<compile_context>
chip_gen: v7x
topology: tpu7x:2x2x1
jax: 0.10.0
libtpu: 0.0.40
codegen_flags: <defaults>
</compile_context>

<pallas_src>
import jax
import jax.numpy as jnp
from jax import lax
from jax.experimental import pallas as pl
from jax.experimental.pallas import tpu as pltpu

# ----------------------------- config ---------------------------------------
LATENT = 32          # shape.latent_size
HID_LAT = 32         # hidden width of the latent MLP
HID_BSDF = 32        # hidden width of the BSDF MLP
FEAT_IN = 3 + 3 + 3 + 3 + LATENT   # [pts, view, normal, light_dir, latent] = 44
SPHERE_TRACE_STEPS = 32
HIT_EPS = 1e-3

TILE = 4096          # rays per grid step (multiple of 1024)
LSUB = TILE // 8     # lane extent of the sublane-packed trace scalars (mult of 128)

# --- parameter slab layout: one (32, 128) bf16 tile holding every weight/bias ---
SLAB_ROWS = 32
SLAB_COLS = 128
C_W1 = 0        # (32, 3)   latent-MLP layer-1 (input = pts)          cols [0, 3)
C_WGEO = 3      # (32, 12)  BSDF layer-1 for [pts, view, nrm, ldir]   cols [3, 15)
C_WFOLD = 15    # (32, 32)  wb1_lat @ w2t (latent layer-2 folded in)  cols [15, 47)
C_WB2 = 47      # rows 0:3  (3, 32) BSDF layer-2                      cols [47, 79)
C_B1 = 79       # (32,) latent-MLP bias 1
C_BB1 = 80      # (32,) folded BSDF bias 1  (= bb1 + wb1_lat @ b2)
C_BB2 = 81      # rows 0:3  BSDF bias 2
C_LP = 82       # rows 0:3  light position
C_LI = 83       # rows 0:3  light intensity


# ----------------------------- kernel ---------------------------------------
def _mm(a, b):
    # bf16 MXU operands, f32 accumulation.
    return jnp.dot(a.astype(jnp.bfloat16), b.astype(jnp.bfloat16),
                   preferred_element_type=jnp.float32)


def _direct_kernel(rays_ref, b_ref, c_ref, slab_ref, out_ref):
    rays = rays_ref[...]                       # (6, TILE)  f32, ray index on lanes
    slab = slab_ref[...]                       # (32, 128)  bf16 parameter slab

    r_o = rays[0:3, :]                         # (3, TILE)
    r_d = rays[3:6, :]                         # (3, TILE)

    # ---- shape.intersect_w_n : sphere trace on sublane-DENSE (8, LSUB) vregs ---
    # sdf(o + t d) = sqrt(c + 2 b t + t^2 + eps) - 1 ; b, c precomputed in wrapper.
    b_pk = b_ref[...]                          # (8, LSUB)  <o, d>
    c_pk = c_ref[...]                          # (8, LSUB)  <o, o>
    two_b = 2.0 * b_pk
    c_eps = c_pk + 1e-12

    def trace_step(_, t):
        return t + jnp.sqrt(c_eps + (two_b + t) * t) - 1.0

    t_pk = lax.fori_loop(0, SPHERE_TRACE_STEPS, trace_step,
                         jnp.zeros_like(b_pk), unroll=True)

    # Packed (8, LSUB) -> lane-major (1, TILE): ray (s, l) -> lane s*LSUB + l.
    t = jnp.concatenate([t_pk[s:s + 1, :] for s in range(8)], axis=1)  # (1, TILE)

    pts = r_o + t * r_d                        # (3, TILE)
    pp = pts * pts
    p2 = pp[0:1] + pp[1:2] + pp[2:3]           # (1, TILE)
    d_final = jnp.sqrt(p2 + 1e-12) - 1.0       # final SDF value
    hits = jnp.abs(d_final) < HIT_EPS          # (1, TILE) bool
    tput = jax.nn.sigmoid(-50.0 * d_final)     # throughput proxy (1, TILE)
    normal = pts * lax.rsqrt(p2 + 1e-12)       # (3, TILE)

    # ---- occ(pts, light) : single point light, hard N.L visibility -------------
    lp = slab[0:3, C_LP:C_LP + 1].astype(jnp.float32)    # (3, 1)
    li = slab[0:3, C_LI:C_LI + 1].astype(jnp.float32)    # (3, 1)
    to_light = lp - pts                        # (3, TILE)
    tl2 = to_light * to_light
    dist2 = tl2[0:1] + tl2[1:2] + tl2[2:3]     # (1, TILE)
    light_dir = to_light * lax.rsqrt(dist2 + 1e-12)
    ndl = normal * light_dir
    n_dot_l = ndl[0:1] + ndl[1:2] + ndl[2:3]
    vis = (n_dot_l > 0.0).astype(jnp.float32)
    inv_d2 = pl.reciprocal(dist2 + 1e-12, approx=True)   # EUP, not a VALU divide
    light_val = li * (vis * inv_d2)            # (3, TILE)

    # ---- shape.from_pts latent MLP + refl BSDF MLP (w2 folded into layer 1) ----
    w1t = slab[:, C_W1:C_W1 + 3]               # (32, 3)  bf16
    b1 = slab[:, C_B1:C_B1 + 1].astype(jnp.float32)      # (32, 1)
    h = jnp.maximum(_mm(w1t, pts) + b1, 0.0)   # (HID_LAT, TILE)

    # One fused K=12 matmul for the geometric features + one K=32 for the
    # folded latent path (was 5 partial matmuls + a separate latent matmul).
    geo = jnp.concatenate([pts, r_d, normal, light_dir], axis=0)   # (12, TILE)
    wgeo = slab[:, C_WGEO:C_WGEO + 12]         # (32, 12) bf16
    wfold = slab[:, C_WFOLD:C_WFOLD + HID_LAT] # (32, 32) bf16
    bb1 = slab[:, C_BB1:C_BB1 + 1].astype(jnp.float32)   # (32, 1)
    hb = jnp.maximum(_mm(wgeo, geo) + _mm(wfold, h) + bb1, 0.0)    # (HID_BSDF, TILE)

    wb2t = slab[0:3, C_WB2:C_WB2 + HID_BSDF]   # (3, 32) bf16
    bb2 = slab[0:3, C_BB2:C_BB2 + 1].astype(jnp.float32) # (3, 1)
    bsdf = jax.nn.sigmoid(_mm(wb2t, hb) + bb2) # (3, TILE)

    # out[hits] = bsdf * light_val ; elsewhere zero. training=True -> + throughput.
    rgb = jnp.where(hits, bsdf * light_val, 0.0)
    out_ref[0:3, :] = rgb                      # lane-dense sub-store
    out_ref[3:4, :] = tput


# ----------------------------- wrapper ---------------------------------------
@jax.jit
def direct_render(rays_soa, param_slab):
    """rays_soa: (6, N) f32 SoA -> (4, N) f32 channel-major (rgb + throughput)."""
    C, n = rays_soa.shape
    assert C == 6
    n_pad = pl.cdiv(n, TILE) * TILE
    if n_pad != n:
        # Padded rays (zeros) stay finite through the whole pipeline and are
        # sliced off below.
        rays_soa = jnp.pad(rays_soa, ((0, 0), (0, n_pad - n)))

    # Precompute <o,d> and <o,o> and ship them sublane-packed: (grid*8, LSUB),
    # so the serial sphere-trace loop runs on fully dense vregs.
    r_o = rays_soa[0:3]
    r_d = rays_soa[3:6]
    b = jnp.sum(r_o * r_d, axis=0)             # (n_pad,)
    c = jnp.sum(r_o * r_o, axis=0)             # (n_pad,)
    grid = n_pad // TILE
    b_pk = b.reshape(grid * 8, LSUB)
    c_pk = c.reshape(grid * 8, LSUB)

    grid_spec = pltpu.PrefetchScalarGridSpec(
        num_scalar_prefetch=0,
        grid=(grid,),
        in_specs=[
            pl.BlockSpec((6, TILE), lambda i: (0, i)),                # rays (SoA)
            pl.BlockSpec((8, LSUB), lambda i: (i, 0)),                # <o,d> packed
            pl.BlockSpec((8, LSUB), lambda i: (i, 0)),                # <o,o> packed
            pl.BlockSpec((SLAB_ROWS, SLAB_COLS), lambda i: (0, 0)),   # param slab
        ],
        out_specs=pl.BlockSpec((4, TILE), lambda i: (0, i)),
    )

    out = pl.pallas_call(
        _direct_kernel,
        out_shape=jax.ShapeDtypeStruct((4, n_pad), jnp.float32),
        grid_spec=grid_spec,
        compiler_params=pltpu.CompilerParams(
            dimension_semantics=("parallel",),
            vmem_limit_bytes=32 * 1024 * 1024),
    )(rays_soa, b_pk, c_pk, param_slab)

    return out[:, :n]


def make_params(key):
    """Build the single (32, 128) bf16 parameter slab (latent layer-2 folded)."""
    ks = jax.random.split(key, 4)
    scale = 0.5
    w1 = scale * jax.random.normal(ks[0], (3, HID_LAT), jnp.float32)
    w2 = scale * jax.random.normal(ks[1], (HID_LAT, LATENT), jnp.float32)
    wb1 = scale * jax.random.normal(ks[2], (FEAT_IN, HID_BSDF), jnp.float32)
    wb2 = scale * jax.random.normal(ks[3], (HID_BSDF, 3), jnp.float32)
    b1 = jnp.zeros((HID_LAT,), jnp.float32)
    b2 = jnp.zeros((LATENT,), jnp.float32)
    bb1 = jnp.zeros((HID_BSDF,), jnp.float32)
    bb2 = jnp.zeros((3,), jnp.float32)
    light_pos = jnp.array([2.0, 2.0, -2.0], jnp.float32)
    light_int = jnp.array([10.0, 9.0, 8.0], jnp.float32)

    w1t = w1.T                                 # (32, 3)
    w2t = w2.T                                 # (LATENT, HID_LAT)
    wb1t = wb1.T                               # (32, 44)
    wgeo = wb1t[:, 0:12]                       # (32, 12)  [pts, view, nrm, ldir]
    wb1_lat = wb1t[:, 12:12 + LATENT]          # (32, 32)
    wfold = wb1_lat @ w2t                      # exact fold (linear, no activation)
    bb1_fold = bb1 + wb1_lat @ b2
    wb2t = wb2.T                               # (3, 32)

    slab = jnp.zeros((SLAB_ROWS, SLAB_COLS), jnp.float32)
    slab = slab.at[:, C_W1:C_W1 + 3].set(w1t)
    slab = slab.at[:, C_WGEO:C_WGEO + 12].set(wgeo)
    slab = slab.at[:, C_WFOLD:C_WFOLD + HID_LAT].set(wfold)
    slab = slab.at[0:3, C_WB2:C_WB2 + HID_BSDF].set(wb2t)
    slab = slab.at[:, C_B1].set(b1)
    slab = slab.at[:, C_BB1].set(bb1_fold)
    slab = slab.at[0:3, C_BB2].set(bb2)
    slab = slab.at[0:3, C_LP].set(light_pos)
    slab = slab.at[0:3, C_LI].set(light_int)
    return slab.astype(jnp.bfloat16)


# ----------------------------- main ------------------------------------------
if __name__ == "__main__":
    key = jax.random.PRNGKey(0)
    k_rays, k_par = jax.random.split(key)

    # Small example: B=2 images, R=4096 rays each -> 8192 rays, 2 grid steps
    # (grid >= 2 keeps both v7x TensorCores busy on the "parallel" axis).
    B, R = 2, 4096
    n = B * R
    # camera at z = -3 looking toward the unit sphere at the origin, SoA layout
    r_o = jnp.broadcast_to(jnp.array([[0.0], [0.0], [-3.0]], jnp.float32), (3, n))
    jitter = 0.4 * jax.random.normal(k_rays, (3, n), jnp.float32)
    r_d = jnp.array([[0.0], [0.0], [1.0]], jnp.float32) + jitter
    r_d = r_d / jnp.linalg.norm(r_d, axis=0, keepdims=True)
    rays = jnp.concatenate([r_o, r_d], axis=0)             # (6, n) SoA

    param_slab = make_params(k_par)

    out = direct_render(rays, param_slab)                   # (4, n) channel-major
    out = jax.block_until_ready(out)
    assert out.shape == (4, n) and out.dtype == jnp.float32
    assert bool(jnp.all(jnp.isfinite(out)))
    print("KERNEL_OK")
</pallas_src>

<mosaic_0001>
module attributes {stable_mosaic.version = 11 : i64} {
  func.func @_direct_kernel(%arg0: i32, %arg1: memref<6x4096xf32, #tpu.memory_space<vmem>>, %arg2: memref<8x512xf32, #tpu.memory_space<vmem>>, %arg3: memref<8x512xf32, #tpu.memory_space<vmem>>, %arg4: memref<32x128xbf16, #tpu.memory_space<vmem>>, %arg5: memref<4x4096xf32, #tpu.memory_space<vmem>>) attributes {dimension_semantics = [#tpu.dimension_semantics<parallel>], iteration_bounds = array<i64: 2>, scalar_prefetch = 0 : i64, scratch_operands = 0 : i64, tpu.core_type = #tpu.core_type<tc>, window_params = [{transform_indices = @transform_0, window_bounds = array<i64: 6, 4096>}, {transform_indices = @transform_1, window_bounds = array<i64: 8, 512>}, {transform_indices = @transform_2, window_bounds = array<i64: 8, 512>}, {pipeline_mode = #tpu.pipeline_mode<synchronous>, transform_indices = @transform_3, window_bounds = array<i64: 32, 128>}, {transform_indices = @transform_4, window_bounds = array<i64: 4, 4096>}]} {
    %c0 = arith.constant 0 : index
    %c0_0 = arith.constant 0 : index
    %0 = vector.load %arg1[%c0, %c0_0] : memref<6x4096xf32, #tpu.memory_space<vmem>>, vector<6x4096xf32>
    %c0_1 = arith.constant 0 : index
    %c0_2 = arith.constant 0 : index
    %1 = vector.load %arg4[%c0_1, %c0_2] : memref<32x128xbf16, #tpu.memory_space<vmem>>, vector<32x128xbf16>
    %2 = vector.extract_strided_slice %0 {offsets = [0, 0], sizes = [3, 4096], strides = [1, 1]} : vector<6x4096xf32> to vector<3x4096xf32>
    %3 = vector.extract_strided_slice %0 {offsets = [3, 0], sizes = [3, 4096], strides = [1, 1]} : vector<6x4096xf32> to vector<3x4096xf32>
    %c0_3 = arith.constant 0 : index
    %c0_4 = arith.constant 0 : index
    %4 = vector.load %arg2[%c0_3, %c0_4] : memref<8x512xf32, #tpu.memory_space<vmem>>, vector<8x512xf32>
    %c0_5 = arith.constant 0 : index
    %c0_6 = arith.constant 0 : index
    %5 = vector.load %arg3[%c0_5, %c0_6] : memref<8x512xf32, #tpu.memory_space<vmem>>, vector<8x512xf32>
    %cst = arith.constant 2.000000e+00 : f32
    %6 = vector.broadcast %cst : f32 to vector<8x512xf32>
    %7 = arith.mulf %6, %4 : vector<8x512xf32>
    %cst_7 = arith.constant 9.99999996E-13 : f32
    %8 = vector.broadcast %cst_7 : f32 to vector<8x512xf32>
    %9 = arith.addf %5, %8 : vector<8x512xf32>
    %cst_8 = arith.constant 0.000000e+00 : f32
    %10 = vector.broadcast %cst_8 : f32 to vector<8x512xf32>
    %c0_i32 = arith.constant 0 : i32
    %11 = arith.addf %7, %10 : vector<8x512xf32>
    %12 = arith.mulf %11, %10 : vector<8x512xf32>
    %13 = arith.addf %9, %12 : vector<8x512xf32>
    %14 = math.sqrt %13 : vector<8x512xf32>
    %15 = arith.addf %10, %14 : vector<8x512xf32>
    %cst_9 = arith.constant 1.000000e+00 : f32
    %16 = vector.broadcast %cst_9 : f32 to vector<8x512xf32>
    %17 = arith.subf %15, %16 : vector<8x512xf32>
    %c1_i32 = arith.constant 1 : i32
    %18 = arith.addf %7, %17 : vector<8x512xf32>
    %19 = arith.mulf %18, %17 : vector<8x512xf32>
    %20 = arith.addf %9, %19 : vector<8x512xf32>
    %21 = math.sqrt %20 : vector<8x512xf32>
    %22 = arith.addf %17, %21 : vector<8x512xf32>
    %cst_10 = arith.constant 1.000000e+00 : f32
    %23 = vector.broadcast %cst_10 : f32 to vector<8x512xf32>
    %24 = arith.subf %22, %23 : vector<8x512xf32>
    %c2_i32 = arith.constant 2 : i32
    %25 = arith.addf %7, %24 : vector<8x512xf32>
    %26 = arith.mulf %25, %24 : vector<8x512xf32>
    %27 = arith.addf %9, %26 : vector<8x512xf32>
    %28 = math.sqrt %27 : vector<8x512xf32>
    %29 = arith.addf %24, %28 : vector<8x512xf32>
    %cst_11 = arith.constant 1.000000e+00 : f32
    %30 = vector.broadcast %cst_11 : f32 to vector<8x512xf32>
    %31 = arith.subf %29, %30 : vector<8x512xf32>
    %c3_i32 = arith.constant 3 : i32
    %32 = arith.addf %7, %31 : vector<8x512xf32>
    %33 = arith.mulf %32, %31 : vector<8x512xf32>
    %34 = arith.addf %9, %33 : vector<8x512xf32>
    %35 = math.sqrt %34 : vector<8x512xf32>
    %36 = arith.addf %31, %35 : vector<8x512xf32>
    %cst_12 = arith.constant 1.000000e+00 : f32
    %37 = vector.broadcast %cst_12 : f32 to vector<8x512xf32>
    %38 = arith.subf %36, %37 : vector<8x512xf32>
    %c4_i32 = arith.constant 4 : i32
    %39 = arith.addf %7, %38 : vector<8x512xf32>
    %40 = arith.mulf %39, %38 : vector<8x512xf32>
    %41 = arith.addf %9, %40 : vector<8x512xf32>
    %42 = math.sqrt %41 : vector<8x512xf32>
    %43 = arith.addf %38, %42 : vector<8x512xf32>
    %cst_13 = arith.constant 1.000000e+00 : f32
    %44 = vector.broadcast %cst_13 : f32 to vector<8x512xf32>
    %45 = arith.subf %43, %44 : vector<8x512xf32>
    %c5_i32 = arith.constant 5 : i32
    %46 = arith.addf %7, %45 : vector<8x512xf32>
    %47 = arith.mulf %46, %45 : vector<8x512xf32>
    %48 = arith.addf %9, %47 : vector<8x512xf32>
    %49 = math.sqrt %48 : vector<8x512xf32>
    %50 = arith.addf %45, %49 : vector<8x512xf32>
    %cst_14 = arith.constant 1.000000e+00 : f32
    %51 = vector.broadcast %cst_14 : f32 to vector<8x512xf32>
    %52 = arith.subf %50, %51 : vector<8x512xf32>
    %c6_i32 = arith.constant 6 : i32
    %53 = arith.addf %7, %52 : vector<8x512xf32>
    %54 = arith.mulf %53, %52 : vector<8x512xf32>
    %55 = arith.addf %9, %54 : vector<8x512xf32>
    %56 = math.sqrt %55 : vector<8x512xf32>
    %57 = arith.addf %52, %56 : vector<8x512xf32>
    %cst_15 = arith.constant 1.000000e+00 : f32
    %58 = vector.broadcast %cst_15 : f32 to vector<8x512xf32>
    %59 = arith.subf %57, %58 : vector<8x512xf32>
    %c7_i32 = arith.constant 7 : i32
    %60 = arith.addf %7, %59 : vector<8x512xf32>
    %61 = arith.mulf %60, %59 : vector<8x512xf32>
    %62 = arith.addf %9, %61 : vector<8x512xf32>
    %63 = math.sqrt %62 : vector<8x512xf32>
    %64 = arith.addf %59, %63 : vector<8x512xf32>
    %cst_16 = arith.constant 1.000000e+00 : f32
    %65 = vector.broadcast %cst_16 : f32 to vector<8x512xf32>
    %66 = arith.subf %64, %65 : vector<8x512xf32>
    %c8_i32 = arith.constant 8 : i32
    %67 = arith.addf %7, %66 : vector<8x512xf32>
    %68 = arith.mulf %67, %66 : vector<8x512xf32>
    %69 = arith.addf %9, %68 : vector<8x512xf32>
    %70 = math.sqrt %69 : vector<8x512xf32>
    %71 = arith.addf %66, %70 : vector<8x512xf32>
    %cst_17 = arith.constant 1.000000e+00 : f32
    %72 = vector.broadcast %cst_17 : f32 to vector<8x512xf32>
    %73 = arith.subf %71, %72 : vector<8x512xf32>
    %c9_i32 = arith.constant 9 : i32
    %74 = arith.addf %7, %73 : vector<8x512xf32>
    %75 = arith.mulf %74, %73 : vector<8x512xf32>
    %76 = arith.addf %9, %75 : vector<8x512xf32>
    %77 = math.sqrt %76 : vector<8x512xf32>
    %78 = arith.addf %73, %77 : vector<8x512xf32>
    %cst_18 = arith.constant 1.000000e+00 : f32
    %79 = vector.broadcast %cst_18 : f32 to vector<8x512xf32>
    %80 = arith.subf %78, %79 : vector<8x512xf32>
    %c10_i32 = arith.constant 10 : i32
    %81 = arith.addf %7, %80 : vector<8x512xf32>
    %82 = arith.mulf %81, %80 : vector<8x512xf32>
    %83 = arith.addf %9, %82 : vector<8x512xf32>
    %84 = math.sqrt %83 : vector<8x512xf32>
    %85 = arith.addf %80, %84 : vector<8x512xf32>
    %cst_19 = arith.constant 1.000000e+00 : f32
    %86 = vector.broadcast %cst_19 : f32 to vector<8x512xf32>
    %87 = arith.subf %85, %86 : vector<8x512xf32>
    %c11_i32 = arith.constant 11 : i32
    %88 = arith.addf %7, %87 : vector<8x512xf32>
    %89 = arith.mulf %88, %87 : vector<8x512xf32>
    %90 = arith.addf %9, %89 : vector<8x512xf32>
    %91 = math.sqrt %90 : vector<8x512xf32>
    %92 = arith.addf %87, %91 : vector<8x512xf32>
    %cst_20 = arith.constant 1.000000e+00 : f32
    %93 = vector.broadcast %cst_20 : f32 to vector<8x512xf32>
    %94 = arith.subf %92, %93 : vector<8x512xf32>
    %c12_i32 = arith.constant 12 : i32
    %95 = arith.addf %7, %94 : vector<8x512xf32>
    %96 = arith.mulf %95, %94 : vector<8x512xf32>
    %97 = arith.addf %9, %96 : vector<8x512xf32>
    %98 = math.sqrt %97 : vector<8x512xf32>
    %99 = arith.addf %94, %98 : vector<8x512xf32>
    %cst_21 = arith.constant 1.000000e+00 : f32
    %100 = vector.broadcast %cst_21 : f32 to vector<8x512xf32>
    %101 = arith.subf %99, %100 : vector<8x512xf32>
    %c13_i32 = arith.constant 13 : i32
    %102 = arith.addf %7, %101 : vector<8x512xf32>
    %103 = arith.mulf %102, %101 : vector<8x512xf32>
    %104 = arith.addf %9, %103 : vector<8x512xf32>
    %105 = math.sqrt %104 : vector<8x512xf32>
    %106 = arith.addf %101, %105 : vector<8x512xf32>
    %cst_22 = arith.constant 1.000000e+00 : f32
    %107 = vector.broadcast %cst_22 : f32 to vector<8x512xf32>
    %108 = arith.subf %106, %107 : vector<8x512xf32>
    %c14_i32 = arith.constant 14 : i32
    %109 = arith.addf %7, %108 : vector<8x512xf32>
    %110 = arith.mulf %109, %108 : vector<8x512xf32>
    %111 = arith.addf %9, %110 : vector<8x512xf32>
    %112 = math.sqrt %111 : vector<8x512xf32>
    %113 = arith.addf %108, %112 : vector<8x512xf32>
    %cst_23 = arith.constant 1.000000e+00 : f32
    %114 = vector.broadcast %cst_23 : f32 to vector<8x512xf32>
    %115 = arith.subf %113, %114 : vector<8x512xf32>
    %c15_i32 = arith.constant 15 : i32
    %116 = arith.addf %7, %115 : vector<8x512xf32>
    %117 = arith.mulf %116, %115 : vector<8x512xf32>
    %118 = arith.addf %9, %117 : vector<8x512xf32>
    %119 = math.sqrt %118 : vector<8x512xf32>
    %120 = arith.addf %115, %119 : vector<8x512xf32>
    %cst_24 = arith.constant 1.000000e+00 : f32
    %121 = vector.broadcast %cst_24 : f32 to vector<8x512xf32>
    %122 = arith.subf %120, %121 : vector<8x512xf32>
    %c16_i32 = arith.constant 16 : i32
    %123 = arith.addf %7, %122 : vector<8x512xf32>
    %124 = arith.mulf %123, %122 : vector<8x512xf32>
    %125 = arith.addf %9, %124 : vector<8x512xf32>
    %126 = math.sqrt %125 : vector<8x512xf32>
    %127 = arith.addf %122, %126 : vector<8x512xf32>
    %cst_25 = arith.constant 1.000000e+00 : f32
    %128 = vector.broadcast %cst_25 : f32 to vector<8x512xf32>
    %129 = arith.subf %127, %128 : vector<8x512xf32>
    %c17_i32 = arith.constant 17 : i32
    %130 = arith.addf %7, %129 : vector<8x512xf32>
    %131 = arith.mulf %130, %129 : vector<8x512xf32>
    %132 = arith.addf %9, %131 : vector<8x512xf32>
    %133 = math.sqrt %132 : vector<8x512xf32>
    %134 = arith.addf %129, %133 : vector<8x512xf32>
    %cst_26 = arith.constant 1.000000e+00 : f32
    %135 = vector.broadcast %cst_26 : f32 to vector<8x512xf32>
    %136 = arith.subf %134, %135 : vector<8x512xf32>
    %c18_i32 = arith.constant 18 : i32
    %137 = arith.addf %7, %136 : vector<8x512xf32>
    %138 = arith.mulf %137, %136 : vector<8x512xf32>
    %139 = arith.addf %9, %138 : vector<8x512xf32>
    %140 = math.sqrt %139 : vector<8x512xf32>
    %141 = arith.addf %136, %140 : vector<8x512xf32>
    %cst_27 = arith.constant 1.000000e+00 : f32
    %142 = vector.broadcast %cst_27 : f32 to vector<8x512xf32>
    %143 = arith.subf %141, %142 : vector<8x512xf32>
    %c19_i32 = arith.constant 19 : i32
    %144 = arith.addf %7, %143 : vector<8x512xf32>
    %145 = arith.mulf %144, %143 : vector<8x512xf32>
    %146 = arith.addf %9, %145 : vector<8x512xf32>
    %147 = math.sqrt %146 : vector<8x512xf32>
    %148 = arith.addf %143, %147 : vector<8x512xf32>
    %cst_28 = arith.constant 1.000000e+00 : f32
    %149 = vector.broadcast %cst_28 : f32 to vector<8x512xf32>
    %150 = arith.subf %148, %149 : vector<8x512xf32>
    %c20_i32 = arith.constant 20 : i32
    %151 = arith.addf %7, %150 : vector<8x512xf32>
    %152 = arith.mulf %151, %150 : vector<8x512xf32>
    %153 = arith.addf %9, %152 : vector<8x512xf32>
    %154 = math.sqrt %153 : vector<8x512xf32>
    %155 = arith.addf %150, %154 : vector<8x512xf32>
    %cst_29 = arith.constant 1.000000e+00 : f32
    %156 = vector.broadcast %cst_29 : f32 to vector<8x512xf32>
    %157 = arith.subf %155, %156 : vector<8x512xf32>
    %c21_i32 = arith.constant 21 : i32
    %158 = arith.addf %7, %157 : vector<8x512xf32>
    %159 = arith.mulf %158, %157 : vector<8x512xf32>
    %160 = arith.addf %9, %159 : vector<8x512xf32>
    %161 = math.sqrt %160 : vector<8x512xf32>
    %162 = arith.addf %157, %161 : vector<8x512xf32>
    %cst_30 = arith.constant 1.000000e+00 : f32
    %163 = vector.broadcast %cst_30 : f32 to vector<8x512xf32>
    %164 = arith.subf %162, %163 : vector<8x512xf32>
    %c22_i32 = arith.constant 22 : i32
    %165 = arith.addf %7, %164 : vector<8x512xf32>
    %166 = arith.mulf %165, %164 : vector<8x512xf32>
    %167 = arith.addf %9, %166 : vector<8x512xf32>
    %168 = math.sqrt %167 : vector<8x512xf32>
    %169 = arith.addf %164, %168 : vector<8x512xf32>
    %cst_31 = arith.constant 1.000000e+00 : f32
    %170 = vector.broadcast %cst_31 : f32 to vector<8x512xf32>
    %171 = arith.subf %169, %170 : vector<8x512xf32>
    %c23_i32 = arith.constant 23 : i32
    %172 = arith.addf %7, %171 : vector<8x512xf32>
    %173 = arith.mulf %172, %171 : vector<8x512xf32>
    %174 = arith.addf %9, %173 : vector<8x512xf32>
    %175 = math.sqrt %174 : vector<8x512xf32>
    %176 = arith.addf %171, %175 : vector<8x512xf32>
    %cst_32 = arith.constant 1.000000e+00 : f32
    %177 = vector.broadcast %cst_32 : f32 to vector<8x512xf32>
    %178 = arith.subf %176, %177 : vector<8x512xf32>
    %c24_i32 = arith.constant 24 : i32
    %179 = arith.addf %7, %178 : vector<8x512xf32>
    %180 = arith.mulf %179, %178 : vector<8x512xf32>
    %181 = arith.addf %9, %180 : vector<8x512xf32>
    %182 = math.sqrt %181 : vector<8x512xf32>
    %183 = arith.addf %178, %182 : vector<8x512xf32>
    %cst_33 = arith.constant 1.000000e+00 : f32
    %184 = vector.broadcast %cst_33 : f32 to vector<8x512xf32>
    %185 = arith.subf %183, %184 : vector<8x512xf32>
    %c25_i32 = arith.constant 25 : i32
    %186 = arith.addf %7, %185 : vector<8x512xf32>
    %187 = arith.mulf %186, %185 : vector<8x512xf32>
    %188 = arith.addf %9, %187 : vector<8x512xf32>
    %189 = math.sqrt %188 : vector<8x512xf32>
    %190 = arith.addf %185, %189 : vector<8x512xf32>
    %cst_34 = arith.constant 1.000000e+00 : f32
    %191 = vector.broadcast %cst_34 : f32 to vector<8x512xf32>
    %192 = arith.subf %190, %191 : vector<8x512xf32>
    %c26_i32 = arith.constant 26 : i32
    %193 = arith.addf %7, %192 : vector<8x512xf32>
    %194 = arith.mulf %193, %192 : vector<8x512xf32>
    %195 = arith.addf %9, %194 : vector<8x512xf32>
    %196 = math.sqrt %195 : vector<8x512xf32>
    %197 = arith.addf %192, %196 : vector<8x512xf32>
    %cst_35 = arith.constant 1.000000e+00 : f32
    %198 = vector.broadcast %cst_35 : f32 to vector<8x512xf32>
    %199 = arith.subf %197, %198 : vector<8x512xf32>
    %c27_i32 = arith.constant 27 : i32
    %200 = arith.addf %7, %199 : vector<8x512xf32>
    %201 = arith.mulf %200, %199 : vector<8x512xf32>
    %202 = arith.addf %9, %201 : vector<8x512xf32>
    %203 = math.sqrt %202 : vector<8x512xf32>
    %204 = arith.addf %199, %203 : vector<8x512xf32>
    %cst_36 = arith.constant 1.000000e+00 : f32
    %205 = vector.broadcast %cst_36 : f32 to vector<8x512xf32>
    %206 = arith.subf %204, %205 : vector<8x512xf32>
    %c28_i32 = arith.constant 28 : i32
    %207 = arith.addf %7, %206 : vector<8x512xf32>
    %208 = arith.mulf %207, %206 : vector<8x512xf32>
    %209 = arith.addf %9, %208 : vector<8x512xf32>
    %210 = math.sqrt %209 : vector<8x512xf32>
    %211 = arith.addf %206, %210 : vector<8x512xf32>
    %cst_37 = arith.constant 1.000000e+00 : f32
    %212 = vector.broadcast %cst_37 : f32 to vector<8x512xf32>
    %213 = arith.subf %211, %212 : vector<8x512xf32>
    %c29_i32 = arith.constant 29 : i32
    %214 = arith.addf %7, %213 : vector<8x512xf32>
    %215 = arith.mulf %214, %213 : vector<8x512xf32>
    %216 = arith.addf %9, %215 : vector<8x512xf32>
    %217 = math.sqrt %216 : vector<8x512xf32>
    %218 = arith.addf %213, %217 : vector<8x512xf32>
    %cst_38 = arith.constant 1.000000e+00 : f32
    %219 = vector.broadcast %cst_38 : f32 to vector<8x512xf32>
    %220 = arith.subf %218, %219 : vector<8x512xf32>
    %c30_i32 = arith.constant 30 : i32
    %221 = arith.addf %7, %220 : vector<8x512xf32>
    %222 = arith.mulf %221, %220 : vector<8x512xf32>
    %223 = arith.addf %9, %222 : vector<8x512xf32>
    %224 = math.sqrt %223 : vector<8x512xf32>
    %225 = arith.addf %220, %224 : vector<8x512xf32>
    %cst_39 = arith.constant 1.000000e+00 : f32
    %226 = vector.broadcast %cst_39 : f32 to vector<8x512xf32>
    %227 = arith.subf %225, %226 : vector<8x512xf32>
    %c31_i32 = arith.constant 31 : i32
    %228 = arith.addf %7, %227 : vector<8x512xf32>
    %229 = arith.mulf %228, %227 : vector<8x512xf32>
    %230 = arith.addf %9, %229 : vector<8x512xf32>
    %231 = math.sqrt %230 : vector<8x512xf32>
    %232 = arith.addf %227, %231 : vector<8x512xf32>
    %cst_40 = arith.constant 1.000000e+00 : f32
    %233 = vector.broadcast %cst_40 : f32 to vector<8x512xf32>
    %234 = arith.subf %232, %233 : vector<8x512xf32>
    %235 = vector.extract_strided_slice %234 {offsets = [0, 0], sizes = [1, 512], strides = [1, 1]} : vector<8x512xf32> to vector<1x512xf32>
    %236 = vector.extract_strided_slice %234 {offsets = [1, 0], sizes = [1, 512], strides = [1, 1]} : vector<8x512xf32> to vector<1x512xf32>
    %237 = vector.extract_strided_slice %234 {offsets = [2, 0], sizes = [1, 512], strides = [1, 1]} : vector<8x512xf32> to vector<1x512xf32>
    %238 = vector.extract_strided_slice %234 {offsets = [3, 0], sizes = [1, 512], strides = [1, 1]} : vector<8x512xf32> to vector<1x512xf32>
    %239 = vector.extract_strided_slice %234 {offsets = [4, 0], sizes = [1, 512], strides = [1, 1]} : vector<8x512xf32> to vector<1x512xf32>
    %240 = vector.extract_strided_slice %234 {offsets = [5, 0], sizes = [1, 512], strides = [1, 1]} : vector<8x512xf32> to vector<1x512xf32>
    %241 = vector.extract_strided_slice %234 {offsets = [6, 0], sizes = [1, 512], strides = [1, 1]} : vector<8x512xf32> to vector<1x512xf32>
    %242 = vector.extract_strided_slice %234 {offsets = [7, 0], sizes = [1, 512], strides = [1, 1]} : vector<8x512xf32> to vector<1x512xf32>
    %243 = tpu.concatenate %235, %236, %237, %238, %239, %240, %241, %242 in 1 : vector<1x512xf32>, vector<1x512xf32>, vector<1x512xf32>, vector<1x512xf32>, vector<1x512xf32>, vector<1x512xf32>, vector<1x512xf32>, vector<1x512xf32> -> vector<1x4096xf32>
    %244 = vector.broadcast %243 : vector<1x4096xf32> to vector<3x4096xf32>
    %245 = arith.mulf %244, %3 : vector<3x4096xf32>
    %246 = arith.addf %2, %245 : vector<3x4096xf32>
    %247 = arith.mulf %246, %246 : vector<3x4096xf32>
    %248 = vector.extract_strided_slice %247 {offsets = [0, 0], sizes = [1, 4096], strides = [1, 1]} : vector<3x4096xf32> to vector<1x4096xf32>
    %249 = vector.extract_strided_slice %247 {offsets = [1, 0], sizes = [1, 4096], strides = [1, 1]} : vector<3x4096xf32> to vector<1x4096xf32>
    %250 = arith.addf %248, %249 : vector<1x4096xf32>
    %251 = vector.extract_strided_slice %247 {offsets = [2, 0], sizes = [1, 4096], strides = [1, 1]} : vector<3x4096xf32> to vector<1x4096xf32>
    %252 = arith.addf %250, %251 : vector<1x4096xf32>
    %cst_41 = arith.constant 9.99999996E-13 : f32
    %253 = vector.broadcast %cst_41 : f32 to vector<1x4096xf32>
    %254 = arith.addf %252, %253 : vector<1x4096xf32>
    %255 = math.sqrt %254 : vector<1x4096xf32>
    %cst_42 = arith.constant 1.000000e+00 : f32
    %256 = vector.broadcast %cst_42 : f32 to vector<1x4096xf32>
    %257 = arith.subf %255, %256 : vector<1x4096xf32>
    %258 = math.absf %257 : vector<1x4096xf32>
    %cst_43 = arith.constant 1.000000e-03 : f32
    %259 = vector.broadcast %cst_43 : f32 to vector<1x4096xf32>
    %260 = arith.cmpf olt, %258, %259 : vector<1x4096xf32>
    %cst_44 = arith.constant -5.000000e+01 : f32
    %261 = vector.broadcast %cst_44 : f32 to vector<1x4096xf32>
    %262 = arith.mulf %261, %257 : vector<1x4096xf32>
    %263 = arith.negf %262 : vector<1x4096xf32>
    %264 = math.exp %263 : vector<1x4096xf32>
    %cst_45 = arith.constant 1.000000e+00 : f32
    %265 = vector.broadcast %cst_45 : f32 to vector<1x4096xf32>
    %266 = arith.addf %265, %264 : vector<1x4096xf32>
    %267 = arith.divf %265, %266 : vector<1x4096xf32>
    %cst_46 = arith.constant 9.99999996E-13 : f32
    %268 = vector.broadcast %cst_46 : f32 to vector<1x4096xf32>
    %269 = arith.addf %252, %268 : vector<1x4096xf32>
    %270 = math.rsqrt %269 : vector<1x4096xf32>
    %271 = vector.broadcast %270 : vector<1x4096xf32> to vector<3x4096xf32>
    %272 = arith.mulf %246, %271 : vector<3x4096xf32>
    %273 = vector.extract_strided_slice %1 {offsets = [0, 82], sizes = [3, 1], strides = [1, 1]} : vector<32x128xbf16> to vector<3x1xbf16>
    %274 = arith.extf %273 : vector<3x1xbf16> to vector<3x1xf32>
    %275 = vector.extract_strided_slice %1 {offsets = [0, 83], sizes = [3, 1], strides = [1, 1]} : vector<32x128xbf16> to vector<3x1xbf16>
    %276 = arith.extf %275 : vector<3x1xbf16> to vector<3x1xf32>
    %277 = vector.broadcast %274 : vector<3x1xf32> to vector<3x4096xf32>
    %278 = arith.subf %277, %246 : vector<3x4096xf32>
    %279 = arith.mulf %278, %278 : vector<3x4096xf32>
    %280 = vector.extract_strided_slice %279 {offsets = [0, 0], sizes = [1, 4096], strides = [1, 1]} : vector<3x4096xf32> to vector<1x4096xf32>
    %281 = vector.extract_strided_slice %279 {offsets = [1, 0], sizes = [1, 4096], strides = [1, 1]} : vector<3x4096xf32> to vector<1x4096xf32>
    %282 = arith.addf %280, %281 : vector<1x4096xf32>
    %283 = vector.extract_strided_slice %279 {offsets = [2, 0], sizes = [1, 4096], strides = [1, 1]} : vector<3x4096xf32> to vector<1x4096xf32>
    %284 = arith.addf %282, %283 : vector<1x4096xf32>
    %cst_47 = arith.constant 9.99999996E-13 : f32
    %285 = vector.broadcast %cst_47 : f32 to vector<1x4096xf32>
    %286 = arith.addf %284, %285 : vector<1x4096xf32>
    %287 = math.rsqrt %286 : vector<1x4096xf32>
    %288 = vector.broadcast %287 : vector<1x4096xf32> to vector<3x4096xf32>
    %289 = arith.mulf %278, %288 : vector<3x4096xf32>
    %290 = arith.mulf %272, %289 : vector<3x4096xf32>
    %291 = vector.extract_strided_slice %290 {offsets = [0, 0], sizes = [1, 4096], strides = [1, 1]} : vector<3x4096xf32> to vector<1x4096xf32>
    %292 = vector.extract_strided_slice %290 {offsets = [1, 0], sizes = [1, 4096], strides = [1, 1]} : vector<3x4096xf32> to vector<1x4096xf32>
    %293 = arith.addf %291, %292 : vector<1x4096xf32>
    %294 = vector.extract_strided_slice %290 {offsets = [2, 0], sizes = [1, 4096], strides = [1, 1]} : vector<3x4096xf32> to vector<1x4096xf32>
    %295 = arith.addf %293, %294 : vector<1x4096xf32>
    %cst_48 = arith.constant 0.000000e+00 : f32
    %296 = vector.broadcast %cst_48 : f32 to vector<1x4096xf32>
    %297 = arith.cmpf ogt, %295, %296 : vector<1x4096xf32>
    %298 = arith.extui %297 : vector<1x4096xi1> to vector<1x4096xi32>
    %299 = arith.sitofp %298 : vector<1x4096xi32> to vector<1x4096xf32>
    %cst_49 = arith.constant 9.99999996E-13 : f32
    %300 = vector.broadcast %cst_49 : f32 to vector<1x4096xf32>
    %301 = arith.addf %284, %300 : vector<1x4096xf32>
    %302 = tpu.reciprocal %301 {approx = true} : vector<1x4096xf32> -> vector<1x4096xf32>
    %303 = arith.mulf %299, %302 : vector<1x4096xf32>
    %304 = vector.broadcast %276 : vector<3x1xf32> to vector<3x4096xf32>
    %305 = vector.broadcast %303 : vector<1x4096xf32> to vector<3x4096xf32>
    %306 = arith.mulf %304, %305 : vector<3x4096xf32>
    %307 = vector.extract_strided_slice %1 {offsets = [0, 0], sizes = [32, 3], strides = [1, 1]} : vector<32x128xbf16> to vector<32x3xbf16>
    %308 = vector.extract_strided_slice %1 {offsets = [0, 79], sizes = [32, 1], strides = [1, 1]} : vector<32x128xbf16> to vector<32x1xbf16>
    %309 = arith.extf %308 : vector<32x1xbf16> to vector<32x1xf32>
    %310 = arith.truncf %246 : vector<3x4096xf32> to vector<3x4096xbf16>
    %cst_50 = arith.constant dense<0.000000e+00> : vector<32x4096xf32>
    %311 = tpu.matmul %307, %310, %cst_50 {dimension_numbers = #tpu.dot_dimension_numbers<[1], [0], [0], [1], [0, 0, 1, 1], [], []>} : vector<32x3xbf16>, vector<3x4096xbf16>, vector<32x4096xf32> -> vector<32x4096xf32>
    %312 = vector.broadcast %309 : vector<32x1xf32> to vector<32x4096xf32>
    %313 = arith.addf %311, %312 : vector<32x4096xf32>
    %cst_51 = arith.constant 0.000000e+00 : f32
    %314 = vector.broadcast %cst_51 : f32 to vector<32x4096xf32>
    %315 = arith.maximumf %313, %314 : vector<32x4096xf32>
    %316 = tpu.concatenate %246, %3, %272, %289 in 0 : vector<3x4096xf32>, vector<3x4096xf32>, vector<3x4096xf32>, vector<3x4096xf32> -> vector<12x4096xf32>
    %317 = vector.extract_strided_slice %1 {offsets = [0, 3], sizes = [32, 12], strides = [1, 1]} : vector<32x128xbf16> to vector<32x12xbf16>
    %318 = vector.extract_strided_slice %1 {offsets = [0, 15], sizes = [32, 32], strides = [1, 1]} : vector<32x128xbf16> to vector<32x32xbf16>
    %319 = vector.extract_strided_slice %1 {offsets = [0, 80], sizes = [32, 1], strides = [1, 1]} : vector<32x128xbf16> to vector<32x1xbf16>
    %320 = arith.extf %319 : vector<32x1xbf16> to vector<32x1xf32>
    %321 = arith.truncf %316 : vector<12x4096xf32> to vector<12x4096xbf16>
    %cst_52 = arith.constant dense<0.000000e+00> : vector<32x4096xf32>
    %322 = tpu.matmul %317, %321, %cst_52 {dimension_numbers = #tpu.dot_dimension_numbers<[1], [0], [0], [1], [0, 0, 1, 1], [], []>} : vector<32x12xbf16>, vector<12x4096xbf16>, vector<32x4096xf32> -> vector<32x4096xf32>
    %323 = arith.truncf %315 : vector<32x4096xf32> to vector<32x4096xbf16>
    %cst_53 = arith.constant dense<0.000000e+00> : vector<32x4096xf32>
    %324 = tpu.matmul %318, %323, %cst_53 {dimension_numbers = #tpu.dot_dimension_numbers<[1], [0], [0], [1], [0, 0, 1, 1], [], []>} : vector<32x32xbf16>, vector<32x4096xbf16>, vector<32x4096xf32> -> vector<32x4096xf32>
    %325 = arith.addf %322, %324 : vector<32x4096xf32>
    %326 = vector.broadcast %320 : vector<32x1xf32> to vector<32x4096xf32>
    %327 = arith.addf %325, %326 : vector<32x4096xf32>
    %cst_54 = arith.constant 0.000000e+00 : f32
    %328 = vector.broadcast %cst_54 : f32 to vector<32x4096xf32>
    %329 = arith.maximumf %327, %328 : vector<32x4096xf32>
    %330 = vector.extract_strided_slice %1 {offsets = [0, 47], sizes = [3, 32], strides = [1, 1]} : vector<32x128xbf16> to vector<3x32xbf16>
    %331 = vector.extract_strided_slice %1 {offsets = [0, 81], sizes = [3, 1], strides = [1, 1]} : vector<32x128xbf16> to vector<3x1xbf16>
    %332 = arith.extf %331 : vector<3x1xbf16> to vector<3x1xf32>
    %333 = arith.truncf %329 : vector<32x4096xf32> to vector<32x4096xbf16>
    %cst_55 = arith.constant dense<0.000000e+00> : vector<3x4096xf32>
    %334 = tpu.matmul %330, %333, %cst_55 {dimension_numbers = #tpu.dot_dimension_numbers<[1], [0], [0], [1], [0, 0, 1, 1], [], []>} : vector<3x32xbf16>, vector<32x4096xbf16>, vector<3x4096xf32> -> vector<3x4096xf32>
    %335 = vector.broadcast %332 : vector<3x1xf32> to vector<3x4096xf32>
    %336 = arith.addf %334, %335 : vector<3x4096xf32>
    %337 = arith.negf %336 : vector<3x4096xf32>
    %338 = math.exp %337 : vector<3x4096xf32>
    %cst_56 = arith.constant 1.000000e+00 : f32
    %339 = vector.broadcast %cst_56 : f32 to vector<3x4096xf32>
    %340 = arith.addf %339, %338 : vector<3x4096xf32>
    %341 = arith.divf %339, %340 : vector<3x4096xf32>
    %342 = arith.mulf %341, %306 : vector<3x4096xf32>
    %cst_57 = arith.constant 0.000000e+00 : f32
    %343 = vector.shape_cast %260 : vector<1x4096xi1> to vector<1x4096xi1>
    %344 = vector.broadcast %343 : vector<1x4096xi1> to vector<3x4096xi1>
    %345 = vector.broadcast %cst_57 : f32 to vector<3x4096xf32>
    %346 = arith.select %344, %342, %345 : vector<3x4096xi1>, vector<3x4096xf32>
    %c0_58 = arith.constant 0 : index
    %c0_59 = arith.constant 0 : index
    %347 = vector.load %arg5[%c0_58, %c0_59] : memref<4x4096xf32, #tpu.memory_space<vmem>>, vector<3x4096xf32>
    tpu.vector_store %arg5[%c0_58, %c0_59], %346 {strides = array<i32>} : memref<4x4096xf32, #tpu.memory_space<vmem>>, vector<3x4096xf32>,
    %c3 = arith.constant 3 : index
    %c0_60 = arith.constant 0 : index
    %348 = vector.load %arg5[%c3, %c0_60] : memref<4x4096xf32, #tpu.memory_space<vmem>>, vector<1x4096xf32>
    tpu.vector_store %arg5[%c3, %c0_60], %267 {strides = array<i32>} : memref<4x4096xf32, #tpu.memory_space<vmem>>, vector<1x4096xf32>,
    return
  }
  func.func @transform_0(%arg0: i32) -> (i32, i32) {
    %c0_i32 = arith.constant 0 : i32
    %c0_i32_0 = arith.constant 0 : i32
    return %c0_i32, %arg0 : i32, i32
  }
  func.func @transform_1(%arg0: i32) -> (i32, i32) {
    %c0_i32 = arith.constant 0 : i32
    %c0_i32_0 = arith.constant 0 : i32
    return %arg0, %c0_i32 : i32, i32
  }
  func.func @transform_2(%arg0: i32) -> (i32, i32) {
    %c0_i32 = arith.constant 0 : i32
    %c0_i32_0 = arith.constant 0 : i32
    return %arg0, %c0_i32 : i32, i32
  }
  func.func @transform_3(%arg0: i32) -> (i32, i32) {
    %c0_i32 = arith.constant 0 : i32
    %c0_i32_0 = arith.constant 0 : i32
    %c0_i32_1 = arith.constant 0 : i32
    return %c0_i32, %c0_i32_0 : i32, i32
  }
  func.func @transform_4(%arg0: i32) -> (i32, i32) {
    %c0_i32 = arith.constant 0 : i32
    %c0_i32_0 = arith.constant 0 : i32
    return %c0_i32, %arg0 : i32, i32
  }
}

</mosaic_0001>

<llo_original>
// kernel: direct_render.1
$region0: #{direct_render.1}
  #allocation0 [shape = 'u32[]', space=smem, size = 0x4, offset = 0x4, fixed_abs, tag = 'smem constant byte address 0x4 - core index']
  #allocation1 [shape = 'u32[144,128]{1,0:T(1,128)}', space=vmem, size = 0x12000, scoped, tag = 'internal scratch']
  %s0 = inlined_call_operand.vmem [shape: f32[6,8192], index: 0, kind: input, shape index: {}]
  %s1 = inlined_call_operand.vmem [shape: f32[16,512], index: 1, kind: input, shape index: {}]
  %s2 = inlined_call_operand.vmem [shape: f32[16,512], index: 2, kind: input, shape index: {}]
  %s3 = inlined_call_operand.vmem [shape: bf16[32,128], index: 3, kind: input, shape index: {}]
  %s4 = inlined_call_operand.hbm [shape: f32[4,8192], index: 4, kind: output, shape index: {}]
  %s5 = sld [smem:[#allocation0]]
  $region49: #{direct_render.1} parent=0
    _
  %s7 = ssub.s32 1, %s5
  %s8 = scalar_select 0, %s7, %s5
  $region1: #{direct_render.1} parent=0
    #allocation2 [shape = 'u8[131072]{0}', space=vmem, size = 0x20000, scoped, tag = 'output window, operand 0']
    #allocation3 [shape = 's32[2]{0}', space=sflag, size = 0x8, scoped, tag = 'scoped memory for direct_render.1']
    %9 = vsyncpa [#allocation3], 0
    %s10 = scalar_lea.sflag [#allocation3], 1
    %11 = vsyncpa %s10, 0
    loop: start=0, step=1, limit=4
    $region2: #{direct_render.1} parent=1 // loop_pre_header
      _
    $region3: #{direct_render.1} parent=1 // loop_header
      %s13 = sphi 0, %s17
      %p14 = scmp.ge.s32.totalorder %s13, 4
      %s23 = sphi 0, %s25
      %s26 = sphi 0, %s23
      %s27 = sphi 0, %s26
      %s43 = sphi 0, %s27
      %s49 = sphi 0, %s51
      %s52 = sphi 0, %s49
      %s53 = sphi 0, %s52
      %s69 = sphi 0, %s53
      %s75 = sphi 0, %s77
      %s78 = sphi 0, %s75
      %s79 = sphi 0, %s78
      %s95 = sphi 0, %s79
      %s99 = sphi 0, %s99
      %s101 = sphi 0, %s99
      %s102 = sphi 0, %s101
      %s116 = sphi 0, %s102
      %s122 = sphi 0, %s124
      %s125 = sphi 0, %s122
      %s126 = sphi 0, %s125
      %s142 = sphi 0, %s126
    $region4: #{direct_render.1} parent=1 // loop_header_branch
      %16 = sbr.rel (%p14) target = $region8
    $region5: #{direct_render.1} parent=1 // loop_body
      %s18 = ssub.s32 %s13, 1
      %s19 = ssub.s32 %s13, 2
      %s20 = sadd.s32 %s13, 1
      %s21 = ssub.s32 %s13, %s20
      %p22 = scmp.eq.s32.totalorder %s21, 0
      %s24 = sadd.s32 %s23, 1
      %s25 = scalar_select %p22, %s23, %s24
      %p28 = pneg %p22
      %p29 = scmp.eq.s32.totalorder %s13, 1
      %p30 = por %p28, %p29
      %p31 = scmp.ne.s32.totalorder %s23, %s26
      %p32 = scmp.eq.s32.totalorder %s13, 0
      %p33 = por %p31, %p32
      %p34 = scmp.ne.s32.totalorder %s23, %s26
      %p35 = scmp.eq.s32.totalorder %s18, 1
      %p36 = por %p34, %p35
      %p37 = scmp.ne.s32.totalorder %s26, %s27
      %p38 = scmp.eq.s32.totalorder %s18, 0
      %p39 = por %p37, %p38
      %p40 = scmp.ne.s32.totalorder %s26, %s27
      %p41 = scmp.eq.s32.totalorder %s19, 1
      %p42 = por %p40, %p41
      %p44 = scmp.ne.s32.totalorder %s27, %s43
      %p45 = scmp.eq.s32.totalorder %s19, 0
      %p46 = por %p44, %p45
      %s47 = ssub.s32 %s13, %s20
      %p48 = scmp.eq.s32.totalorder %s47, 0
      %s50 = sadd.s32 %s49, 1
      %s51 = scalar_select %p48, %s49, %s50
      %p54 = pneg %p48
      %p55 = scmp.eq.s32.totalorder %s13, 1
      %p56 = por %p54, %p55
      %p57 = scmp.ne.s32.totalorder %s49, %s52
      %p58 = scmp.eq.s32.totalorder %s13, 0
      %p59 = por %p57, %p58
      %p60 = scmp.ne.s32.totalorder %s49, %s52
      %p61 = scmp.eq.s32.totalorder %s18, 1
      %p62 = por %p60, %p61
      %p63 = scmp.ne.s32.totalorder %s52, %s53
      %p64 = scmp.eq.s32.totalorder %s18, 0
      %p65 = por %p63, %p64
      %p66 = scmp.ne.s32.totalorder %s52, %s53
      %p67 = scmp.eq.s32.totalorder %s19, 1
      %p68 = por %p66, %p67
      %p70 = scmp.ne.s32.totalorder %s53, %s69
      %p71 = scmp.eq.s32.totalorder %s19, 0
      %p72 = por %p70, %p71
      %s73 = ssub.s32 %s13, %s20
      %p74 = scmp.eq.s32.totalorder %s73, 0
      %s76 = sadd.s32 %s75, 1
      %s77 = scalar_select %p74, %s75, %s76
      %p80 = pneg %p74
      %p81 = scmp.eq.s32.totalorder %s13, 1
      %p82 = por %p80, %p81
      %p83 = scmp.ne.s32.totalorder %s75, %s78
      %p84 = scmp.eq.s32.totalorder %s13, 0
      %p85 = por %p83, %p84
      %p86 = scmp.ne.s32.totalorder %s75, %s78
      %p87 = scmp.eq.s32.totalorder %s18, 1
      %p88 = por %p86, %p87
      %p89 = scmp.ne.s32.totalorder %s78, %s79
      %p90 = scmp.eq.s32.totalorder %s18, 0
      %p91 = por %p89, %p90
      %p92 = scmp.ne.s32.totalorder %s78, %s79
      %p93 = scmp.eq.s32.totalorder %s19, 1
      %p94 = por %p92, %p93
      %p96 = scmp.ne.s32.totalorder %s79, %s95
      %p97 = scmp.eq.s32.totalorder %s19, 0
      %p98 = por %p96, %p97
      %s100 = sadd.s32 %s99, 1
      %p103 = scmp.eq.s32.totalorder %s13, 1
      %p104 = scmp.ne.s32.totalorder %s99, %s101
      %p105 = scmp.eq.s32.totalorder %s13, 0
      %p106 = por %p104, %p105
      %p107 = scmp.ne.s32.totalorder %s99, %s101
      %p108 = scmp.eq.s32.totalorder %s18, 1
      %p109 = por %p107, %p108
      %p110 = scmp.ne.s32.totalorder %s101, %s102
      %p111 = scmp.eq.s32.totalorder %s18, 0
      %p112 = por %p110, %p111
      %p113 = scmp.ne.s32.totalorder %s101, %s102
      %p114 = scmp.eq.s32.totalorder %s19, 1
      %p115 = por %p113, %p114
      %p117 = scmp.ne.s32.totalorder %s102, %s116
      %p118 = scmp.eq.s32.totalorder %s19, 0
      %p119 = por %p117, %p118
      %s120 = ssub.s32 %s13, %s20
      %p121 = scmp.eq.s32.totalorder %s120, 0
      %s123 = sadd.s32 %s122, 1
      %s124 = scalar_select %p121, %s122, %s123
      %p127 = pneg %p121
      %p128 = scmp.eq.s32.totalorder %s13, 1
      %p129 = por %p127, %p128
      %p130 = scmp.ne.s32.totalorder %s122, %s125
      %p131 = scmp.eq.s32.totalorder %s13, 0
      %p132 = por %p130, %p131
      %p133 = scmp.ne.s32.totalorder %s122, %s125
      %p134 = scmp.eq.s32.totalorder %s18, 1
      %p135 = por %p133, %p134
      %p136 = scmp.ne.s32.totalorder %s125, %s126
      %p137 = scmp.eq.s32.totalorder %s18, 0
      %p138 = por %p136, %p137
      %p139 = scmp.ne.s32.totalorder %s125, %s126
      %p140 = scmp.eq.s32.totalorder %s19, 1
      %p141 = por %p139, %p140
      %p143 = scmp.ne.s32.totalorder %s126, %s142
      %p144 = scmp.eq.s32.totalorder %s19, 0
      %p145 = por %p143, %p144
      %p146 = scmp.le.s32.totalorder 1, %s13
      %p147 = scmp.lt.s32.totalorder %s13, 3
      %p148 = pnand %p146, %p147
      %p149 = pneg %p148
      // Predicated region
      $region9: #{direct_render.1} parent=5 // pred_check
        _
      $region10: #{direct_render.1} parent=5 // pred_check_branch
        %151 = sbr.rel (%p148) target = $region12
      $region11: #{direct_render.1} parent=5 // pred_region
        %s152 = ssub.s32 %s13, 1
        // Predicated region
        $region13: #{direct_render.1} parent=11 // pred_check
          %p153 = pneg %p112
        $region14: #{direct_render.1} parent=11 // pred_check_branch
          %155 = sbr.rel (%p153) target = $region16
        $region15: #{direct_render.1} parent=11 // pred_region
          _
        $region16: #{direct_render.1} parent=11 // pred_fallthru
          _
      $region12: #{direct_render.1} parent=5 // pred_fallthru
        _
      %p156 = scmp.lt.s32.totalorder %s13, 2
      // Predicated region
      $region17: #{direct_render.1} parent=5 // pred_check
        %p157 = pneg %p156
      $region18: #{direct_render.1} parent=5 // pred_check_branch
        %159 = sbr.rel (%p157) target = $region20
      $region19: #{direct_render.1} parent=5 // pred_region
        // Predicated region
        $region21: #{direct_render.1} parent=19 // pred_check
          %p160 = pneg %p33
        $region22: #{direct_render.1} parent=19 // pred_check_branch
          %162 = sbr.rel (%p160) target = $region24
        $region23: #{direct_render.1} parent=19 // pred_region
          %s163 = smul.u32 32, %s13
          %p164 = scmp.lt.s32.totalorder %s163, 63
          %s165 = scalar_select %p164, %s163, 63
          %s166 = smul.addr %s165, 8
          %s167 = scalar_lea.vmem %s0, %s166
          %s168 = smul.u32 32, %s13
        $region24: #{direct_render.1} parent=19 // pred_fallthru
          _
        // Predicated region
        $region25: #{direct_render.1} parent=19 // pred_check
          %p169 = pneg %p59
        $region26: #{direct_render.1} parent=19 // pred_check_branch
          %171 = sbr.rel (%p169) target = $region28
        $region27: #{direct_render.1} parent=19 // pred_region
          %p172 = scmp.lt.s32.totalorder %s13, 1
          %s173 = scalar_select %p172, %s13, 1
          %s174 = smul.addr %s173, 4
          %s175 = smul.addr %s174, 8
          %s176 = scalar_lea.vmem %s1, %s175
        $region28: #{direct_render.1} parent=19 // pred_fallthru
          _
        // Predicated region
        $region29: #{direct_render.1} parent=19 // pred_check
          %p177 = pneg %p85
        $region30: #{direct_render.1} parent=19 // pred_check_branch
          %179 = sbr.rel (%p177) target = $region32
        $region31: #{direct_render.1} parent=19 // pred_region
          %p180 = scmp.lt.s32.totalorder %s13, 1
          %s181 = scalar_select %p180, %s13, 1
          %s182 = smul.addr %s181, 4
          %s183 = smul.addr %s182, 8
          %s184 = scalar_lea.vmem %s2, %s183
        $region32: #{direct_render.1} parent=19 // pred_fallthru
          _
      $region20: #{direct_render.1} parent=5 // pred_fallthru
        _
      %p185 = scmp.le.s32.totalorder 1, %s13
      %p186 = scmp.lt.s32.totalorder %s13, 3
      %p187 = pnand %p185, %p186
      %p188 = pneg %p187
      // Predicated region
      $region33: #{direct_render.1} parent=5 // pred_check
        _
      $region34: #{direct_render.1} parent=5 // pred_check_branch
        %190 = sbr.rel (%p187) target = $region36
      $region35: #{direct_render.1} parent=5 // pred_region
        %s191 = ssub.s32 %s13, 1
        %s192 = smul.u32 32, %s18
        %p193 = scmp.lt.s32.totalorder %s192, 63
        %s194 = scalar_select %p193, %s192, 63
        %s195 = smul.addr %s194, 8
        %s196 = scalar_lea.vmem %s0, %s195
        %p197 = pneg %p39
        %p198 = pneg %p36
        %p199 = scmp.lt.s32.totalorder %s18, 1
        %s200 = scalar_select %p199, %s18, 1
        %s201 = smul.addr %s200, 4
        %s202 = smul.addr %s201, 8
        %s203 = scalar_lea.vmem %s1, %s202
        %p204 = pneg %p65
        %p205 = pneg %p62
        %p206 = scmp.lt.s32.totalorder %s18, 1
        %s207 = scalar_select %p206, %s18, 1
        %s208 = smul.addr %s207, 4
        %s209 = smul.addr %s208, 8
        %s210 = scalar_lea.vmem %s2, %s209
        %p211 = pneg %p91
        %p212 = pneg %p88
        %p213 = pneg %p112
        %p214 = pneg %p109
        %p215 = pneg %p138
        %p216 = pneg %p135
        %s217 = sand.u32 %s125, 1
        %s218 = scalar_lea.sflag [#allocation3], %s217
        %s219 = sand.u32 %s125, 1
        %s220 = smul.addr %s219, 128
        %s221 = scalar_lea.vmem [#allocation2], %s220
        %s222 = smul.u32 32, %s18
        %p223 = scmp.lt.s32.totalorder %s222, 63
        %s224 = scalar_select %p223, %s222, 63
        %s225 = smul.addr %s224, 8
        %s226 = scalar_lea.vmem %s0, %s225
        %s227 = smul.u32 32, %s18
        %p228 = scmp.lt.s32.totalorder %s18, 1
        %s229 = scalar_select %p228, %s18, 1
        %s230 = smul.addr %s229, 4
        %s231 = smul.addr %s230, 8
        %s232 = scalar_lea.vmem %s1, %s231
        %p233 = scmp.lt.s32.totalorder %s18, 1
        %s234 = scalar_select %p233, %s18, 1
        %s235 = smul.addr %s234, 4
        %s236 = smul.addr %s235, 8
        %s237 = scalar_lea.vmem %s2, %s236
        %s238 = smul.u32 32, %s18
        %v240 = vld [vmem:[%s226] sm:$0x3f]
        %v241 = vld [vmem:[%s226 + $0x8] sm:$0x3f]
        %v242 = vld [vmem:[%s226 + $0x10] sm:$0x3f]
        %v243 = vld [vmem:[%s226 + $0x18] sm:$0x3f]
        %v244 = vld [vmem:[%s226 + $0x20] sm:$0x3f]
        %v245 = vld [vmem:[%s226 + $0x28] sm:$0x3f]
        %v246 = vld [vmem:[%s226 + $0x30] sm:$0x3f]
        %v247 = vld [vmem:[%s226 + $0x38] sm:$0x3f]
        %v248 = vld [vmem:[%s226 + $0x40] sm:$0x3f]
        %v249 = vld [vmem:[%s226 + $0x48] sm:$0x3f]
        %v250 = vld [vmem:[%s226 + $0x50] sm:$0x3f]
        %v251 = vld [vmem:[%s226 + $0x58] sm:$0x3f]
        %v252 = vld [vmem:[%s226 + $0x60] sm:$0x3f]
        %v253 = vld [vmem:[%s226 + $0x68] sm:$0x3f]
        %v254 = vld [vmem:[%s226 + $0x70] sm:$0x3f]
        %v255 = vld [vmem:[%s226 + $0x78] sm:$0x3f]
        %v256 = vld [vmem:[%s226 + $0x80] sm:$0x3f]
        %v257 = vld [vmem:[%s226 + $0x88] sm:$0x3f]
        %v258 = vld [vmem:[%s226 + $0x90] sm:$0x3f]
        %v259 = vld [vmem:[%s226 + $0x98] sm:$0x3f]
        %v260 = vld [vmem:[%s226 + $0xa0] sm:$0x3f]
        %v261 = vld [vmem:[%s226 + $0xa8] sm:$0x3f]
        %v262 = vld [vmem:[%s226 + $0xb0] sm:$0x3f]
        %v263 = vld [vmem:[%s226 + $0xb8] sm:$0x3f]
        %v264 = vld [vmem:[%s226 + $0xc0] sm:$0x3f]
        %v265 = vld [vmem:[%s226 + $0xc8] sm:$0x3f]
        %v266 = vld [vmem:[%s226 + $0xd0] sm:$0x3f]
        %v267 = vld [vmem:[%s226 + $0xd8] sm:$0x3f]
        %v268 = vld [vmem:[%s226 + $0xe0] sm:$0x3f]
        %v269 = vld [vmem:[%s226 + $0xe8] sm:$0x3f]
        %v270 = vld [vmem:[%s226 + $0xf0] sm:$0x3f]
        %v271 = vld [vmem:[%s226 + $0xf8] sm:$0x3f]
        %v272 = vld [vmem:[%s3] sm:$0xf]
        %v273 = vld [vmem:[%s3 + $0x4] sm:$0xf]
        %v274 = vld [vmem:[%s3 + $0x8] sm:$0xf]
        %v275 = vld [vmem:[%s3 + $0xc] sm:$0xf]
        %v276 = vld [vmem:[%s232] sm:$0xff]
        %v277 = vld [vmem:[%s232 + $0x8] sm:$0xff]
        %v278 = vld [vmem:[%s232 + $0x10] sm:$0xff]
        %v279 = vld [vmem:[%s232 + $0x18] sm:$0xff]
        %v280 = vld [vmem:[%s237] sm:$0xff]
        %v281 = vld [vmem:[%s237 + $0x8] sm:$0xff]
        %v282 = vld [vmem:[%s237 + $0x10] sm:$0xff]
        %v283 = vld [vmem:[%s237 + $0x18] sm:$0xff]
        %v284 = vmul.f32 %v276, 2.0
        %v285 = vmul.f32 %v277, 2.0
        %v286 = vmul.f32 %v278, 2.0
        %v287 = vmul.f32 %v279, 2.0
        %v288 = vadd.f32 %v280, 1e-12
        %v289 = vadd.f32 %v281, 1e-12
        %v290 = vadd.f32 %v282, 1e-12
        %v291 = vadd.f32 %v283, 1e-12
        %v292 = vadd.f32 %v284, 0.0
        %v293 = vadd.f32 %v285, 0.0
        %v294 = vadd.f32 %v286, 0.0
        %v295 = vadd.f32 %v287, 0.0
        %v296 = vmul.f32 %v292, 0.0
        %v297 = vmul.f32 %v293, 0.0
        %v298 = vmul.f32 %v294, 0.0
        %v299 = vmul.f32 %v295, 0.0
        %v300 = vadd.f32 %v288, %v296
        %v301 = vadd.f32 %v289, %v297
        %v302 = vadd.f32 %v290, %v298
        %v303 = vadd.f32 %v291, %v299
        %v304 = vrsqrt.pop %v300
        %v305 = vmul.f32 %v300, %v304
        %vm306 = vcmp.eq.f32.partialorder %v300, inf
        %v307 = vsel %vm306, %v300, %v305
        %vm308 = vcmp.eq.f32.partialorder %v300, 0.0
        %v309 = vand.u32 %v300, 2147483648
        %v310 = vsel %vm308, %v309, %v307
        %v311 = vrsqrt.pop %v301
        %v312 = vmul.f32 %v301, %v311
        %vm313 = vcmp.eq.f32.partialorder %v301, inf
        %v314 = vsel %vm313, %v301, %v312
        %vm315 = vcmp.eq.f32.partialorder %v301, 0.0
        %v316 = vand.u32 %v301, 2147483648
        %v317 = vsel %vm315, %v316, %v314
        %v318 = vrsqrt.pop %v302
        %v319 = vmul.f32 %v302, %v318
        %vm320 = vcmp.eq.f32.partialorder %v302, inf
        %v321 = vsel %vm320, %v302, %v319
        %vm322 = vcmp.eq.f32.partialorder %v302, 0.0
        %v323 = vand.u32 %v302, 2147483648
        %v324 = vsel %vm322, %v323, %v321
        %v325 = vrsqrt.pop %v303
        %v326 = vmul.f32 %v303, %v325
        %vm327 = vcmp.eq.f32.partialorder %v303, inf
        %v328 = vsel %vm327, %v303, %v326
        %vm329 = vcmp.eq.f32.partialorder %v303, 0.0
        %v330 = vand.u32 %v303, 2147483648
        %v331 = vsel %vm329, %v330, %v328
        %v332 = vadd.f32 %v310, 0.0
        %v333 = vadd.f32 %v317, 0.0
        %v334 = vadd.f32 %v324, 0.0
        %v335 = vadd.f32 %v331, 0.0
        %v336 = vsub.f32 %v332, 1.0
        %v337 = vsub.f32 %v333, 1.0
        %v338 = vsub.f32 %v334, 1.0
        %v339 = vsub.f32 %v335, 1.0
        %v340 = vadd.f32 %v284, %v336
        %v341 = vadd.f32 %v285, %v337
        %v342 = vadd.f32 %v286, %v338
        %v343 = vadd.f32 %v287, %v339
        %v344 = vmul.f32 %v340, %v336
        %v345 = vmul.f32 %v341, %v337
        %v346 = vmul.f32 %v342, %v338
        %v347 = vmul.f32 %v343, %v339
        %v348 = vadd.f32 %v288, %v344
        %v349 = vadd.f32 %v289, %v345
        %v350 = vadd.f32 %v290, %v346
        %v351 = vadd.f32 %v291, %v347
        %v352 = vrsqrt.pop %v348
        %v353 = vmul.f32 %v348, %v352
        %vm354 = vcmp.eq.f32.partialorder %v348, inf
        %v355 = vsel %vm354, %v348, %v353
        %vm356 = vcmp.eq.f32.partialorder %v348, 0.0
        %v357 = vand.u32 %v348, 2147483648
        %v358 = vsel %vm356, %v357, %v355
        %v359 = vrsqrt.pop %v349
        %v360 = vmul.f32 %v349, %v359
        %vm361 = vcmp.eq.f32.partialorder %v349, inf
        %v362 = vsel %vm361, %v349, %v360
        %vm363 = vcmp.eq.f32.partialorder %v349, 0.0
        %v364 = vand.u32 %v349, 2147483648
        %v365 = vsel %vm363, %v364, %v362
        %v366 = vrsqrt.pop %v350
        %v367 = vmul.f32 %v350, %v366
        %vm368 = vcmp.eq.f32.partialorder %v350, inf
        %v369 = vsel %vm368, %v350, %v367
        %vm370 = vcmp.eq.f32.partialorder %v350, 0.0
        %v371 = vand.u32 %v350, 2147483648
        %v372 = vsel %vm370, %v371, %v369
        %v373 = vrsqrt.pop %v351
        %v374 = vmul.f32 %v351, %v373
        %vm375 = vcmp.eq.f32.partialorder %v351, inf
        %v376 = vsel %vm375, %v351, %v374
        %vm377 = vcmp.eq.f32.partialorder %v351, 0.0
        %v378 = vand.u32 %v351, 2147483648
        %v379 = vsel %vm377, %v378, %v376
        %v380 = vadd.f32 %v336, %v358
        %v381 = vadd.f32 %v337, %v365
        %v382 = vadd.f32 %v338, %v372
        %v383 = vadd.f32 %v339, %v379
        %v384 = vsub.f32 %v380, 1.0
        %v385 = vsub.f32 %v381, 1.0
        %v386 = vsub.f32 %v382, 1.0
        %v387 = vsub.f32 %v383, 1.0
        %v388 = vadd.f32 %v284, %v384
        %v389 = vadd.f32 %v285, %v385
        %v390 = vadd.f32 %v286, %v386
        %v391 = vadd.f32 %v287, %v387
        %v392 = vmul.f32 %v388, %v384
        %v393 = vmul.f32 %v389, %v385
        %v394 = vmul.f32 %v390, %v386
        %v395 = vmul.f32 %v391, %v387
        %v396 = vadd.f32 %v288, %v392
        %v397 = vadd.f32 %v289, %v393
        %v398 = vadd.f32 %v290, %v394
        %v399 = vadd.f32 %v291, %v395
        %v400 = vrsqrt.pop %v396
        %v401 = vmul.f32 %v396, %v400
        %vm402 = vcmp.eq.f32.partialorder %v396, inf
        %v403 = vsel %vm402, %v396, %v401
        %vm404 = vcmp.eq.f32.partialorder %v396, 0.0
        %v405 = vand.u32 %v396, 2147483648
        %v406 = vsel %vm404, %v405, %v403
        %v407 = vrsqrt.pop %v397
        %v408 = vmul.f32 %v397, %v407
        %vm409 = vcmp.eq.f32.partialorder %v397, inf
        %v410 = vsel %vm409, %v397, %v408
        %vm411 = vcmp.eq.f32.partialorder %v397, 0.0
        %v412 = vand.u32 %v397, 2147483648
        %v413 = vsel %vm411, %v412, %v410
        %v414 = vrsqrt.pop %v398
        %v415 = vmul.f32 %v398, %v414
        %vm416 = vcmp.eq.f32.partialorder %v398, inf
        %v417 = vsel %vm416, %v398, %v415
        %vm418 = vcmp.eq.f32.partialorder %v398, 0.0
        %v419 = vand.u32 %v398, 2147483648
        %v420 = vsel %vm418, %v419, %v417
        %v421 = vrsqrt.pop %v399
        %v422 = vmul.f32 %v399, %v421
        %vm423 = vcmp.eq.f32.partialorder %v399, inf
        %v424 = vsel %vm423, %v399, %v422
        %vm425 = vcmp.eq.f32.partialorder %v399, 0.0
        %v426 = vand.u32 %v399, 2147483648
        %v427 = vsel %vm425, %v426, %v424
        %v428 = vadd.f32 %v384, %v406
        %v429 = vadd.f32 %v385, %v413
        %v430 = vadd.f32 %v386, %v420
        %v431 = vadd.f32 %v387, %v427
        %v432 = vsub.f32 %v428, 1.0
        %v433 = vsub.f32 %v429, 1.0
        %v434 = vsub.f32 %v430, 1.0
        %v435 = vsub.f32 %v431, 1.0
        %v436 = vadd.f32 %v284, %v432
        %v437 = vadd.f32 %v285, %v433
        %v438 = vadd.f32 %v286, %v434
        %v439 = vadd.f32 %v287, %v435
        %v440 = vmul.f32 %v436, %v432
        %v441 = vmul.f32 %v437, %v433
        %v442 = vmul.f32 %v438, %v434
        %v443 = vmul.f32 %v439, %v435
        %v444 = vadd.f32 %v288, %v440
        %v445 = vadd.f32 %v289, %v441
        %v446 = vadd.f32 %v290, %v442
        %v447 = vadd.f32 %v291, %v443
        %v448 = vrsqrt.pop %v444
        %v449 = vmul.f32 %v444, %v448
        %vm450 = vcmp.eq.f32.partialorder %v444, inf
        %v451 = vsel %vm450, %v444, %v449
        %vm452 = vcmp.eq.f32.partialorder %v444, 0.0
        %v453 = vand.u32 %v444, 2147483648
        %v454 = vsel %vm452, %v453, %v451
        %v455 = vrsqrt.pop %v445
        %v456 = vmul.f32 %v445, %v455
        %vm457 = vcmp.eq.f32.partialorder %v445, inf
        %v458 = vsel %vm457, %v445, %v456
        %vm459 = vcmp.eq.f32.partialorder %v445, 0.0
        %v460 = vand.u32 %v445, 2147483648
        %v461 = vsel %vm459, %v460, %v458
        %v462 = vrsqrt.pop %v446
        %v463 = vmul.f32 %v446, %v462
        %vm464 = vcmp.eq.f32.partialorder %v446, inf
        %v465 = vsel %vm464, %v446, %v463
        %vm466 = vcmp.eq.f32.partialorder %v446, 0.0
        %v467 = vand.u32 %v446, 2147483648
        %v468 = vsel %vm466, %v467, %v465
        %v469 = vrsqrt.pop %v447
        %v470 = vmul.f32 %v447, %v469
        %vm471 = vcmp.eq.f32.partialorder %v447, inf
        %v472 = vsel %vm471, %v447, %v470
        %vm473 = vcmp.eq.f32.partialorder %v447, 0.0
        %v474 = vand.u32 %v447, 2147483648
        %v475 = vsel %vm473, %v474, %v472
        %v476 = vadd.f32 %v432, %v454
        %v477 = vadd.f32 %v433, %v461
        %v478 = vadd.f32 %v434, %v468
        %v479 = vadd.f32 %v435, %v475
        %v480 = vsub.f32 %v476, 1.0
        %v481 = vsub.f32 %v477, 1.0
        %v482 = vsub.f32 %v478, 1.0
        %v483 = vsub.f32 %v479, 1.0
        %v484 = vadd.f32 %v284, %v480
        %v485 = vadd.f32 %v285, %v481
        %v486 = vadd.f32 %v286, %v482
        %v487 = vadd.f32 %v287, %v483
        %v488 = vmul.f32 %v484, %v480
        %v489 = vmul.f32 %v485, %v481
        %v490 = vmul.f32 %v486, %v482
        %v491 = vmul.f32 %v487, %v483
        %v492 = vadd.f32 %v288, %v488
        %v493 = vadd.f32 %v289, %v489
        %v494 = vadd.f32 %v290, %v490
        %v495 = vadd.f32 %v291, %v491
        %v496 = vrsqrt.pop %v492
        %v497 = vmul.f32 %v492, %v496
        %vm498 = vcmp.eq.f32.partialorder %v492, inf
        %v499 = vsel %vm498, %v492, %v497
        %vm500 = vcmp.eq.f32.partialorder %v492, 0.0
        %v501 = vand.u32 %v492, 2147483648
        %v502 = vsel %vm500, %v501, %v499
        %v503 = vrsqrt.pop %v493
        %v504 = vmul.f32 %v493, %v503
        %vm505 = vcmp.eq.f32.partialorder %v493, inf
        %v506 = vsel %vm505, %v493, %v504
        %vm507 = vcmp.eq.f32.partialorder %v493, 0.0
        %v508 = vand.u32 %v493, 2147483648
        %v509 = vsel %vm507, %v508, %v506
        %v510 = vrsqrt.pop %v494
        %v511 = vmul.f32 %v494, %v510
        %vm512 = vcmp.eq.f32.partialorder %v494, inf
        %v513 = vsel %vm512, %v494, %v511
        %vm514 = vcmp.eq.f32.partialorder %v494, 0.0
        %v515 = vand.u32 %v494, 2147483648
        %v516 = vsel %vm514, %v515, %v513
        %v517 = vrsqrt.pop %v495
        %v518 = vmul.f32 %v495, %v517
        %vm519 = vcmp.eq.f32.partialorder %v495, inf
        %v520 = vsel %vm519, %v495, %v518
        %vm521 = vcmp.eq.f32.partialorder %v495, 0.0
        %v522 = vand.u32 %v495, 2147483648
        %v523 = vsel %vm521, %v522, %v520
        %v524 = vadd.f32 %v480, %v502
        %v525 = vadd.f32 %v481, %v509
        %v526 = vadd.f32 %v482, %v516
        %v527 = vadd.f32 %v483, %v523
        %v528 = vsub.f32 %v524, 1.0
        %v529 = vsub.f32 %v525, 1.0
        %v530 = vsub.f32 %v526, 1.0
        %v531 = vsub.f32 %v527, 1.0
        %v532 = vadd.f32 %v284, %v528
        %v533 = vadd.f32 %v285, %v529
        %v534 = vadd.f32 %v286, %v530
        %v535 = vadd.f32 %v287, %v531
        %v536 = vmul.f32 %v532, %v528
        %v537 = vmul.f32 %v533, %v529
        %v538 = vmul.f32 %v534, %v530
        %v539 = vmul.f32 %v535, %v531
        %v540 = vadd.f32 %v288, %v536
        %v541 = vadd.f32 %v289, %v537
        %v542 = vadd.f32 %v290, %v538
        %v543 = vadd.f32 %v291, %v539
        %v544 = vrsqrt.pop %v540
        %v545 = vmul.f32 %v540, %v544
        %vm546 = vcmp.eq.f32.partialorder %v540, inf
        %v547 = vsel %vm546, %v540, %v545
        %vm548 = vcmp.eq.f32.partialorder %v540, 0.0
        %v549 = vand.u32 %v540, 2147483648
        %v550 = vsel %vm548, %v549, %v547
        %v551 = vrsqrt.pop %v541
        %v552 = vmul.f32 %v541, %v551
        %vm553 = vcmp.eq.f32.partialorder %v541, inf
        %v554 = vsel %vm553, %v541, %v552
        %vm555 = vcmp.eq.f32.partialorder %v541, 0.0
        %v556 = vand.u32 %v541, 2147483648
        %v557 = vsel %vm555, %v556, %v554
        %v558 = vrsqrt.pop %v542
        %v559 = vmul.f32 %v542, %v558
        %vm560 = vcmp.eq.f32.partialorder %v542, inf
        %v561 = vsel %vm560, %v542, %v559
        %vm562 = vcmp.eq.f32.partialorder %v542, 0.0
        %v563 = vand.u32 %v542, 2147483648
        %v564 = vsel %vm562, %v563, %v561
        %v565 = vrsqrt.pop %v543
        %v566 = vmul.f32 %v543, %v565
        %vm567 = vcmp.eq.f32.partialorder %v543, inf
        %v568 = vsel %vm567, %v543, %v566
        %vm569 = vcmp.eq.f32.partialorder %v543, 0.0
        %v570 = vand.u32 %v543, 2147483648
        %v571 = vsel %vm569, %v570, %v568
        %v572 = vadd.f32 %v528, %v550
        %v573 = vadd.f32 %v529, %v557
        %v574 = vadd.f32 %v530, %v564
        %v575 = vadd.f32 %v531, %v571
        %v576 = vsub.f32 %v572, 1.0
        %v577 = vsub.f32 %v573, 1.0
        %v578 = vsub.f32 %v574, 1.0
        %v579 = vsub.f32 %v575, 1.0
        %v580 = vadd.f32 %v284, %v576
        %v581 = vadd.f32 %v285, %v577
        %v582 = vadd.f32 %v286, %v578
        %v583 = vadd.f32 %v287, %v579
        %v584 = vmul.f32 %v580, %v576
        %v585 = vmul.f32 %v581, %v577
        %v586 = vmul.f32 %v582, %v578
        %v587 = vmul.f32 %v583, %v579
        %v588 = vadd.f32 %v288, %v584
        %v589 = vadd.f32 %v289, %v585
        %v590 = vadd.f32 %v290, %v586
        %v591 = vadd.f32 %v291, %v587
        %v592 = vrsqrt.pop %v588
        %v593 = vmul.f32 %v588, %v592
        %vm594 = vcmp.eq.f32.partialorder %v588, inf
        %v595 = vsel %vm594, %v588, %v593
        %vm596 = vcmp.eq.f32.partialorder %v588, 0.0
        %v597 = vand.u32 %v588, 2147483648
        %v598 = vsel %vm596, %v597, %v595
        %v599 = vrsqrt.pop %v589
        %v600 = vmul.f32 %v589, %v599
        %vm601 = vcmp.eq.f32.partialorder %v589, inf
        %v602 = vsel %vm601, %v589, %v600
        %vm603 = vcmp.eq.f32.partialorder %v589, 0.0
        %v604 = vand.u32 %v589, 2147483648
        %v605 = vsel %vm603, %v604, %v602
        %v606 = vrsqrt.pop %v590
        %v607 = vmul.f32 %v590, %v606
        %vm608 = vcmp.eq.f32.partialorder %v590, inf
        %v609 = vsel %vm608, %v590, %v607
        %vm610 = vcmp.eq.f32.partialorder %v590, 0.0
        %v611 = vand.u32 %v590, 2147483648
        %v612 = vsel %vm610, %v611, %v609
        %v613 = vrsqrt.pop %v591
        %v614 = vmul.f32 %v591, %v613
        %vm615 = vcmp.eq.f32.partialorder %v591, inf
        %v616 = vsel %vm615, %v591, %v614
        %vm617 = vcmp.eq.f32.partialorder %v591, 0.0
        %v618 = vand.u32 %v591, 2147483648
        %v619 = vsel %vm617, %v618, %v616
        %v620 = vadd.f32 %v576, %v598
        %v621 = vadd.f32 %v577, %v605
        %v622 = vadd.f32 %v578, %v612
        %v623 = vadd.f32 %v579, %v619
        %v624 = vsub.f32 %v620, 1.0
        %v625 = vsub.f32 %v621, 1.0
        %v626 = vsub.f32 %v622, 1.0
        %v627 = vsub.f32 %v623, 1.0
        %v628 = vadd.f32 %v284, %v624
        %v629 = vadd.f32 %v285, %v625
        %v630 = vadd.f32 %v286, %v626
        %v631 = vadd.f32 %v287, %v627
        %v632 = vmul.f32 %v628, %v624
        %v633 = vmul.f32 %v629, %v625
        %v634 = vmul.f32 %v630, %v626
        %v635 = vmul.f32 %v631, %v627
        %v636 = vadd.f32 %v288, %v632
        %v637 = vadd.f32 %v289, %v633
        %v638 = vadd.f32 %v290, %v634
        %v639 = vadd.f32 %v291, %v635
        %v640 = vrsqrt.pop %v636
        %v641 = vmul.f32 %v636, %v640
        %vm642 = vcmp.eq.f32.partialorder %v636, inf
        %v643 = vsel %vm642, %v636, %v641
        %vm644 = vcmp.eq.f32.partialorder %v636, 0.0
        %v645 = vand.u32 %v636, 2147483648
        %v646 = vsel %vm644, %v645, %v643
        %v647 = vrsqrt.pop %v637
        %v648 = vmul.f32 %v637, %v647
        %vm649 = vcmp.eq.f32.partialorder %v637, inf
        %v650 = vsel %vm649, %v637, %v648
        %vm651 = vcmp.eq.f32.partialorder %v637, 0.0
        %v652 = vand.u32 %v637, 2147483648
        %v653 = vsel %vm651, %v652, %v650
        %v654 = vrsqrt.pop %v638
        %v655 = vmul.f32 %v638, %v654
        %vm656 = vcmp.eq.f32.partialorder %v638, inf
        %v657 = vsel %vm656, %v638, %v655
        %vm658 = vcmp.eq.f32.partialorder %v638, 0.0
        %v659 = vand.u32 %v638, 2147483648
        %v660 = vsel %vm658, %v659, %v657
        %v661 = vrsqrt.pop %v639
        %v662 = vmul.f32 %v639, %v661
        %vm663 = vcmp.eq.f32.partialorder %v639, inf
        %v664 = vsel %vm663, %v639, %v662
        %vm665 = vcmp.eq.f32.partialorder %v639, 0.0
        %v666 = vand.u32 %v639, 2147483648
        %v667 = vsel %vm665, %v666, %v664
        %v668 = vadd.f32 %v624, %v646
        %v669 = vadd.f32 %v625, %v653
        %v670 = vadd.f32 %v626, %v660
        %v671 = vadd.f32 %v627, %v667
        %v672 = vsub.f32 %v668, 1.0
        %v673 = vsub.f32 %v669, 1.0
        %v674 = vsub.f32 %v670, 1.0
        %v675 = vsub.f32 %v671, 1.0
        %v676 = vadd.f32 %v284, %v672
        %v677 = vadd.f32 %v285, %v673
        %v678 = vadd.f32 %v286, %v674
        %v679 = vadd.f32 %v287, %v675
        %v680 = vmul.f32 %v676, %v672
        %v681 = vmul.f32 %v677, %v673
        %v682 = vmul.f32 %v678, %v674
        %v683 = vmul.f32 %v679, %v675
        %v684 = vadd.f32 %v288, %v680
        %v685 = vadd.f32 %v289, %v681
        %v686 = vadd.f32 %v290, %v682
        %v687 = vadd.f32 %v291, %v683
        %v688 = vrsqrt.pop %v684
        %v689 = vmul.f32 %v684, %v688
        %vm690 = vcmp.eq.f32.partialorder %v684, inf
        %v691 = vsel %vm690, %v684, %v689
        %vm692 = vcmp.eq.f32.partialorder %v684, 0.0
        %v693 = vand.u32 %v684, 2147483648
        %v694 = vsel %vm692, %v693, %v691
        %v695 = vrsqrt.pop %v685
        %v696 = vmul.f32 %v685, %v695
        %vm697 = vcmp.eq.f32.partialorder %v685, inf
        %v698 = vsel %vm697, %v685, %v696
        %vm699 = vcmp.eq.f32.partialorder %v685, 0.0
        %v700 = vand.u32 %v685, 2147483648
        %v701 = vsel %vm699, %v700, %v698
        %v702 = vrsqrt.pop %v686
        %v703 = vmul.f32 %v686, %v702
        %vm704 = vcmp.eq.f32.partialorder %v686, inf
        %v705 = vsel %vm704, %v686, %v703
        %vm706 = vcmp.eq.f32.partialorder %v686, 0.0
        %v707 = vand.u32 %v686, 2147483648
        %v708 = vsel %vm706, %v707, %v705
        %v709 = vrsqrt.pop %v687
        %v710 = vmul.f32 %v687, %v709
        %vm711 = vcmp.eq.f32.partialorder %v687, inf
        %v712 = vsel %vm711, %v687, %v710
        %vm713 = vcmp.eq.f32.partialorder %v687, 0.0
        %v714 = vand.u32 %v687, 2147483648
        %v715 = vsel %vm713, %v714, %v712
        %v716 = vadd.f32 %v672, %v694
        %v717 = vadd.f32 %v673, %v701
        %v718 = vadd.f32 %v674, %v708
        %v719 = vadd.f32 %v675, %v715
        %v720 = vsub.f32 %v716, 1.0
        %v721 = vsub.f32 %v717, 1.0
        %v722 = vsub.f32 %v718, 1.0
        %v723 = vsub.f32 %v719, 1.0
        %v724 = vadd.f32 %v284, %v720
        %v725 = vadd.f32 %v285, %v721
        %v726 = vadd.f32 %v286, %v722
        %v727 = vadd.f32 %v287, %v723
        %v728 = vmul.f32 %v724, %v720
        %v729 = vmul.f32 %v725, %v721
        %v730 = vmul.f32 %v726, %v722
        %v731 = vmul.f32 %v727, %v723
        %v732 = vadd.f32 %v288, %v728
        %v733 = vadd.f32 %v289, %v729
        %v734 = vadd.f32 %v290, %v730
        %v735 = vadd.f32 %v291, %v731
        %v736 = vrsqrt.pop %v732
        %v737 = vmul.f32 %v732, %v736
        %vm738 = vcmp.eq.f32.partialorder %v732, inf
        %v739 = vsel %vm738, %v732, %v737
        %vm740 = vcmp.eq.f32.partialorder %v732, 0.0
        %v741 = vand.u32 %v732, 2147483648
        %v742 = vsel %vm740, %v741, %v739
        %v743 = vrsqrt.pop %v733
        %v744 = vmul.f32 %v733, %v743
        %vm745 = vcmp.eq.f32.partialorder %v733, inf
        %v746 = vsel %vm745, %v733, %v744
        %vm747 = vcmp.eq.f32.partialorder %v733, 0.0
        %v748 = vand.u32 %v733, 2147483648
        %v749 = vsel %vm747, %v748, %v746
        %v750 = vrsqrt.pop %v734
        %v751 = vmul.f32 %v734, %v750
        %vm752 = vcmp.eq.f32.partialorder %v734, inf
        %v753 = vsel %vm752, %v734, %v751
        %vm754 = vcmp.eq.f32.partialorder %v734, 0.0
        %v755 = vand.u32 %v734, 2147483648
        %v756 = vsel %vm754, %v755, %v753
        %v757 = vrsqrt.pop %v735
        %v758 = vmul.f32 %v735, %v757
        %vm759 = vcmp.eq.f32.partialorder %v735, inf
        %v760 = vsel %vm759, %v735, %v758
        %vm761 = vcmp.eq.f32.partialorder %v735, 0.0
        %v762 = vand.u32 %v735, 2147483648
        %v763 = vsel %vm761, %v762, %v760
        %v764 = vadd.f32 %v720, %v742
        %v765 = vadd.f32 %v721, %v749
        %v766 = vadd.f32 %v722, %v756
        %v767 = vadd.f32 %v723, %v763
        %v768 = vsub.f32 %v764, 1.0
        %v769 = vsub.f32 %v765, 1.0
        %v770 = vsub.f32 %v766, 1.0
        %v771 = vsub.f32 %v767, 1.0
        %v772 = vadd.f32 %v284, %v768
        %v773 = vadd.f32 %v285, %v769
        %v774 = vadd.f32 %v286, %v770
        %v775 = vadd.f32 %v287, %v771
        %v776 = vmul.f32 %v772, %v768
        %v777 = vmul.f32 %v773, %v769
        %v778 = vmul.f32 %v774, %v770
        %v779 = vmul.f32 %v775, %v771
        %v780 = vadd.f32 %v288, %v776
        %v781 = vadd.f32 %v289, %v777
        %v782 = vadd.f32 %v290, %v778
        %v783 = vadd.f32 %v291, %v779
        %v784 = vrsqrt.pop %v780
        %v785 = vmul.f32 %v780, %v784
        %vm786 = vcmp.eq.f32.partialorder %v780, inf
        %v787 = vsel %vm786, %v780, %v785
        %vm788 = vcmp.eq.f32.partialorder %v780, 0.0
        %v789 = vand.u32 %v780, 2147483648
        %v790 = vsel %vm788, %v789, %v787
        %v791 = vrsqrt.pop %v781
        %v792 = vmul.f32 %v781, %v791
        %vm793 = vcmp.eq.f32.partialorder %v781, inf
        %v794 = vsel %vm793, %v781, %v792
        %vm795 = vcmp.eq.f32.partialorder %v781, 0.0
        %v796 = vand.u32 %v781, 2147483648
        %v797 = vsel %vm795, %v796, %v794
        %v798 = vrsqrt.pop %v782
        %v799 = vmul.f32 %v782, %v798
        %vm800 = vcmp.eq.f32.partialorder %v782, inf
        %v801 = vsel %vm800, %v782, %v799
        %vm802 = vcmp.eq.f32.partialorder %v782, 0.0
        %v803 = vand.u32 %v782, 2147483648
        %v804 = vsel %vm802, %v803, %v801
        %v805 = vrsqrt.pop %v783
        %v806 = vmul.f32 %v783, %v805
        %vm807 = vcmp.eq.f32.partialorder %v783, inf
        %v808 = vsel %vm807, %v783, %v806
        %vm809 = vcmp.eq.f32.partialorder %v783, 0.0
        %v810 = vand.u32 %v783, 2147483648
        %v811 = vsel %vm809, %v810, %v808
        %v812 = vadd.f32 %v768, %v790
        %v813 = vadd.f32 %v769, %v797
        %v814 = vadd.f32 %v770, %v804
        %v815 = vadd.f32 %v771, %v811
        %v816 = vsub.f32 %v812, 1.0
        %v817 = vsub.f32 %v813, 1.0
        %v818 = vsub.f32 %v814, 1.0
        %v819 = vsub.f32 %v815, 1.0
        %v820 = vadd.f32 %v284, %v816
        %v821 = vadd.f32 %v285, %v817
        %v822 = vadd.f32 %v286, %v818
        %v823 = vadd.f32 %v287, %v819
        %v824 = vmul.f32 %v820, %v816
        %v825 = vmul.f32 %v821, %v817
        %v826 = vmul.f32 %v822, %v818
        %v827 = vmul.f32 %v823, %v819
        %v828 = vadd.f32 %v288, %v824
        %v829 = vadd.f32 %v289, %v825
        %v830 = vadd.f32 %v290, %v826
        %v831 = vadd.f32 %v291, %v827
        %v832 = vrsqrt.pop %v828
        %v833 = vmul.f32 %v828, %v832
        %vm834 = vcmp.eq.f32.partialorder %v828, inf
        %v835 = vsel %vm834, %v828, %v833
        %vm836 = vcmp.eq.f32.partialorder %v828, 0.0
        %v837 = vand.u32 %v828, 2147483648
        %v838 = vsel %vm836, %v837, %v835
        %v839 = vrsqrt.pop %v829
        %v840 = vmul.f32 %v829, %v839
        %vm841 = vcmp.eq.f32.partialorder %v829, inf
        %v842 = vsel %vm841, %v829, %v840
        %vm843 = vcmp.eq.f32.partialorder %v829, 0.0
        %v844 = vand.u32 %v829, 2147483648
        %v845 = vsel %vm843, %v844, %v842
        %v846 = vrsqrt.pop %v830
        %v847 = vmul.f32 %v830, %v846
        %vm848 = vcmp.eq.f32.partialorder %v830, inf
        %v849 = vsel %vm848, %v830, %v847
        %vm850 = vcmp.eq.f32.partialorder %v830, 0.0
        %v851 = vand.u32 %v830, 2147483648
        %v852 = vsel %vm850, %v851, %v849
        %v853 = vrsqrt.pop %v831
        %v854 = vmul.f32 %v831, %v853
        %vm855 = vcmp.eq.f32.partialorder %v831, inf
        %v856 = vsel %vm855, %v831, %v854
        %vm857 = vcmp.eq.f32.partialorder %v831, 0.0
        %v858 = vand.u32 %v831, 2147483648
        %v859 = vsel %vm857, %v858, %v856
        %v860 = vadd.f32 %v816, %v838
        %v861 = vadd.f32 %v817, %v845
        %v862 = vadd.f32 %v818, %v852
        %v863 = vadd.f32 %v819, %v859
        %v864 = vsub.f32 %v860, 1.0
        %v865 = vsub.f32 %v861, 1.0
        %v866 = vsub.f32 %v862, 1.0
        %v867 = vsub.f32 %v863, 1.0
        %v868 = vadd.f32 %v284, %v864
        %v869 = vadd.f32 %v285, %v865
        %v870 = vadd.f32 %v286, %v866
        %v871 = vadd.f32 %v287, %v867
        %v872 = vmul.f32 %v868, %v864
        %v873 = vmul.f32 %v869, %v865
        %v874 = vmul.f32 %v870, %v866
        %v875 = vmul.f32 %v871, %v867
        %v876 = vadd.f32 %v288, %v872
        %v877 = vadd.f32 %v289, %v873
        %v878 = vadd.f32 %v290, %v874
        %v879 = vadd.f32 %v291, %v875
        %v880 = vrsqrt.pop %v876
        %v881 = vmul.f32 %v876, %v880
        %vm882 = vcmp.eq.f32.partialorder %v876, inf
        %v883 = vsel %vm882, %v876, %v881
        %vm884 = vcmp.eq.f32.partialorder %v876, 0.0
        %v885 = vand.u32 %v876, 2147483648
        %v886 = vsel %vm884, %v885, %v883
        %v887 = vrsqrt.pop %v877
        %v888 = vmul.f32 %v877, %v887
        %vm889 = vcmp.eq.f32.partialorder %v877, inf
        %v890 = vsel %vm889, %v877, %v888
        %vm891 = vcmp.eq.f32.partialorder %v877, 0.0
        %v892 = vand.u32 %v877, 2147483648
        %v893 = vsel %vm891, %v892, %v890
        %v894 = vrsqrt.pop %v878
        %v895 = vmul.f32 %v878, %v894
        %vm896 = vcmp.eq.f32.partialorder %v878, inf
        %v897 = vsel %vm896, %v878, %v895
        %vm898 = vcmp.eq.f32.partialorder %v878, 0.0
        %v899 = vand.u32 %v878, 2147483648
        %v900 = vsel %vm898, %v899, %v897
        %v901 = vrsqrt.pop %v879
        %v902 = vmul.f32 %v879, %v901
        %vm903 = vcmp.eq.f32.partialorder %v879, inf
        %v904 = vsel %vm903, %v879, %v902
        %vm905 = vcmp.eq.f32.partialorder %v879, 0.0
        %v906 = vand.u32 %v879, 2147483648
        %v907 = vsel %vm905, %v906, %v904
        %v908 = vadd.f32 %v864, %v886
        %v909 = vadd.f32 %v865, %v893
        %v910 = vadd.f32 %v866, %v900
        %v911 = vadd.f32 %v867, %v907
        %v912 = vsub.f32 %v908, 1.0
        %v913 = vsub.f32 %v909, 1.0
        %v914 = vsub.f32 %v910, 1.0
        %v915 = vsub.f32 %v911, 1.0
        %v916 = vadd.f32 %v284, %v912
        %v917 = vadd.f32 %v285, %v913
        %v918 = vadd.f32 %v286, %v914
        %v919 = vadd.f32 %v287, %v915
        %v920 = vmul.f32 %v916, %v912
        %v921 = vmul.f32 %v917, %v913
        %v922 = vmul.f32 %v918, %v914
        %v923 = vmul.f32 %v919, %v915
        %v924 = vadd.f32 %v288, %v920
        %v925 = vadd.f32 %v289, %v921
        %v926 = vadd.f32 %v290, %v922
        %v927 = vadd.f32 %v291, %v923
        %v928 = vrsqrt.pop %v924
        %v929 = vmul.f32 %v924, %v928
        %vm930 = vcmp.eq.f32.partialorder %v924, inf
        %v931 = vsel %vm930, %v924, %v929
        %vm932 = vcmp.eq.f32.partialorder %v924, 0.0
        %v933 = vand.u32 %v924, 2147483648
        %v934 = vsel %vm932, %v933, %v931
        %v935 = vrsqrt.pop %v925
        %v936 = vmul.f32 %v925, %v935
        %vm937 = vcmp.eq.f32.partialorder %v925, inf
        %v938 = vsel %vm937, %v925, %v936
        %vm939 = vcmp.eq.f32.partialorder %v925, 0.0
        %v940 = vand.u32 %v925, 2147483648
        %v941 = vsel %vm939, %v940, %v938
        %v942 = vrsqrt.pop %v926
        %v943 = vmul.f32 %v926, %v942
        %vm944 = vcmp.eq.f32.partialorder %v926, inf
        %v945 = vsel %vm944, %v926, %v943
        %vm946 = vcmp.eq.f32.partialorder %v926, 0.0
        %v947 = vand.u32 %v926, 2147483648
        %v948 = vsel %vm946, %v947, %v945
        %v949 = vrsqrt.pop %v927
        %v950 = vmul.f32 %v927, %v949
        %vm951 = vcmp.eq.f32.partialorder %v927, inf
        %v952 = vsel %vm951, %v927, %v950
        %vm953 = vcmp.eq.f32.partialorder %v927, 0.0
        %v954 = vand.u32 %v927, 2147483648
        %v955 = vsel %vm953, %v954, %v952
        %v956 = vadd.f32 %v912, %v934
        %v957 = vadd.f32 %v913, %v941
        %v958 = vadd.f32 %v914, %v948
        %v959 = vadd.f32 %v915, %v955
        %v960 = vsub.f32 %v956, 1.0
        %v961 = vsub.f32 %v957, 1.0
        %v962 = vsub.f32 %v958, 1.0
        %v963 = vsub.f32 %v959, 1.0
        %v964 = vadd.f32 %v284, %v960
        %v965 = vadd.f32 %v285, %v961
        %v966 = vadd.f32 %v286, %v962
        %v967 = vadd.f32 %v287, %v963
        %v968 = vmul.f32 %v964, %v960
        %v969 = vmul.f32 %v965, %v961
        %v970 = vmul.f32 %v966, %v962
        %v971 = vmul.f32 %v967, %v963
        %v972 = vadd.f32 %v288, %v968
        %v973 = vadd.f32 %v289, %v969
        %v974 = vadd.f32 %v290, %v970
        %v975 = vadd.f32 %v291, %v971
        %v976 = vrsqrt.pop %v972
        %v977 = vmul.f32 %v972, %v976
        %vm978 = vcmp.eq.f32.partialorder %v972, inf
        %v979 = vsel %vm978, %v972, %v977
        %vm980 = vcmp.eq.f32.partialorder %v972, 0.0
        %v981 = vand.u32 %v972, 2147483648
        %v982 = vsel %vm980, %v981, %v979
        %v983 = vrsqrt.pop %v973
        %v984 = vmul.f32 %v973, %v983
        %vm985 = vcmp.eq.f32.partialorder %v973, inf
        %v986 = vsel %vm985, %v973, %v984
        %vm987 = vcmp.eq.f32.partialorder %v973, 0.0
        %v988 = vand.u32 %v973, 2147483648
        %v989 = vsel %vm987, %v988, %v986
        %v990 = vrsqrt.pop %v974
        %v991 = vmul.f32 %v974, %v990
        %vm992 = vcmp.eq.f32.partialorder %v974, inf
        %v993 = vsel %vm992, %v974, %v991
        %vm994 = vcmp.eq.f32.partialorder %v974, 0.0
        %v995 = vand.u32 %v974, 2147483648
        %v996 = vsel %vm994, %v995, %v993
        %v997 = vrsqrt.pop %v975
        %v998 = vmul.f32 %v975, %v997
        %vm999 = vcmp.eq.f32.partialorder %v975, inf
        %v1000 = vsel %vm999, %v975, %v998
        %vm1001 = vcmp.eq.f32.partialorder %v975, 0.0
        %v1002 = vand.u32 %v975, 2147483648
        %v1003 = vsel %vm1001, %v1002, %v1000
        %v1004 = vadd.f32 %v960, %v982
        %v1005 = vadd.f32 %v961, %v989
        %v1006 = vadd.f32 %v962, %v996
        %v1007 = vadd.f32 %v963, %v1003
        %v1008 = vsub.f32 %v1004, 1.0
        %v1009 = vsub.f32 %v1005, 1.0
        %v1010 = vsub.f32 %v1006, 1.0
        %v1011 = vsub.f32 %v1007, 1.0
        %v1012 = vadd.f32 %v284, %v1008
        %v1013 = vadd.f32 %v285, %v1009
        %v1014 = vadd.f32 %v286, %v1010
        %v1015 = vadd.f32 %v287, %v1011
        %v1016 = vmul.f32 %v1012, %v1008
        %v1017 = vmul.f32 %v1013, %v1009
        %v1018 = vmul.f32 %v1014, %v1010
        %v1019 = vmul.f32 %v1015, %v1011
        %v1020 = vadd.f32 %v288, %v1016
        %v1021 = vadd.f32 %v289, %v1017
        %v1022 = vadd.f32 %v290, %v1018
        %v1023 = vadd.f32 %v291, %v1019
        %v1024 = vrsqrt.pop %v1020
        %v1025 = vmul.f32 %v1020, %v1024
        %vm1026 = vcmp.eq.f32.partialorder %v1020, inf
        %v1027 = vsel %vm1026, %v1020, %v1025
        %vm1028 = vcmp.eq.f32.partialorder %v1020, 0.0
        %v1029 = vand.u32 %v1020, 2147483648
        %v1030 = vsel %vm1028, %v1029, %v1027
        %v1031 = vrsqrt.pop %v1021
        %v1032 = vmul.f32 %v1021, %v1031
        %vm1033 = vcmp.eq.f32.partialorder %v1021, inf
        %v1034 = vsel %vm1033, %v1021, %v1032
        %vm1035 = vcmp.eq.f32.partialorder %v1021, 0.0
        %v1036 = vand.u32 %v1021, 2147483648
        %v1037 = vsel %vm1035, %v1036, %v1034
        %v1038 = vrsqrt.pop %v1022
        %v1039 = vmul.f32 %v1022, %v1038
        %vm1040 = vcmp.eq.f32.partialorder %v1022, inf
        %v1041 = vsel %vm1040, %v1022, %v1039
        %vm1042 = vcmp.eq.f32.partialorder %v1022, 0.0
        %v1043 = vand.u32 %v1022, 2147483648
        %v1044 = vsel %vm1042, %v1043, %v1041
        %v1045 = vrsqrt.pop %v1023
        %v1046 = vmul.f32 %v1023, %v1045
        %vm1047 = vcmp.eq.f32.partialorder %v1023, inf
        %v1048 = vsel %vm1047, %v1023, %v1046
        %vm1049 = vcmp.eq.f32.partialorder %v1023, 0.0
        %v1050 = vand.u32 %v1023, 2147483648
        %v1051 = vsel %vm1049, %v1050, %v1048
        %v1052 = vadd.f32 %v1008, %v1030
        %v1053 = vadd.f32 %v1009, %v1037
        %v1054 = vadd.f32 %v1010, %v1044
        %v1055 = vadd.f32 %v1011, %v1051
        %v1056 = vsub.f32 %v1052, 1.0
        %v1057 = vsub.f32 %v1053, 1.0
        %v1058 = vsub.f32 %v1054, 1.0
        %v1059 = vsub.f32 %v1055, 1.0
        %v1060 = vadd.f32 %v284, %v1056
        %v1061 = vadd.f32 %v285, %v1057
        %v1062 = vadd.f32 %v286, %v1058
        %v1063 = vadd.f32 %v287, %v1059
        %v1064 = vmul.f32 %v1060, %v1056
        %v1065 = vmul.f32 %v1061, %v1057
        %v1066 = vmul.f32 %v1062, %v1058
        %v1067 = vmul.f32 %v1063, %v1059
        %v1068 = vadd.f32 %v288, %v1064
        %v1069 = vadd.f32 %v289, %v1065
        %v1070 = vadd.f32 %v290, %v1066
        %v1071 = vadd.f32 %v291, %v1067
        %v1072 = vrsqrt.pop %v1068
        %v1073 = vmul.f32 %v1068, %v1072
        %vm1074 = vcmp.eq.f32.partialorder %v1068, inf
        %v1075 = vsel %vm1074, %v1068, %v1073
        %vm1076 = vcmp.eq.f32.partialorder %v1068, 0.0
        %v1077 = vand.u32 %v1068, 2147483648
        %v1078 = vsel %vm1076, %v1077, %v1075
        %v1079 = vrsqrt.pop %v1069
        %v1080 = vmul.f32 %v1069, %v1079
        %vm1081 = vcmp.eq.f32.partialorder %v1069, inf
        %v1082 = vsel %vm1081, %v1069, %v1080
        %vm1083 = vcmp.eq.f32.partialorder %v1069, 0.0
        %v1084 = vand.u32 %v1069, 2147483648
        %v1085 = vsel %vm1083, %v1084, %v1082
        %v1086 = vrsqrt.pop %v1070
        %v1087 = vmul.f32 %v1070, %v1086
        %vm1088 = vcmp.eq.f32.partialorder %v1070, inf
        %v1089 = vsel %vm1088, %v1070, %v1087
        %vm1090 = vcmp.eq.f32.partialorder %v1070, 0.0
        %v1091 = vand.u32 %v1070, 2147483648
        %v1092 = vsel %vm1090, %v1091, %v1089
        %v1093 = vrsqrt.pop %v1071
        %v1094 = vmul.f32 %v1071, %v1093
        %vm1095 = vcmp.eq.f32.partialorder %v1071, inf
        %v1096 = vsel %vm1095, %v1071, %v1094
        %vm1097 = vcmp.eq.f32.partialorder %v1071, 0.0
        %v1098 = vand.u32 %v1071, 2147483648
        %v1099 = vsel %vm1097, %v1098, %v1096
        %v1100 = vadd.f32 %v1056, %v1078
        %v1101 = vadd.f32 %v1057, %v1085
        %v1102 = vadd.f32 %v1058, %v1092
        %v1103 = vadd.f32 %v1059, %v1099
        %v1104 = vsub.f32 %v1100, 1.0
        %v1105 = vsub.f32 %v1101, 1.0
        %v1106 = vsub.f32 %v1102, 1.0
        %v1107 = vsub.f32 %v1103, 1.0
        %v1108 = vadd.f32 %v284, %v1104
        %v1109 = vadd.f32 %v285, %v1105
        %v1110 = vadd.f32 %v286, %v1106
        %v1111 = vadd.f32 %v287, %v1107
        %v1112 = vmul.f32 %v1108, %v1104
        %v1113 = vmul.f32 %v1109, %v1105
        %v1114 = vmul.f32 %v1110, %v1106
        %v1115 = vmul.f32 %v1111, %v1107
        %v1116 = vadd.f32 %v288, %v1112
        %v1117 = vadd.f32 %v289, %v1113
        %v1118 = vadd.f32 %v290, %v1114
        %v1119 = vadd.f32 %v291, %v1115
        %v1120 = vrsqrt.pop %v1116
        %v1121 = vmul.f32 %v1116, %v1120
        %vm1122 = vcmp.eq.f32.partialorder %v1116, inf
        %v1123 = vsel %vm1122, %v1116, %v1121
        %vm1124 = vcmp.eq.f32.partialorder %v1116, 0.0
        %v1125 = vand.u32 %v1116, 2147483648
        %v1126 = vsel %vm1124, %v1125, %v1123
        %v1127 = vrsqrt.pop %v1117
        %v1128 = vmul.f32 %v1117, %v1127
        %vm1129 = vcmp.eq.f32.partialorder %v1117, inf
        %v1130 = vsel %vm1129, %v1117, %v1128
        %vm1131 = vcmp.eq.f32.partialorder %v1117, 0.0
        %v1132 = vand.u32 %v1117, 2147483648
        %v1133 = vsel %vm1131, %v1132, %v1130
        %v1134 = vrsqrt.pop %v1118
        %v1135 = vmul.f32 %v1118, %v1134
        %vm1136 = vcmp.eq.f32.partialorder %v1118, inf
        %v1137 = vsel %vm1136, %v1118, %v1135
        %vm1138 = vcmp.eq.f32.partialorder %v1118, 0.0
        %v1139 = vand.u32 %v1118, 2147483648
        %v1140 = vsel %vm1138, %v1139, %v1137
        %v1141 = vrsqrt.pop %v1119
        %v1142 = vmul.f32 %v1119, %v1141
        %vm1143 = vcmp.eq.f32.partialorder %v1119, inf
        %v1144 = vsel %vm1143, %v1119, %v1142
        %vm1145 = vcmp.eq.f32.partialorder %v1119, 0.0
        %v1146 = vand.u32 %v1119, 2147483648
        %v1147 = vsel %vm1145, %v1146, %v1144
        %v1148 = vadd.f32 %v1104, %v1126
        %v1149 = vadd.f32 %v1105, %v1133
        %v1150 = vadd.f32 %v1106, %v1140
        %v1151 = vadd.f32 %v1107, %v1147
        %v1152 = vsub.f32 %v1148, 1.0
        %v1153 = vsub.f32 %v1149, 1.0
        %v1154 = vsub.f32 %v1150, 1.0
        %v1155 = vsub.f32 %v1151, 1.0
        %v1156 = vadd.f32 %v284, %v1152
        %v1157 = vadd.f32 %v285, %v1153
        %v1158 = vadd.f32 %v286, %v1154
        %v1159 = vadd.f32 %v287, %v1155
        %v1160 = vmul.f32 %v1156, %v1152
        %v1161 = vmul.f32 %v1157, %v1153
        %v1162 = vmul.f32 %v1158, %v1154
        %v1163 = vmul.f32 %v1159, %v1155
        %v1164 = vadd.f32 %v288, %v1160
        %v1165 = vadd.f32 %v289, %v1161
        %v1166 = vadd.f32 %v290, %v1162
        %v1167 = vadd.f32 %v291, %v1163
        %v1168 = vrsqrt.pop %v1164
        %v1169 = vmul.f32 %v1164, %v1168
        %vm1170 = vcmp.eq.f32.partialorder %v1164, inf
        %v1171 = vsel %vm1170, %v1164, %v1169
        %vm1172 = vcmp.eq.f32.partialorder %v1164, 0.0
        %v1173 = vand.u32 %v1164, 2147483648
        %v1174 = vsel %vm1172, %v1173, %v1171
        %v1175 = vrsqrt.pop %v1165
        %v1176 = vmul.f32 %v1165, %v1175
        %vm1177 = vcmp.eq.f32.partialorder %v1165, inf
        %v1178 = vsel %vm1177, %v1165, %v1176
        %vm1179 = vcmp.eq.f32.partialorder %v1165, 0.0
        %v1180 = vand.u32 %v1165, 2147483648
        %v1181 = vsel %vm1179, %v1180, %v1178
        %v1182 = vrsqrt.pop %v1166
        %v1183 = vmul.f32 %v1166, %v1182
        %vm1184 = vcmp.eq.f32.partialorder %v1166, inf
        %v1185 = vsel %vm1184, %v1166, %v1183
        %vm1186 = vcmp.eq.f32.partialorder %v1166, 0.0
        %v1187 = vand.u32 %v1166, 2147483648
        %v1188 = vsel %vm1186, %v1187, %v1185
        %v1189 = vrsqrt.pop %v1167
        %v1190 = vmul.f32 %v1167, %v1189
        %vm1191 = vcmp.eq.f32.partialorder %v1167, inf
        %v1192 = vsel %vm1191, %v1167, %v1190
        %vm1193 = vcmp.eq.f32.partialorder %v1167, 0.0
        %v1194 = vand.u32 %v1167, 2147483648
        %v1195 = vsel %vm1193, %v1194, %v1192
        %v1196 = vadd.f32 %v1152, %v1174
        %v1197 = vadd.f32 %v1153, %v1181
        %v1198 = vadd.f32 %v1154, %v1188
        %v1199 = vadd.f32 %v1155, %v1195
        %v1200 = vsub.f32 %v1196, 1.0
        %v1201 = vsub.f32 %v1197, 1.0
        %v1202 = vsub.f32 %v1198, 1.0
        %v1203 = vsub.f32 %v1199, 1.0
        %v1204 = vadd.f32 %v284, %v1200
        %v1205 = vadd.f32 %v285, %v1201
        %v1206 = vadd.f32 %v286, %v1202
        %v1207 = vadd.f32 %v287, %v1203
        %v1208 = vmul.f32 %v1204, %v1200
        %v1209 = vmul.f32 %v1205, %v1201
        %v1210 = vmul.f32 %v1206, %v1202
        %v1211 = vmul.f32 %v1207, %v1203
        %v1212 = vadd.f32 %v288, %v1208
        %v1213 = vadd.f32 %v289, %v1209
        %v1214 = vadd.f32 %v290, %v1210
        %v1215 = vadd.f32 %v291, %v1211
        %v1216 = vrsqrt.pop %v1212
        %v1217 = vmul.f32 %v1212, %v1216
        %vm1218 = vcmp.eq.f32.partialorder %v1212, inf
        %v1219 = vsel %vm1218, %v1212, %v1217
        %vm1220 = vcmp.eq.f32.partialorder %v1212, 0.0
        %v1221 = vand.u32 %v1212, 2147483648
        %v1222 = vsel %vm1220, %v1221, %v1219
        %v1223 = vrsqrt.pop %v1213
        %v1224 = vmul.f32 %v1213, %v1223
        %vm1225 = vcmp.eq.f32.partialorder %v1213, inf
        %v1226 = vsel %vm1225, %v1213, %v1224
        %vm1227 = vcmp.eq.f32.partialorder %v1213, 0.0
        %v1228 = vand.u32 %v1213, 2147483648
        %v1229 = vsel %vm1227, %v1228, %v1226
        %v1230 = vrsqrt.pop %v1214
        %v1231 = vmul.f32 %v1214, %v1230
        %vm1232 = vcmp.eq.f32.partialorder %v1214, inf
        %v1233 = vsel %vm1232, %v1214, %v1231
        %vm1234 = vcmp.eq.f32.partialorder %v1214, 0.0
        %v1235 = vand.u32 %v1214, 2147483648
        %v1236 = vsel %vm1234, %v1235, %v1233
        %v1237 = vrsqrt.pop %v1215
        %v1238 = vmul.f32 %v1215, %v1237
        %vm1239 = vcmp.eq.f32.partialorder %v1215, inf
        %v1240 = vsel %vm1239, %v1215, %v1238
        %vm1241 = vcmp.eq.f32.partialorder %v1215, 0.0
        %v1242 = vand.u32 %v1215, 2147483648
        %v1243 = vsel %vm1241, %v1242, %v1240
        %v1244 = vadd.f32 %v1200, %v1222
        %v1245 = vadd.f32 %v1201, %v1229
        %v1246 = vadd.f32 %v1202, %v1236
        %v1247 = vadd.f32 %v1203, %v1243
        %v1248 = vsub.f32 %v1244, 1.0
        %v1249 = vsub.f32 %v1245, 1.0
        %v1250 = vsub.f32 %v1246, 1.0
        %v1251 = vsub.f32 %v1247, 1.0
        %v1252 = vadd.f32 %v284, %v1248
        %v1253 = vadd.f32 %v285, %v1249
        %v1254 = vadd.f32 %v286, %v1250
        %v1255 = vadd.f32 %v287, %v1251
        %v1256 = vmul.f32 %v1252, %v1248
        %v1257 = vmul.f32 %v1253, %v1249
        %v1258 = vmul.f32 %v1254, %v1250
        %v1259 = vmul.f32 %v1255, %v1251
        %v1260 = vadd.f32 %v288, %v1256
        %v1261 = vadd.f32 %v289, %v1257
        %v1262 = vadd.f32 %v290, %v1258
        %v1263 = vadd.f32 %v291, %v1259
        %v1264 = vrsqrt.pop %v1260
        %v1265 = vmul.f32 %v1260, %v1264
        %vm1266 = vcmp.eq.f32.partialorder %v1260, inf
        %v1267 = vsel %vm1266, %v1260, %v1265
        %vm1268 = vcmp.eq.f32.partialorder %v1260, 0.0
        %v1269 = vand.u32 %v1260, 2147483648
        %v1270 = vsel %vm1268, %v1269, %v1267
        %v1271 = vrsqrt.pop %v1261
        %v1272 = vmul.f32 %v1261, %v1271
        %vm1273 = vcmp.eq.f32.partialorder %v1261, inf
        %v1274 = vsel %vm1273, %v1261, %v1272
        %vm1275 = vcmp.eq.f32.partialorder %v1261, 0.0
        %v1276 = vand.u32 %v1261, 2147483648
        %v1277 = vsel %vm1275, %v1276, %v1274
        %v1278 = vrsqrt.pop %v1262
        %v1279 = vmul.f32 %v1262, %v1278
        %vm1280 = vcmp.eq.f32.partialorder %v1262, inf
        %v1281 = vsel %vm1280, %v1262, %v1279
        %vm1282 = vcmp.eq.f32.partialorder %v1262, 0.0
        %v1283 = vand.u32 %v1262, 2147483648
        %v1284 = vsel %vm1282, %v1283, %v1281
        %v1285 = vrsqrt.pop %v1263
        %v1286 = vmul.f32 %v1263, %v1285
        %vm1287 = vcmp.eq.f32.partialorder %v1263, inf
        %v1288 = vsel %vm1287, %v1263, %v1286
        %vm1289 = vcmp.eq.f32.partialorder %v1263, 0.0
        %v1290 = vand.u32 %v1263, 2147483648
        %v1291 = vsel %vm1289, %v1290, %v1288
        %v1292 = vadd.f32 %v1248, %v1270
        %v1293 = vadd.f32 %v1249, %v1277
        %v1294 = vadd.f32 %v1250, %v1284
        %v1295 = vadd.f32 %v1251, %v1291
        %v1296 = vsub.f32 %v1292, 1.0
        %v1297 = vsub.f32 %v1293, 1.0
        %v1298 = vsub.f32 %v1294, 1.0
        %v1299 = vsub.f32 %v1295, 1.0
        %v1300 = vadd.f32 %v284, %v1296
        %v1301 = vadd.f32 %v285, %v1297
        %v1302 = vadd.f32 %v286, %v1298
        %v1303 = vadd.f32 %v287, %v1299
        %v1304 = vmul.f32 %v1300, %v1296
        %v1305 = vmul.f32 %v1301, %v1297
        %v1306 = vmul.f32 %v1302, %v1298
        %v1307 = vmul.f32 %v1303, %v1299
        %v1308 = vadd.f32 %v288, %v1304
        %v1309 = vadd.f32 %v289, %v1305
        %v1310 = vadd.f32 %v290, %v1306
        %v1311 = vadd.f32 %v291, %v1307
        %v1312 = vrsqrt.pop %v1308
        %v1313 = vmul.f32 %v1308, %v1312
        %vm1314 = vcmp.eq.f32.partialorder %v1308, inf
        %v1315 = vsel %vm1314, %v1308, %v1313
        %vm1316 = vcmp.eq.f32.partialorder %v1308, 0.0
        %v1317 = vand.u32 %v1308, 2147483648
        %v1318 = vsel %vm1316, %v1317, %v1315
        %v1319 = vrsqrt.pop %v1309
        %v1320 = vmul.f32 %v1309, %v1319
        %vm1321 = vcmp.eq.f32.partialorder %v1309, inf
        %v1322 = vsel %vm1321, %v1309, %v1320
        %vm1323 = vcmp.eq.f32.partialorder %v1309, 0.0
        %v1324 = vand.u32 %v1309, 2147483648
        %v1325 = vsel %vm1323, %v1324, %v1322
        %v1326 = vrsqrt.pop %v1310
        %v1327 = vmul.f32 %v1310, %v1326
        %vm1328 = vcmp.eq.f32.partialorder %v1310, inf
        %v1329 = vsel %vm1328, %v1310, %v1327
        %vm1330 = vcmp.eq.f32.partialorder %v1310, 0.0
        %v1331 = vand.u32 %v1310, 2147483648
        %v1332 = vsel %vm1330, %v1331, %v1329
        %v1333 = vrsqrt.pop %v1311
        %v1334 = vmul.f32 %v1311, %v1333
        %vm1335 = vcmp.eq.f32.partialorder %v1311, inf
        %v1336 = vsel %vm1335, %v1311, %v1334
        %vm1337 = vcmp.eq.f32.partialorder %v1311, 0.0
        %v1338 = vand.u32 %v1311, 2147483648
        %v1339 = vsel %vm1337, %v1338, %v1336
        %v1340 = vadd.f32 %v1296, %v1318
        %v1341 = vadd.f32 %v1297, %v1325
        %v1342 = vadd.f32 %v1298, %v1332
        %v1343 = vadd.f32 %v1299, %v1339
        %v1344 = vsub.f32 %v1340, 1.0
        %v1345 = vsub.f32 %v1341, 1.0
        %v1346 = vsub.f32 %v1342, 1.0
        %v1347 = vsub.f32 %v1343, 1.0
        %v1348 = vadd.f32 %v284, %v1344
        %v1349 = vadd.f32 %v285, %v1345
        %v1350 = vadd.f32 %v286, %v1346
        %v1351 = vadd.f32 %v287, %v1347
        %v1352 = vmul.f32 %v1348, %v1344
        %v1353 = vmul.f32 %v1349, %v1345
        %v1354 = vmul.f32 %v1350, %v1346
        %v1355 = vmul.f32 %v1351, %v1347
        %v1356 = vadd.f32 %v288, %v1352
        %v1357 = vadd.f32 %v289, %v1353
        %v1358 = vadd.f32 %v290, %v1354
        %v1359 = vadd.f32 %v291, %v1355
        %v1360 = vrsqrt.pop %v1356
        %v1361 = vmul.f32 %v1356, %v1360
        %vm1362 = vcmp.eq.f32.partialorder %v1356, inf
        %v1363 = vsel %vm1362, %v1356, %v1361
        %vm1364 = vcmp.eq.f32.partialorder %v1356, 0.0
        %v1365 = vand.u32 %v1356, 2147483648
        %v1366 = vsel %vm1364, %v1365, %v1363
        %v1367 = vrsqrt.pop %v1357
        %v1368 = vmul.f32 %v1357, %v1367
        %vm1369 = vcmp.eq.f32.partialorder %v1357, inf
        %v1370 = vsel %vm1369, %v1357, %v1368
        %vm1371 = vcmp.eq.f32.partialorder %v1357, 0.0
        %v1372 = vand.u32 %v1357, 2147483648
        %v1373 = vsel %vm1371, %v1372, %v1370
        %v1374 = vrsqrt.pop %v1358
        %v1375 = vmul.f32 %v1358, %v1374
        %vm1376 = vcmp.eq.f32.partialorder %v1358, inf
        %v1377 = vsel %vm1376, %v1358, %v1375
        %vm1378 = vcmp.eq.f32.partialorder %v1358, 0.0
        %v1379 = vand.u32 %v1358, 2147483648
        %v1380 = vsel %vm1378, %v1379, %v1377
        %v1381 = vrsqrt.pop %v1359
        %v1382 = vmul.f32 %v1359, %v1381
        %vm1383 = vcmp.eq.f32.partialorder %v1359, inf
        %v1384 = vsel %vm1383, %v1359, %v1382
        %vm1385 = vcmp.eq.f32.partialorder %v1359, 0.0
        %v1386 = vand.u32 %v1359, 2147483648
        %v1387 = vsel %vm1385, %v1386, %v1384
        %v1388 = vadd.f32 %v1344, %v1366
        %v1389 = vadd.f32 %v1345, %v1373
        %v1390 = vadd.f32 %v1346, %v1380
        %v1391 = vadd.f32 %v1347, %v1387
        %v1392 = vsub.f32 %v1388, 1.0
        %v1393 = vsub.f32 %v1389, 1.0
        %v1394 = vsub.f32 %v1390, 1.0
        %v1395 = vsub.f32 %v1391, 1.0
        %v1396 = vadd.f32 %v284, %v1392
        %v1397 = vadd.f32 %v285, %v1393
        %v1398 = vadd.f32 %v286, %v1394
        %v1399 = vadd.f32 %v287, %v1395
        %v1400 = vmul.f32 %v1396, %v1392
        %v1401 = vmul.f32 %v1397, %v1393
        %v1402 = vmul.f32 %v1398, %v1394
        %v1403 = vmul.f32 %v1399, %v1395
        %v1404 = vadd.f32 %v288, %v1400
        %v1405 = vadd.f32 %v289, %v1401
        %v1406 = vadd.f32 %v290, %v1402
        %v1407 = vadd.f32 %v291, %v1403
        %v1408 = vrsqrt.pop %v1404
        %v1409 = vmul.f32 %v1404, %v1408
        %vm1410 = vcmp.eq.f32.partialorder %v1404, inf
        %v1411 = vsel %vm1410, %v1404, %v1409
        %vm1412 = vcmp.eq.f32.partialorder %v1404, 0.0
        %v1413 = vand.u32 %v1404, 2147483648
        %v1414 = vsel %vm1412, %v1413, %v1411
        %v1415 = vrsqrt.pop %v1405
        %v1416 = vmul.f32 %v1405, %v1415
        %vm1417 = vcmp.eq.f32.partialorder %v1405, inf
        %v1418 = vsel %vm1417, %v1405, %v1416
        %vm1419 = vcmp.eq.f32.partialorder %v1405, 0.0
        %v1420 = vand.u32 %v1405, 2147483648
        %v1421 = vsel %vm1419, %v1420, %v1418
        %v1422 = vrsqrt.pop %v1406
        %v1423 = vmul.f32 %v1406, %v1422
        %vm1424 = vcmp.eq.f32.partialorder %v1406, inf
        %v1425 = vsel %vm1424, %v1406, %v1423
        %vm1426 = vcmp.eq.f32.partialorder %v1406, 0.0
        %v1427 = vand.u32 %v1406, 2147483648
        %v1428 = vsel %vm1426, %v1427, %v1425
        %v1429 = vrsqrt.pop %v1407
        %v1430 = vmul.f32 %v1407, %v1429
        %vm1431 = vcmp.eq.f32.partialorder %v1407, inf
        %v1432 = vsel %vm1431, %v1407, %v1430
        %vm1433 = vcmp.eq.f32.partialorder %v1407, 0.0
        %v1434 = vand.u32 %v1407, 2147483648
        %v1435 = vsel %vm1433, %v1434, %v1432
        %v1436 = vadd.f32 %v1392, %v1414
        %v1437 = vadd.f32 %v1393, %v1421
        %v1438 = vadd.f32 %v1394, %v1428
        %v1439 = vadd.f32 %v1395, %v1435
        %v1440 = vsub.f32 %v1436, 1.0
        %v1441 = vsub.f32 %v1437, 1.0
        %v1442 = vsub.f32 %v1438, 1.0
        %v1443 = vsub.f32 %v1439, 1.0
        %v1444 = vadd.f32 %v284, %v1440
        %v1445 = vadd.f32 %v285, %v1441
        %v1446 = vadd.f32 %v286, %v1442
        %v1447 = vadd.f32 %v287, %v1443
        %v1448 = vmul.f32 %v1444, %v1440
        %v1449 = vmul.f32 %v1445, %v1441
        %v1450 = vmul.f32 %v1446, %v1442
        %v1451 = vmul.f32 %v1447, %v1443
        %v1452 = vadd.f32 %v288, %v1448
        %v1453 = vadd.f32 %v289, %v1449
        %v1454 = vadd.f32 %v290, %v1450
        %v1455 = vadd.f32 %v291, %v1451
        %v1456 = vrsqrt.pop %v1452
        %v1457 = vmul.f32 %v1452, %v1456
        %vm1458 = vcmp.eq.f32.partialorder %v1452, inf
        %v1459 = vsel %vm1458, %v1452, %v1457
        %vm1460 = vcmp.eq.f32.partialorder %v1452, 0.0
        %v1461 = vand.u32 %v1452, 2147483648
        %v1462 = vsel %vm1460, %v1461, %v1459
        %v1463 = vrsqrt.pop %v1453
        %v1464 = vmul.f32 %v1453, %v1463
        %vm1465 = vcmp.eq.f32.partialorder %v1453, inf
        %v1466 = vsel %vm1465, %v1453, %v1464
        %vm1467 = vcmp.eq.f32.partialorder %v1453, 0.0
        %v1468 = vand.u32 %v1453, 2147483648
        %v1469 = vsel %vm1467, %v1468, %v1466
        %v1470 = vrsqrt.pop %v1454
        %v1471 = vmul.f32 %v1454, %v1470
        %vm1472 = vcmp.eq.f32.partialorder %v1454, inf
        %v1473 = vsel %vm1472, %v1454, %v1471
        %vm1474 = vcmp.eq.f32.partialorder %v1454, 0.0
        %v1475 = vand.u32 %v1454, 2147483648
        %v1476 = vsel %vm1474, %v1475, %v1473
        %v1477 = vrsqrt.pop %v1455
        %v1478 = vmul.f32 %v1455, %v1477
        %vm1479 = vcmp.eq.f32.partialorder %v1455, inf
        %v1480 = vsel %vm1479, %v1455, %v1478
        %vm1481 = vcmp.eq.f32.partialorder %v1455, 0.0
        %v1482 = vand.u32 %v1455, 2147483648
        %v1483 = vsel %vm1481, %v1482, %v1480
        %v1484 = vadd.f32 %v1440, %v1462
        %v1485 = vadd.f32 %v1441, %v1469
        %v1486 = vadd.f32 %v1442, %v1476
        %v1487 = vadd.f32 %v1443, %v1483
        %v1488 = vsub.f32 %v1484, 1.0
        %v1489 = vsub.f32 %v1485, 1.0
        %v1490 = vsub.f32 %v1486, 1.0
        %v1491 = vsub.f32 %v1487, 1.0
        %v1492 = vadd.f32 %v284, %v1488
        %v1493 = vadd.f32 %v285, %v1489
        %v1494 = vadd.f32 %v286, %v1490
        %v1495 = vadd.f32 %v287, %v1491
        %v1496 = vmul.f32 %v1492, %v1488
        %v1497 = vmul.f32 %v1493, %v1489
        %v1498 = vmul.f32 %v1494, %v1490
        %v1499 = vmul.f32 %v1495, %v1491
        %v1500 = vadd.f32 %v288, %v1496
        %v1501 = vadd.f32 %v289, %v1497
        %v1502 = vadd.f32 %v290, %v1498
        %v1503 = vadd.f32 %v291, %v1499
        %v1504 = vrsqrt.pop %v1500
        %v1505 = vmul.f32 %v1500, %v1504
        %vm1506 = vcmp.eq.f32.partialorder %v1500, inf
        %v1507 = vsel %vm1506, %v1500, %v1505
        %vm1508 = vcmp.eq.f32.partialorder %v1500, 0.0
        %v1509 = vand.u32 %v1500, 2147483648
        %v1510 = vsel %vm1508, %v1509, %v1507
        %v1511 = vrsqrt.pop %v1501
        %v1512 = vmul.f32 %v1501, %v1511
        %vm1513 = vcmp.eq.f32.partialorder %v1501, inf
        %v1514 = vsel %vm1513, %v1501, %v1512
        %vm1515 = vcmp.eq.f32.partialorder %v1501, 0.0
        %v1516 = vand.u32 %v1501, 2147483648
        %v1517 = vsel %vm1515, %v1516, %v1514
        %v1518 = vrsqrt.pop %v1502
        %v1519 = vmul.f32 %v1502, %v1518
        %vm1520 = vcmp.eq.f32.partialorder %v1502, inf
        %v1521 = vsel %vm1520, %v1502, %v1519
        %vm1522 = vcmp.eq.f32.partialorder %v1502, 0.0
        %v1523 = vand.u32 %v1502, 2147483648
        %v1524 = vsel %vm1522, %v1523, %v1521
        %v1525 = vrsqrt.pop %v1503
        %v1526 = vmul.f32 %v1503, %v1525
        %vm1527 = vcmp.eq.f32.partialorder %v1503, inf
        %v1528 = vsel %vm1527, %v1503, %v1526
        %vm1529 = vcmp.eq.f32.partialorder %v1503, 0.0
        %v1530 = vand.u32 %v1503, 2147483648
        %v1531 = vsel %vm1529, %v1530, %v1528
        %v1532 = vadd.f32 %v1488, %v1510
        %v1533 = vadd.f32 %v1489, %v1517
        %v1534 = vadd.f32 %v1490, %v1524
        %v1535 = vadd.f32 %v1491, %v1531
        %v1536 = vsub.f32 %v1532, 1.0
        %v1537 = vsub.f32 %v1533, 1.0
        %v1538 = vsub.f32 %v1534, 1.0
        %v1539 = vsub.f32 %v1535, 1.0
        %v1540 = vadd.f32 %v284, %v1536
        %v1541 = vadd.f32 %v285, %v1537
        %v1542 = vadd.f32 %v286, %v1538
        %v1543 = vadd.f32 %v287, %v1539
        %v1544 = vmul.f32 %v1540, %v1536
        %v1545 = vmul.f32 %v1541, %v1537
        %v1546 = vmul.f32 %v1542, %v1538
        %v1547 = vmul.f32 %v1543, %v1539
        %v1548 = vadd.f32 %v288, %v1544
        %v1549 = vadd.f32 %v289, %v1545
        %v1550 = vadd.f32 %v290, %v1546
        %v1551 = vadd.f32 %v291, %v1547
        %v1552 = vrsqrt.pop %v1548
        %v1553 = vmul.f32 %v1548, %v1552
        %vm1554 = vcmp.eq.f32.partialorder %v1548, inf
        %v1555 = vsel %vm1554, %v1548, %v1553
        %vm1556 = vcmp.eq.f32.partialorder %v1548, 0.0
        %v1557 = vand.u32 %v1548, 2147483648
        %v1558 = vsel %vm1556, %v1557, %v1555
        %v1559 = vrsqrt.pop %v1549
        %v1560 = vmul.f32 %v1549, %v1559
        %vm1561 = vcmp.eq.f32.partialorder %v1549, inf
        %v1562 = vsel %vm1561, %v1549, %v1560
        %vm1563 = vcmp.eq.f32.partialorder %v1549, 0.0
        %v1564 = vand.u32 %v1549, 2147483648
        %v1565 = vsel %vm1563, %v1564, %v1562
        %v1566 = vrsqrt.pop %v1550
        %v1567 = vmul.f32 %v1550, %v1566
        %vm1568 = vcmp.eq.f32.partialorder %v1550, inf
        %v1569 = vsel %vm1568, %v1550, %v1567
        %vm1570 = vcmp.eq.f32.partialorder %v1550, 0.0
        %v1571 = vand.u32 %v1550, 2147483648
        %v1572 = vsel %vm1570, %v1571, %v1569
        %v1573 = vrsqrt.pop %v1551
        %v1574 = vmul.f32 %v1551, %v1573
        %vm1575 = vcmp.eq.f32.partialorder %v1551, inf
        %v1576 = vsel %vm1575, %v1551, %v1574
        %vm1577 = vcmp.eq.f32.partialorder %v1551, 0.0
        %v1578 = vand.u32 %v1551, 2147483648
        %v1579 = vsel %vm1577, %v1578, %v1576
        %v1580 = vadd.f32 %v1536, %v1558
        %v1581 = vadd.f32 %v1537, %v1565
        %v1582 = vadd.f32 %v1538, %v1572
        %v1583 = vadd.f32 %v1539, %v1579
        %v1584 = vsub.f32 %v1580, 1.0
        %v1585 = vsub.f32 %v1581, 1.0
        %v1586 = vsub.f32 %v1582, 1.0
        %v1587 = vsub.f32 %v1583, 1.0
        %v1588 = vadd.f32 %v284, %v1584
        %v1589 = vadd.f32 %v285, %v1585
        %v1590 = vadd.f32 %v286, %v1586
        %v1591 = vadd.f32 %v287, %v1587
        %v1592 = vmul.f32 %v1588, %v1584
        %v1593 = vmul.f32 %v1589, %v1585
        %v1594 = vmul.f32 %v1590, %v1586
        %v1595 = vmul.f32 %v1591, %v1587
        %v1596 = vadd.f32 %v288, %v1592
        %v1597 = vadd.f32 %v289, %v1593
        %v1598 = vadd.f32 %v290, %v1594
        %v1599 = vadd.f32 %v291, %v1595
        %v1600 = vrsqrt.pop %v1596
        %v1601 = vmul.f32 %v1596, %v1600
        %vm1602 = vcmp.eq.f32.partialorder %v1596, inf
        %v1603 = vsel %vm1602, %v1596, %v1601
        %vm1604 = vcmp.eq.f32.partialorder %v1596, 0.0
        %v1605 = vand.u32 %v1596, 2147483648
        %v1606 = vsel %vm1604, %v1605, %v1603
        %v1607 = vrsqrt.pop %v1597
        %v1608 = vmul.f32 %v1597, %v1607
        %vm1609 = vcmp.eq.f32.partialorder %v1597, inf
        %v1610 = vsel %vm1609, %v1597, %v1608
        %vm1611 = vcmp.eq.f32.partialorder %v1597, 0.0
        %v1612 = vand.u32 %v1597, 2147483648
        %v1613 = vsel %vm1611, %v1612, %v1610
        %v1614 = vrsqrt.pop %v1598
        %v1615 = vmul.f32 %v1598, %v1614
        %vm1616 = vcmp.eq.f32.partialorder %v1598, inf
        %v1617 = vsel %vm1616, %v1598, %v1615
        %vm1618 = vcmp.eq.f32.partialorder %v1598, 0.0
        %v1619 = vand.u32 %v1598, 2147483648
        %v1620 = vsel %vm1618, %v1619, %v1617
        %v1621 = vrsqrt.pop %v1599
        %v1622 = vmul.f32 %v1599, %v1621
        %vm1623 = vcmp.eq.f32.partialorder %v1599, inf
        %v1624 = vsel %vm1623, %v1599, %v1622
        %vm1625 = vcmp.eq.f32.partialorder %v1599, 0.0
        %v1626 = vand.u32 %v1599, 2147483648
        %v1627 = vsel %vm1625, %v1626, %v1624
        %v1628 = vadd.f32 %v1584, %v1606
        %v1629 = vadd.f32 %v1585, %v1613
        %v1630 = vadd.f32 %v1586, %v1620
        %v1631 = vadd.f32 %v1587, %v1627
        %v1632 = vsub.f32 %v1628, 1.0
        %v1633 = vsub.f32 %v1629, 1.0
        %v1634 = vsub.f32 %v1630, 1.0
        %v1635 = vsub.f32 %v1631, 1.0
        %v1636 = vadd.f32 %v284, %v1632
        %v1637 = vadd.f32 %v285, %v1633
        %v1638 = vadd.f32 %v286, %v1634
        %v1639 = vadd.f32 %v287, %v1635
        %v1640 = vmul.f32 %v1636, %v1632
        %v1641 = vmul.f32 %v1637, %v1633
        %v1642 = vmul.f32 %v1638, %v1634
        %v1643 = vmul.f32 %v1639, %v1635
        %v1644 = vadd.f32 %v288, %v1640
        %v1645 = vadd.f32 %v289, %v1641
        %v1646 = vadd.f32 %v290, %v1642
        %v1647 = vadd.f32 %v291, %v1643
        %v1648 = vrsqrt.pop %v1644
        %v1649 = vmul.f32 %v1644, %v1648
        %vm1650 = vcmp.eq.f32.partialorder %v1644, inf
        %v1651 = vsel %vm1650, %v1644, %v1649
        %vm1652 = vcmp.eq.f32.partialorder %v1644, 0.0
        %v1653 = vand.u32 %v1644, 2147483648
        %v1654 = vsel %vm1652, %v1653, %v1651
        %v1655 = vrsqrt.pop %v1645
        %v1656 = vmul.f32 %v1645, %v1655
        %vm1657 = vcmp.eq.f32.partialorder %v1645, inf
        %v1658 = vsel %vm1657, %v1645, %v1656
        %vm1659 = vcmp.eq.f32.partialorder %v1645, 0.0
        %v1660 = vand.u32 %v1645, 2147483648
        %v1661 = vsel %vm1659, %v1660, %v1658
        %v1662 = vrsqrt.pop %v1646
        %v1663 = vmul.f32 %v1646, %v1662
        %vm1664 = vcmp.eq.f32.partialorder %v1646, inf
        %v1665 = vsel %vm1664, %v1646, %v1663
        %vm1666 = vcmp.eq.f32.partialorder %v1646, 0.0
        %v1667 = vand.u32 %v1646, 2147483648
        %v1668 = vsel %vm1666, %v1667, %v1665
        %v1669 = vrsqrt.pop %v1647
        %v1670 = vmul.f32 %v1647, %v1669
        %vm1671 = vcmp.eq.f32.partialorder %v1647, inf
        %v1672 = vsel %vm1671, %v1647, %v1670
        %vm1673 = vcmp.eq.f32.partialorder %v1647, 0.0
        %v1674 = vand.u32 %v1647, 2147483648
        %v1675 = vsel %vm1673, %v1674, %v1672
        %v1676 = vadd.f32 %v1632, %v1654
        %v1677 = vadd.f32 %v1633, %v1661
        %v1678 = vadd.f32 %v1634, %v1668
        %v1679 = vadd.f32 %v1635, %v1675
        %v1680 = vsub.f32 %v1676, 1.0
        %v1681 = vsub.f32 %v1677, 1.0
        %v1682 = vsub.f32 %v1678, 1.0
        %v1683 = vsub.f32 %v1679, 1.0
        %v1684 = vadd.f32 %v284, %v1680
        %v1685 = vadd.f32 %v285, %v1681
        %v1686 = vadd.f32 %v286, %v1682
        %v1687 = vadd.f32 %v287, %v1683
        %v1688 = vmul.f32 %v1684, %v1680
        %v1689 = vmul.f32 %v1685, %v1681
        %v1690 = vmul.f32 %v1686, %v1682
        %v1691 = vmul.f32 %v1687, %v1683
        %v1692 = vadd.f32 %v288, %v1688
        %v1693 = vadd.f32 %v289, %v1689
        %v1694 = vadd.f32 %v290, %v1690
        %v1695 = vadd.f32 %v291, %v1691
        %v1696 = vrsqrt.pop %v1692
        %v1697 = vmul.f32 %v1692, %v1696
        %vm1698 = vcmp.eq.f32.partialorder %v1692, inf
        %v1699 = vsel %vm1698, %v1692, %v1697
        %vm1700 = vcmp.eq.f32.partialorder %v1692, 0.0
        %v1701 = vand.u32 %v1692, 2147483648
        %v1702 = vsel %vm1700, %v1701, %v1699
        %v1703 = vrsqrt.pop %v1693
        %v1704 = vmul.f32 %v1693, %v1703
        %vm1705 = vcmp.eq.f32.partialorder %v1693, inf
        %v1706 = vsel %vm1705, %v1693, %v1704
        %vm1707 = vcmp.eq.f32.partialorder %v1693, 0.0
        %v1708 = vand.u32 %v1693, 2147483648
        %v1709 = vsel %vm1707, %v1708, %v1706
        %v1710 = vrsqrt.pop %v1694
        %v1711 = vmul.f32 %v1694, %v1710
        %vm1712 = vcmp.eq.f32.partialorder %v1694, inf
        %v1713 = vsel %vm1712, %v1694, %v1711
        %vm1714 = vcmp.eq.f32.partialorder %v1694, 0.0
        %v1715 = vand.u32 %v1694, 2147483648
        %v1716 = vsel %vm1714, %v1715, %v1713
        %v1717 = vrsqrt.pop %v1695
        %v1718 = vmul.f32 %v1695, %v1717
        %vm1719 = vcmp.eq.f32.partialorder %v1695, inf
        %v1720 = vsel %vm1719, %v1695, %v1718
        %vm1721 = vcmp.eq.f32.partialorder %v1695, 0.0
        %v1722 = vand.u32 %v1695, 2147483648
        %v1723 = vsel %vm1721, %v1722, %v1720
        %v1724 = vadd.f32 %v1680, %v1702
        %v1725 = vadd.f32 %v1681, %v1709
        %v1726 = vadd.f32 %v1682, %v1716
        %v1727 = vadd.f32 %v1683, %v1723
        %v1728 = vsub.f32 %v1724, 1.0
        %v1729 = vsub.f32 %v1725, 1.0
        %v1730 = vsub.f32 %v1726, 1.0
        %v1731 = vsub.f32 %v1727, 1.0
        %v1732 = vadd.f32 %v284, %v1728
        %v1733 = vadd.f32 %v285, %v1729
        %v1734 = vadd.f32 %v286, %v1730
        %v1735 = vadd.f32 %v287, %v1731
        %v1736 = vmul.f32 %v1732, %v1728
        %v1737 = vmul.f32 %v1733, %v1729
        %v1738 = vmul.f32 %v1734, %v1730
        %v1739 = vmul.f32 %v1735, %v1731
        %v1740 = vadd.f32 %v288, %v1736
        %v1741 = vadd.f32 %v289, %v1737
        %v1742 = vadd.f32 %v290, %v1738
        %v1743 = vadd.f32 %v291, %v1739
        %v1744 = vrsqrt.pop %v1740
        %v1745 = vmul.f32 %v1740, %v1744
        %vm1746 = vcmp.eq.f32.partialorder %v1740, inf
        %v1747 = vsel %vm1746, %v1740, %v1745
        %vm1748 = vcmp.eq.f32.partialorder %v1740, 0.0
        %v1749 = vand.u32 %v1740, 2147483648
        %v1750 = vsel %vm1748, %v1749, %v1747
        %v1751 = vrsqrt.pop %v1741
        %v1752 = vmul.f32 %v1741, %v1751
        %vm1753 = vcmp.eq.f32.partialorder %v1741, inf
        %v1754 = vsel %vm1753, %v1741, %v1752
        %vm1755 = vcmp.eq.f32.partialorder %v1741, 0.0
        %v1756 = vand.u32 %v1741, 2147483648
        %v1757 = vsel %vm1755, %v1756, %v1754
        %v1758 = vrsqrt.pop %v1742
        %v1759 = vmul.f32 %v1742, %v1758
        %vm1760 = vcmp.eq.f32.partialorder %v1742, inf
        %v1761 = vsel %vm1760, %v1742, %v1759
        %vm1762 = vcmp.eq.f32.partialorder %v1742, 0.0
        %v1763 = vand.u32 %v1742, 2147483648
        %v1764 = vsel %vm1762, %v1763, %v1761
        %v1765 = vrsqrt.pop %v1743
        %v1766 = vmul.f32 %v1743, %v1765
        %vm1767 = vcmp.eq.f32.partialorder %v1743, inf
        %v1768 = vsel %vm1767, %v1743, %v1766
        %vm1769 = vcmp.eq.f32.partialorder %v1743, 0.0
        %v1770 = vand.u32 %v1743, 2147483648
        %v1771 = vsel %vm1769, %v1770, %v1768
        %v1772 = vadd.f32 %v1728, %v1750
        %v1773 = vadd.f32 %v1729, %v1757
        %v1774 = vadd.f32 %v1730, %v1764
        %v1775 = vadd.f32 %v1731, %v1771
        %v1776 = vsub.f32 %v1772, 1.0
        %v1777 = vsub.f32 %v1773, 1.0
        %v1778 = vsub.f32 %v1774, 1.0
        %v1779 = vsub.f32 %v1775, 1.0
        %v1780 = vadd.f32 %v284, %v1776
        %v1781 = vadd.f32 %v285, %v1777
        %v1782 = vadd.f32 %v286, %v1778
        %v1783 = vadd.f32 %v287, %v1779
        %v1784 = vmul.f32 %v1780, %v1776
        %v1785 = vmul.f32 %v1781, %v1777
        %v1786 = vmul.f32 %v1782, %v1778
        %v1787 = vmul.f32 %v1783, %v1779
        %v1788 = vadd.f32 %v288, %v1784
        %v1789 = vadd.f32 %v289, %v1785
        %v1790 = vadd.f32 %v290, %v1786
        %v1791 = vadd.f32 %v291, %v1787
        %v1792 = vrsqrt.pop %v1788
        %v1793 = vmul.f32 %v1788, %v1792
        %vm1794 = vcmp.eq.f32.partialorder %v1788, inf
        %v1795 = vsel %vm1794, %v1788, %v1793
        %vm1796 = vcmp.eq.f32.partialorder %v1788, 0.0
        %v1797 = vand.u32 %v1788, 2147483648
        %v1798 = vsel %vm1796, %v1797, %v1795
        %v1799 = vrsqrt.pop %v1789
        %v1800 = vmul.f32 %v1789, %v1799
        %vm1801 = vcmp.eq.f32.partialorder %v1789, inf
        %v1802 = vsel %vm1801, %v1789, %v1800
        %vm1803 = vcmp.eq.f32.partialorder %v1789, 0.0
        %v1804 = vand.u32 %v1789, 2147483648
        %v1805 = vsel %vm1803, %v1804, %v1802
        %v1806 = vrsqrt.pop %v1790
        %v1807 = vmul.f32 %v1790, %v1806
        %vm1808 = vcmp.eq.f32.partialorder %v1790, inf
        %v1809 = vsel %vm1808, %v1790, %v1807
        %vm1810 = vcmp.eq.f32.partialorder %v1790, 0.0
        %v1811 = vand.u32 %v1790, 2147483648
        %v1812 = vsel %vm1810, %v1811, %v1809
        %v1813 = vrsqrt.pop %v1791
        %v1814 = vmul.f32 %v1791, %v1813
        %vm1815 = vcmp.eq.f32.partialorder %v1791, inf
        %v1816 = vsel %vm1815, %v1791, %v1814
        %vm1817 = vcmp.eq.f32.partialorder %v1791, 0.0
        %v1818 = vand.u32 %v1791, 2147483648
        %v1819 = vsel %vm1817, %v1818, %v1816
        %v1820 = vadd.f32 %v1776, %v1798
        %v1821 = vadd.f32 %v1777, %v1805
        %v1822 = vadd.f32 %v1778, %v1812
        %v1823 = vadd.f32 %v1779, %v1819
        %v1824 = vsub.f32 %v1820, 1.0
        %v1825 = vsub.f32 %v1821, 1.0
        %v1826 = vsub.f32 %v1822, 1.0
        %v1827 = vsub.f32 %v1823, 1.0
        %v1832 = vrot.slane %v1824, 1
        %v1833 = vrot.slane %v1825, 1
        %v1834 = vrot.slane %v1826, 1
        %v1835 = vrot.slane %v1827, 1
        %v1840 = vrot.slane %v1824, 2
        %v1841 = vrot.slane %v1825, 2
        %v1842 = vrot.slane %v1826, 2
        %v1843 = vrot.slane %v1827, 2
        %v1848 = vrot.slane %v1824, 3
        %v1849 = vrot.slane %v1825, 3
        %v1850 = vrot.slane %v1826, 3
        %v1851 = vrot.slane %v1827, 3
        %v1856 = vrot.slane %v1824, 4
        %v1857 = vrot.slane %v1825, 4
        %v1858 = vrot.slane %v1826, 4
        %v1859 = vrot.slane %v1827, 4
        %v1864 = vrot.slane %v1824, 5
        %v1865 = vrot.slane %v1825, 5
        %v1866 = vrot.slane %v1826, 5
        %v1867 = vrot.slane %v1827, 5
        %v1872 = vrot.slane %v1824, 6
        %v1873 = vrot.slane %v1825, 6
        %v1874 = vrot.slane %v1826, 6
        %v1875 = vrot.slane %v1827, 6
        %v1880 = vrot.slane %v1824, 7
        %v1881 = vrot.slane %v1825, 7
        %v1882 = vrot.slane %v1826, 7
        %v1883 = vrot.slane %v1827, 7
        %v1888 = vlaneseq
        %v1889 = vshrl.u32 %v1888, 7
        %v1890 = vsub.s32 0, %v1889
        %v1891 = vrot.slane %v1824, %v1890
        %v1892 = vlaneseq
        %v1893 = vshrl.u32 %v1892, 7
        %v1894 = vsub.s32 0, %v1893
        %v1895 = vrot.slane %v1825, %v1894
        %v1896 = vlaneseq
        %v1897 = vshrl.u32 %v1896, 7
        %v1898 = vsub.s32 0, %v1897
        %v1899 = vrot.slane %v1826, %v1898
        %v1900 = vlaneseq
        %v1901 = vshrl.u32 %v1900, 7
        %v1902 = vsub.s32 0, %v1901
        %v1903 = vrot.slane %v1827, %v1902
        %v1904 = vlaneseq
        %v1905 = vshrl.u32 %v1904, 7
        %v1906 = vsub.s32 0, %v1905
        %v1907 = vrot.slane %v1832, %v1906
        %v1908 = vlaneseq
        %v1909 = vshrl.u32 %v1908, 7
        %v1910 = vsub.s32 0, %v1909
        %v1911 = vrot.slane %v1833, %v1910
        %v1912 = vlaneseq
        %v1913 = vshrl.u32 %v1912, 7
        %v1914 = vsub.s32 0, %v1913
        %v1915 = vrot.slane %v1834, %v1914
        %v1916 = vlaneseq
        %v1917 = vshrl.u32 %v1916, 7
        %v1918 = vsub.s32 0, %v1917
        %v1919 = vrot.slane %v1835, %v1918
        %v1920 = vlaneseq
        %v1921 = vshrl.u32 %v1920, 7
        %v1922 = vsub.s32 0, %v1921
        %v1923 = vrot.slane %v1840, %v1922
        %v1924 = vlaneseq
        %v1925 = vshrl.u32 %v1924, 7
        %v1926 = vsub.s32 0, %v1925
        %v1927 = vrot.slane %v1841, %v1926
        %v1928 = vlaneseq
        %v1929 = vshrl.u32 %v1928, 7
        %v1930 = vsub.s32 0, %v1929
        %v1931 = vrot.slane %v1842, %v1930
        %v1932 = vlaneseq
        %v1933 = vshrl.u32 %v1932, 7
        %v1934 = vsub.s32 0, %v1933
        %v1935 = vrot.slane %v1843, %v1934
        %v1936 = vlaneseq
        %v1937 = vshrl.u32 %v1936, 7
        %v1938 = vsub.s32 0, %v1937
        %v1939 = vrot.slane %v1848, %v1938
        %v1940 = vlaneseq
        %v1941 = vshrl.u32 %v1940, 7
        %v1942 = vsub.s32 0, %v1941
        %v1943 = vrot.slane %v1849, %v1942
        %v1944 = vlaneseq
        %v1945 = vshrl.u32 %v1944, 7
        %v1946 = vsub.s32 0, %v1945
        %v1947 = vrot.slane %v1850, %v1946
        %v1948 = vlaneseq
        %v1949 = vshrl.u32 %v1948, 7
        %v1950 = vsub.s32 0, %v1949
        %v1951 = vrot.slane %v1851, %v1950
        %v1952 = vlaneseq
        %v1953 = vshrl.u32 %v1952, 7
        %v1954 = vsub.s32 0, %v1953
        %v1955 = vrot.slane %v1856, %v1954
        %v1956 = vlaneseq
        %v1957 = vshrl.u32 %v1956, 7
        %v1958 = vsub.s32 0, %v1957
        %v1959 = vrot.slane %v1857, %v1958
        %v1960 = vlaneseq
        %v1961 = vshrl.u32 %v1960, 7
        %v1962 = vsub.s32 0, %v1961
        %v1963 = vrot.slane %v1858, %v1962
        %v1964 = vlaneseq
        %v1965 = vshrl.u32 %v1964, 7
        %v1966 = vsub.s32 0, %v1965
        %v1967 = vrot.slane %v1859, %v1966
        %v1968 = vlaneseq
        %v1969 = vshrl.u32 %v1968, 7
        %v1970 = vsub.s32 0, %v1969
        %v1971 = vrot.slane %v1864, %v1970
        %v1972 = vlaneseq
        %v1973 = vshrl.u32 %v1972, 7
        %v1974 = vsub.s32 0, %v1973
        %v1975 = vrot.slane %v1865, %v1974
        %v1976 = vlaneseq
        %v1977 = vshrl.u32 %v1976, 7
        %v1978 = vsub.s32 0, %v1977
        %v1979 = vrot.slane %v1866, %v1978
        %v1980 = vlaneseq
        %v1981 = vshrl.u32 %v1980, 7
        %v1982 = vsub.s32 0, %v1981
        %v1983 = vrot.slane %v1867, %v1982
        %v1984 = vlaneseq
        %v1985 = vshrl.u32 %v1984, 7
        %v1986 = vsub.s32 0, %v1985
        %v1987 = vrot.slane %v1872, %v1986
        %v1988 = vlaneseq
        %v1989 = vshrl.u32 %v1988, 7
        %v1990 = vsub.s32 0, %v1989
        %v1991 = vrot.slane %v1873, %v1990
        %v1992 = vlaneseq
        %v1993 = vshrl.u32 %v1992, 7
        %v1994 = vsub.s32 0, %v1993
        %v1995 = vrot.slane %v1874, %v1994
        %v1996 = vlaneseq
        %v1997 = vshrl.u32 %v1996, 7
        %v1998 = vsub.s32 0, %v1997
        %v1999 = vrot.slane %v1875, %v1998
        %v2000 = vlaneseq
        %v2001 = vshrl.u32 %v2000, 7
        %v2002 = vsub.s32 0, %v2001
        %v2003 = vrot.slane %v1880, %v2002
        %v2004 = vlaneseq
        %v2005 = vshrl.u32 %v2004, 7
        %v2006 = vsub.s32 0, %v2005
        %v2007 = vrot.slane %v1881, %v2006
        %v2008 = vlaneseq
        %v2009 = vshrl.u32 %v2008, 7
        %v2010 = vsub.s32 0, %v2009
        %v2011 = vrot.slane %v1882, %v2010
        %v2012 = vlaneseq
        %v2013 = vshrl.u32 %v2012, 7
        %v2014 = vsub.s32 0, %v2013
        %v2015 = vrot.slane %v1883, %v2014
        %v2016 = vmul.f32 %v1891, %v240
        %v2017 = vmul.f32 %v1895, %v241
        %v2018 = vmul.f32 %v1899, %v242
        %v2019 = vmul.f32 %v1903, %v243
        %v2020 = vmul.f32 %v1907, %v244
        %v2021 = vmul.f32 %v1911, %v245
        %v2022 = vmul.f32 %v1915, %v246
        %v2023 = vmul.f32 %v1919, %v247
        %v2024 = vmul.f32 %v1923, %v248
        %v2025 = vmul.f32 %v1927, %v249
        %v2026 = vmul.f32 %v1931, %v250
        %v2027 = vmul.f32 %v1935, %v251
        %v2028 = vmul.f32 %v1939, %v252
        %v2029 = vmul.f32 %v1943, %v253
        %v2030 = vmul.f32 %v1947, %v254
        %v2031 = vmul.f32 %v1951, %v255
        %v2032 = vmul.f32 %v1955, %v256
        %v2033 = vmul.f32 %v1959, %v257
        %v2034 = vmul.f32 %v1963, %v258
        %v2035 = vmul.f32 %v1967, %v259
        %v2036 = vmul.f32 %v1971, %v260
        %v2037 = vmul.f32 %v1975, %v261
        %v2038 = vmul.f32 %v1979, %v262
        %v2039 = vmul.f32 %v1983, %v263
        %v2040 = vmul.f32 %v1987, %v264
        %v2041 = vmul.f32 %v1991, %v265
        %v2042 = vmul.f32 %v1995, %v266
        %v2043 = vmul.f32 %v1999, %v267
        %v2044 = vmul.f32 %v2003, %v268
        %v2045 = vmul.f32 %v2007, %v269
        %v2046 = vmul.f32 %v2011, %v270
        %v2047 = vmul.f32 %v2015, %v271
        %v2080 = vrot.slane %v2016, 3
        %v2081 = vrot.slane %v2017, 3
        %v2082 = vrot.slane %v2018, 3
        %v2083 = vrot.slane %v2019, 3
        %v2084 = vrot.slane %v2020, 3
        %v2085 = vrot.slane %v2021, 3
        %v2086 = vrot.slane %v2022, 3
        %v2087 = vrot.slane %v2023, 3
        %v2088 = vrot.slane %v2024, 3
        %v2089 = vrot.slane %v2025, 3
        %v2090 = vrot.slane %v2026, 3
        %v2091 = vrot.slane %v2027, 3
        %v2092 = vrot.slane %v2028, 3
        %v2093 = vrot.slane %v2029, 3
        %v2094 = vrot.slane %v2030, 3
        %v2095 = vrot.slane %v2031, 3
        %v2096 = vrot.slane %v2032, 3
        %v2097 = vrot.slane %v2033, 3
        %v2098 = vrot.slane %v2034, 3
        %v2099 = vrot.slane %v2035, 3
        %v2100 = vrot.slane %v2036, 3
        %v2101 = vrot.slane %v2037, 3
        %v2102 = vrot.slane %v2038, 3
        %v2103 = vrot.slane %v2039, 3
        %v2104 = vrot.slane %v2040, 3
        %v2105 = vrot.slane %v2041, 3
        %v2106 = vrot.slane %v2042, 3
        %v2107 = vrot.slane %v2043, 3
        %v2108 = vrot.slane %v2044, 3
        %v2109 = vrot.slane %v2045, 3
        %v2110 = vrot.slane %v2046, 3
        %v2111 = vrot.slane %v2047, 3
        %v2144 = vadd.f32 %v240, %v2080
        %v2145 = vadd.f32 %v241, %v2081
        %v2146 = vadd.f32 %v242, %v2082
        %v2147 = vadd.f32 %v243, %v2083
        %v2148 = vadd.f32 %v244, %v2084
        %v2149 = vadd.f32 %v245, %v2085
        %v2150 = vadd.f32 %v246, %v2086
        %v2151 = vadd.f32 %v247, %v2087
        %v2152 = vadd.f32 %v248, %v2088
        %v2153 = vadd.f32 %v249, %v2089
        %v2154 = vadd.f32 %v250, %v2090
        %v2155 = vadd.f32 %v251, %v2091
        %v2156 = vadd.f32 %v252, %v2092
        %v2157 = vadd.f32 %v253, %v2093
        %v2158 = vadd.f32 %v254, %v2094
        %v2159 = vadd.f32 %v255, %v2095
        %v2160 = vadd.f32 %v256, %v2096
        %v2161 = vadd.f32 %v257, %v2097
        %v2162 = vadd.f32 %v258, %v2098
        %v2163 = vadd.f32 %v259, %v2099
        %v2164 = vadd.f32 %v260, %v2100
        %v2165 = vadd.f32 %v261, %v2101
        %v2166 = vadd.f32 %v262, %v2102
        %v2167 = vadd.f32 %v263, %v2103
        %v2168 = vadd.f32 %v264, %v2104
        %v2169 = vadd.f32 %v265, %v2105
        %v2170 = vadd.f32 %v266, %v2106
        %v2171 = vadd.f32 %v267, %v2107
        %v2172 = vadd.f32 %v268, %v2108
        %v2173 = vadd.f32 %v269, %v2109
        %v2174 = vadd.f32 %v270, %v2110
        %v2175 = vadd.f32 %v271, %v2111
        %v2176 = vmul.f32 %v2144, %v2144
        %v2177 = vmul.f32 %v2145, %v2145
        %v2178 = vmul.f32 %v2146, %v2146
        %v2179 = vmul.f32 %v2147, %v2147
        %v2180 = vmul.f32 %v2148, %v2148
        %v2181 = vmul.f32 %v2149, %v2149
        %v2182 = vmul.f32 %v2150, %v2150
        %v2183 = vmul.f32 %v2151, %v2151
        %v2184 = vmul.f32 %v2152, %v2152
        %v2185 = vmul.f32 %v2153, %v2153
        %v2186 = vmul.f32 %v2154, %v2154
        %v2187 = vmul.f32 %v2155, %v2155
        %v2188 = vmul.f32 %v2156, %v2156
        %v2189 = vmul.f32 %v2157, %v2157
        %v2190 = vmul.f32 %v2158, %v2158
        %v2191 = vmul.f32 %v2159, %v2159
        %v2192 = vmul.f32 %v2160, %v2160
        %v2193 = vmul.f32 %v2161, %v2161
        %v2194 = vmul.f32 %v2162, %v2162
        %v2195 = vmul.f32 %v2163, %v2163
        %v2196 = vmul.f32 %v2164, %v2164
        %v2197 = vmul.f32 %v2165, %v2165
        %v2198 = vmul.f32 %v2166, %v2166
        %v2199 = vmul.f32 %v2167, %v2167
        %v2200 = vmul.f32 %v2168, %v2168
        %v2201 = vmul.f32 %v2169, %v2169
        %v2202 = vmul.f32 %v2170, %v2170
        %v2203 = vmul.f32 %v2171, %v2171
        %v2204 = vmul.f32 %v2172, %v2172
        %v2205 = vmul.f32 %v2173, %v2173
        %v2206 = vmul.f32 %v2174, %v2174
        %v2207 = vmul.f32 %v2175, %v2175
        %v2240 = vrot.slane %v2176, 1
        %v2241 = vrot.slane %v2177, 1
        %v2242 = vrot.slane %v2178, 1
        %v2243 = vrot.slane %v2179, 1
        %v2244 = vrot.slane %v2180, 1
        %v2245 = vrot.slane %v2181, 1
        %v2246 = vrot.slane %v2182, 1
        %v2247 = vrot.slane %v2183, 1
        %v2248 = vrot.slane %v2184, 1
        %v2249 = vrot.slane %v2185, 1
        %v2250 = vrot.slane %v2186, 1
        %v2251 = vrot.slane %v2187, 1
        %v2252 = vrot.slane %v2188, 1
        %v2253 = vrot.slane %v2189, 1
        %v2254 = vrot.slane %v2190, 1
        %v2255 = vrot.slane %v2191, 1
        %v2256 = vrot.slane %v2192, 1
        %v2257 = vrot.slane %v2193, 1
        %v2258 = vrot.slane %v2194, 1
        %v2259 = vrot.slane %v2195, 1
        %v2260 = vrot.slane %v2196, 1
        %v2261 = vrot.slane %v2197, 1
        %v2262 = vrot.slane %v2198, 1
        %v2263 = vrot.slane %v2199, 1
        %v2264 = vrot.slane %v2200, 1
        %v2265 = vrot.slane %v2201, 1
        %v2266 = vrot.slane %v2202, 1
        %v2267 = vrot.slane %v2203, 1
        %v2268 = vrot.slane %v2204, 1
        %v2269 = vrot.slane %v2205, 1
        %v2270 = vrot.slane %v2206, 1
        %v2271 = vrot.slane %v2207, 1
        %v2304 = vadd.f32 %v2176, %v2240
        %v2305 = vadd.f32 %v2177, %v2241
        %v2306 = vadd.f32 %v2178, %v2242
        %v2307 = vadd.f32 %v2179, %v2243
        %v2308 = vadd.f32 %v2180, %v2244
        %v2309 = vadd.f32 %v2181, %v2245
        %v2310 = vadd.f32 %v2182, %v2246
        %v2311 = vadd.f32 %v2183, %v2247
        %v2312 = vadd.f32 %v2184, %v2248
        %v2313 = vadd.f32 %v2185, %v2249
        %v2314 = vadd.f32 %v2186, %v2250
        %v2315 = vadd.f32 %v2187, %v2251
        %v2316 = vadd.f32 %v2188, %v2252
        %v2317 = vadd.f32 %v2189, %v2253
        %v2318 = vadd.f32 %v2190, %v2254
        %v2319 = vadd.f32 %v2191, %v2255
        %v2320 = vadd.f32 %v2192, %v2256
        %v2321 = vadd.f32 %v2193, %v2257
        %v2322 = vadd.f32 %v2194, %v2258
        %v2323 = vadd.f32 %v2195, %v2259
        %v2324 = vadd.f32 %v2196, %v2260
        %v2325 = vadd.f32 %v2197, %v2261
        %v2326 = vadd.f32 %v2198, %v2262
        %v2327 = vadd.f32 %v2199, %v2263
        %v2328 = vadd.f32 %v2200, %v2264
        %v2329 = vadd.f32 %v2201, %v2265
        %v2330 = vadd.f32 %v2202, %v2266
        %v2331 = vadd.f32 %v2203, %v2267
        %v2332 = vadd.f32 %v2204, %v2268
        %v2333 = vadd.f32 %v2205, %v2269
        %v2334 = vadd.f32 %v2206, %v2270
        %v2335 = vadd.f32 %v2207, %v2271
        %v2336 = vrot.slane %v2176, 2
        %v2337 = vrot.slane %v2177, 2
        %v2338 = vrot.slane %v2178, 2
        %v2339 = vrot.slane %v2179, 2
        %v2340 = vrot.slane %v2180, 2
        %v2341 = vrot.slane %v2181, 2
        %v2342 = vrot.slane %v2182, 2
        %v2343 = vrot.slane %v2183, 2
        %v2344 = vrot.slane %v2184, 2
        %v2345 = vrot.slane %v2185, 2
        %v2346 = vrot.slane %v2186, 2
        %v2347 = vrot.slane %v2187, 2
        %v2348 = vrot.slane %v2188, 2
        %v2349 = vrot.slane %v2189, 2
        %v2350 = vrot.slane %v2190, 2
        %v2351 = vrot.slane %v2191, 2
        %v2352 = vrot.slane %v2192, 2
        %v2353 = vrot.slane %v2193, 2
        %v2354 = vrot.slane %v2194, 2
        %v2355 = vrot.slane %v2195, 2
        %v2356 = vrot.slane %v2196, 2
        %v2357 = vrot.slane %v2197, 2
        %v2358 = vrot.slane %v2198, 2
        %v2359 = vrot.slane %v2199, 2
        %v2360 = vrot.slane %v2200, 2
        %v2361 = vrot.slane %v2201, 2
        %v2362 = vrot.slane %v2202, 2
        %v2363 = vrot.slane %v2203, 2
        %v2364 = vrot.slane %v2204, 2
        %v2365 = vrot.slane %v2205, 2
        %v2366 = vrot.slane %v2206, 2
        %v2367 = vrot.slane %v2207, 2
        %v2400 = vadd.f32 %v2304, %v2336
        %v2401 = vadd.f32 %v2305, %v2337
        %v2402 = vadd.f32 %v2306, %v2338
        %v2403 = vadd.f32 %v2307, %v2339
        %v2404 = vadd.f32 %v2308, %v2340
        %v2405 = vadd.f32 %v2309, %v2341
        %v2406 = vadd.f32 %v2310, %v2342
        %v2407 = vadd.f32 %v2311, %v2343
        %v2408 = vadd.f32 %v2312, %v2344
        %v2409 = vadd.f32 %v2313, %v2345
        %v2410 = vadd.f32 %v2314, %v2346
        %v2411 = vadd.f32 %v2315, %v2347
        %v2412 = vadd.f32 %v2316, %v2348
        %v2413 = vadd.f32 %v2317, %v2349
        %v2414 = vadd.f32 %v2318, %v2350
        %v2415 = vadd.f32 %v2319, %v2351
        %v2416 = vadd.f32 %v2320, %v2352
        %v2417 = vadd.f32 %v2321, %v2353
        %v2418 = vadd.f32 %v2322, %v2354
        %v2419 = vadd.f32 %v2323, %v2355
        %v2420 = vadd.f32 %v2324, %v2356
        %v2421 = vadd.f32 %v2325, %v2357
        %v2422 = vadd.f32 %v2326, %v2358
        %v2423 = vadd.f32 %v2327, %v2359
        %v2424 = vadd.f32 %v2328, %v2360
        %v2425 = vadd.f32 %v2329, %v2361
        %v2426 = vadd.f32 %v2330, %v2362
        %v2427 = vadd.f32 %v2331, %v2363
        %v2428 = vadd.f32 %v2332, %v2364
        %v2429 = vadd.f32 %v2333, %v2365
        %v2430 = vadd.f32 %v2334, %v2366
        %v2431 = vadd.f32 %v2335, %v2367
        %v2432 = vadd.f32 %v2400, 1e-12
        %v2433 = vadd.f32 %v2401, 1e-12
        %v2434 = vadd.f32 %v2402, 1e-12
        %v2435 = vadd.f32 %v2403, 1e-12
        %v2436 = vadd.f32 %v2404, 1e-12
        %v2437 = vadd.f32 %v2405, 1e-12
        %v2438 = vadd.f32 %v2406, 1e-12
        %v2439 = vadd.f32 %v2407, 1e-12
        %v2440 = vadd.f32 %v2408, 1e-12
        %v2441 = vadd.f32 %v2409, 1e-12
        %v2442 = vadd.f32 %v2410, 1e-12
        %v2443 = vadd.f32 %v2411, 1e-12
        %v2444 = vadd.f32 %v2412, 1e-12
        %v2445 = vadd.f32 %v2413, 1e-12
        %v2446 = vadd.f32 %v2414, 1e-12
        %v2447 = vadd.f32 %v2415, 1e-12
        %v2448 = vadd.f32 %v2416, 1e-12
        %v2449 = vadd.f32 %v2417, 1e-12
        %v2450 = vadd.f32 %v2418, 1e-12
        %v2451 = vadd.f32 %v2419, 1e-12
        %v2452 = vadd.f32 %v2420, 1e-12
        %v2453 = vadd.f32 %v2421, 1e-12
        %v2454 = vadd.f32 %v2422, 1e-12
        %v2455 = vadd.f32 %v2423, 1e-12
        %v2456 = vadd.f32 %v2424, 1e-12
        %v2457 = vadd.f32 %v2425, 1e-12
        %v2458 = vadd.f32 %v2426, 1e-12
        %v2459 = vadd.f32 %v2427, 1e-12
        %v2460 = vadd.f32 %v2428, 1e-12
        %v2461 = vadd.f32 %v2429, 1e-12
        %v2462 = vadd.f32 %v2430, 1e-12
        %v2463 = vadd.f32 %v2431, 1e-12
        %v2464 = vrsqrt.pop %v2432
        %v2465 = vmul.f32 %v2432, %v2464
        %vm2466 = vcmp.eq.f32.partialorder %v2432, inf
        %v2467 = vsel %vm2466, %v2432, %v2465
        %vm2468 = vcmp.eq.f32.partialorder %v2432, 0.0
        %v2469 = vand.u32 %v2432, 2147483648
        %v2470 = vsel %vm2468, %v2469, %v2467
        %v2471 = vrsqrt.pop %v2433
        %v2472 = vmul.f32 %v2433, %v2471
        %vm2473 = vcmp.eq.f32.partialorder %v2433, inf
        %v2474 = vsel %vm2473, %v2433, %v2472
        %vm2475 = vcmp.eq.f32.partialorder %v2433, 0.0
        %v2476 = vand.u32 %v2433, 2147483648
        %v2477 = vsel %vm2475, %v2476, %v2474
        %v2478 = vrsqrt.pop %v2434
        %v2479 = vmul.f32 %v2434, %v2478
        %vm2480 = vcmp.eq.f32.partialorder %v2434, inf
        %v2481 = vsel %vm2480, %v2434, %v2479
        %vm2482 = vcmp.eq.f32.partialorder %v2434, 0.0
        %v2483 = vand.u32 %v2434, 2147483648
        %v2484 = vsel %vm2482, %v2483, %v2481
        %v2485 = vrsqrt.pop %v2435
        %v2486 = vmul.f32 %v2435, %v2485
        %vm2487 = vcmp.eq.f32.partialorder %v2435, inf
        %v2488 = vsel %vm2487, %v2435, %v2486
        %vm2489 = vcmp.eq.f32.partialorder %v2435, 0.0
        %v2490 = vand.u32 %v2435, 2147483648
        %v2491 = vsel %vm2489, %v2490, %v2488
        %v2492 = vrsqrt.pop %v2436
        %v2493 = vmul.f32 %v2436, %v2492
        %vm2494 = vcmp.eq.f32.partialorder %v2436, inf
        %v2495 = vsel %vm2494, %v2436, %v2493
        %vm2496 = vcmp.eq.f32.partialorder %v2436, 0.0
        %v2497 = vand.u32 %v2436, 2147483648
        %v2498 = vsel %vm2496, %v2497, %v2495
        %v2499 = vrsqrt.pop %v2437
        %v2500 = vmul.f32 %v2437, %v2499
        %vm2501 = vcmp.eq.f32.partialorder %v2437, inf
        %v2502 = vsel %vm2501, %v2437, %v2500
        %vm2503 = vcmp.eq.f32.partialorder %v2437, 0.0
        %v2504 = vand.u32 %v2437, 2147483648
        %v2505 = vsel %vm2503, %v2504, %v2502
        %v2506 = vrsqrt.pop %v2438
        %v2507 = vmul.f32 %v2438, %v2506
        %vm2508 = vcmp.eq.f32.partialorder %v2438, inf
        %v2509 = vsel %vm2508, %v2438, %v2507
        %vm2510 = vcmp.eq.f32.partialorder %v2438, 0.0
        %v2511 = vand.u32 %v2438, 2147483648
        %v2512 = vsel %vm2510, %v2511, %v2509
        %v2513 = vrsqrt.pop %v2439
        %v2514 = vmul.f32 %v2439, %v2513
        %vm2515 = vcmp.eq.f32.partialorder %v2439, inf
        %v2516 = vsel %vm2515, %v2439, %v2514
        %vm2517 = vcmp.eq.f32.partialorder %v2439, 0.0
        %v2518 = vand.u32 %v2439, 2147483648
        %v2519 = vsel %vm2517, %v2518, %v2516
        %v2520 = vrsqrt.pop %v2440
        %v2521 = vmul.f32 %v2440, %v2520
        %vm2522 = vcmp.eq.f32.partialorder %v2440, inf
        %v2523 = vsel %vm2522, %v2440, %v2521
        %vm2524 = vcmp.eq.f32.partialorder %v2440, 0.0
        %v2525 = vand.u32 %v2440, 2147483648
        %v2526 = vsel %vm2524, %v2525, %v2523
        %v2527 = vrsqrt.pop %v2441
        %v2528 = vmul.f32 %v2441, %v2527
        %vm2529 = vcmp.eq.f32.partialorder %v2441, inf
        %v2530 = vsel %vm2529, %v2441, %v2528
        %vm2531 = vcmp.eq.f32.partialorder %v2441, 0.0
        %v2532 = vand.u32 %v2441, 2147483648
        %v2533 = vsel %vm2531, %v2532, %v2530
        %v2534 = vrsqrt.pop %v2442
        %v2535 = vmul.f32 %v2442, %v2534
        %vm2536 = vcmp.eq.f32.partialorder %v2442, inf
        %v2537 = vsel %vm2536, %v2442, %v2535
        %vm2538 = vcmp.eq.f32.partialorder %v2442, 0.0
        %v2539 = vand.u32 %v2442, 2147483648
        %v2540 = vsel %vm2538, %v2539, %v2537
        %v2541 = vrsqrt.pop %v2443
        %v2542 = vmul.f32 %v2443, %v2541
        %vm2543 = vcmp.eq.f32.partialorder %v2443, inf
        %v2544 = vsel %vm2543, %v2443, %v2542
        %vm2545 = vcmp.eq.f32.partialorder %v2443, 0.0
        %v2546 = vand.u32 %v2443, 2147483648
        %v2547 = vsel %vm2545, %v2546, %v2544
        %v2548 = vrsqrt.pop %v2444
        %v2549 = vmul.f32 %v2444, %v2548
        %vm2550 = vcmp.eq.f32.partialorder %v2444, inf
        %v2551 = vsel %vm2550, %v2444, %v2549
        %vm2552 = vcmp.eq.f32.partialorder %v2444, 0.0
        %v2553 = vand.u32 %v2444, 2147483648
        %v2554 = vsel %vm2552, %v2553, %v2551
        %v2555 = vrsqrt.pop %v2445
        %v2556 = vmul.f32 %v2445, %v2555
        %vm2557 = vcmp.eq.f32.partialorder %v2445, inf
        %v2558 = vsel %vm2557, %v2445, %v2556
        %vm2559 = vcmp.eq.f32.partialorder %v2445, 0.0
        %v2560 = vand.u32 %v2445, 2147483648
        %v2561 = vsel %vm2559, %v2560, %v2558
        %v2562 = vrsqrt.pop %v2446
        %v2563 = vmul.f32 %v2446, %v2562
        %vm2564 = vcmp.eq.f32.partialorder %v2446, inf
        %v2565 = vsel %vm2564, %v2446, %v2563
        %vm2566 = vcmp.eq.f32.partialorder %v2446, 0.0
        %v2567 = vand.u32 %v2446, 2147483648
        %v2568 = vsel %vm2566, %v2567, %v2565
        %v2569 = vrsqrt.pop %v2447
        %v2570 = vmul.f32 %v2447, %v2569
        %vm2571 = vcmp.eq.f32.partialorder %v2447, inf
        %v2572 = vsel %vm2571, %v2447, %v2570
        %vm2573 = vcmp.eq.f32.partialorder %v2447, 0.0
        %v2574 = vand.u32 %v2447, 2147483648
        %v2575 = vsel %vm2573, %v2574, %v2572
        %v2576 = vrsqrt.pop %v2448
        %v2577 = vmul.f32 %v2448, %v2576
        %vm2578 = vcmp.eq.f32.partialorder %v2448, inf
        %v2579 = vsel %vm2578, %v2448, %v2577
        %vm2580 = vcmp.eq.f32.partialorder %v2448, 0.0
        %v2581 = vand.u32 %v2448, 2147483648
        %v2582 = vsel %vm2580, %v2581, %v2579
        %v2583 = vrsqrt.pop %v2449
        %v2584 = vmul.f32 %v2449, %v2583
        %vm2585 = vcmp.eq.f32.partialorder %v2449, inf
        %v2586 = vsel %vm2585, %v2449, %v2584
        %vm2587 = vcmp.eq.f32.partialorder %v2449, 0.0
        %v2588 = vand.u32 %v2449, 2147483648
        %v2589 = vsel %vm2587, %v2588, %v2586
        %v2590 = vrsqrt.pop %v2450
        %v2591 = vmul.f32 %v2450, %v2590
        %vm2592 = vcmp.eq.f32.partialorder %v2450, inf
        %v2593 = vsel %vm2592, %v2450, %v2591
        %vm2594 = vcmp.eq.f32.partialorder %v2450, 0.0
        %v2595 = vand.u32 %v2450, 2147483648
        %v2596 = vsel %vm2594, %v2595, %v2593
        %v2597 = vrsqrt.pop %v2451
        %v2598 = vmul.f32 %v2451, %v2597
        %vm2599 = vcmp.eq.f32.partialorder %v2451, inf
        %v2600 = vsel %vm2599, %v2451, %v2598
        %vm2601 = vcmp.eq.f32.partialorder %v2451, 0.0
        %v2602 = vand.u32 %v2451, 2147483648
        %v2603 = vsel %vm2601, %v2602, %v2600
        %v2604 = vrsqrt.pop %v2452
        %v2605 = vmul.f32 %v2452, %v2604
        %vm2606 = vcmp.eq.f32.partialorder %v2452, inf
        %v2607 = vsel %vm2606, %v2452, %v2605
        %vm2608 = vcmp.eq.f32.partialorder %v2452, 0.0
        %v2609 = vand.u32 %v2452, 2147483648
        %v2610 = vsel %vm2608, %v2609, %v2607
        %v2611 = vrsqrt.pop %v2453
        %v2612 = vmul.f32 %v2453, %v2611
        %vm2613 = vcmp.eq.f32.partialorder %v2453, inf
        %v2614 = vsel %vm2613, %v2453, %v2612
        %vm2615 = vcmp.eq.f32.partialorder %v2453, 0.0
        %v2616 = vand.u32 %v2453, 2147483648
        %v2617 = vsel %vm2615, %v2616, %v2614
        %v2618 = vrsqrt.pop %v2454
        %v2619 = vmul.f32 %v2454, %v2618
        %vm2620 = vcmp.eq.f32.partialorder %v2454, inf
        %v2621 = vsel %vm2620, %v2454, %v2619
        %vm2622 = vcmp.eq.f32.partialorder %v2454, 0.0
        %v2623 = vand.u32 %v2454, 2147483648
        %v2624 = vsel %vm2622, %v2623, %v2621
        %v2625 = vrsqrt.pop %v2455
        %v2626 = vmul.f32 %v2455, %v2625
        %vm2627 = vcmp.eq.f32.partialorder %v2455, inf
        %v2628 = vsel %vm2627, %v2455, %v2626
        %vm2629 = vcmp.eq.f32.partialorder %v2455, 0.0
        %v2630 = vand.u32 %v2455, 2147483648
        %v2631 = vsel %vm2629, %v2630, %v2628
        %v2632 = vrsqrt.pop %v2456
        %v2633 = vmul.f32 %v2456, %v2632
        %vm2634 = vcmp.eq.f32.partialorder %v2456, inf
        %v2635 = vsel %vm2634, %v2456, %v2633
        %vm2636 = vcmp.eq.f32.partialorder %v2456, 0.0
        %v2637 = vand.u32 %v2456, 2147483648
        %v2638 = vsel %vm2636, %v2637, %v2635
        %v2639 = vrsqrt.pop %v2457
        %v2640 = vmul.f32 %v2457, %v2639
        %vm2641 = vcmp.eq.f32.partialorder %v2457, inf
        %v2642 = vsel %vm2641, %v2457, %v2640
        %vm2643 = vcmp.eq.f32.partialorder %v2457, 0.0
        %v2644 = vand.u32 %v2457, 2147483648
        %v2645 = vsel %vm2643, %v2644, %v2642
        %v2646 = vrsqrt.pop %v2458
        %v2647 = vmul.f32 %v2458, %v2646
        %vm2648 = vcmp.eq.f32.partialorder %v2458, inf
        %v2649 = vsel %vm2648, %v2458, %v2647
        %vm2650 = vcmp.eq.f32.partialorder %v2458, 0.0
        %v2651 = vand.u32 %v2458, 2147483648
        %v2652 = vsel %vm2650, %v2651, %v2649
        %v2653 = vrsqrt.pop %v2459
        %v2654 = vmul.f32 %v2459, %v2653
        %vm2655 = vcmp.eq.f32.partialorder %v2459, inf
        %v2656 = vsel %vm2655, %v2459, %v2654
        %vm2657 = vcmp.eq.f32.partialorder %v2459, 0.0
        %v2658 = vand.u32 %v2459, 2147483648
        %v2659 = vsel %vm2657, %v2658, %v2656
        %v2660 = vrsqrt.pop %v2460
        %v2661 = vmul.f32 %v2460, %v2660
        %vm2662 = vcmp.eq.f32.partialorder %v2460, inf
        %v2663 = vsel %vm2662, %v2460, %v2661
        %vm2664 = vcmp.eq.f32.partialorder %v2460, 0.0
        %v2665 = vand.u32 %v2460, 2147483648
        %v2666 = vsel %vm2664, %v2665, %v2663
        %v2667 = vrsqrt.pop %v2461
        %v2668 = vmul.f32 %v2461, %v2667
        %vm2669 = vcmp.eq.f32.partialorder %v2461, inf
        %v2670 = vsel %vm2669, %v2461, %v2668
        %vm2671 = vcmp.eq.f32.partialorder %v2461, 0.0
        %v2672 = vand.u32 %v2461, 2147483648
        %v2673 = vsel %vm2671, %v2672, %v2670
        %v2674 = vrsqrt.pop %v2462
        %v2675 = vmul.f32 %v2462, %v2674
        %vm2676 = vcmp.eq.f32.partialorder %v2462, inf
        %v2677 = vsel %vm2676, %v2462, %v2675
        %vm2678 = vcmp.eq.f32.partialorder %v2462, 0.0
        %v2679 = vand.u32 %v2462, 2147483648
        %v2680 = vsel %vm2678, %v2679, %v2677
        %v2681 = vrsqrt.pop %v2463
        %v2682 = vmul.f32 %v2463, %v2681
        %vm2683 = vcmp.eq.f32.partialorder %v2463, inf
        %v2684 = vsel %vm2683, %v2463, %v2682
        %vm2685 = vcmp.eq.f32.partialorder %v2463, 0.0
        %v2686 = vand.u32 %v2463, 2147483648
        %v2687 = vsel %vm2685, %v2686, %v2684
        %v2688 = vsub.f32 %v2470, 1.0
        %v2689 = vsub.f32 %v2477, 1.0
        %v2690 = vsub.f32 %v2484, 1.0
        %v2691 = vsub.f32 %v2491, 1.0
        %v2692 = vsub.f32 %v2498, 1.0
        %v2693 = vsub.f32 %v2505, 1.0
        %v2694 = vsub.f32 %v2512, 1.0
        %v2695 = vsub.f32 %v2519, 1.0
        %v2696 = vsub.f32 %v2526, 1.0
        %v2697 = vsub.f32 %v2533, 1.0
        %v2698 = vsub.f32 %v2540, 1.0
        %v2699 = vsub.f32 %v2547, 1.0
        %v2700 = vsub.f32 %v2554, 1.0
        %v2701 = vsub.f32 %v2561, 1.0
        %v2702 = vsub.f32 %v2568, 1.0
        %v2703 = vsub.f32 %v2575, 1.0
        %v2704 = vsub.f32 %v2582, 1.0
        %v2705 = vsub.f32 %v2589, 1.0
        %v2706 = vsub.f32 %v2596, 1.0
        %v2707 = vsub.f32 %v2603, 1.0
        %v2708 = vsub.f32 %v2610, 1.0
        %v2709 = vsub.f32 %v2617, 1.0
        %v2710 = vsub.f32 %v2624, 1.0
        %v2711 = vsub.f32 %v2631, 1.0
        %v2712 = vsub.f32 %v2638, 1.0
        %v2713 = vsub.f32 %v2645, 1.0
        %v2714 = vsub.f32 %v2652, 1.0
        %v2715 = vsub.f32 %v2659, 1.0
        %v2716 = vsub.f32 %v2666, 1.0
        %v2717 = vsub.f32 %v2673, 1.0
        %v2718 = vsub.f32 %v2680, 1.0
        %v2719 = vsub.f32 %v2687, 1.0
        %v2720 = vand.u32 2147483647, %v2688
        %v2721 = vand.u32 2147483647, %v2689
        %v2722 = vand.u32 2147483647, %v2690
        %v2723 = vand.u32 2147483647, %v2691
        %v2724 = vand.u32 2147483647, %v2692
        %v2725 = vand.u32 2147483647, %v2693
        %v2726 = vand.u32 2147483647, %v2694
        %v2727 = vand.u32 2147483647, %v2695
        %v2728 = vand.u32 2147483647, %v2696
        %v2729 = vand.u32 2147483647, %v2697
        %v2730 = vand.u32 2147483647, %v2698
        %v2731 = vand.u32 2147483647, %v2699
        %v2732 = vand.u32 2147483647, %v2700
        %v2733 = vand.u32 2147483647, %v2701
        %v2734 = vand.u32 2147483647, %v2702
        %v2735 = vand.u32 2147483647, %v2703
        %v2736 = vand.u32 2147483647, %v2704
        %v2737 = vand.u32 2147483647, %v2705
        %v2738 = vand.u32 2147483647, %v2706
        %v2739 = vand.u32 2147483647, %v2707
        %v2740 = vand.u32 2147483647, %v2708
        %v2741 = vand.u32 2147483647, %v2709
        %v2742 = vand.u32 2147483647, %v2710
        %v2743 = vand.u32 2147483647, %v2711
        %v2744 = vand.u32 2147483647, %v2712
        %v2745 = vand.u32 2147483647, %v2713
        %v2746 = vand.u32 2147483647, %v2714
        %v2747 = vand.u32 2147483647, %v2715
        %v2748 = vand.u32 2147483647, %v2716
        %v2749 = vand.u32 2147483647, %v2717
        %v2750 = vand.u32 2147483647, %v2718
        %v2751 = vand.u32 2147483647, %v2719
        %vm2752 = vcmp.lt.f32.partialorder %v2720, 0.001
        %vm2753 = vcmp.lt.f32.partialorder %v2721, 0.001
        %vm2754 = vcmp.lt.f32.partialorder %v2722, 0.001
        %vm2755 = vcmp.lt.f32.partialorder %v2723, 0.001
        %vm2756 = vcmp.lt.f32.partialorder %v2724, 0.001
        %vm2757 = vcmp.lt.f32.partialorder %v2725, 0.001
        %vm2758 = vcmp.lt.f32.partialorder %v2726, 0.001
        %vm2759 = vcmp.lt.f32.partialorder %v2727, 0.001
        %vm2760 = vcmp.lt.f32.partialorder %v2728, 0.001
        %vm2761 = vcmp.lt.f32.partialorder %v2729, 0.001
        %vm2762 = vcmp.lt.f32.partialorder %v2730, 0.001
        %vm2763 = vcmp.lt.f32.partialorder %v2731, 0.001
        %vm2764 = vcmp.lt.f32.partialorder %v2732, 0.001
        %vm2765 = vcmp.lt.f32.partialorder %v2733, 0.001
        %vm2766 = vcmp.lt.f32.partialorder %v2734, 0.001
        %vm2767 = vcmp.lt.f32.partialorder %v2735, 0.001
        %vm2768 = vcmp.lt.f32.partialorder %v2736, 0.001
        %vm2769 = vcmp.lt.f32.partialorder %v2737, 0.001
        %vm2770 = vcmp.lt.f32.partialorder %v2738, 0.001
        %vm2771 = vcmp.lt.f32.partialorder %v2739, 0.001
        %vm2772 = vcmp.lt.f32.partialorder %v2740, 0.001
        %vm2773 = vcmp.lt.f32.partialorder %v2741, 0.001
        %vm2774 = vcmp.lt.f32.partialorder %v2742, 0.001
        %vm2775 = vcmp.lt.f32.partialorder %v2743, 0.001
        %vm2776 = vcmp.lt.f32.partialorder %v2744, 0.001
        %vm2777 = vcmp.lt.f32.partialorder %v2745, 0.001
        %vm2778 = vcmp.lt.f32.partialorder %v2746, 0.001
        %vm2779 = vcmp.lt.f32.partialorder %v2747, 0.001
        %vm2780 = vcmp.lt.f32.partialorder %v2748, 0.001
        %vm2781 = vcmp.lt.f32.partialorder %v2749, 0.001
        %vm2782 = vcmp.lt.f32.partialorder %v2750, 0.001
        %vm2783 = vcmp.lt.f32.partialorder %v2751, 0.001
        %v2784 = vmul.f32 %v2688, -50.0
        %v2785 = vmul.f32 %v2689, -50.0
        %v2786 = vmul.f32 %v2690, -50.0
        %v2787 = vmul.f32 %v2691, -50.0
        %v2788 = vmul.f32 %v2692, -50.0
        %v2789 = vmul.f32 %v2693, -50.0
        %v2790 = vmul.f32 %v2694, -50.0
        %v2791 = vmul.f32 %v2695, -50.0
        %v2792 = vmul.f32 %v2696, -50.0
        %v2793 = vmul.f32 %v2697, -50.0
        %v2794 = vmul.f32 %v2698, -50.0
        %v2795 = vmul.f32 %v2699, -50.0
        %v2796 = vmul.f32 %v2700, -50.0
        %v2797 = vmul.f32 %v2701, -50.0
        %v2798 = vmul.f32 %v2702, -50.0
        %v2799 = vmul.f32 %v2703, -50.0
        %v2800 = vmul.f32 %v2704, -50.0
        %v2801 = vmul.f32 %v2705, -50.0
        %v2802 = vmul.f32 %v2706, -50.0
        %v2803 = vmul.f32 %v2707, -50.0
        %v2804 = vmul.f32 %v2708, -50.0
        %v2805 = vmul.f32 %v2709, -50.0
        %v2806 = vmul.f32 %v2710, -50.0
        %v2807 = vmul.f32 %v2711, -50.0
        %v2808 = vmul.f32 %v2712, -50.0
        %v2809 = vmul.f32 %v2713, -50.0
        %v2810 = vmul.f32 %v2714, -50.0
        %v2811 = vmul.f32 %v2715, -50.0
        %v2812 = vmul.f32 %v2716, -50.0
        %v2813 = vmul.f32 %v2717, -50.0
        %v2814 = vmul.f32 %v2718, -50.0
        %v2815 = vmul.f32 %v2719, -50.0
        %v2816 = vxor.u32 %v2784, 2147483648
        %v2817 = vxor.u32 %v2785, 2147483648
        %v2818 = vxor.u32 %v2786, 2147483648
        %v2819 = vxor.u32 %v2787, 2147483648
        %v2820 = vxor.u32 %v2788, 2147483648
        %v2821 = vxor.u32 %v2789, 2147483648
        %v2822 = vxor.u32 %v2790, 2147483648
        %v2823 = vxor.u32 %v2791, 2147483648
        %v2824 = vxor.u32 %v2792, 2147483648
        %v2825 = vxor.u32 %v2793, 2147483648
        %v2826 = vxor.u32 %v2794, 2147483648
        %v2827 = vxor.u32 %v2795, 2147483648
        %v2828 = vxor.u32 %v2796, 2147483648
        %v2829 = vxor.u32 %v2797, 2147483648
        %v2830 = vxor.u32 %v2798, 2147483648
        %v2831 = vxor.u32 %v2799, 2147483648
        %v2832 = vxor.u32 %v2800, 2147483648
        %v2833 = vxor.u32 %v2801, 2147483648
        %v2834 = vxor.u32 %v2802, 2147483648
        %v2835 = vxor.u32 %v2803, 2147483648
        %v2836 = vxor.u32 %v2804, 2147483648
        %v2837 = vxor.u32 %v2805, 2147483648
        %v2838 = vxor.u32 %v2806, 2147483648
        %v2839 = vxor.u32 %v2807, 2147483648
        %v2840 = vxor.u32 %v2808, 2147483648
        %v2841 = vxor.u32 %v2809, 2147483648
        %v2842 = vxor.u32 %v2810, 2147483648
        %v2843 = vxor.u32 %v2811, 2147483648
        %v2844 = vxor.u32 %v2812, 2147483648
        %v2845 = vxor.u32 %v2813, 2147483648
        %v2846 = vxor.u32 %v2814, 2147483648
        %v2847 = vxor.u32 %v2815, 2147483648
        %v2848 = vmul.f32 %v2816, 1.442695
        %v2849 = vpow.pop %v2848
        %v2850 = vmul.f32 %v2817, 1.442695
        %v2851 = vpow.pop %v2850
        %v2852 = vmul.f32 %v2818, 1.442695
        %v2853 = vpow.pop %v2852
        %v2854 = vmul.f32 %v2819, 1.442695
        %v2855 = vpow.pop %v2854
        %v2856 = vmul.f32 %v2820, 1.442695
        %v2857 = vpow.pop %v2856
        %v2858 = vmul.f32 %v2821, 1.442695
        %v2859 = vpow.pop %v2858
        %v2860 = vmul.f32 %v2822, 1.442695
        %v2861 = vpow.pop %v2860
        %v2862 = vmul.f32 %v2823, 1.442695
        %v2863 = vpow.pop %v2862
        %v2864 = vmul.f32 %v2824, 1.442695
        %v2865 = vpow.pop %v2864
        %v2866 = vmul.f32 %v2825, 1.442695
        %v2867 = vpow.pop %v2866
        %v2868 = vmul.f32 %v2826, 1.442695
        %v2869 = vpow.pop %v2868
        %v2870 = vmul.f32 %v2827, 1.442695
        %v2871 = vpow.pop %v2870
        %v2872 = vmul.f32 %v2828, 1.442695
        %v2873 = vpow.pop %v2872
        %v2874 = vmul.f32 %v2829, 1.442695
        %v2875 = vpow.pop %v2874
        %v2876 = vmul.f32 %v2830, 1.442695
        %v2877 = vpow.pop %v2876
        %v2878 = vmul.f32 %v2831, 1.442695
        %v2879 = vpow.pop %v2878
        %v2880 = vmul.f32 %v2832, 1.442695
        %v2881 = vpow.pop %v2880
        %v2882 = vmul.f32 %v2833, 1.442695
        %v2883 = vpow.pop %v2882
        %v2884 = vmul.f32 %v2834, 1.442695
        %v2885 = vpow.pop %v2884
        %v2886 = vmul.f32 %v2835, 1.442695
        %v2887 = vpow.pop %v2886
        %v2888 = vmul.f32 %v2836, 1.442695
        %v2889 = vpow.pop %v2888
        %v2890 = vmul.f32 %v2837, 1.442695
        %v2891 = vpow.pop %v2890
        %v2892 = vmul.f32 %v2838, 1.442695
        %v2893 = vpow.pop %v2892
        %v2894 = vmul.f32 %v2839, 1.442695
        %v2895 = vpow.pop %v2894
        %v2896 = vmul.f32 %v2840, 1.442695
        %v2897 = vpow.pop %v2896
        %v2898 = vmul.f32 %v2841, 1.442695
        %v2899 = vpow.pop %v2898
        %v2900 = vmul.f32 %v2842, 1.442695
        %v2901 = vpow.pop %v2900
        %v2902 = vmul.f32 %v2843, 1.442695
        %v2903 = vpow.pop %v2902
        %v2904 = vmul.f32 %v2844, 1.442695
        %v2905 = vpow.pop %v2904
        %v2906 = vmul.f32 %v2845, 1.442695
        %v2907 = vpow.pop %v2906
        %v2908 = vmul.f32 %v2846, 1.442695
        %v2909 = vpow.pop %v2908
        %v2910 = vmul.f32 %v2847, 1.442695
        %v2911 = vpow.pop %v2910
        %v2912 = vadd.f32 %v2849, 1.0
        %v2913 = vadd.f32 %v2851, 1.0
        %v2914 = vadd.f32 %v2853, 1.0
        %v2915 = vadd.f32 %v2855, 1.0
        %v2916 = vadd.f32 %v2857, 1.0
        %v2917 = vadd.f32 %v2859, 1.0
        %v2918 = vadd.f32 %v2861, 1.0
        %v2919 = vadd.f32 %v2863, 1.0
        %v2920 = vadd.f32 %v2865, 1.0
        %v2921 = vadd.f32 %v2867, 1.0
        %v2922 = vadd.f32 %v2869, 1.0
        %v2923 = vadd.f32 %v2871, 1.0
        %v2924 = vadd.f32 %v2873, 1.0
        %v2925 = vadd.f32 %v2875, 1.0
        %v2926 = vadd.f32 %v2877, 1.0
        %v2927 = vadd.f32 %v2879, 1.0
        %v2928 = vadd.f32 %v2881, 1.0
        %v2929 = vadd.f32 %v2883, 1.0
        %v2930 = vadd.f32 %v2885, 1.0
        %v2931 = vadd.f32 %v2887, 1.0
        %v2932 = vadd.f32 %v2889, 1.0
        %v2933 = vadd.f32 %v2891, 1.0
        %v2934 = vadd.f32 %v2893, 1.0
        %v2935 = vadd.f32 %v2895, 1.0
        %v2936 = vadd.f32 %v2897, 1.0
        %v2937 = vadd.f32 %v2899, 1.0
        %v2938 = vadd.f32 %v2901, 1.0
        %v2939 = vadd.f32 %v2903, 1.0
        %v2940 = vadd.f32 %v2905, 1.0
        %v2941 = vadd.f32 %v2907, 1.0
        %v2942 = vadd.f32 %v2909, 1.0
        %v2943 = vadd.f32 %v2911, 1.0
        %v2944 = vrcp.pop %v2912
        %v2945 = vmul.f32 1.0, %v2944
        %v2946 = vrcp.pop %v2913
        %v2947 = vmul.f32 1.0, %v2946
        %v2948 = vrcp.pop %v2914
        %v2949 = vmul.f32 1.0, %v2948
        %v2950 = vrcp.pop %v2915
        %v2951 = vmul.f32 1.0, %v2950
        %v2952 = vrcp.pop %v2916
        %v2953 = vmul.f32 1.0, %v2952
        %v2954 = vrcp.pop %v2917
        %v2955 = vmul.f32 1.0, %v2954
        %v2956 = vrcp.pop %v2918
        %v2957 = vmul.f32 1.0, %v2956
        %v2958 = vrcp.pop %v2919
        %v2959 = vmul.f32 1.0, %v2958
        %v2960 = vrcp.pop %v2920
        %v2961 = vmul.f32 1.0, %v2960
        %v2962 = vrcp.pop %v2921
        %v2963 = vmul.f32 1.0, %v2962
        %v2964 = vrcp.pop %v2922
        %v2965 = vmul.f32 1.0, %v2964
        %v2966 = vrcp.pop %v2923
        %v2967 = vmul.f32 1.0, %v2966
        %v2968 = vrcp.pop %v2924
        %v2969 = vmul.f32 1.0, %v2968
        %v2970 = vrcp.pop %v2925
        %v2971 = vmul.f32 1.0, %v2970
        %v2972 = vrcp.pop %v2926
        %v2973 = vmul.f32 1.0, %v2972
        %v2974 = vrcp.pop %v2927
        %v2975 = vmul.f32 1.0, %v2974
        %v2976 = vrcp.pop %v2928
        %v2977 = vmul.f32 1.0, %v2976
        %v2978 = vrcp.pop %v2929
        %v2979 = vmul.f32 1.0, %v2978
        %v2980 = vrcp.pop %v2930
        %v2981 = vmul.f32 1.0, %v2980
        %v2982 = vrcp.pop %v2931
        %v2983 = vmul.f32 1.0, %v2982
        %v2984 = vrcp.pop %v2932
        %v2985 = vmul.f32 1.0, %v2984
        %v2986 = vrcp.pop %v2933
        %v2987 = vmul.f32 1.0, %v2986
        %v2988 = vrcp.pop %v2934
        %v2989 = vmul.f32 1.0, %v2988
        %v2990 = vrcp.pop %v2935
        %v2991 = vmul.f32 1.0, %v2990
        %v2992 = vrcp.pop %v2936
        %v2993 = vmul.f32 1.0, %v2992
        %v2994 = vrcp.pop %v2937
        %v2995 = vmul.f32 1.0, %v2994
        %v2996 = vrcp.pop %v2938
        %v2997 = vmul.f32 1.0, %v2996
        %v2998 = vrcp.pop %v2939
        %v2999 = vmul.f32 1.0, %v2998
        %v3000 = vrcp.pop %v2940
        %v3001 = vmul.f32 1.0, %v3000
        %v3002 = vrcp.pop %v2941
        %v3003 = vmul.f32 1.0, %v3002
        %v3004 = vrcp.pop %v2942
        %v3005 = vmul.f32 1.0, %v3004
        %v3006 = vrcp.pop %v2943
        %v3007 = vmul.f32 1.0, %v3006
        %v3008 = vrsqrt.pop %v2432
        %v3009 = vrsqrt.pop %v2433
        %v3010 = vrsqrt.pop %v2434
        %v3011 = vrsqrt.pop %v2435
        %v3012 = vrsqrt.pop %v2436
        %v3013 = vrsqrt.pop %v2437
        %v3014 = vrsqrt.pop %v2438
        %v3015 = vrsqrt.pop %v2439
        %v3016 = vrsqrt.pop %v2440
        %v3017 = vrsqrt.pop %v2441
        %v3018 = vrsqrt.pop %v2442
        %v3019 = vrsqrt.pop %v2443
        %v3020 = vrsqrt.pop %v2444
        %v3021 = vrsqrt.pop %v2445
        %v3022 = vrsqrt.pop %v2446
        %v3023 = vrsqrt.pop %v2447
        %v3024 = vrsqrt.pop %v2448
        %v3025 = vrsqrt.pop %v2449
        %v3026 = vrsqrt.pop %v2450
        %v3027 = vrsqrt.pop %v2451
        %v3028 = vrsqrt.pop %v2452
        %v3029 = vrsqrt.pop %v2453
        %v3030 = vrsqrt.pop %v2454
        %v3031 = vrsqrt.pop %v2455
        %v3032 = vrsqrt.pop %v2456
        %v3033 = vrsqrt.pop %v2457
        %v3034 = vrsqrt.pop %v2458
        %v3035 = vrsqrt.pop %v2459
        %v3036 = vrsqrt.pop %v2460
        %v3037 = vrsqrt.pop %v2461
        %v3038 = vrsqrt.pop %v2462
        %v3039 = vrsqrt.pop %v2463
        %v3040 = vlaneseq
        %v3041 = vshrl.u32 %v3040, 7
        %v3042 = vsub.s32 0, %v3041
        %v3043 = vrot.slane %v3008, %v3042
        %v3044 = vlaneseq
        %v3045 = vshrl.u32 %v3044, 7
        %v3046 = vsub.s32 0, %v3045
        %v3047 = vrot.slane %v3009, %v3046
        %v3048 = vlaneseq
        %v3049 = vshrl.u32 %v3048, 7
        %v3050 = vsub.s32 0, %v3049
        %v3051 = vrot.slane %v3010, %v3050
        %v3052 = vlaneseq
        %v3053 = vshrl.u32 %v3052, 7
        %v3054 = vsub.s32 0, %v3053
        %v3055 = vrot.slane %v3011, %v3054
        %v3056 = vlaneseq
        %v3057 = vshrl.u32 %v3056, 7
        %v3058 = vsub.s32 0, %v3057
        %v3059 = vrot.slane %v3012, %v3058
        %v3060 = vlaneseq
        %v3061 = vshrl.u32 %v3060, 7
        %v3062 = vsub.s32 0, %v3061
        %v3063 = vrot.slane %v3013, %v3062
        %v3064 = vlaneseq
        %v3065 = vshrl.u32 %v3064, 7
        %v3066 = vsub.s32 0, %v3065
        %v3067 = vrot.slane %v3014, %v3066
        %v3068 = vlaneseq
        %v3069 = vshrl.u32 %v3068, 7
        %v3070 = vsub.s32 0, %v3069
        %v3071 = vrot.slane %v3015, %v3070
        %v3072 = vlaneseq
        %v3073 = vshrl.u32 %v3072, 7
        %v3074 = vsub.s32 0, %v3073
        %v3075 = vrot.slane %v3016, %v3074
        %v3076 = vlaneseq
        %v3077 = vshrl.u32 %v3076, 7
        %v3078 = vsub.s32 0, %v3077
        %v3079 = vrot.slane %v3017, %v3078
        %v3080 = vlaneseq
        %v3081 = vshrl.u32 %v3080, 7
        %v3082 = vsub.s32 0, %v3081
        %v3083 = vrot.slane %v3018, %v3082
        %v3084 = vlaneseq
        %v3085 = vshrl.u32 %v3084, 7
        %v3086 = vsub.s32 0, %v3085
        %v3087 = vrot.slane %v3019, %v3086
        %v3088 = vlaneseq
        %v3089 = vshrl.u32 %v3088, 7
        %v3090 = vsub.s32 0, %v3089
        %v3091 = vrot.slane %v3020, %v3090
        %v3092 = vlaneseq
        %v3093 = vshrl.u32 %v3092, 7
        %v3094 = vsub.s32 0, %v3093
        %v3095 = vrot.slane %v3021, %v3094
        %v3096 = vlaneseq
        %v3097 = vshrl.u32 %v3096, 7
        %v3098 = vsub.s32 0, %v3097
        %v3099 = vrot.slane %v3022, %v3098
        %v3100 = vlaneseq
        %v3101 = vshrl.u32 %v3100, 7
        %v3102 = vsub.s32 0, %v3101
        %v3103 = vrot.slane %v3023, %v3102
        %v3104 = vlaneseq
        %v3105 = vshrl.u32 %v3104, 7
        %v3106 = vsub.s32 0, %v3105
        %v3107 = vrot.slane %v3024, %v3106
        %v3108 = vlaneseq
        %v3109 = vshrl.u32 %v3108, 7
        %v3110 = vsub.s32 0, %v3109
        %v3111 = vrot.slane %v3025, %v3110
        %v3112 = vlaneseq
        %v3113 = vshrl.u32 %v3112, 7
        %v3114 = vsub.s32 0, %v3113
        %v3115 = vrot.slane %v3026, %v3114
        %v3116 = vlaneseq
        %v3117 = vshrl.u32 %v3116, 7
        %v3118 = vsub.s32 0, %v3117
        %v3119 = vrot.slane %v3027, %v3118
        %v3120 = vlaneseq
        %v3121 = vshrl.u32 %v3120, 7
        %v3122 = vsub.s32 0, %v3121
        %v3123 = vrot.slane %v3028, %v3122
        %v3124 = vlaneseq
        %v3125 = vshrl.u32 %v3124, 7
        %v3126 = vsub.s32 0, %v3125
        %v3127 = vrot.slane %v3029, %v3126
        %v3128 = vlaneseq
        %v3129 = vshrl.u32 %v3128, 7
        %v3130 = vsub.s32 0, %v3129
        %v3131 = vrot.slane %v3030, %v3130
        %v3132 = vlaneseq
        %v3133 = vshrl.u32 %v3132, 7
        %v3134 = vsub.s32 0, %v3133
        %v3135 = vrot.slane %v3031, %v3134
        %v3136 = vlaneseq
        %v3137 = vshrl.u32 %v3136, 7
        %v3138 = vsub.s32 0, %v3137
        %v3139 = vrot.slane %v3032, %v3138
        %v3140 = vlaneseq
        %v3141 = vshrl.u32 %v3140, 7
        %v3142 = vsub.s32 0, %v3141
        %v3143 = vrot.slane %v3033, %v3142
        %v3144 = vlaneseq
        %v3145 = vshrl.u32 %v3144, 7
        %v3146 = vsub.s32 0, %v3145
        %v3147 = vrot.slane %v3034, %v3146
        %v3148 = vlaneseq
        %v3149 = vshrl.u32 %v3148, 7
        %v3150 = vsub.s32 0, %v3149
        %v3151 = vrot.slane %v3035, %v3150
        %v3152 = vlaneseq
        %v3153 = vshrl.u32 %v3152, 7
        %v3154 = vsub.s32 0, %v3153
        %v3155 = vrot.slane %v3036, %v3154
        %v3156 = vlaneseq
        %v3157 = vshrl.u32 %v3156, 7
        %v3158 = vsub.s32 0, %v3157
        %v3159 = vrot.slane %v3037, %v3158
        %v3160 = vlaneseq
        %v3161 = vshrl.u32 %v3160, 7
        %v3162 = vsub.s32 0, %v3161
        %v3163 = vrot.slane %v3038, %v3162
        %v3164 = vlaneseq
        %v3165 = vshrl.u32 %v3164, 7
        %v3166 = vsub.s32 0, %v3165
        %v3167 = vrot.slane %v3039, %v3166
        %v3168 = vmul.f32 %v2144, %v3043
        %v3169 = vmul.f32 %v2145, %v3047
        %v3170 = vmul.f32 %v2146, %v3051
        %v3171 = vmul.f32 %v2147, %v3055
        %v3172 = vmul.f32 %v2148, %v3059
        %v3173 = vmul.f32 %v2149, %v3063
        %v3174 = vmul.f32 %v2150, %v3067
        %v3175 = vmul.f32 %v2151, %v3071
        %v3176 = vmul.f32 %v2152, %v3075
        %v3177 = vmul.f32 %v2153, %v3079
        %v3178 = vmul.f32 %v2154, %v3083
        %v3179 = vmul.f32 %v2155, %v3087
        %v3180 = vmul.f32 %v2156, %v3091
        %v3181 = vmul.f32 %v2157, %v3095
        %v3182 = vmul.f32 %v2158, %v3099
        %v3183 = vmul.f32 %v2159, %v3103
        %v3184 = vmul.f32 %v2160, %v3107
        %v3185 = vmul.f32 %v2161, %v3111
        %v3186 = vmul.f32 %v2162, %v3115
        %v3187 = vmul.f32 %v2163, %v3119
        %v3188 = vmul.f32 %v2164, %v3123
        %v3189 = vmul.f32 %v2165, %v3127
        %v3190 = vmul.f32 %v2166, %v3131
        %v3191 = vmul.f32 %v2167, %v3135
        %v3192 = vmul.f32 %v2168, %v3139
        %v3193 = vmul.f32 %v2169, %v3143
        %v3194 = vmul.f32 %v2170, %v3147
        %v3195 = vmul.f32 %v2171, %v3151
        %v3196 = vmul.f32 %v2172, %v3155
        %v3197 = vmul.f32 %v2173, %v3159
        %v3198 = vmul.f32 %v2174, %v3163
        %v3199 = vmul.f32 %v2175, %v3167
        %v3200 = vunpack.c.l.bf16 %v272
        %3202 = vset.pattern.permute.xlu0 82
        %3203 = vperm.xlu0 %3202, %v3200
        %v3204 = vpop.permute.xlu0 %3203
        %v3206 = vsub.f32 %v3204, %v2144
        %v3207 = vsub.f32 %v3204, %v2145
        %v3208 = vsub.f32 %v3204, %v2146
        %v3209 = vsub.f32 %v3204, %v2147
        %v3210 = vsub.f32 %v3204, %v2148
        %v3211 = vsub.f32 %v3204, %v2149
        %v3212 = vsub.f32 %v3204, %v2150
        %v3213 = vsub.f32 %v3204, %v2151
        %v3214 = vsub.f32 %v3204, %v2152
        %v3215 = vsub.f32 %v3204, %v2153
        %v3216 = vsub.f32 %v3204, %v2154
        %v3217 = vsub.f32 %v3204, %v2155
        %v3218 = vsub.f32 %v3204, %v2156
        %v3219 = vsub.f32 %v3204, %v2157
        %v3220 = vsub.f32 %v3204, %v2158
        %v3221 = vsub.f32 %v3204, %v2159
        %v3222 = vsub.f32 %v3204, %v2160
        %v3223 = vsub.f32 %v3204, %v2161
        %v3224 = vsub.f32 %v3204, %v2162
        %v3225 = vsub.f32 %v3204, %v2163
        %v3226 = vsub.f32 %v3204, %v2164
        %v3227 = vsub.f32 %v3204, %v2165
        %v3228 = vsub.f32 %v3204, %v2166
        %v3229 = vsub.f32 %v3204, %v2167
        %v3230 = vsub.f32 %v3204, %v2168
        %v3231 = vsub.f32 %v3204, %v2169
        %v3232 = vsub.f32 %v3204, %v2170
        %v3233 = vsub.f32 %v3204, %v2171
        %v3234 = vsub.f32 %v3204, %v2172
        %v3235 = vsub.f32 %v3204, %v2173
        %v3236 = vsub.f32 %v3204, %v2174
        %v3237 = vsub.f32 %v3204, %v2175
        %v3238 = vmul.f32 %v3206, %v3206
        %v3239 = vmul.f32 %v3207, %v3207
        %v3240 = vmul.f32 %v3208, %v3208
        %v3241 = vmul.f32 %v3209, %v3209
        %v3242 = vmul.f32 %v3210, %v3210
        %v3243 = vmul.f32 %v3211, %v3211
        %v3244 = vmul.f32 %v3212, %v3212
        %v3245 = vmul.f32 %v3213, %v3213
        %v3246 = vmul.f32 %v3214, %v3214
        %v3247 = vmul.f32 %v3215, %v3215
        %v3248 = vmul.f32 %v3216, %v3216
        %v3249 = vmul.f32 %v3217, %v3217
        %v3250 = vmul.f32 %v3218, %v3218
        %v3251 = vmul.f32 %v3219, %v3219
        %v3252 = vmul.f32 %v3220, %v3220
        %v3253 = vmul.f32 %v3221, %v3221
        %v3254 = vmul.f32 %v3222, %v3222
        %v3255 = vmul.f32 %v3223, %v3223
        %v3256 = vmul.f32 %v3224, %v3224
        %v3257 = vmul.f32 %v3225, %v3225
        %v3258 = vmul.f32 %v3226, %v3226
        %v3259 = vmul.f32 %v3227, %v3227
        %v3260 = vmul.f32 %v3228, %v3228
        %v3261 = vmul.f32 %v3229, %v3229
        %v3262 = vmul.f32 %v3230, %v3230
        %v3263 = vmul.f32 %v3231, %v3231
        %v3264 = vmul.f32 %v3232, %v3232
        %v3265 = vmul.f32 %v3233, %v3233
        %v3266 = vmul.f32 %v3234, %v3234
        %v3267 = vmul.f32 %v3235, %v3235
        %v3268 = vmul.f32 %v3236, %v3236
        %v3269 = vmul.f32 %v3237, %v3237
        %v3302 = vrot.slane %v3238, 1
        %v3303 = vrot.slane %v3239, 1
        %v3304 = vrot.slane %v3240, 1
        %v3305 = vrot.slane %v3241, 1
        %v3306 = vrot.slane %v3242, 1
        %v3307 = vrot.slane %v3243, 1
        %v3308 = vrot.slane %v3244, 1
        %v3309 = vrot.slane %v3245, 1
        %v3310 = vrot.slane %v3246, 1
        %v3311 = vrot.slane %v3247, 1
        %v3312 = vrot.slane %v3248, 1
        %v3313 = vrot.slane %v3249, 1
        %v3314 = vrot.slane %v3250, 1
        %v3315 = vrot.slane %v3251, 1
        %v3316 = vrot.slane %v3252, 1
        %v3317 = vrot.slane %v3253, 1
        %v3318 = vrot.slane %v3254, 1
        %v3319 = vrot.slane %v3255, 1
        %v3320 = vrot.slane %v3256, 1
        %v3321 = vrot.slane %v3257, 1
        %v3322 = vrot.slane %v3258, 1
        %v3323 = vrot.slane %v3259, 1
        %v3324 = vrot.slane %v3260, 1
        %v3325 = vrot.slane %v3261, 1
        %v3326 = vrot.slane %v3262, 1
        %v3327 = vrot.slane %v3263, 1
        %v3328 = vrot.slane %v3264, 1
        %v3329 = vrot.slane %v3265, 1
        %v3330 = vrot.slane %v3266, 1
        %v3331 = vrot.slane %v3267, 1
        %v3332 = vrot.slane %v3268, 1
        %v3333 = vrot.slane %v3269, 1
        %v3366 = vadd.f32 %v3238, %v3302
        %v3367 = vadd.f32 %v3239, %v3303
        %v3368 = vadd.f32 %v3240, %v3304
        %v3369 = vadd.f32 %v3241, %v3305
        %v3370 = vadd.f32 %v3242, %v3306
        %v3371 = vadd.f32 %v3243, %v3307
        %v3372 = vadd.f32 %v3244, %v3308
        %v3373 = vadd.f32 %v3245, %v3309
        %v3374 = vadd.f32 %v3246, %v3310
        %v3375 = vadd.f32 %v3247, %v3311
        %v3376 = vadd.f32 %v3248, %v3312
        %v3377 = vadd.f32 %v3249, %v3313
        %v3378 = vadd.f32 %v3250, %v3314
        %v3379 = vadd.f32 %v3251, %v3315
        %v3380 = vadd.f32 %v3252, %v3316
        %v3381 = vadd.f32 %v3253, %v3317
        %v3382 = vadd.f32 %v3254, %v3318
        %v3383 = vadd.f32 %v3255, %v3319
        %v3384 = vadd.f32 %v3256, %v3320
        %v3385 = vadd.f32 %v3257, %v3321
        %v3386 = vadd.f32 %v3258, %v3322
        %v3387 = vadd.f32 %v3259, %v3323
        %v3388 = vadd.f32 %v3260, %v3324
        %v3389 = vadd.f32 %v3261, %v3325
        %v3390 = vadd.f32 %v3262, %v3326
        %v3391 = vadd.f32 %v3263, %v3327
        %v3392 = vadd.f32 %v3264, %v3328
        %v3393 = vadd.f32 %v3265, %v3329
        %v3394 = vadd.f32 %v3266, %v3330
        %v3395 = vadd.f32 %v3267, %v3331
        %v3396 = vadd.f32 %v3268, %v3332
        %v3397 = vadd.f32 %v3269, %v3333
        %v3398 = vrot.slane %v3238, 2
        %v3399 = vrot.slane %v3239, 2
        %v3400 = vrot.slane %v3240, 2
        %v3401 = vrot.slane %v3241, 2
        %v3402 = vrot.slane %v3242, 2
        %v3403 = vrot.slane %v3243, 2
        %v3404 = vrot.slane %v3244, 2
        %v3405 = vrot.slane %v3245, 2
        %v3406 = vrot.slane %v3246, 2
        %v3407 = vrot.slane %v3247, 2
        %v3408 = vrot.slane %v3248, 2
        %v3409 = vrot.slane %v3249, 2
        %v3410 = vrot.slane %v3250, 2
        %v3411 = vrot.slane %v3251, 2
        %v3412 = vrot.slane %v3252, 2
        %v3413 = vrot.slane %v3253, 2
        %v3414 = vrot.slane %v3254, 2
        %v3415 = vrot.slane %v3255, 2
        %v3416 = vrot.slane %v3256, 2
        %v3417 = vrot.slane %v3257, 2
        %v3418 = vrot.slane %v3258, 2
        %v3419 = vrot.slane %v3259, 2
        %v3420 = vrot.slane %v3260, 2
        %v3421 = vrot.slane %v3261, 2
        %v3422 = vrot.slane %v3262, 2
        %v3423 = vrot.slane %v3263, 2
        %v3424 = vrot.slane %v3264, 2
        %v3425 = vrot.slane %v3265, 2
        %v3426 = vrot.slane %v3266, 2
        %v3427 = vrot.slane %v3267, 2
        %v3428 = vrot.slane %v3268, 2
        %v3429 = vrot.slane %v3269, 2
        %v3462 = vadd.f32 %v3366, %v3398
        %v3463 = vadd.f32 %v3367, %v3399
        %v3464 = vadd.f32 %v3368, %v3400
        %v3465 = vadd.f32 %v3369, %v3401
        %v3466 = vadd.f32 %v3370, %v3402
        %v3467 = vadd.f32 %v3371, %v3403
        %v3468 = vadd.f32 %v3372, %v3404
        %v3469 = vadd.f32 %v3373, %v3405
        %v3470 = vadd.f32 %v3374, %v3406
        %v3471 = vadd.f32 %v3375, %v3407
        %v3472 = vadd.f32 %v3376, %v3408
        %v3473 = vadd.f32 %v3377, %v3409
        %v3474 = vadd.f32 %v3378, %v3410
        %v3475 = vadd.f32 %v3379, %v3411
        %v3476 = vadd.f32 %v3380, %v3412
        %v3477 = vadd.f32 %v3381, %v3413
        %v3478 = vadd.f32 %v3382, %v3414
        %v3479 = vadd.f32 %v3383, %v3415
        %v3480 = vadd.f32 %v3384, %v3416
        %v3481 = vadd.f32 %v3385, %v3417
        %v3482 = vadd.f32 %v3386, %v3418
        %v3483 = vadd.f32 %v3387, %v3419
        %v3484 = vadd.f32 %v3388, %v3420
        %v3485 = vadd.f32 %v3389, %v3421
        %v3486 = vadd.f32 %v3390, %v3422
        %v3487 = vadd.f32 %v3391, %v3423
        %v3488 = vadd.f32 %v3392, %v3424
        %v3489 = vadd.f32 %v3393, %v3425
        %v3490 = vadd.f32 %v3394, %v3426
        %v3491 = vadd.f32 %v3395, %v3427
        %v3492 = vadd.f32 %v3396, %v3428
        %v3493 = vadd.f32 %v3397, %v3429
        %v3494 = vadd.f32 %v3462, 1e-12
        %v3495 = vadd.f32 %v3463, 1e-12
        %v3496 = vadd.f32 %v3464, 1e-12
        %v3497 = vadd.f32 %v3465, 1e-12
        %v3498 = vadd.f32 %v3466, 1e-12
        %v3499 = vadd.f32 %v3467, 1e-12
        %v3500 = vadd.f32 %v3468, 1e-12
        %v3501 = vadd.f32 %v3469, 1e-12
        %v3502 = vadd.f32 %v3470, 1e-12
        %v3503 = vadd.f32 %v3471, 1e-12
        %v3504 = vadd.f32 %v3472, 1e-12
        %v3505 = vadd.f32 %v3473, 1e-12
        %v3506 = vadd.f32 %v3474, 1e-12
        %v3507 = vadd.f32 %v3475, 1e-12
        %v3508 = vadd.f32 %v3476, 1e-12
        %v3509 = vadd.f32 %v3477, 1e-12
        %v3510 = vadd.f32 %v3478, 1e-12
        %v3511 = vadd.f32 %v3479, 1e-12
        %v3512 = vadd.f32 %v3480, 1e-12
        %v3513 = vadd.f32 %v3481, 1e-12
        %v3514 = vadd.f32 %v3482, 1e-12
        %v3515 = vadd.f32 %v3483, 1e-12
        %v3516 = vadd.f32 %v3484, 1e-12
        %v3517 = vadd.f32 %v3485, 1e-12
        %v3518 = vadd.f32 %v3486, 1e-12
        %v3519 = vadd.f32 %v3487, 1e-12
        %v3520 = vadd.f32 %v3488, 1e-12
        %v3521 = vadd.f32 %v3489, 1e-12
        %v3522 = vadd.f32 %v3490, 1e-12
        %v3523 = vadd.f32 %v3491, 1e-12
        %v3524 = vadd.f32 %v3492, 1e-12
        %v3525 = vadd.f32 %v3493, 1e-12
        %v3526 = vrsqrt.pop %v3494
        %v3527 = vrsqrt.pop %v3495
        %v3528 = vrsqrt.pop %v3496
        %v3529 = vrsqrt.pop %v3497
        %v3530 = vrsqrt.pop %v3498
        %v3531 = vrsqrt.pop %v3499
        %v3532 = vrsqrt.pop %v3500
        %v3533 = vrsqrt.pop %v3501
        %v3534 = vrsqrt.pop %v3502
        %v3535 = vrsqrt.pop %v3503
        %v3536 = vrsqrt.pop %v3504
        %v3537 = vrsqrt.pop %v3505
        %v3538 = vrsqrt.pop %v3506
        %v3539 = vrsqrt.pop %v3507
        %v3540 = vrsqrt.pop %v3508
        %v3541 = vrsqrt.pop %v3509
        %v3542 = vrsqrt.pop %v3510
        %v3543 = vrsqrt.pop %v3511
        %v3544 = vrsqrt.pop %v3512
        %v3545 = vrsqrt.pop %v3513
        %v3546 = vrsqrt.pop %v3514
        %v3547 = vrsqrt.pop %v3515
        %v3548 = vrsqrt.pop %v3516
        %v3549 = vrsqrt.pop %v3517
        %v3550 = vrsqrt.pop %v3518
        %v3551 = vrsqrt.pop %v3519
        %v3552 = vrsqrt.pop %v3520
        %v3553 = vrsqrt.pop %v3521
        %v3554 = vrsqrt.pop %v3522
        %v3555 = vrsqrt.pop %v3523
        %v3556 = vrsqrt.pop %v3524
        %v3557 = vrsqrt.pop %v3525
        %v3558 = vlaneseq
        %v3559 = vshrl.u32 %v3558, 7
        %v3560 = vsub.s32 0, %v3559
        %v3561 = vrot.slane %v3526, %v3560
        %v3562 = vlaneseq
        %v3563 = vshrl.u32 %v3562, 7
        %v3564 = vsub.s32 0, %v3563
        %v3565 = vrot.slane %v3527, %v3564
        %v3566 = vlaneseq
        %v3567 = vshrl.u32 %v3566, 7
        %v3568 = vsub.s32 0, %v3567
        %v3569 = vrot.slane %v3528, %v3568
        %v3570 = vlaneseq
        %v3571 = vshrl.u32 %v3570, 7
        %v3572 = vsub.s32 0, %v3571
        %v3573 = vrot.slane %v3529, %v3572
        %v3574 = vlaneseq
        %v3575 = vshrl.u32 %v3574, 7
        %v3576 = vsub.s32 0, %v3575
        %v3577 = vrot.slane %v3530, %v3576
        %v3578 = vlaneseq
        %v3579 = vshrl.u32 %v3578, 7
        %v3580 = vsub.s32 0, %v3579
        %v3581 = vrot.slane %v3531, %v3580
        %v3582 = vlaneseq
        %v3583 = vshrl.u32 %v3582, 7
        %v3584 = vsub.s32 0, %v3583
        %v3585 = vrot.slane %v3532, %v3584
        %v3586 = vlaneseq
        %v3587 = vshrl.u32 %v3586, 7
        %v3588 = vsub.s32 0, %v3587
        %v3589 = vrot.slane %v3533, %v3588
        %v3590 = vlaneseq
        %v3591 = vshrl.u32 %v3590, 7
        %v3592 = vsub.s32 0, %v3591
        %v3593 = vrot.slane %v3534, %v3592
        %v3594 = vlaneseq
        %v3595 = vshrl.u32 %v3594, 7
        %v3596 = vsub.s32 0, %v3595
        %v3597 = vrot.slane %v3535, %v3596
        %v3598 = vlaneseq
        %v3599 = vshrl.u32 %v3598, 7
        %v3600 = vsub.s32 0, %v3599
        %v3601 = vrot.slane %v3536, %v3600
        %v3602 = vlaneseq
        %v3603 = vshrl.u32 %v3602, 7
        %v3604 = vsub.s32 0, %v3603
        %v3605 = vrot.slane %v3537, %v3604
        %v3606 = vlaneseq
        %v3607 = vshrl.u32 %v3606, 7
        %v3608 = vsub.s32 0, %v3607
        %v3609 = vrot.slane %v3538, %v3608
        %v3610 = vlaneseq
        %v3611 = vshrl.u32 %v3610, 7
        %v3612 = vsub.s32 0, %v3611
        %v3613 = vrot.slane %v3539, %v3612
        %v3614 = vlaneseq
        %v3615 = vshrl.u32 %v3614, 7
        %v3616 = vsub.s32 0, %v3615
        %v3617 = vrot.slane %v3540, %v3616
        %v3618 = vlaneseq
        %v3619 = vshrl.u32 %v3618, 7
        %v3620 = vsub.s32 0, %v3619
        %v3621 = vrot.slane %v3541, %v3620
        %v3622 = vlaneseq
        %v3623 = vshrl.u32 %v3622, 7
        %v3624 = vsub.s32 0, %v3623
        %v3625 = vrot.slane %v3542, %v3624
        %v3626 = vlaneseq
        %v3627 = vshrl.u32 %v3626, 7
        %v3628 = vsub.s32 0, %v3627
        %v3629 = vrot.slane %v3543, %v3628
        %v3630 = vlaneseq
        %v3631 = vshrl.u32 %v3630, 7
        %v3632 = vsub.s32 0, %v3631
        %v3633 = vrot.slane %v3544, %v3632
        %v3634 = vlaneseq
        %v3635 = vshrl.u32 %v3634, 7
        %v3636 = vsub.s32 0, %v3635
        %v3637 = vrot.slane %v3545, %v3636
        %v3638 = vlaneseq
        %v3639 = vshrl.u32 %v3638, 7
        %v3640 = vsub.s32 0, %v3639
        %v3641 = vrot.slane %v3546, %v3640
        %v3642 = vlaneseq
        %v3643 = vshrl.u32 %v3642, 7
        %v3644 = vsub.s32 0, %v3643
        %v3645 = vrot.slane %v3547, %v3644
        %v3646 = vlaneseq
        %v3647 = vshrl.u32 %v3646, 7
        %v3648 = vsub.s32 0, %v3647
        %v3649 = vrot.slane %v3548, %v3648
        %v3650 = vlaneseq
        %v3651 = vshrl.u32 %v3650, 7
        %v3652 = vsub.s32 0, %v3651
        %v3653 = vrot.slane %v3549, %v3652
        %v3654 = vlaneseq
        %v3655 = vshrl.u32 %v3654, 7
        %v3656 = vsub.s32 0, %v3655
        %v3657 = vrot.slane %v3550, %v3656
        %v3658 = vlaneseq
        %v3659 = vshrl.u32 %v3658, 7
        %v3660 = vsub.s32 0, %v3659
        %v3661 = vrot.slane %v3551, %v3660
        %v3662 = vlaneseq
        %v3663 = vshrl.u32 %v3662, 7
        %v3664 = vsub.s32 0, %v3663
        %v3665 = vrot.slane %v3552, %v3664
        %v3666 = vlaneseq
        %v3667 = vshrl.u32 %v3666, 7
        %v3668 = vsub.s32 0, %v3667
        %v3669 = vrot.slane %v3553, %v3668
        %v3670 = vlaneseq
        %v3671 = vshrl.u32 %v3670, 7
        %v3672 = vsub.s32 0, %v3671
        %v3673 = vrot.slane %v3554, %v3672
        %v3674 = vlaneseq
        %v3675 = vshrl.u32 %v3674, 7
        %v3676 = vsub.s32 0, %v3675
        %v3677 = vrot.slane %v3555, %v3676
        %v3678 = vlaneseq
        %v3679 = vshrl.u32 %v3678, 7
        %v3680 = vsub.s32 0, %v3679
        %v3681 = vrot.slane %v3556, %v3680
        %v3682 = vlaneseq
        %v3683 = vshrl.u32 %v3682, 7
        %v3684 = vsub.s32 0, %v3683
        %v3685 = vrot.slane %v3557, %v3684
        %v3686 = vmul.f32 %v3206, %v3561
        %v3687 = vmul.f32 %v3207, %v3565
        %v3688 = vmul.f32 %v3208, %v3569
        %v3689 = vmul.f32 %v3209, %v3573
        %v3690 = vmul.f32 %v3210, %v3577
        %v3691 = vmul.f32 %v3211, %v3581
        %v3692 = vmul.f32 %v3212, %v3585
        %v3693 = vmul.f32 %v3213, %v3589
        %v3694 = vmul.f32 %v3214, %v3593
        %v3695 = vmul.f32 %v3215, %v3597
        %v3696 = vmul.f32 %v3216, %v3601
        %v3697 = vmul.f32 %v3217, %v3605
        %v3698 = vmul.f32 %v3218, %v3609
        %v3699 = vmul.f32 %v3219, %v3613
        %v3700 = vmul.f32 %v3220, %v3617
        %v3701 = vmul.f32 %v3221, %v3621
        %v3702 = vmul.f32 %v3222, %v3625
        %v3703 = vmul.f32 %v3223, %v3629
        %v3704 = vmul.f32 %v3224, %v3633
        %v3705 = vmul.f32 %v3225, %v3637
        %v3706 = vmul.f32 %v3226, %v3641
        %v3707 = vmul.f32 %v3227, %v3645
        %v3708 = vmul.f32 %v3228, %v3649
        %v3709 = vmul.f32 %v3229, %v3653
        %v3710 = vmul.f32 %v3230, %v3657
        %v3711 = vmul.f32 %v3231, %v3661
        %v3712 = vmul.f32 %v3232, %v3665
        %v3713 = vmul.f32 %v3233, %v3669
        %v3714 = vmul.f32 %v3234, %v3673
        %v3715 = vmul.f32 %v3235, %v3677
        %v3716 = vmul.f32 %v3236, %v3681
        %v3717 = vmul.f32 %v3237, %v3685
        %v3718 = vmul.f32 %v3168, %v3686
        %v3719 = vmul.f32 %v3169, %v3687
        %v3720 = vmul.f32 %v3170, %v3688
        %v3721 = vmul.f32 %v3171, %v3689
        %v3722 = vmul.f32 %v3172, %v3690
        %v3723 = vmul.f32 %v3173, %v3691
        %v3724 = vmul.f32 %v3174, %v3692
        %v3725 = vmul.f32 %v3175, %v3693
        %v3726 = vmul.f32 %v3176, %v3694
        %v3727 = vmul.f32 %v3177, %v3695
        %v3728 = vmul.f32 %v3178, %v3696
        %v3729 = vmul.f32 %v3179, %v3697
        %v3730 = vmul.f32 %v3180, %v3698
        %v3731 = vmul.f32 %v3181, %v3699
        %v3732 = vmul.f32 %v3182, %v3700
        %v3733 = vmul.f32 %v3183, %v3701
        %v3734 = vmul.f32 %v3184, %v3702
        %v3735 = vmul.f32 %v3185, %v3703
        %v3736 = vmul.f32 %v3186, %v3704
        %v3737 = vmul.f32 %v3187, %v3705
        %v3738 = vmul.f32 %v3188, %v3706
        %v3739 = vmul.f32 %v3189, %v3707
        %v3740 = vmul.f32 %v3190, %v3708
        %v3741 = vmul.f32 %v3191, %v3709
        %v3742 = vmul.f32 %v3192, %v3710
        %v3743 = vmul.f32 %v3193, %v3711
        %v3744 = vmul.f32 %v3194, %v3712
        %v3745 = vmul.f32 %v3195, %v3713
        %v3746 = vmul.f32 %v3196, %v3714
        %v3747 = vmul.f32 %v3197, %v3715
        %v3748 = vmul.f32 %v3198, %v3716
        %v3749 = vmul.f32 %v3199, %v3717
        %v3782 = vrot.slane %v3718, 1
        %v3783 = vrot.slane %v3719, 1
        %v3784 = vrot.slane %v3720, 1
        %v3785 = vrot.slane %v3721, 1
        %v3786 = vrot.slane %v3722, 1
        %v3787 = vrot.slane %v3723, 1
        %v3788 = vrot.slane %v3724, 1
        %v3789 = vrot.slane %v3725, 1
        %v3790 = vrot.slane %v3726, 1
        %v3791 = vrot.slane %v3727, 1
        %v3792 = vrot.slane %v3728, 1
        %v3793 = vrot.slane %v3729, 1
        %v3794 = vrot.slane %v3730, 1
        %v3795 = vrot.slane %v3731, 1
        %v3796 = vrot.slane %v3732, 1
        %v3797 = vrot.slane %v3733, 1
        %v3798 = vrot.slane %v3734, 1
        %v3799 = vrot.slane %v3735, 1
        %v3800 = vrot.slane %v3736, 1
        %v3801 = vrot.slane %v3737, 1
        %v3802 = vrot.slane %v3738, 1
        %v3803 = vrot.slane %v3739, 1
        %v3804 = vrot.slane %v3740, 1
        %v3805 = vrot.slane %v3741, 1
        %v3806 = vrot.slane %v3742, 1
        %v3807 = vrot.slane %v3743, 1
        %v3808 = vrot.slane %v3744, 1
        %v3809 = vrot.slane %v3745, 1
        %v3810 = vrot.slane %v3746, 1
        %v3811 = vrot.slane %v3747, 1
        %v3812 = vrot.slane %v3748, 1
        %v3813 = vrot.slane %v3749, 1
        %v3846 = vadd.f32 %v3718, %v3782
        %v3847 = vadd.f32 %v3719, %v3783
        %v3848 = vadd.f32 %v3720, %v3784
        %v3849 = vadd.f32 %v3721, %v3785
        %v3850 = vadd.f32 %v3722, %v3786
        %v3851 = vadd.f32 %v3723, %v3787
        %v3852 = vadd.f32 %v3724, %v3788
        %v3853 = vadd.f32 %v3725, %v3789
        %v3854 = vadd.f32 %v3726, %v3790
        %v3855 = vadd.f32 %v3727, %v3791
        %v3856 = vadd.f32 %v3728, %v3792
        %v3857 = vadd.f32 %v3729, %v3793
        %v3858 = vadd.f32 %v3730, %v3794
        %v3859 = vadd.f32 %v3731, %v3795
        %v3860 = vadd.f32 %v3732, %v3796
        %v3861 = vadd.f32 %v3733, %v3797
        %v3862 = vadd.f32 %v3734, %v3798
        %v3863 = vadd.f32 %v3735, %v3799
        %v3864 = vadd.f32 %v3736, %v3800
        %v3865 = vadd.f32 %v3737, %v3801
        %v3866 = vadd.f32 %v3738, %v3802
        %v3867 = vadd.f32 %v3739, %v3803
        %v3868 = vadd.f32 %v3740, %v3804
        %v3869 = vadd.f32 %v3741, %v3805
        %v3870 = vadd.f32 %v3742, %v3806
        %v3871 = vadd.f32 %v3743, %v3807
        %v3872 = vadd.f32 %v3744, %v3808
        %v3873 = vadd.f32 %v3745, %v3809
        %v3874 = vadd.f32 %v3746, %v3810
        %v3875 = vadd.f32 %v3747, %v3811
        %v3876 = vadd.f32 %v3748, %v3812
        %v3877 = vadd.f32 %v3749, %v3813
        %v3878 = vrot.slane %v3718, 2
        %v3879 = vrot.slane %v3719, 2
        %v3880 = vrot.slane %v3720, 2
        %v3881 = vrot.slane %v3721, 2
        %v3882 = vrot.slane %v3722, 2
        %v3883 = vrot.slane %v3723, 2
        %v3884 = vrot.slane %v3724, 2
        %v3885 = vrot.slane %v3725, 2
        %v3886 = vrot.slane %v3726, 2
        %v3887 = vrot.slane %v3727, 2
        %v3888 = vrot.slane %v3728, 2
        %v3889 = vrot.slane %v3729, 2
        %v3890 = vrot.slane %v3730, 2
        %v3891 = vrot.slane %v3731, 2
        %v3892 = vrot.slane %v3732, 2
        %v3893 = vrot.slane %v3733, 2
        %v3894 = vrot.slane %v3734, 2
        %v3895 = vrot.slane %v3735, 2
        %v3896 = vrot.slane %v3736, 2
        %v3897 = vrot.slane %v3737, 2
        %v3898 = vrot.slane %v3738, 2
        %v3899 = vrot.slane %v3739, 2
        %v3900 = vrot.slane %v3740, 2
        %v3901 = vrot.slane %v3741, 2
        %v3902 = vrot.slane %v3742, 2
        %v3903 = vrot.slane %v3743, 2
        %v3904 = vrot.slane %v3744, 2
        %v3905 = vrot.slane %v3745, 2
        %v3906 = vrot.slane %v3746, 2
        %v3907 = vrot.slane %v3747, 2
        %v3908 = vrot.slane %v3748, 2
        %v3909 = vrot.slane %v3749, 2
        %v3942 = vadd.f32 %v3846, %v3878
        %v3943 = vadd.f32 %v3847, %v3879
        %v3944 = vadd.f32 %v3848, %v3880
        %v3945 = vadd.f32 %v3849, %v3881
        %v3946 = vadd.f32 %v3850, %v3882
        %v3947 = vadd.f32 %v3851, %v3883
        %v3948 = vadd.f32 %v3852, %v3884
        %v3949 = vadd.f32 %v3853, %v3885
        %v3950 = vadd.f32 %v3854, %v3886
        %v3951 = vadd.f32 %v3855, %v3887
        %v3952 = vadd.f32 %v3856, %v3888
        %v3953 = vadd.f32 %v3857, %v3889
        %v3954 = vadd.f32 %v3858, %v3890
        %v3955 = vadd.f32 %v3859, %v3891
        %v3956 = vadd.f32 %v3860, %v3892
        %v3957 = vadd.f32 %v3861, %v3893
        %v3958 = vadd.f32 %v3862, %v3894
        %v3959 = vadd.f32 %v3863, %v3895
        %v3960 = vadd.f32 %v3864, %v3896
        %v3961 = vadd.f32 %v3865, %v3897
        %v3962 = vadd.f32 %v3866, %v3898
        %v3963 = vadd.f32 %v3867, %v3899
        %v3964 = vadd.f32 %v3868, %v3900
        %v3965 = vadd.f32 %v3869, %v3901
        %v3966 = vadd.f32 %v3870, %v3902
        %v3967 = vadd.f32 %v3871, %v3903
        %v3968 = vadd.f32 %v3872, %v3904
        %v3969 = vadd.f32 %v3873, %v3905
        %v3970 = vadd.f32 %v3874, %v3906
        %v3971 = vadd.f32 %v3875, %v3907
        %v3972 = vadd.f32 %v3876, %v3908
        %v3973 = vadd.f32 %v3877, %v3909
        %vm3974 = vcmp.gt.f32.partialorder %v3942, 0.0
        %vm3975 = vcmp.gt.f32.partialorder %v3943, 0.0
        %vm3976 = vcmp.gt.f32.partialorder %v3944, 0.0
        %vm3977 = vcmp.gt.f32.partialorder %v3945, 0.0
        %vm3978 = vcmp.gt.f32.partialorder %v3946, 0.0
        %vm3979 = vcmp.gt.f32.partialorder %v3947, 0.0
        %vm3980 = vcmp.gt.f32.partialorder %v3948, 0.0
        %vm3981 = vcmp.gt.f32.partialorder %v3949, 0.0
        %vm3982 = vcmp.gt.f32.partialorder %v3950, 0.0
        %vm3983 = vcmp.gt.f32.partialorder %v3951, 0.0
        %vm3984 = vcmp.gt.f32.partialorder %v3952, 0.0
        %vm3985 = vcmp.gt.f32.partialorder %v3953, 0.0
        %vm3986 = vcmp.gt.f32.partialorder %v3954, 0.0
        %vm3987 = vcmp.gt.f32.partialorder %v3955, 0.0
        %vm3988 = vcmp.gt.f32.partialorder %v3956, 0.0
        %vm3989 = vcmp.gt.f32.partialorder %v3957, 0.0
        %vm3990 = vcmp.gt.f32.partialorder %v3958, 0.0
        %vm3991 = vcmp.gt.f32.partialorder %v3959, 0.0
        %vm3992 = vcmp.gt.f32.partialorder %v3960, 0.0
        %vm3993 = vcmp.gt.f32.partialorder %v3961, 0.0
        %vm3994 = vcmp.gt.f32.partialorder %v3962, 0.0
        %vm3995 = vcmp.gt.f32.partialorder %v3963, 0.0
        %vm3996 = vcmp.gt.f32.partialorder %v3964, 0.0
        %vm3997 = vcmp.gt.f32.partialorder %v3965, 0.0
        %vm3998 = vcmp.gt.f32.partialorder %v3966, 0.0
        %vm3999 = vcmp.gt.f32.partialorder %v3967, 0.0
        %vm4000 = vcmp.gt.f32.partialorder %v3968, 0.0
        %vm4001 = vcmp.gt.f32.partialorder %v3969, 0.0
        %vm4002 = vcmp.gt.f32.partialorder %v3970, 0.0
        %vm4003 = vcmp.gt.f32.partialorder %v3971, 0.0
        %vm4004 = vcmp.gt.f32.partialorder %v3972, 0.0
        %vm4005 = vcmp.gt.f32.partialorder %v3973, 0.0
        %v4006 = vsel %vm3974, 1, 0
        %v4007 = vsel %vm3975, 1, 0
        %v4008 = vsel %vm3976, 1, 0
        %v4009 = vsel %vm3977, 1, 0
        %v4010 = vsel %vm3978, 1, 0
        %v4011 = vsel %vm3979, 1, 0
        %v4012 = vsel %vm3980, 1, 0
        %v4013 = vsel %vm3981, 1, 0
        %v4014 = vsel %vm3982, 1, 0
        %v4015 = vsel %vm3983, 1, 0
        %v4016 = vsel %vm3984, 1, 0
        %v4017 = vsel %vm3985, 1, 0
        %v4018 = vsel %vm3986, 1, 0
        %v4019 = vsel %vm3987, 1, 0
        %v4020 = vsel %vm3988, 1, 0
        %v4021 = vsel %vm3989, 1, 0
        %v4022 = vsel %vm3990, 1, 0
        %v4023 = vsel %vm3991, 1, 0
        %v4024 = vsel %vm3992, 1, 0
        %v4025 = vsel %vm3993, 1, 0
        %v4026 = vsel %vm3994, 1, 0
        %v4027 = vsel %vm3995, 1, 0
        %v4028 = vsel %vm3996, 1, 0
        %v4029 = vsel %vm3997, 1, 0
        %v4030 = vsel %vm3998, 1, 0
        %v4031 = vsel %vm3999, 1, 0
        %v4032 = vsel %vm4000, 1, 0
        %v4033 = vsel %vm4001, 1, 0
        %v4034 = vsel %vm4002, 1, 0
        %v4035 = vsel %vm4003, 1, 0
        %v4036 = vsel %vm4004, 1, 0
        %v4037 = vsel %vm4005, 1, 0
        %v4038 = vcvt.s32.f32 %v4006
        %v4039 = vcvt.s32.f32 %v4007
        %v4040 = vcvt.s32.f32 %v4008
        %v4041 = vcvt.s32.f32 %v4009
        %v4042 = vcvt.s32.f32 %v4010
        %v4043 = vcvt.s32.f32 %v4011
        %v4044 = vcvt.s32.f32 %v4012
        %v4045 = vcvt.s32.f32 %v4013
        %v4046 = vcvt.s32.f32 %v4014
        %v4047 = vcvt.s32.f32 %v4015
        %v4048 = vcvt.s32.f32 %v4016
        %v4049 = vcvt.s32.f32 %v4017
        %v4050 = vcvt.s32.f32 %v4018
        %v4051 = vcvt.s32.f32 %v4019
        %v4052 = vcvt.s32.f32 %v4020
        %v4053 = vcvt.s32.f32 %v4021
        %v4054 = vcvt.s32.f32 %v4022
        %v4055 = vcvt.s32.f32 %v4023
        %v4056 = vcvt.s32.f32 %v4024
        %v4057 = vcvt.s32.f32 %v4025
        %v4058 = vcvt.s32.f32 %v4026
        %v4059 = vcvt.s32.f32 %v4027
        %v4060 = vcvt.s32.f32 %v4028
        %v4061 = vcvt.s32.f32 %v4029
        %v4062 = vcvt.s32.f32 %v4030
        %v4063 = vcvt.s32.f32 %v4031
        %v4064 = vcvt.s32.f32 %v4032
        %v4065 = vcvt.s32.f32 %v4033
        %v4066 = vcvt.s32.f32 %v4034
        %v4067 = vcvt.s32.f32 %v4035
        %v4068 = vcvt.s32.f32 %v4036
        %v4069 = vcvt.s32.f32 %v4037
        %v4070 = vrcp.pop %v3494
        %v4071 = vrcp.pop %v3495
        %v4072 = vrcp.pop %v3496
        %v4073 = vrcp.pop %v3497
        %v4074 = vrcp.pop %v3498
        %v4075 = vrcp.pop %v3499
        %v4076 = vrcp.pop %v3500
        %v4077 = vrcp.pop %v3501
        %v4078 = vrcp.pop %v3502
        %v4079 = vrcp.pop %v3503
        %v4080 = vrcp.pop %v3504
        %v4081 = vrcp.pop %v3505
        %v4082 = vrcp.pop %v3506
        %v4083 = vrcp.pop %v3507
        %v4084 = vrcp.pop %v3508
        %v4085 = vrcp.pop %v3509
        %v4086 = vrcp.pop %v3510
        %v4087 = vrcp.pop %v3511
        %v4088 = vrcp.pop %v3512
        %v4089 = vrcp.pop %v3513
        %v4090 = vrcp.pop %v3514
        %v4091 = vrcp.pop %v3515
        %v4092 = vrcp.pop %v3516
        %v4093 = vrcp.pop %v3517
        %v4094 = vrcp.pop %v3518
        %v4095 = vrcp.pop %v3519
        %v4096 = vrcp.pop %v3520
        %v4097 = vrcp.pop %v3521
        %v4098 = vrcp.pop %v3522
        %v4099 = vrcp.pop %v3523
        %v4100 = vrcp.pop %v3524
        %v4101 = vrcp.pop %v3525
        %v4102 = vmul.f32 %v4038, %v4070
        %v4103 = vmul.f32 %v4039, %v4071
        %v4104 = vmul.f32 %v4040, %v4072
        %v4105 = vmul.f32 %v4041, %v4073
        %v4106 = vmul.f32 %v4042, %v4074
        %v4107 = vmul.f32 %v4043, %v4075
        %v4108 = vmul.f32 %v4044, %v4076
        %v4109 = vmul.f32 %v4045, %v4077
        %v4110 = vmul.f32 %v4046, %v4078
        %v4111 = vmul.f32 %v4047, %v4079
        %v4112 = vmul.f32 %v4048, %v4080
        %v4113 = vmul.f32 %v4049, %v4081
        %v4114 = vmul.f32 %v4050, %v4082
        %v4115 = vmul.f32 %v4051, %v4083
        %v4116 = vmul.f32 %v4052, %v4084
        %v4117 = vmul.f32 %v4053, %v4085
        %v4118 = vmul.f32 %v4054, %v4086
        %v4119 = vmul.f32 %v4055, %v4087
        %v4120 = vmul.f32 %v4056, %v4088
        %v4121 = vmul.f32 %v4057, %v4089
        %v4122 = vmul.f32 %v4058, %v4090
        %v4123 = vmul.f32 %v4059, %v4091
        %v4124 = vmul.f32 %v4060, %v4092
        %v4125 = vmul.f32 %v4061, %v4093
        %v4126 = vmul.f32 %v4062, %v4094
        %v4127 = vmul.f32 %v4063, %v4095
        %v4128 = vmul.f32 %v4064, %v4096
        %v4129 = vmul.f32 %v4065, %v4097
        %v4130 = vmul.f32 %v4066, %v4098
        %v4131 = vmul.f32 %v4067, %v4099
        %v4132 = vmul.f32 %v4068, %v4100
        %v4133 = vmul.f32 %v4069, %v4101
        %4134 = vset.pattern.permute.xlu0 83
        %4135 = vperm.xlu0 %4134, %v3200
        %v4136 = vpop.permute.xlu0 %4135
        %v4138 = vlaneseq
        %v4139 = vshrl.u32 %v4138, 7
        %v4140 = vsub.s32 0, %v4139
        %v4141 = vrot.slane %v4102, %v4140
        %v4142 = vlaneseq
        %v4143 = vshrl.u32 %v4142, 7
        %v4144 = vsub.s32 0, %v4143
        %v4145 = vrot.slane %v4103, %v4144
        %v4146 = vlaneseq
        %v4147 = vshrl.u32 %v4146, 7
        %v4148 = vsub.s32 0, %v4147
        %v4149 = vrot.slane %v4104, %v4148
        %v4150 = vlaneseq
        %v4151 = vshrl.u32 %v4150, 7
        %v4152 = vsub.s32 0, %v4151
        %v4153 = vrot.slane %v4105, %v4152
        %v4154 = vlaneseq
        %v4155 = vshrl.u32 %v4154, 7
        %v4156 = vsub.s32 0, %v4155
        %v4157 = vrot.slane %v4106, %v4156
        %v4158 = vlaneseq
        %v4159 = vshrl.u32 %v4158, 7
        %v4160 = vsub.s32 0, %v4159
        %v4161 = vrot.slane %v4107, %v4160
        %v4162 = vlaneseq
        %v4163 = vshrl.u32 %v4162, 7
        %v4164 = vsub.s32 0, %v4163
        %v4165 = vrot.slane %v4108, %v4164
        %v4166 = vlaneseq
        %v4167 = vshrl.u32 %v4166, 7
        %v4168 = vsub.s32 0, %v4167
        %v4169 = vrot.slane %v4109, %v4168
        %v4170 = vlaneseq
        %v4171 = vshrl.u32 %v4170, 7
        %v4172 = vsub.s32 0, %v4171
        %v4173 = vrot.slane %v4110, %v4172
        %v4174 = vlaneseq
        %v4175 = vshrl.u32 %v4174, 7
        %v4176 = vsub.s32 0, %v4175
        %v4177 = vrot.slane %v4111, %v4176
        %v4178 = vlaneseq
        %v4179 = vshrl.u32 %v4178, 7
        %v4180 = vsub.s32 0, %v4179
        %v4181 = vrot.slane %v4112, %v4180
        %v4182 = vlaneseq
        %v4183 = vshrl.u32 %v4182, 7
        %v4184 = vsub.s32 0, %v4183
        %v4185 = vrot.slane %v4113, %v4184
        %v4186 = vlaneseq
        %v4187 = vshrl.u32 %v4186, 7
        %v4188 = vsub.s32 0, %v4187
        %v4189 = vrot.slane %v4114, %v4188
        %v4190 = vlaneseq
        %v4191 = vshrl.u32 %v4190, 7
        %v4192 = vsub.s32 0, %v4191
        %v4193 = vrot.slane %v4115, %v4192
        %v4194 = vlaneseq
        %v4195 = vshrl.u32 %v4194, 7
        %v4196 = vsub.s32 0, %v4195
        %v4197 = vrot.slane %v4116, %v4196
        %v4198 = vlaneseq
        %v4199 = vshrl.u32 %v4198, 7
        %v4200 = vsub.s32 0, %v4199
        %v4201 = vrot.slane %v4117, %v4200
        %v4202 = vlaneseq
        %v4203 = vshrl.u32 %v4202, 7
        %v4204 = vsub.s32 0, %v4203
        %v4205 = vrot.slane %v4118, %v4204
        %v4206 = vlaneseq
        %v4207 = vshrl.u32 %v4206, 7
        %v4208 = vsub.s32 0, %v4207
        %v4209 = vrot.slane %v4119, %v4208
        %v4210 = vlaneseq
        %v4211 = vshrl.u32 %v4210, 7
        %v4212 = vsub.s32 0, %v4211
        %v4213 = vrot.slane %v4120, %v4212
        %v4214 = vlaneseq
        %v4215 = vshrl.u32 %v4214, 7
        %v4216 = vsub.s32 0, %v4215
        %v4217 = vrot.slane %v4121, %v4216
        %v4218 = vlaneseq
        %v4219 = vshrl.u32 %v4218, 7
        %v4220 = vsub.s32 0, %v4219
        %v4221 = vrot.slane %v4122, %v4220
        %v4222 = vlaneseq
        %v4223 = vshrl.u32 %v4222, 7
        %v4224 = vsub.s32 0, %v4223
        %v4225 = vrot.slane %v4123, %v4224
        %v4226 = vlaneseq
        %v4227 = vshrl.u32 %v4226, 7
        %v4228 = vsub.s32 0, %v4227
        %v4229 = vrot.slane %v4124, %v4228
        %v4230 = vlaneseq
        %v4231 = vshrl.u32 %v4230, 7
        %v4232 = vsub.s32 0, %v4231
        %v4233 = vrot.slane %v4125, %v4232
        %v4234 = vlaneseq
        %v4235 = vshrl.u32 %v4234, 7
        %v4236 = vsub.s32 0, %v4235
        %v4237 = vrot.slane %v4126, %v4236
        %v4238 = vlaneseq
        %v4239 = vshrl.u32 %v4238, 7
        %v4240 = vsub.s32 0, %v4239
        %v4241 = vrot.slane %v4127, %v4240
        %v4242 = vlaneseq
        %v4243 = vshrl.u32 %v4242, 7
        %v4244 = vsub.s32 0, %v4243
        %v4245 = vrot.slane %v4128, %v4244
        %v4246 = vlaneseq
        %v4247 = vshrl.u32 %v4246, 7
        %v4248 = vsub.s32 0, %v4247
        %v4249 = vrot.slane %v4129, %v4248
        %v4250 = vlaneseq
        %v4251 = vshrl.u32 %v4250, 7
        %v4252 = vsub.s32 0, %v4251
        %v4253 = vrot.slane %v4130, %v4252
        %v4254 = vlaneseq
        %v4255 = vshrl.u32 %v4254, 7
        %v4256 = vsub.s32 0, %v4255
        %v4257 = vrot.slane %v4131, %v4256
        %v4258 = vlaneseq
        %v4259 = vshrl.u32 %v4258, 7
        %v4260 = vsub.s32 0, %v4259
        %v4261 = vrot.slane %v4132, %v4260
        %v4262 = vlaneseq
        %v4263 = vshrl.u32 %v4262, 7
        %v4264 = vsub.s32 0, %v4263
        %v4265 = vrot.slane %v4133, %v4264
        %v4266 = vmul.f32 %v4136, %v4141
        %v4267 = vmul.f32 %v4136, %v4145
        %v4268 = vmul.f32 %v4136, %v4149
        %v4269 = vmul.f32 %v4136, %v4153
        %v4270 = vmul.f32 %v4136, %v4157
        %v4271 = vmul.f32 %v4136, %v4161
        %v4272 = vmul.f32 %v4136, %v4165
        %v4273 = vmul.f32 %v4136, %v4169
        %v4274 = vmul.f32 %v4136, %v4173
        %v4275 = vmul.f32 %v4136, %v4177
        %v4276 = vmul.f32 %v4136, %v4181
        %v4277 = vmul.f32 %v4136, %v4185
        %v4278 = vmul.f32 %v4136, %v4189
        %v4279 = vmul.f32 %v4136, %v4193
        %v4280 = vmul.f32 %v4136, %v4197
        %v4281 = vmul.f32 %v4136, %v4201
        %v4282 = vmul.f32 %v4136, %v4205
        %v4283 = vmul.f32 %v4136, %v4209
        %v4284 = vmul.f32 %v4136, %v4213
        %v4285 = vmul.f32 %v4136, %v4217
        %v4286 = vmul.f32 %v4136, %v4221
        %v4287 = vmul.f32 %v4136, %v4225
        %v4288 = vmul.f32 %v4136, %v4229
        %v4289 = vmul.f32 %v4136, %v4233
        %v4290 = vmul.f32 %v4136, %v4237
        %v4291 = vmul.f32 %v4136, %v4241
        %v4292 = vmul.f32 %v4136, %v4245
        %v4293 = vmul.f32 %v4136, %v4249
        %v4294 = vmul.f32 %v4136, %v4253
        %v4295 = vmul.f32 %v4136, %v4257
        %v4296 = vmul.f32 %v4136, %v4261
        %v4297 = vmul.f32 %v4136, %v4265
        %v4298 = vunpack.c.l.bf16 %v273
        %v4299 = vunpack.c.l.bf16 %v274
        %v4300 = vunpack.c.l.bf16 %v275
        %v4301 = vpack.c.bf16 %v2144, %v2144
        %v4302 = vpack.c.bf16 %v2145, %v2145
        %v4303 = vpack.c.bf16 %v2146, %v2146
        %v4304 = vpack.c.bf16 %v2147, %v2147
        %v4305 = vpack.c.bf16 %v2148, %v2148
        %v4306 = vpack.c.bf16 %v2149, %v2149
        %v4307 = vpack.c.bf16 %v2150, %v2150
        %v4308 = vpack.c.bf16 %v2151, %v2151
        %v4309 = vpack.c.bf16 %v2152, %v2152
        %v4310 = vpack.c.bf16 %v2153, %v2153
        %v4311 = vpack.c.bf16 %v2154, %v2154
        %v4312 = vpack.c.bf16 %v2155, %v2155
        %v4313 = vpack.c.bf16 %v2156, %v2156
        %v4314 = vpack.c.bf16 %v2157, %v2157
        %v4315 = vpack.c.bf16 %v2158, %v2158
        %v4316 = vpack.c.bf16 %v2159, %v2159
        %v4317 = vpack.c.bf16 %v2160, %v2160
        %v4318 = vpack.c.bf16 %v2161, %v2161
        %v4319 = vpack.c.bf16 %v2162, %v2162
        %v4320 = vpack.c.bf16 %v2163, %v2163
        %v4321 = vpack.c.bf16 %v2164, %v2164
        %v4322 = vpack.c.bf16 %v2165, %v2165
        %v4323 = vpack.c.bf16 %v2166, %v2166
        %v4324 = vpack.c.bf16 %v2167, %v2167
        %v4325 = vpack.c.bf16 %v2168, %v2168
        %v4326 = vpack.c.bf16 %v2169, %v2169
        %v4327 = vpack.c.bf16 %v2170, %v2170
        %v4328 = vpack.c.bf16 %v2171, %v2171
        %v4329 = vpack.c.bf16 %v2172, %v2172
        %v4330 = vpack.c.bf16 %v2173, %v2173
        %v4331 = vpack.c.bf16 %v2174, %v2174
        %v4332 = vpack.c.bf16 %v2175, %v2175
        %4333 = vset.pattern.permute.xlu0 79
        %4334 = vperm.xlu0 %4333, %v3200
        %v4335 = vpop.permute.xlu0 %4334
        %4338 = vset.pattern.permute.xlu0 79
        %4339 = vperm.xlu0 %4338, %v4298
        %v4340 = vpop.permute.xlu0 %4339
        %4343 = vset.pattern.permute.xlu0 79
        %4344 = vperm.xlu0 %4343, %v4299
        %v4345 = vpop.permute.xlu0 %4344
        %4348 = vset.pattern.permute.xlu0 79
        %4349 = vperm.xlu0 %4348, %v4300
        %v4350 = vpop.permute.xlu0 %4349
        %v4356 = vunpack.c.l.b16 %v272
        %v4357 = vunpack.c.l.b16 %v273
        %v4358 = vunpack.c.l.b16 %v274
        %v4359 = vunpack.c.l.b16 %v275
        %v4360 = vpack.c.b16 %v4357, %v4356
        %v4361 = vpack.c.b16 %v4359, %v4358
        %vm4362 = vcmask 23552
        %v4364 = vsel %vm4362, %v4360, 0
        %v4367 = vsel %vm4362, %v4361, 0
        %vm4369 = vcmask 1040384
        %vm4370 = vcmask 1041408
        %v4371 = vsel %vm4369, 4294967295, 65535
        %v4372 = vsel %vm4370, %v4371, 0
        %v4374 = vand.u32 %v4301, %v4372
        %v4377 = vand.u32 %v4302, %v4372
        %v4380 = vand.u32 %v4303, %v4372
        %v4383 = vand.u32 %v4304, %v4372
        %v4386 = vand.u32 %v4305, %v4372
        %v4389 = vand.u32 %v4306, %v4372
        %v4392 = vand.u32 %v4307, %v4372
        %v4395 = vand.u32 %v4308, %v4372
        %v4398 = vand.u32 %v4309, %v4372
        %v4401 = vand.u32 %v4310, %v4372
        %v4404 = vand.u32 %v4311, %v4372
        %v4407 = vand.u32 %v4312, %v4372
        %v4410 = vand.u32 %v4313, %v4372
        %v4413 = vand.u32 %v4314, %v4372
        %v4416 = vand.u32 %v4315, %v4372
        %v4419 = vand.u32 %v4316, %v4372
        %v4422 = vand.u32 %v4317, %v4372
        %v4425 = vand.u32 %v4318, %v4372
        %v4428 = vand.u32 %v4319, %v4372
        %v4431 = vand.u32 %v4320, %v4372
        %v4434 = vand.u32 %v4321, %v4372
        %v4437 = vand.u32 %v4322, %v4372
        %v4440 = vand.u32 %v4323, %v4372
        %v4443 = vand.u32 %v4324, %v4372
        %v4446 = vand.u32 %v4325, %v4372
        %v4449 = vand.u32 %v4326, %v4372
        %v4452 = vand.u32 %v4327, %v4372
        %v4455 = vand.u32 %v4328, %v4372
        %v4458 = vand.u32 %v4329, %v4372
        %v4461 = vand.u32 %v4330, %v4372
        %v4464 = vand.u32 %v4331, %v4372
        %v4467 = vand.u32 %v4332, %v4372
        %4469 = vmatprep.subr.bf16.mxu0 %v4377
        %4470 = vmatpush1.bf16.msra.mxu0 %v4374
        %4471 = vmatprep.subr.bf16.mxu0 0
        %4472 = vmatpush1.bf16.msra.mxu0 0
        %4473 = vmatprep.subr.bf16.mxu0 0
        %4474 = vmatpush1.bf16.msra.mxu0 0
        %4475 = vmatprep.subr.bf16.mxu0 0
        %4476 = vmatpush1.bf16.msra.mxu0 0
        %4477 = vmatprep.subr.bf16.mxu0 0
        %4478 = vmatpush1.bf16.msra.mxu0 0
        %4479 = vmatprep.subr.bf16.mxu0 0
        %4480 = vmatpush1.bf16.msra.mxu0 0
        %4481 = vmatprep.subr.bf16.mxu0 0
        %4482 = vmatpush1.bf16.msra.mxu0 0
        %4483 = vmatprep.subr.bf16.mxu0 0
        %4484 = vmatpush1.bf16.msra.mxu0 0
        %4485 = vmatprep.subr.bf16.mxu0 0
        %4486 = vmatpush1.bf16.msra.mxu0 0
        %4487 = vmatprep.subr.bf16.mxu0 0
        %4488 = vmatpush1.bf16.msra.mxu0 0
        %4489 = vmatprep.subr.bf16.mxu0 0
        %4490 = vmatpush1.bf16.msra.mxu0 0
        %4491 = vmatprep.subr.bf16.mxu0 0
        %4492 = vmatpush1.bf16.msra.mxu0 0
        %4493 = vmatprep.subr.bf16.mxu0 0
        %4494 = vmatpush1.bf16.msra.mxu0 0
        %4495 = vmatprep.subr.bf16.mxu0 0
        %4496 = vmatpush1.bf16.msra.mxu0 0
        %4497 = vmatprep.subr.bf16.mxu0 0
        %4498 = vmatpush1.bf16.msra.mxu0 0
        %4499 = vmatprep.subr.bf16.mxu0 0
        %4500 = vmatpush1.bf16.msra.mxu0 0
        %4501 = vmatprep.mubr.bf16.mxu0 0
        %4502 = vmatmul.mubr.bf16.gmra.mrb[0].mxu0 %v4364
        %v4503 = vpop.f32.mrb[0].mxu0
        %v4504 = vadd.f32 %v4335, %v4503
        %v4505 = vpop.f32.mrb[0].mxu0
        %v4506 = vadd.f32 %v4335, %v4505
        %v4507 = vpop.f32.mrb[0].mxu0
        %v4508 = vadd.f32 %v4340, %v4507
        %v4509 = vpop.f32.mrb[0].mxu0
        %v4510 = vadd.f32 %v4340, %v4509
        %4511 = vmatprep.mubr.bf16.mxu0 0
        %4512 = vmatmul.mubr.bf16.gmra.mrb[0].mxu0 %v4367
        %v4513 = vpop.f32.mrb[0].mxu0
        %v4514 = vadd.f32 %v4345, %v4513
        %v4515 = vpop.f32.mrb[0].mxu0
        %v4516 = vadd.f32 %v4345, %v4515
        %v4517 = vpop.f32.mrb[0].mxu0
        %v4518 = vadd.f32 %v4350, %v4517
        %v4519 = vpop.f32.mrb[0].mxu0
        %v4520 = vadd.f32 %v4350, %v4519
        %4521 = vdwg.mxu0
        %4522 = vmatprep.subr.bf16.mxu0 %v4383
        %4523 = vmatpush1.bf16.msra.mxu0 %v4380
        %4524 = vmatprep.subr.bf16.mxu0 0
        %4525 = vmatpush1.bf16.msra.mxu0 0
        %4526 = vmatprep.subr.bf16.mxu0 0
        %4527 = vmatpush1.bf16.msra.mxu0 0
        %4528 = vmatprep.subr.bf16.mxu0 0
        %4529 = vmatpush1.bf16.msra.mxu0 0
        %4530 = vmatprep.subr.bf16.mxu0 0
        %4531 = vmatpush1.bf16.msra.mxu0 0
        %4532 = vmatprep.subr.bf16.mxu0 0
        %4533 = vmatpush1.bf16.msra.mxu0 0
        %4534 = vmatprep.subr.bf16.mxu0 0
        %4535 = vmatpush1.bf16.msra.mxu0 0
        %4536 = vmatprep.subr.bf16.mxu0 0
        %4537 = vmatpush1.bf16.msra.mxu0 0
        %4538 = vmatprep.subr.bf16.mxu0 0
        %4539 = vmatpush1.bf16.msra.mxu0 0
        %4540 = vmatprep.subr.bf16.mxu0 0
        %4541 = vmatpush1.bf16.msra.mxu0 0
        %4542 = vmatprep.subr.bf16.mxu0 0
        %4543 = vmatpush1.bf16.msra.mxu0 0
        %4544 = vmatprep.subr.bf16.mxu0 0
        %4545 = vmatpush1.bf16.msra.mxu0 0
        %4546 = vmatprep.subr.bf16.mxu0 0
        %4547 = vmatpush1.bf16.msra.mxu0 0
        %4548 = vmatprep.subr.bf16.mxu0 0
        %4549 = vmatpush1.bf16.msra.mxu0 0
        %4550 = vmatprep.subr.bf16.mxu0 0
        %4551 = vmatpush1.bf16.msra.mxu0 0
        %4552 = vmatprep.subr.bf16.mxu0 0
        %4553 = vmatpush1.bf16.msra.mxu0 0
        %4554 = vmatprep.mubr.bf16.mxu0 0
        %4555 = vmatmul.mubr.bf16.gmra.mrb[0].mxu0 %v4364
        %v4556 = vpop.f32.mrb[0].mxu0
        %v4557 = vadd.f32 %v4335, %v4556
        %v4558 = vpop.f32.mrb[0].mxu0
        %v4559 = vadd.f32 %v4335, %v4558
        %v4560 = vpop.f32.mrb[0].mxu0
        %v4561 = vadd.f32 %v4340, %v4560
        %v4562 = vpop.f32.mrb[0].mxu0
        %v4563 = vadd.f32 %v4340, %v4562
        %4564 = vmatprep.mubr.bf16.mxu0 0
        %4565 = vmatmul.mubr.bf16.gmra.mrb[0].mxu0 %v4367
        %v4566 = vpop.f32.mrb[0].mxu0
        %v4567 = vadd.f32 %v4345, %v4566
        %v4568 = vpop.f32.mrb[0].mxu0
        %v4569 = vadd.f32 %v4345, %v4568
        %v4570 = vpop.f32.mrb[0].mxu0
        %v4571 = vadd.f32 %v4350, %v4570
        %v4572 = vpop.f32.mrb[0].mxu0
        %v4573 = vadd.f32 %v4350, %v4572
        %4574 = vdwg.mxu0
        %4575 = vmatprep.subr.bf16.mxu0 %v4389
        %4576 = vmatpush1.bf16.msra.mxu0 %v4386
        %4577 = vmatprep.subr.bf16.mxu0 0
        %4578 = vmatpush1.bf16.msra.mxu0 0
        %4579 = vmatprep.subr.bf16.mxu0 0
        %4580 = vmatpush1.bf16.msra.mxu0 0
        %4581 = vmatprep.subr.bf16.mxu0 0
        %4582 = vmatpush1.bf16.msra.mxu0 0
        %4583 = vmatprep.subr.bf16.mxu0 0
        %4584 = vmatpush1.bf16.msra.mxu0 0
        %4585 = vmatprep.subr.bf16.mxu0 0
        %4586 = vmatpush1.bf16.msra.mxu0 0
        %4587 = vmatprep.subr.bf16.mxu0 0
        %4588 = vmatpush1.bf16.msra.mxu0 0
        %4589 = vmatprep.subr.bf16.mxu0 0
        %4590 = vmatpush1.bf16.msra.mxu0 0
        %4591 = vmatprep.subr.bf16.mxu0 0
        %4592 = vmatpush1.bf16.msra.mxu0 0
        %4593 = vmatprep.subr.bf16.mxu0 0
        %4594 = vmatpush1.bf16.msra.mxu0 0
        %4595 = vmatprep.subr.bf16.mxu0 0
        %4596 = vmatpush1.bf16.msra.mxu0 0
        %4597 = vmatprep.subr.bf16.mxu0 0
        %4598 = vmatpush1.bf16.msra.mxu0 0
        %4599 = vmatprep.subr.bf16.mxu0 0
        %4600 = vmatpush1.bf16.msra.mxu0 0
        %4601 = vmatprep.subr.bf16.mxu0 0
        %4602 = vmatpush1.bf16.msra.mxu0 0
        %4603 = vmatprep.subr.bf16.mxu0 0
        %4604 = vmatpush1.bf16.msra.mxu0 0
        %4605 = vmatprep.subr.bf16.mxu0 0
        %4606 = vmatpush1.bf16.msra.mxu0 0
        %4607 = vmatprep.mubr.bf16.mxu0 0
        %4608 = vmatmul.mubr.bf16.gmra.mrb[0].mxu0 %v4364
        %v4609 = vpop.f32.mrb[0].mxu0
        %v4610 = vadd.f32 %v4335, %v4609
        %v4611 = vpop.f32.mrb[0].mxu0
        %v4612 = vadd.f32 %v4335, %v4611
        %v4613 = vpop.f32.mrb[0].mxu0
        %v4614 = vadd.f32 %v4340, %v4613
        %v4615 = vpop.f32.mrb[0].mxu0
        %v4616 = vadd.f32 %v4340, %v4615
        %4617 = vmatprep.mubr.bf16.mxu0 0
        %4618 = vmatmul.mubr.bf16.gmra.mrb[0].mxu0 %v4367
        %v4619 = vpop.f32.mrb[0].mxu0
        %v4620 = vadd.f32 %v4345, %v4619
        %v4621 = vpop.f32.mrb[0].mxu0
        %v4622 = vadd.f32 %v4345, %v4621
        %v4623 = vpop.f32.mrb[0].mxu0
        %v4624 = vadd.f32 %v4350, %v4623
        %v4625 = vpop.f32.mrb[0].mxu0
        %v4626 = vadd.f32 %v4350, %v4625
        %4627 = vdwg.mxu0
        %4628 = vmatprep.subr.bf16.mxu0 %v4395
        %4629 = vmatpush1.bf16.msra.mxu0 %v4392
        %4630 = vmatprep.subr.bf16.mxu0 0
        %4631 = vmatpush1.bf16.msra.mxu0 0
        %4632 = vmatprep.subr.bf16.mxu0 0
        %4633 = vmatpush1.bf16.msra.mxu0 0
        %4634 = vmatprep.subr.bf16.mxu0 0
        %4635 = vmatpush1.bf16.msra.mxu0 0
        %4636 = vmatprep.subr.bf16.mxu0 0
        %4637 = vmatpush1.bf16.msra.mxu0 0
        %4638 = vmatprep.subr.bf16.mxu0 0
        %4639 = vmatpush1.bf16.msra.mxu0 0
        %4640 = vmatprep.subr.bf16.mxu0 0
        %4641 = vmatpush1.bf16.msra.mxu0 0
        %4642 = vmatprep.subr.bf16.mxu0 0
        %4643 = vmatpush1.bf16.msra.mxu0 0
        %4644 = vmatprep.subr.bf16.mxu0 0
        %4645 = vmatpush1.bf16.msra.mxu0 0
        %4646 = vmatprep.subr.bf16.mxu0 0
        %4647 = vmatpush1.bf16.msra.mxu0 0
        %4648 = vmatprep.subr.bf16.mxu0 0
        %4649 = vmatpush1.bf16.msra.mxu0 0
        %4650 = vmatprep.subr.bf16.mxu0 0
        %4651 = vmatpush1.bf16.msra.mxu0 0
        %4652 = vmatprep.subr.bf16.mxu0 0
        %4653 = vmatpush1.bf16.msra.mxu0 0
        %4654 = vmatprep.subr.bf16.mxu0 0
        %4655 = vmatpush1.bf16.msra.mxu0 0
        %4656 = vmatprep.subr.bf16.mxu0 0
        %4657 = vmatpush1.bf16.msra.mxu0 0
        %4658 = vmatprep.subr.bf16.mxu0 0
        %4659 = vmatpush1.bf16.msra.mxu0 0
        %4660 = vmatprep.mubr.bf16.mxu0 0
        %4661 = vmatmul.mubr.bf16.gmra.mrb[0].mxu0 %v4364
        %v4662 = vpop.f32.mrb[0].mxu0
        %v4663 = vadd.f32 %v4335, %v4662
        %v4664 = vpop.f32.mrb[0].mxu0
        %v4665 = vadd.f32 %v4335, %v4664
        %v4666 = vpop.f32.mrb[0].mxu0
        %v4667 = vadd.f32 %v4340, %v4666
        %v4668 = vpop.f32.mrb[0].mxu0
        %v4669 = vadd.f32 %v4340, %v4668
        %4670 = vmatprep.mubr.bf16.mxu0 0
        %4671 = vmatmul.mubr.bf16.gmra.mrb[0].mxu0 %v4367
        %v4672 = vpop.f32.mrb[0].mxu0
        %v4673 = vadd.f32 %v4345, %v4672
        %v4674 = vpop.f32.mrb[0].mxu0
        %v4675 = vadd.f32 %v4345, %v4674
        %v4676 = vpop.f32.mrb[0].mxu0
        %v4677 = vadd.f32 %v4350, %v4676
        %v4678 = vpop.f32.mrb[0].mxu0
        %v4679 = vadd.f32 %v4350, %v4678
        %4680 = vdwg.mxu0
        %4681 = vmatprep.subr.bf16.mxu0 %v4401
        %4682 = vmatpush1.bf16.msra.mxu0 %v4398
        %4683 = vmatprep.subr.bf16.mxu0 0
        %4684 = vmatpush1.bf16.msra.mxu0 0
        %4685 = vmatprep.subr.bf16.mxu0 0
        %4686 = vmatpush1.bf16.msra.mxu0 0
        %4687 = vmatprep.subr.bf16.mxu0 0
        %4688 = vmatpush1.bf16.msra.mxu0 0
        %4689 = vmatprep.subr.bf16.mxu0 0
        %4690 = vmatpush1.bf16.msra.mxu0 0
        %4691 = vmatprep.subr.bf16.mxu0 0
        %4692 = vmatpush1.bf16.msra.mxu0 0
        %4693 = vmatprep.subr.bf16.mxu0 0
        %4694 = vmatpush1.bf16.msra.mxu0 0
        %4695 = vmatprep.subr.bf16.mxu0 0
        %4696 = vmatpush1.bf16.msra.mxu0 0
        %4697 = vmatprep.subr.bf16.mxu0 0
        %4698 = vmatpush1.bf16.msra.mxu0 0
        %4699 = vmatprep.subr.bf16.mxu0 0
        %4700 = vmatpush1.bf16.msra.mxu0 0
        %4701 = vmatprep.subr.bf16.mxu0 0
        %4702 = vmatpush1.bf16.msra.mxu0 0
        %4703 = vmatprep.subr.bf16.mxu0 0
        %4704 = vmatpush1.bf16.msra.mxu0 0
        %4705 = vmatprep.subr.bf16.mxu0 0
        %4706 = vmatpush1.bf16.msra.mxu0 0
        %4707 = vmatprep.subr.bf16.mxu0 0
        %4708 = vmatpush1.bf16.msra.mxu0 0
        %4709 = vmatprep.subr.bf16.mxu0 0
        %4710 = vmatpush1.bf16.msra.mxu0 0
        %4711 = vmatprep.subr.bf16.mxu0 0
        %4712 = vmatpush1.bf16.msra.mxu0 0
        %4713 = vmatprep.mubr.bf16.mxu0 0
        %4714 = vmatmul.mubr.bf16.gmra.mrb[0].mxu0 %v4364
        %v4715 = vpop.f32.mrb[0].mxu0
        %v4716 = vadd.f32 %v4335, %v4715
        %v4717 = vpop.f32.mrb[0].mxu0
        %v4718 = vadd.f32 %v4335, %v4717
        %v4719 = vpop.f32.mrb[0].mxu0
        %v4720 = vadd.f32 %v4340, %v4719
        %v4721 = vpop.f32.mrb[0].mxu0
        %v4722 = vadd.f32 %v4340, %v4721
        %4723 = vmatprep.mubr.bf16.mxu0 0
        %4724 = vmatmul.mubr.bf16.gmra.mrb[0].mxu0 %v4367
        %v4725 = vpop.f32.mrb[0].mxu0
        %v4726 = vadd.f32 %v4345, %v4725
        %v4727 = vpop.f32.mrb[0].mxu0
        %v4728 = vadd.f32 %v4345, %v4727
        %v4729 = vpop.f32.mrb[0].mxu0
        %v4730 = vadd.f32 %v4350, %v4729
        %v4731 = vpop.f32.mrb[0].mxu0
        %v4732 = vadd.f32 %v4350, %v4731
        %4733 = vdwg.mxu0
        %4734 = vmatprep.subr.bf16.mxu0 %v4407
        %4735 = vmatpush1.bf16.msra.mxu0 %v4404
        %4736 = vmatprep.subr.bf16.mxu0 0
        %4737 = vmatpush1.bf16.msra.mxu0 0
        %4738 = vmatprep.subr.bf16.mxu0 0
        %4739 = vmatpush1.bf16.msra.mxu0 0
        %4740 = vmatprep.subr.bf16.mxu0 0
        %4741 = vmatpush1.bf16.msra.mxu0 0
        %4742 = vmatprep.subr.bf16.mxu0 0
        %4743 = vmatpush1.bf16.msra.mxu0 0
        %4744 = vmatprep.subr.bf16.mxu0 0
        %4745 = vmatpush1.bf16.msra.mxu0 0
        %4746 = vmatprep.subr.bf16.mxu0 0
        %4747 = vmatpush1.bf16.msra.mxu0 0
        %4748 = vmatprep.subr.bf16.mxu0 0
        %4749 = vmatpush1.bf16.msra.mxu0 0
        %4750 = vmatprep.subr.bf16.mxu0 0
        %4751 = vmatpush1.bf16.msra.mxu0 0
        %4752 = vmatprep.subr.bf16.mxu0 0
        %4753 = vmatpush1.bf16.msra.mxu0 0
        %4754 = vmatprep.subr.bf16.mxu0 0
        %4755 = vmatpush1.bf16.msra.mxu0 0
        %4756 = vmatprep.subr.bf16.mxu0 0
        %4757 = vmatpush1.bf16.msra.mxu0 0
        %4758 = vmatprep.subr.bf16.mxu0 0
        %4759 = vmatpush1.bf16.msra.mxu0 0
        %4760 = vmatprep.subr.bf16.mxu0 0
        %4761 = vmatpush1.bf16.msra.mxu0 0
        %4762 = vmatprep.subr.bf16.mxu0 0
        %4763 = vmatpush1.bf16.msra.mxu0 0
        %4764 = vmatprep.subr.bf16.mxu0 0
        %4765 = vmatpush1.bf16.msra.mxu0 0
        %4766 = vmatprep.mubr.bf16.mxu0 0
        %4767 = vmatmul.mubr.bf16.gmra.mrb[0].mxu0 %v4364
        %v4768 = vpop.f32.mrb[0].mxu0
        %v4769 = vadd.f32 %v4335, %v4768
        %v4770 = vpop.f32.mrb[0].mxu0
        %v4771 = vadd.f32 %v4335, %v4770
        %v4772 = vpop.f32.mrb[0].mxu0
        %v4773 = vadd.f32 %v4340, %v4772
        %v4774 = vpop.f32.mrb[0].mxu0
        %v4775 = vadd.f32 %v4340, %v4774
        %4776 = vmatprep.mubr.bf16.mxu0 0
        %4777 = vmatmul.mubr.bf16.gmra.mrb[0].mxu0 %v4367
        %v4778 = vpop.f32.mrb[0].mxu0
        %v4779 = vadd.f32 %v4345, %v4778
        %v4780 = vpop.f32.mrb[0].mxu0
        %v4781 = vadd.f32 %v4345, %v4780
        %v4782 = vpop.f32.mrb[0].mxu0
        %v4783 = vadd.f32 %v4350, %v4782
        %v4784 = vpop.f32.mrb[0].mxu0
        %v4785 = vadd.f32 %v4350, %v4784
        %4786 = vdwg.mxu0
        %4787 = vmatprep.subr.bf16.mxu0 %v4413
        %4788 = vmatpush1.bf16.msra.mxu0 %v4410
        %4789 = vmatprep.subr.bf16.mxu0 0
        %4790 = vmatpush1.bf16.msra.mxu0 0
        %4791 = vmatprep.subr.bf16.mxu0 0
        %4792 = vmatpush1.bf16.msra.mxu0 0
        %4793 = vmatprep.subr.bf16.mxu0 0
        %4794 = vmatpush1.bf16.msra.mxu0 0
        %4795 = vmatprep.subr.bf16.mxu0 0
        %4796 = vmatpush1.bf16.msra.mxu0 0
        %4797 = vmatprep.subr.bf16.mxu0 0
        %4798 = vmatpush1.bf16.msra.mxu0 0
        %4799 = vmatprep.subr.bf16.mxu0 0
        %4800 = vmatpush1.bf16.msra.mxu0 0
        %4801 = vmatprep.subr.bf16.mxu0 0
        %4802 = vmatpush1.bf16.msra.mxu0 0
        %4803 = vmatprep.subr.bf16.mxu0 0
        %4804 = vmatpush1.bf16.msra.mxu0 0
        %4805 = vmatprep.subr.bf16.mxu0 0
        %4806 = vmatpush1.bf16.msra.mxu0 0
        %4807 = vmatprep.subr.bf16.mxu0 0
        %4808 = vmatpush1.bf16.msra.mxu0 0
        %4809 = vmatprep.subr.bf16.mxu0 0
        %4810 = vmatpush1.bf16.msra.mxu0 0
        %4811 = vmatprep.subr.bf16.mxu0 0
        %4812 = vmatpush1.bf16.msra.mxu0 0
        %4813 = vmatprep.subr.bf16.mxu0 0
        %4814 = vmatpush1.bf16.msra.mxu0 0
        %4815 = vmatprep.subr.bf16.mxu0 0
        %4816 = vmatpush1.bf16.msra.mxu0 0
        %4817 = vmatprep.subr.bf16.mxu0 0
        %4818 = vmatpush1.bf16.msra.mxu0 0
        %4819 = vmatprep.mubr.bf16.mxu0 0
        %4820 = vmatmul.mubr.bf16.gmra.mrb[0].mxu0 %v4364
        %v4821 = vpop.f32.mrb[0].mxu0
        %v4822 = vadd.f32 %v4335, %v4821
        %v4823 = vpop.f32.mrb[0].mxu0
        %v4824 = vadd.f32 %v4335, %v4823
        %v4825 = vpop.f32.mrb[0].mxu0
        %v4826 = vadd.f32 %v4340, %v4825
        %v4827 = vpop.f32.mrb[0].mxu0
        %v4828 = vadd.f32 %v4340, %v4827
        %4829 = vmatprep.mubr.bf16.mxu0 0
        %4830 = vmatmul.mubr.bf16.gmra.mrb[0].mxu0 %v4367
        %v4831 = vpop.f32.mrb[0].mxu0
        %v4832 = vadd.f32 %v4345, %v4831
        %v4833 = vpop.f32.mrb[0].mxu0
        %v4834 = vadd.f32 %v4345, %v4833
        %v4835 = vpop.f32.mrb[0].mxu0
        %v4836 = vadd.f32 %v4350, %v4835
        %v4837 = vpop.f32.mrb[0].mxu0
        %v4838 = vadd.f32 %v4350, %v4837
        %4839 = vdwg.mxu0
        %4840 = vmatprep.subr.bf16.mxu0 %v4419
        %4841 = vmatpush1.bf16.msra.mxu0 %v4416
        %4842 = vmatprep.subr.bf16.mxu0 0
        %4843 = vmatpush1.bf16.msra.mxu0 0
        %4844 = vmatprep.subr.bf16.mxu0 0
        %4845 = vmatpush1.bf16.msra.mxu0 0
        %4846 = vmatprep.subr.bf16.mxu0 0
        %4847 = vmatpush1.bf16.msra.mxu0 0
        %4848 = vmatprep.subr.bf16.mxu0 0
        %4849 = vmatpush1.bf16.msra.mxu0 0
        %4850 = vmatprep.subr.bf16.mxu0 0
        %4851 = vmatpush1.bf16.msra.mxu0 0
        %4852 = vmatprep.subr.bf16.mxu0 0
        %4853 = vmatpush1.bf16.msra.mxu0 0
        %4854 = vmatprep.subr.bf16.mxu0 0
        %4855 = vmatpush1.bf16.msra.mxu0 0
        %4856 = vmatprep.subr.bf16.mxu0 0
        %4857 = vmatpush1.bf16.msra.mxu0 0
        %4858 = vmatprep.subr.bf16.mxu0 0
        %4859 = vmatpush1.bf16.msra.mxu0 0
        %4860 = vmatprep.subr.bf16.mxu0 0
        %4861 = vmatpush1.bf16.msra.mxu0 0
        %4862 = vmatprep.subr.bf16.mxu0 0
        %4863 = vmatpush1.bf16.msra.mxu0 0
        %4864 = vmatprep.subr.bf16.mxu0 0
        %4865 = vmatpush1.bf16.msra.mxu0 0
        %4866 = vmatprep.subr.bf16.mxu0 0
        %4867 = vmatpush1.bf16.msra.mxu0 0
        %4868 = vmatprep.subr.bf16.mxu0 0
        %4869 = vmatpush1.bf16.msra.mxu0 0
        %4870 = vmatprep.subr.bf16.mxu0 0
        %4871 = vmatpush1.bf16.msra.mxu0 0
        %4872 = vmatprep.mubr.bf16.mxu0 0
        %4873 = vmatmul.mubr.bf16.gmra.mrb[0].mxu0 %v4364
        %v4874 = vpop.f32.mrb[0].mxu0
        %v4875 = vadd.f32 %v4335, %v4874
        %v4876 = vpop.f32.mrb[0].mxu0
        %v4877 = vadd.f32 %v4335, %v4876
        %v4878 = vpop.f32.mrb[0].mxu0
        %v4879 = vadd.f32 %v4340, %v4878
        %v4880 = vpop.f32.mrb[0].mxu0
        %v4881 = vadd.f32 %v4340, %v4880
        %4882 = vmatprep.mubr.bf16.mxu0 0
        %4883 = vmatmul.mubr.bf16.gmra.mrb[0].mxu0 %v4367
        %v4884 = vpop.f32.mrb[0].mxu0
        %v4885 = vadd.f32 %v4345, %v4884
        %v4886 = vpop.f32.mrb[0].mxu0
        %v4887 = vadd.f32 %v4345, %v4886
        %v4888 = vpop.f32.mrb[0].mxu0
        %v4889 = vadd.f32 %v4350, %v4888
        %v4890 = vpop.f32.mrb[0].mxu0
        %v4891 = vadd.f32 %v4350, %v4890
        %4892 = vdwg.mxu0
        %4893 = vmatprep.subr.bf16.mxu0 %v4425
        %4894 = vmatpush1.bf16.msra.mxu0 %v4422
        %4895 = vmatprep.subr.bf16.mxu0 0
        %4896 = vmatpush1.bf16.msra.mxu0 0
        %4897 = vmatprep.subr.bf16.mxu0 0
        %4898 = vmatpush1.bf16.msra.mxu0 0
        %4899 = vmatprep.subr.bf16.mxu0 0
        %4900 = vmatpush1.bf16.msra.mxu0 0
        %4901 = vmatprep.subr.bf16.mxu0 0
        %4902 = vmatpush1.bf16.msra.mxu0 0
        %4903 = vmatprep.subr.bf16.mxu0 0
        %4904 = vmatpush1.bf16.msra.mxu0 0
        %4905 = vmatprep.subr.bf16.mxu0 0
        %4906 = vmatpush1.bf16.msra.mxu0 0
        %4907 = vmatprep.subr.bf16.mxu0 0
        %4908 = vmatpush1.bf16.msra.mxu0 0
        %4909 = vmatprep.subr.bf16.mxu0 0
        %4910 = vmatpush1.bf16.msra.mxu0 0
        %4911 = vmatprep.subr.bf16.mxu0 0
        %4912 = vmatpush1.bf16.msra.mxu0 0
        %4913 = vmatprep.subr.bf16.mxu0 0
        %4914 = vmatpush1.bf16.msra.mxu0 0
        %4915 = vmatprep.subr.bf16.mxu0 0
        %4916 = vmatpush1.bf16.msra.mxu0 0
        %4917 = vmatprep.subr.bf16.mxu0 0
        %4918 = vmatpush1.bf16.msra.mxu0 0
        %4919 = vmatprep.subr.bf16.mxu0 0
        %4920 = vmatpush1.bf16.msra.mxu0 0
        %4921 = vmatprep.subr.bf16.mxu0 0
        %4922 = vmatpush1.bf16.msra.mxu0 0
        %4923 = vmatprep.subr.bf16.mxu0 0
        %4924 = vmatpush1.bf16.msra.mxu0 0
        %4925 = vmatprep.mubr.bf16.mxu0 0
        %4926 = vmatmul.mubr.bf16.gmra.mrb[0].mxu0 %v4364
        %v4927 = vpop.f32.mrb[0].mxu0
        %v4928 = vadd.f32 %v4335, %v4927
        %v4929 = vpop.f32.mrb[0].mxu0
        %v4930 = vadd.f32 %v4335, %v4929
        %v4931 = vpop.f32.mrb[0].mxu0
        %v4932 = vadd.f32 %v4340, %v4931
        %v4933 = vpop.f32.mrb[0].mxu0
        %v4934 = vadd.f32 %v4340, %v4933
        %4935 = vmatprep.mubr.bf16.mxu0 0
        %4936 = vmatmul.mubr.bf16.gmra.mrb[0].mxu0 %v4367
        %v4937 = vpop.f32.mrb[0].mxu0
        %v4938 = vadd.f32 %v4345, %v4937
        %v4939 = vpop.f32.mrb[0].mxu0
        %v4940 = vadd.f32 %v4345, %v4939
        %v4941 = vpop.f32.mrb[0].mxu0
        %v4942 = vadd.f32 %v4350, %v4941
        %v4943 = vpop.f32.mrb[0].mxu0
        %v4944 = vadd.f32 %v4350, %v4943
        %4945 = vdwg.mxu0
        %4946 = vmatprep.subr.bf16.mxu0 %v4431
        %4947 = vmatpush1.bf16.msra.mxu0 %v4428
        %4948 = vmatprep.subr.bf16.mxu0 0
        %4949 = vmatpush1.bf16.msra.mxu0 0
        %4950 = vmatprep.subr.bf16.mxu0 0
        %4951 = vmatpush1.bf16.msra.mxu0 0
        %4952 = vmatprep.subr.bf16.mxu0 0
        %4953 = vmatpush1.bf16.msra.mxu0 0
        %4954 = vmatprep.subr.bf16.mxu0 0
        %4955 = vmatpush1.bf16.msra.mxu0 0
        %4956 = vmatprep.subr.bf16.mxu0 0
        %4957 = vmatpush1.bf16.msra.mxu0 0
        %4958 = vmatprep.subr.bf16.mxu0 0
        %4959 = vmatpush1.bf16.msra.mxu0 0
        %4960 = vmatprep.subr.bf16.mxu0 0
        %4961 = vmatpush1.bf16.msra.mxu0 0
        %4962 = vmatprep.subr.bf16.mxu0 0
        %4963 = vmatpush1.bf16.msra.mxu0 0
        %4964 = vmatprep.subr.bf16.mxu0 0
        %4965 = vmatpush1.bf16.msra.mxu0 0
        %4966 = vmatprep.subr.bf16.mxu0 0
        %4967 = vmatpush1.bf16.msra.mxu0 0
        %4968 = vmatprep.subr.bf16.mxu0 0
        %4969 = vmatpush1.bf16.msra.mxu0 0
        %4970 = vmatprep.subr.bf16.mxu0 0
        %4971 = vmatpush1.bf16.msra.mxu0 0
        %4972 = vmatprep.subr.bf16.mxu0 0
        %4973 = vmatpush1.bf16.msra.mxu0 0
        %4974 = vmatprep.subr.bf16.mxu0 0
        %4975 = vmatpush1.bf16.msra.mxu0 0
        %4976 = vmatprep.subr.bf16.mxu0 0
        %4977 = vmatpush1.bf16.msra.mxu0 0
        %4978 = vmatprep.mubr.bf16.mxu0 0
        %4979 = vmatmul.mubr.bf16.gmra.mrb[0].mxu0 %v4364
        %v4980 = vpop.f32.mrb[0].mxu0
        %v4981 = vadd.f32 %v4335, %v4980
        %v4982 = vpop.f32.mrb[0].mxu0
        %v4983 = vadd.f32 %v4335, %v4982
        %v4984 = vpop.f32.mrb[0].mxu0
        %v4985 = vadd.f32 %v4340, %v4984
        %v4986 = vpop.f32.mrb[0].mxu0
        %v4987 = vadd.f32 %v4340, %v4986
        %4988 = vmatprep.mubr.bf16.mxu0 0
        %4989 = vmatmul.mubr.bf16.gmra.mrb[0].mxu0 %v4367
        %v4990 = vpop.f32.mrb[0].mxu0
        %v4991 = vadd.f32 %v4345, %v4990
        %v4992 = vpop.f32.mrb[0].mxu0
        %v4993 = vadd.f32 %v4345, %v4992
        %v4994 = vpop.f32.mrb[0].mxu0
        %v4995 = vadd.f32 %v4350, %v4994
        %v4996 = vpop.f32.mrb[0].mxu0
        %v4997 = vadd.f32 %v4350, %v4996
        %4998 = vdwg.mxu0
        %4999 = vmatprep.subr.bf16.mxu0 %v4437
        %5000 = vmatpush1.bf16.msra.mxu0 %v4434
        %5001 = vmatprep.subr.bf16.mxu0 0
        %5002 = vmatpush1.bf16.msra.mxu0 0
        %5003 = vmatprep.subr.bf16.mxu0 0
        %5004 = vmatpush1.bf16.msra.mxu0 0
        %5005 = vmatprep.subr.bf16.mxu0 0
        %5006 = vmatpush1.bf16.msra.mxu0 0
        %5007 = vmatprep.subr.bf16.mxu0 0
        %5008 = vmatpush1.bf16.msra.mxu0 0
        %5009 = vmatprep.subr.bf16.mxu0 0
        %5010 = vmatpush1.bf16.msra.mxu0 0
        %5011 = vmatprep.subr.bf16.mxu0 0
        %5012 = vmatpush1.bf16.msra.mxu0 0
        %5013 = vmatprep.subr.bf16.mxu0 0
        %5014 = vmatpush1.bf16.msra.mxu0 0
        %5015 = vmatprep.subr.bf16.mxu0 0
        %5016 = vmatpush1.bf16.msra.mxu0 0
        %5017 = vmatprep.subr.bf16.mxu0 0
        %5018 = vmatpush1.bf16.msra.mxu0 0
        %5019 = vmatprep.subr.bf16.mxu0 0
        %5020 = vmatpush1.bf16.msra.mxu0 0
        %5021 = vmatprep.subr.bf16.mxu0 0
        %5022 = vmatpush1.bf16.msra.mxu0 0
        %5023 = vmatprep.subr.bf16.mxu0 0
        %5024 = vmatpush1.bf16.msra.mxu0 0
        %5025 = vmatprep.subr.bf16.mxu0 0
        %5026 = vmatpush1.bf16.msra.mxu0 0
        %5027 = vmatprep.subr.bf16.mxu0 0
        %5028 = vmatpush1.bf16.msra.mxu0 0
        %5029 = vmatprep.subr.bf16.mxu0 0
        %5030 = vmatpush1.bf16.msra.mxu0 0
        %5031 = vmatprep.mubr.bf16.mxu0 0
        %5032 = vmatmul.mubr.bf16.gmra.mrb[0].mxu0 %v4364
        %v5033 = vpop.f32.mrb[0].mxu0
        %v5034 = vadd.f32 %v4335, %v5033
        %v5035 = vpop.f32.mrb[0].mxu0
        %v5036 = vadd.f32 %v4335, %v5035
        %v5037 = vpop.f32.mrb[0].mxu0
        %v5038 = vadd.f32 %v4340, %v5037
        %v5039 = vpop.f32.mrb[0].mxu0
        %v5040 = vadd.f32 %v4340, %v5039
        %5041 = vmatprep.mubr.bf16.mxu0 0
        %5042 = vmatmul.mubr.bf16.gmra.mrb[0].mxu0 %v4367
        %v5043 = vpop.f32.mrb[0].mxu0
        %v5044 = vadd.f32 %v4345, %v5043
        %v5045 = vpop.f32.mrb[0].mxu0
        %v5046 = vadd.f32 %v4345, %v5045
        %v5047 = vpop.f32.mrb[0].mxu0
        %v5048 = vadd.f32 %v4350, %v5047
        %v5049 = vpop.f32.mrb[0].mxu0
        %v5050 = vadd.f32 %v4350, %v5049
        %5051 = vdwg.mxu0
        %5052 = vmatprep.subr.bf16.mxu0 %v4443
        %5053 = vmatpush1.bf16.msra.mxu0 %v4440
        %5054 = vmatprep.subr.bf16.mxu0 0
        %5055 = vmatpush1.bf16.msra.mxu0 0
        %5056 = vmatprep.subr.bf16.mxu0 0
        %5057 = vmatpush1.bf16.msra.mxu0 0
        %5058 = vmatprep.subr.bf16.mxu0 0
        %5059 = vmatpush1.bf16.msra.mxu0 0
        %5060 = vmatprep.subr.bf16.mxu0 0
        %5061 = vmatpush1.bf16.msra.mxu0 0
        %5062 = vmatprep.subr.bf16.mxu0 0
        %5063 = vmatpush1.bf16.msra.mxu0 0
        %5064 = vmatprep.subr.bf16.mxu0 0
        %5065 = vmatpush1.bf16.msra.mxu0 0
        %5066 = vmatprep.subr.bf16.mxu0 0
        %5067 = vmatpush1.bf16.msra.mxu0 0
        %5068 = vmatprep.subr.bf16.mxu0 0
        %5069 = vmatpush1.bf16.msra.mxu0 0
        %5070 = vmatprep.subr.bf16.mxu0 0
        %5071 = vmatpush1.bf16.msra.mxu0 0
        %5072 = vmatprep.subr.bf16.mxu0 0
        %5073 = vmatpush1.bf16.msra.mxu0 0
        %5074 = vmatprep.subr.bf16.mxu0 0
        %5075 = vmatpush1.bf16.msra.mxu0 0
        %5076 = vmatprep.subr.bf16.mxu0 0
        %5077 = vmatpush1.bf16.msra.mxu0 0
        %5078 = vmatprep.subr.bf16.mxu0 0
        %5079 = vmatpush1.bf16.msra.mxu0 0
        %5080 = vmatprep.subr.bf16.mxu0 0
        %5081 = vmatpush1.bf16.msra.mxu0 0
        %5082 = vmatprep.subr.bf16.mxu0 0
        %5083 = vmatpush1.bf16.msra.mxu0 0
        %5084 = vmatprep.mubr.bf16.mxu0 0
        %5085 = vmatmul.mubr.bf16.gmra.mrb[0].mxu0 %v4364
        %v5086 = vpop.f32.mrb[0].mxu0
        %v5087 = vadd.f32 %v4335, %v5086
        %v5088 = vpop.f32.mrb[0].mxu0
        %v5089 = vadd.f32 %v4335, %v5088
        %v5090 = vpop.f32.mrb[0].mxu0
        %v5091 = vadd.f32 %v4340, %v5090
        %v5092 = vpop.f32.mrb[0].mxu0
        %v5093 = vadd.f32 %v4340, %v5092
        %5094 = vmatprep.mubr.bf16.mxu0 0
        %5095 = vmatmul.mubr.bf16.gmra.mrb[0].mxu0 %v4367
        %v5096 = vpop.f32.mrb[0].mxu0
        %v5097 = vadd.f32 %v4345, %v5096
        %v5098 = vpop.f32.mrb[0].mxu0
        %v5099 = vadd.f32 %v4345, %v5098
        %v5100 = vpop.f32.mrb[0].mxu0
        %v5101 = vadd.f32 %v4350, %v5100
        %v5102 = vpop.f32.mrb[0].mxu0
        %v5103 = vadd.f32 %v4350, %v5102
        %5104 = vdwg.mxu0
        %5105 = vmatprep.subr.bf16.mxu0 %v4449
        %5106 = vmatpush1.bf16.msra.mxu0 %v4446
        %5107 = vmatprep.subr.bf16.mxu0 0
        %5108 = vmatpush1.bf16.msra.mxu0 0
        %5109 = vmatprep.subr.bf16.mxu0 0
        %5110 = vmatpush1.bf16.msra.mxu0 0
        %5111 = vmatprep.subr.bf16.mxu0 0
        %5112 = vmatpush1.bf16.msra.mxu0 0
        %5113 = vmatprep.subr.bf16.mxu0 0
        %5114 = vmatpush1.bf16.msra.mxu0 0
        %5115 = vmatprep.subr.bf16.mxu0 0
        %5116 = vmatpush1.bf16.msra.mxu0 0
        %5117 = vmatprep.subr.bf16.mxu0 0
        %5118 = vmatpush1.bf16.msra.mxu0 0
        %5119 = vmatprep.subr.bf16.mxu0 0
        %5120 = vmatpush1.bf16.msra.mxu0 0
        %5121 = vmatprep.subr.bf16.mxu0 0
        %5122 = vmatpush1.bf16.msra.mxu0 0
        %5123 = vmatprep.subr.bf16.mxu0 0
        %5124 = vmatpush1.bf16.msra.mxu0 0
        %5125 = vmatprep.subr.bf16.mxu0 0
        %5126 = vmatpush1.bf16.msra.mxu0 0
        %5127 = vmatprep.subr.bf16.mxu0 0
        %5128 = vmatpush1.bf16.msra.mxu0 0
        %5129 = vmatprep.subr.bf16.mxu0 0
        %5130 = vmatpush1.bf16.msra.mxu0 0
        %5131 = vmatprep.subr.bf16.mxu0 0
        %5132 = vmatpush1.bf16.msra.mxu0 0
        %5133 = vmatprep.subr.bf16.mxu0 0
        %5134 = vmatpush1.bf16.msra.mxu0 0
        %5135 = vmatprep.subr.bf16.mxu0 0
        %5136 = vmatpush1.bf16.msra.mxu0 0
        %5137 = vmatprep.mubr.bf16.mxu0 0
        %5138 = vmatmul.mubr.bf16.gmra.mrb[0].mxu0 %v4364
        %v5139 = vpop.f32.mrb[0].mxu0
        %v5140 = vadd.f32 %v4335, %v5139
        %v5141 = vpop.f32.mrb[0].mxu0
        %v5142 = vadd.f32 %v4335, %v5141
        %v5143 = vpop.f32.mrb[0].mxu0
        %v5144 = vadd.f32 %v4340, %v5143
        %v5145 = vpop.f32.mrb[0].mxu0
        %v5146 = vadd.f32 %v4340, %v5145
        %5147 = vmatprep.mubr.bf16.mxu0 0
        %5148 = vmatmul.mubr.bf16.gmra.mrb[0].mxu0 %v4367
        %v5149 = vpop.f32.mrb[0].mxu0
        %v5150 = vadd.f32 %v4345, %v5149
        %v5151 = vpop.f32.mrb[0].mxu0
        %v5152 = vadd.f32 %v4345, %v5151
        %v5153 = vpop.f32.mrb[0].mxu0
        %v5154 = vadd.f32 %v4350, %v5153
        %v5155 = vpop.f32.mrb[0].mxu0
        %v5156 = vadd.f32 %v4350, %v5155
        %5157 = vdwg.mxu0
        %5158 = vmatprep.subr.bf16.mxu0 %v4455
        %5159 = vmatpush1.bf16.msra.mxu0 %v4452
        %5160 = vmatprep.subr.bf16.mxu0 0
        %5161 = vmatpush1.bf16.msra.mxu0 0
        %5162 = vmatprep.subr.bf16.mxu0 0
        %5163 = vmatpush1.bf16.msra.mxu0 0
        %5164 = vmatprep.subr.bf16.mxu0 0
        %5165 = vmatpush1.bf16.msra.mxu0 0
        %5166 = vmatprep.subr.bf16.mxu0 0
        %5167 = vmatpush1.bf16.msra.mxu0 0
        %5168 = vmatprep.subr.bf16.mxu0 0
        %5169 = vmatpush1.bf16.msra.mxu0 0
        %5170 = vmatprep.subr.bf16.mxu0 0
        %5171 = vmatpush1.bf16.msra.mxu0 0
        %5172 = vmatprep.subr.bf16.mxu0 0
        %5173 = vmatpush1.bf16.msra.mxu0 0
        %5174 = vmatprep.subr.bf16.mxu0 0
        %5175 = vmatpush1.bf16.msra.mxu0 0
        %5176 = vmatprep.subr.bf16.mxu0 0
        %5177 = vmatpush1.bf16.msra.mxu0 0
        %5178 = vmatprep.subr.bf16.mxu0 0
        %5179 = vmatpush1.bf16.msra.mxu0 0
        %5180 = vmatprep.subr.bf16.mxu0 0
        %5181 = vmatpush1.bf16.msra.mxu0 0
        %5182 = vmatprep.subr.bf16.mxu0 0
        %5183 = vmatpush1.bf16.msra.mxu0 0
        %5184 = vmatprep.subr.bf16.mxu0 0
        %5185 = vmatpush1.bf16.msra.mxu0 0
        %5186 = vmatprep.subr.bf16.mxu0 0
        %5187 = vmatpush1.bf16.msra.mxu0 0
        %5188 = vmatprep.subr.bf16.mxu0 0
        %5189 = vmatpush1.bf16.msra.mxu0 0
        %5190 = vmatprep.mubr.bf16.mxu0 0
        %5191 = vmatmul.mubr.bf16.gmra.mrb[0].mxu0 %v4364
        %v5192 = vpop.f32.mrb[0].mxu0
        %v5193 = vadd.f32 %v4335, %v5192
        %v5194 = vpop.f32.mrb[0].mxu0
        %v5195 = vadd.f32 %v4335, %v5194
        %v5196 = vpop.f32.mrb[0].mxu0
        %v5197 = vadd.f32 %v4340, %v5196
        %v5198 = vpop.f32.mrb[0].mxu0
        %v5199 = vadd.f32 %v4340, %v5198
        %5200 = vmatprep.mubr.bf16.mxu0 0
        %5201 = vmatmul.mubr.bf16.gmra.mrb[0].mxu0 %v4367
        %v5202 = vpop.f32.mrb[0].mxu0
        %v5203 = vadd.f32 %v4345, %v5202
        %v5204 = vpop.f32.mrb[0].mxu0
        %v5205 = vadd.f32 %v4345, %v5204
        %v5206 = vpop.f32.mrb[0].mxu0
        %v5207 = vadd.f32 %v4350, %v5206
        %v5208 = vpop.f32.mrb[0].mxu0
        %v5209 = vadd.f32 %v4350, %v5208
        %5210 = vdwg.mxu0
        %5211 = vmatprep.subr.bf16.mxu0 %v4461
        %5212 = vmatpush1.bf16.msra.mxu0 %v4458
        %5213 = vmatprep.subr.bf16.mxu0 0
        %5214 = vmatpush1.bf16.msra.mxu0 0
        %5215 = vmatprep.subr.bf16.mxu0 0
        %5216 = vmatpush1.bf16.msra.mxu0 0
        %5217 = vmatprep.subr.bf16.mxu0 0
        %5218 = vmatpush1.bf16.msra.mxu0 0
        %5219 = vmatprep.subr.bf16.mxu0 0
        %5220 = vmatpush1.bf16.msra.mxu0 0
        %5221 = vmatprep.subr.bf16.mxu0 0
        %5222 = vmatpush1.bf16.msra.mxu0 0
        %5223 = vmatprep.subr.bf16.mxu0 0
        %5224 = vmatpush1.bf16.msra.mxu0 0
        %5225 = vmatprep.subr.bf16.mxu0 0
        %5226 = vmatpush1.bf16.msra.mxu0 0
        %5227 = vmatprep.subr.bf16.mxu0 0
        %5228 = vmatpush1.bf16.msra.mxu0 0
        %5229 = vmatprep.subr.bf16.mxu0 0
        %5230 = vmatpush1.bf16.msra.mxu0 0
        %5231 = vmatprep.subr.bf16.mxu0 0
        %5232 = vmatpush1.bf16.msra.mxu0 0
        %5233 = vmatprep.subr.bf16.mxu0 0
        %5234 = vmatpush1.bf16.msra.mxu0 0
        %5235 = vmatprep.subr.bf16.mxu0 0
        %5236 = vmatpush1.bf16.msra.mxu0 0
        %5237 = vmatprep.subr.bf16.mxu0 0
        %5238 = vmatpush1.bf16.msra.mxu0 0
        %5239 = vmatprep.subr.bf16.mxu0 0
        %5240 = vmatpush1.bf16.msra.mxu0 0
        %5241 = vmatprep.subr.bf16.mxu0 0
        %5242 = vmatpush1.bf16.msra.mxu0 0
        %5243 = vmatprep.mubr.bf16.mxu0 0
        %5244 = vmatmul.mubr.bf16.gmra.mrb[0].mxu0 %v4364
        %v5245 = vpop.f32.mrb[0].mxu0
        %v5246 = vadd.f32 %v4335, %v5245
        %v5247 = vpop.f32.mrb[0].mxu0
        %v5248 = vadd.f32 %v4335, %v5247
        %v5249 = vpop.f32.mrb[0].mxu0
        %v5250 = vadd.f32 %v4340, %v5249
        %v5251 = vpop.f32.mrb[0].mxu0
        %v5252 = vadd.f32 %v4340, %v5251
        %5253 = vmatprep.mubr.bf16.mxu0 0
        %5254 = vmatmul.mubr.bf16.gmra.mrb[0].mxu0 %v4367
        %v5255 = vpop.f32.mrb[0].mxu0
        %v5256 = vadd.f32 %v4345, %v5255
        %v5257 = vpop.f32.mrb[0].mxu0
        %v5258 = vadd.f32 %v4345, %v5257
        %v5259 = vpop.f32.mrb[0].mxu0
        %v5260 = vadd.f32 %v4350, %v5259
        %v5261 = vpop.f32.mrb[0].mxu0
        %v5262 = vadd.f32 %v4350, %v5261
        %5263 = vdwg.mxu0
        %5264 = vmatprep.subr.bf16.mxu0 %v4467
        %5265 = vmatpush1.bf16.msra.mxu0 %v4464
        %5266 = vmatprep.subr.bf16.mxu0 0
        %5267 = vmatpush1.bf16.msra.mxu0 0
        %5268 = vmatprep.subr.bf16.mxu0 0
        %5269 = vmatpush1.bf16.msra.mxu0 0
        %5270 = vmatprep.subr.bf16.mxu0 0
        %5271 = vmatpush1.bf16.msra.mxu0 0
        %5272 = vmatprep.subr.bf16.mxu0 0
        %5273 = vmatpush1.bf16.msra.mxu0 0
        %5274 = vmatprep.subr.bf16.mxu0 0
        %5275 = vmatpush1.bf16.msra.mxu0 0
        %5276 = vmatprep.subr.bf16.mxu0 0
        %5277 = vmatpush1.bf16.msra.mxu0 0
        %5278 = vmatprep.subr.bf16.mxu0 0
        %5279 = vmatpush1.bf16.msra.mxu0 0
        %5280 = vmatprep.subr.bf16.mxu0 0
        %5281 = vmatpush1.bf16.msra.mxu0 0
        %5282 = vmatprep.subr.bf16.mxu0 0
        %5283 = vmatpush1.bf16.msra.mxu0 0
        %5284 = vmatprep.subr.bf16.mxu0 0
        %5285 = vmatpush1.bf16.msra.mxu0 0
        %5286 = vmatprep.subr.bf16.mxu0 0
        %5287 = vmatpush1.bf16.msra.mxu0 0
        %5288 = vmatprep.subr.bf16.mxu0 0
        %5289 = vmatpush1.bf16.msra.mxu0 0
        %5290 = vmatprep.subr.bf16.mxu0 0
        %5291 = vmatpush1.bf16.msra.mxu0 0
        %5292 = vmatprep.subr.bf16.mxu0 0
        %5293 = vmatpush1.bf16.msra.mxu0 0
        %5294 = vmatprep.subr.bf16.mxu0 0
        %5295 = vmatpush1.bf16.msra.mxu0 0
        %5296 = vmatprep.mubr.bf16.mxu0 0
        %5297 = vmatmul.mubr.bf16.gmra.mrb[0].mxu0 %v4364
        %v5298 = vpop.f32.mrb[0].mxu0
        %v5299 = vadd.f32 %v4335, %v5298
        %v5300 = vpop.f32.mrb[0].mxu0
        %v5301 = vadd.f32 %v4335, %v5300
        %v5302 = vpop.f32.mrb[0].mxu0
        %v5303 = vadd.f32 %v4340, %v5302
        %v5304 = vpop.f32.mrb[0].mxu0
        %v5305 = vadd.f32 %v4340, %v5304
        %5306 = vmatprep.mubr.bf16.mxu0 0
        %5307 = vmatmul.mubr.bf16.gmra.mrb[0].mxu0 %v4367
        %v5308 = vpop.f32.mrb[0].mxu0
        %v5309 = vadd.f32 %v4345, %v5308
        %v5310 = vpop.f32.mrb[0].mxu0
        %v5311 = vadd.f32 %v4345, %v5310
        %v5312 = vpop.f32.mrb[0].mxu0
        %v5313 = vadd.f32 %v4350, %v5312
        %v5314 = vpop.f32.mrb[0].mxu0
        %v5315 = vadd.f32 %v4350, %v5314
        %5316 = vdwg.mxu0
        %v5317 = vmax.f32 %v4504, 0.0
        %v5318 = vmax.f32 %v4506, 0.0
        %v5319 = vmax.f32 %v4557, 0.0
        %v5320 = vmax.f32 %v4559, 0.0
        %v5321 = vmax.f32 %v4610, 0.0
        %v5322 = vmax.f32 %v4612, 0.0
        %v5323 = vmax.f32 %v4663, 0.0
        %v5324 = vmax.f32 %v4665, 0.0
        %v5325 = vmax.f32 %v4716, 0.0
        %v5326 = vmax.f32 %v4718, 0.0
        %v5327 = vmax.f32 %v4769, 0.0
        %v5328 = vmax.f32 %v4771, 0.0
        %v5329 = vmax.f32 %v4822, 0.0
        %v5330 = vmax.f32 %v4824, 0.0
        %v5331 = vmax.f32 %v4875, 0.0
        %v5332 = vmax.f32 %v4877, 0.0
        %v5333 = vmax.f32 %v4928, 0.0
        %v5334 = vmax.f32 %v4930, 0.0
        %v5335 = vmax.f32 %v4981, 0.0
        %v5336 = vmax.f32 %v4983, 0.0
        %v5337 = vmax.f32 %v5034, 0.0
        %v5338 = vmax.f32 %v5036, 0.0
        %v5339 = vmax.f32 %v5087, 0.0
        %v5340 = vmax.f32 %v5089, 0.0
        %v5341 = vmax.f32 %v5140, 0.0
        %v5342 = vmax.f32 %v5142, 0.0
        %v5343 = vmax.f32 %v5193, 0.0
        %v5344 = vmax.f32 %v5195, 0.0
        %v5345 = vmax.f32 %v5246, 0.0
        %v5346 = vmax.f32 %v5248, 0.0
        %v5347 = vmax.f32 %v5299, 0.0
        %v5348 = vmax.f32 %v5301, 0.0
        %v5349 = vmax.f32 %v4508, 0.0
        %v5350 = vmax.f32 %v4510, 0.0
        %v5351 = vmax.f32 %v4561, 0.0
        %v5352 = vmax.f32 %v4563, 0.0
        %v5353 = vmax.f32 %v4614, 0.0
        %v5354 = vmax.f32 %v4616, 0.0
        %v5355 = vmax.f32 %v4667, 0.0
        %v5356 = vmax.f32 %v4669, 0.0
        %v5357 = vmax.f32 %v4720, 0.0
        %v5358 = vmax.f32 %v4722, 0.0
        %v5359 = vmax.f32 %v4773, 0.0
        %v5360 = vmax.f32 %v4775, 0.0
        %v5361 = vmax.f32 %v4826, 0.0
        %v5362 = vmax.f32 %v4828, 0.0
        %v5363 = vmax.f32 %v4879, 0.0
        %v5364 = vmax.f32 %v4881, 0.0
        %v5365 = vmax.f32 %v4932, 0.0
        %v5366 = vmax.f32 %v4934, 0.0
        %v5367 = vmax.f32 %v4985, 0.0
        %v5368 = vmax.f32 %v4987, 0.0
        %v5369 = vmax.f32 %v5038, 0.0
        %v5370 = vmax.f32 %v5040, 0.0
        %v5371 = vmax.f32 %v5091, 0.0
        %v5372 = vmax.f32 %v5093, 0.0
        %v5373 = vmax.f32 %v5144, 0.0
        %v5374 = vmax.f32 %v5146, 0.0
        %v5375 = vmax.f32 %v5197, 0.0
        %v5376 = vmax.f32 %v5199, 0.0
        %v5377 = vmax.f32 %v5250, 0.0
        %v5378 = vmax.f32 %v5252, 0.0
        %v5379 = vmax.f32 %v5303, 0.0
        %v5380 = vmax.f32 %v5305, 0.0
        %v5381 = vmax.f32 %v4514, 0.0
        %v5382 = vmax.f32 %v4516, 0.0
        %v5383 = vmax.f32 %v4567, 0.0
        %v5384 = vmax.f32 %v4569, 0.0
        %v5385 = vmax.f32 %v4620, 0.0
        %v5386 = vmax.f32 %v4622, 0.0
        %v5387 = vmax.f32 %v4673, 0.0
        %v5388 = vmax.f32 %v4675, 0.0
        %v5389 = vmax.f32 %v4726, 0.0
        %v5390 = vmax.f32 %v4728, 0.0
        %v5391 = vmax.f32 %v4779, 0.0
        %v5392 = vmax.f32 %v4781, 0.0
        %v5393 = vmax.f32 %v4832, 0.0
        %v5394 = vmax.f32 %v4834, 0.0
        %v5395 = vmax.f32 %v4885, 0.0
        %v5396 = vmax.f32 %v4887, 0.0
        %v5397 = vmax.f32 %v4938, 0.0
        %v5398 = vmax.f32 %v4940, 0.0
        %v5399 = vmax.f32 %v4991, 0.0
        %v5400 = vmax.f32 %v4993, 0.0
        %v5401 = vmax.f32 %v5044, 0.0
        %v5402 = vmax.f32 %v5046, 0.0
        %v5403 = vmax.f32 %v5097, 0.0
        %v5404 = vmax.f32 %v5099, 0.0
        %v5405 = vmax.f32 %v5150, 0.0
        %v5406 = vmax.f32 %v5152, 0.0
        %v5407 = vmax.f32 %v5203, 0.0
        %v5408 = vmax.f32 %v5205, 0.0
        %v5409 = vmax.f32 %v5256, 0.0
        %v5410 = vmax.f32 %v5258, 0.0
        %v5411 = vmax.f32 %v5309, 0.0
        %v5412 = vmax.f32 %v5311, 0.0
        %v5413 = vmax.f32 %v4518, 0.0
        %v5414 = vmax.f32 %v4520, 0.0
        %v5415 = vmax.f32 %v4571, 0.0
        %v5416 = vmax.f32 %v4573, 0.0
        %v5417 = vmax.f32 %v4624, 0.0
        %v5418 = vmax.f32 %v4626, 0.0
        %v5419 = vmax.f32 %v4677, 0.0
        %v5420 = vmax.f32 %v4679, 0.0
        %v5421 = vmax.f32 %v4730, 0.0
        %v5422 = vmax.f32 %v4732, 0.0
        %v5423 = vmax.f32 %v4783, 0.0
        %v5424 = vmax.f32 %v4785, 0.0
        %v5425 = vmax.f32 %v4836, 0.0
        %v5426 = vmax.f32 %v4838, 0.0
        %v5427 = vmax.f32 %v4889, 0.0
        %v5428 = vmax.f32 %v4891, 0.0
        %v5429 = vmax.f32 %v4942, 0.0
        %v5430 = vmax.f32 %v4944, 0.0
        %v5431 = vmax.f32 %v4995, 0.0
        %v5432 = vmax.f32 %v4997, 0.0
        %v5433 = vmax.f32 %v5048, 0.0
        %v5434 = vmax.f32 %v5050, 0.0
        %v5435 = vmax.f32 %v5101, 0.0
        %v5436 = vmax.f32 %v5103, 0.0
        %v5437 = vmax.f32 %v5154, 0.0
        %v5438 = vmax.f32 %v5156, 0.0
        %v5439 = vmax.f32 %v5207, 0.0
        %v5440 = vmax.f32 %v5209, 0.0
        %v5441 = vmax.f32 %v5260, 0.0
        %v5442 = vmax.f32 %v5262, 0.0
        %v5443 = vmax.f32 %v5313, 0.0
        %v5444 = vmax.f32 %v5315, 0.0
        %v5477 = vrot.slane %v3168, 2
        %v5478 = vrot.slane %v3169, 2
        %v5479 = vrot.slane %v3170, 2
        %v5480 = vrot.slane %v3171, 2
        %v5481 = vrot.slane %v3172, 2
        %v5482 = vrot.slane %v3173, 2
        %v5483 = vrot.slane %v3174, 2
        %v5484 = vrot.slane %v3175, 2
        %v5485 = vrot.slane %v3176, 2
        %v5486 = vrot.slane %v3177, 2
        %v5487 = vrot.slane %v3178, 2
        %v5488 = vrot.slane %v3179, 2
        %v5489 = vrot.slane %v3180, 2
        %v5490 = vrot.slane %v3181, 2
        %v5491 = vrot.slane %v3182, 2
        %v5492 = vrot.slane %v3183, 2
        %v5493 = vrot.slane %v3184, 2
        %v5494 = vrot.slane %v3185, 2
        %v5495 = vrot.slane %v3186, 2
        %v5496 = vrot.slane %v3187, 2
        %v5497 = vrot.slane %v3188, 2
        %v5498 = vrot.slane %v3189, 2
        %v5499 = vrot.slane %v3190, 2
        %v5500 = vrot.slane %v3191, 2
        %v5501 = vrot.slane %v3192, 2
        %v5502 = vrot.slane %v3193, 2
        %v5503 = vrot.slane %v3194, 2
        %v5504 = vrot.slane %v3195, 2
        %v5505 = vrot.slane %v3196, 2
        %v5506 = vrot.slane %v3197, 2
        %v5507 = vrot.slane %v3198, 2
        %v5508 = vrot.slane %v3199, 2
        %v5573 = vrot.slane %v3686, 7
        %v5574 = vrot.slane %v3687, 7
        %v5575 = vrot.slane %v3688, 7
        %v5576 = vrot.slane %v3689, 7
        %v5577 = vrot.slane %v3690, 7
        %v5578 = vrot.slane %v3691, 7
        %v5579 = vrot.slane %v3692, 7
        %v5580 = vrot.slane %v3693, 7
        %v5581 = vrot.slane %v3694, 7
        %v5582 = vrot.slane %v3695, 7
        %v5583 = vrot.slane %v3696, 7
        %v5584 = vrot.slane %v3697, 7
        %v5585 = vrot.slane %v3698, 7
        %v5586 = vrot.slane %v3699, 7
        %v5587 = vrot.slane %v3700, 7
        %v5588 = vrot.slane %v3701, 7
        %v5589 = vrot.slane %v3702, 7
        %v5590 = vrot.slane %v3703, 7
        %v5591 = vrot.slane %v3704, 7
        %v5592 = vrot.slane %v3705, 7
        %v5593 = vrot.slane %v3706, 7
        %v5594 = vrot.slane %v3707, 7
        %v5595 = vrot.slane %v3708, 7
        %v5596 = vrot.slane %v3709, 7
        %v5597 = vrot.slane %v3710, 7
        %v5598 = vrot.slane %v3711, 7
        %v5599 = vrot.slane %v3712, 7
        %v5600 = vrot.slane %v3713, 7
        %v5601 = vrot.slane %v3714, 7
        %v5602 = vrot.slane %v3715, 7
        %v5603 = vrot.slane %v3716, 7
        %v5604 = vrot.slane %v3717, 7
        %vm5637 = vcmask 1042432
        %v5638 = vsel %vm5637, %v2144, %v240
        %v5639 = vsel %vm5637, %v2145, %v241
        %v5640 = vsel %vm5637, %v2146, %v242
        %v5641 = vsel %vm5637, %v2147, %v243
        %v5642 = vsel %vm5637, %v2148, %v244
        %v5643 = vsel %vm5637, %v2149, %v245
        %v5644 = vsel %vm5637, %v2150, %v246
        %v5645 = vsel %vm5637, %v2151, %v247
        %v5646 = vsel %vm5637, %v2152, %v248
        %v5647 = vsel %vm5637, %v2153, %v249
        %v5648 = vsel %vm5637, %v2154, %v250
        %v5649 = vsel %vm5637, %v2155, %v251
        %v5650 = vsel %vm5637, %v2156, %v252
        %v5651 = vsel %vm5637, %v2157, %v253
        %v5652 = vsel %vm5637, %v2158, %v254
        %v5653 = vsel %vm5637, %v2159, %v255
        %v5654 = vsel %vm5637, %v2160, %v256
        %v5655 = vsel %vm5637, %v2161, %v257
        %v5656 = vsel %vm5637, %v2162, %v258
        %v5657 = vsel %vm5637, %v2163, %v259
        %v5658 = vsel %vm5637, %v2164, %v260
        %v5659 = vsel %vm5637, %v2165, %v261
        %v5660 = vsel %vm5637, %v2166, %v262
        %v5661 = vsel %vm5637, %v2167, %v263
        %v5662 = vsel %vm5637, %v2168, %v264
        %v5663 = vsel %vm5637, %v2169, %v265
        %v5664 = vsel %vm5637, %v2170, %v266
        %v5665 = vsel %vm5637, %v2171, %v267
        %v5666 = vsel %vm5637, %v2172, %v268
        %v5667 = vsel %vm5637, %v2173, %v269
        %v5668 = vsel %vm5637, %v2174, %v270
        %v5669 = vsel %vm5637, %v2175, %v271
        %vm5670 = vcmask 1045504
        %v5671 = vsel %vm5670, %v5638, %v5477
        %v5672 = vsel %vm5670, %v5639, %v5478
        %v5673 = vsel %vm5670, %v5640, %v5479
        %v5674 = vsel %vm5670, %v5641, %v5480
        %v5675 = vsel %vm5670, %v5642, %v5481
        %v5676 = vsel %vm5670, %v5643, %v5482
        %v5677 = vsel %vm5670, %v5644, %v5483
        %v5678 = vsel %vm5670, %v5645, %v5484
        %v5679 = vsel %vm5670, %v5646, %v5485
        %v5680 = vsel %vm5670, %v5647, %v5486
        %v5681 = vsel %vm5670, %v5648, %v5487
        %v5682 = vsel %vm5670, %v5649, %v5488
        %v5683 = vsel %vm5670, %v5650, %v5489
        %v5684 = vsel %vm5670, %v5651, %v5490
        %v5685 = vsel %vm5670, %v5652, %v5491
        %v5686 = vsel %vm5670, %v5653, %v5492
        %v5687 = vsel %vm5670, %v5654, %v5493
        %v5688 = vsel %vm5670, %v5655, %v5494
        %v5689 = vsel %vm5670, %v5656, %v5495
        %v5690 = vsel %vm5670, %v5657, %v5496
        %v5691 = vsel %vm5670, %v5658, %v5497
        %v5692 = vsel %vm5670, %v5659, %v5498
        %v5693 = vsel %vm5670, %v5660, %v5499
        %v5694 = vsel %vm5670, %v5661, %v5500
        %v5695 = vsel %vm5670, %v5662, %v5501
        %v5696 = vsel %vm5670, %v5663, %v5502
        %v5697 = vsel %vm5670, %v5664, %v5503
        %v5698 = vsel %vm5670, %v5665, %v5504
        %v5699 = vsel %vm5670, %v5666, %v5505
        %v5700 = vsel %vm5670, %v5667, %v5506
        %v5701 = vsel %vm5670, %v5668, %v5507
        %v5702 = vsel %vm5670, %v5669, %v5508
        %v5703 = vsel %vm4369, %v5477, %v5573
        %v5704 = vsel %vm4369, %v5478, %v5574
        %v5705 = vsel %vm4369, %v5479, %v5575
        %v5706 = vsel %vm4369, %v5480, %v5576
        %v5707 = vsel %vm4369, %v5481, %v5577
        %v5708 = vsel %vm4369, %v5482, %v5578
        %v5709 = vsel %vm4369, %v5483, %v5579
        %v5710 = vsel %vm4369, %v5484, %v5580
        %v5711 = vsel %vm4369, %v5485, %v5581
        %v5712 = vsel %vm4369, %v5486, %v5582
        %v5713 = vsel %vm4369, %v5487, %v5583
        %v5714 = vsel %vm4369, %v5488, %v5584
        %v5715 = vsel %vm4369, %v5489, %v5585
        %v5716 = vsel %vm4369, %v5490, %v5586
        %v5717 = vsel %vm4369, %v5491, %v5587
        %v5718 = vsel %vm4369, %v5492, %v5588
        %v5719 = vsel %vm4369, %v5493, %v5589
        %v5720 = vsel %vm4369, %v5494, %v5590
        %v5721 = vsel %vm4369, %v5495, %v5591
        %v5722 = vsel %vm4369, %v5496, %v5592
        %v5723 = vsel %vm4369, %v5497, %v5593
        %v5724 = vsel %vm4369, %v5498, %v5594
        %v5725 = vsel %vm4369, %v5499, %v5595
        %v5726 = vsel %vm4369, %v5500, %v5596
        %v5727 = vsel %vm4369, %v5501, %v5597
        %v5728 = vsel %vm4369, %v5502, %v5598
        %v5729 = vsel %vm4369, %v5503, %v5599
        %v5730 = vsel %vm4369, %v5504, %v5600
        %v5731 = vsel %vm4369, %v5505, %v5601
        %v5732 = vsel %vm4369, %v5506, %v5602
        %v5733 = vsel %vm4369, %v5507, %v5603
        %v5734 = vsel %vm4369, %v5508, %v5604
        %v5735 = vpack.c.bf16 %v5703, %v5671
        %v5736 = vpack.c.bf16 %v5704, %v5672
        %v5737 = vpack.c.bf16 %v5705, %v5673
        %v5738 = vpack.c.bf16 %v5706, %v5674
        %v5739 = vpack.c.bf16 %v5707, %v5675
        %v5740 = vpack.c.bf16 %v5708, %v5676
        %v5741 = vpack.c.bf16 %v5709, %v5677
        %v5742 = vpack.c.bf16 %v5710, %v5678
        %v5743 = vpack.c.bf16 %v5711, %v5679
        %v5744 = vpack.c.bf16 %v5712, %v5680
        %v5745 = vpack.c.bf16 %v5713, %v5681
        %v5746 = vpack.c.bf16 %v5714, %v5682
        %v5747 = vpack.c.bf16 %v5715, %v5683
        %v5748 = vpack.c.bf16 %v5716, %v5684
        %v5749 = vpack.c.bf16 %v5717, %v5685
        %v5750 = vpack.c.bf16 %v5718, %v5686
        %v5751 = vpack.c.bf16 %v5719, %v5687
        %v5752 = vpack.c.bf16 %v5720, %v5688
        %v5753 = vpack.c.bf16 %v5721, %v5689
        %v5754 = vpack.c.bf16 %v5722, %v5690
        %v5755 = vpack.c.bf16 %v5723, %v5691
        %v5756 = vpack.c.bf16 %v5724, %v5692
        %v5757 = vpack.c.bf16 %v5725, %v5693
        %v5758 = vpack.c.bf16 %v5726, %v5694
        %v5759 = vpack.c.bf16 %v5727, %v5695
        %v5760 = vpack.c.bf16 %v5728, %v5696
        %v5761 = vpack.c.bf16 %v5729, %v5697
        %v5762 = vpack.c.bf16 %v5730, %v5698
        %v5763 = vpack.c.bf16 %v5731, %v5699
        %v5764 = vpack.c.bf16 %v5732, %v5700
        %v5765 = vpack.c.bf16 %v5733, %v5701
        %v5766 = vpack.c.bf16 %v5734, %v5702
        %v5767 = vpack.c.bf16 %v5349, %v5317
        %v5768 = vpack.c.bf16 %v5350, %v5318
        %v5769 = vpack.c.bf16 %v5351, %v5319
        %v5770 = vpack.c.bf16 %v5352, %v5320
        %v5771 = vpack.c.bf16 %v5353, %v5321
        %v5772 = vpack.c.bf16 %v5354, %v5322
        %v5773 = vpack.c.bf16 %v5355, %v5323
        %v5774 = vpack.c.bf16 %v5356, %v5324
        %v5775 = vpack.c.bf16 %v5357, %v5325
        %v5776 = vpack.c.bf16 %v5358, %v5326
        %v5777 = vpack.c.bf16 %v5359, %v5327
        %v5778 = vpack.c.bf16 %v5360, %v5328
        %v5779 = vpack.c.bf16 %v5361, %v5329
        %v5780 = vpack.c.bf16 %v5362, %v5330
        %v5781 = vpack.c.bf16 %v5363, %v5331
        %v5782 = vpack.c.bf16 %v5364, %v5332
        %v5783 = vpack.c.bf16 %v5365, %v5333
        %v5784 = vpack.c.bf16 %v5366, %v5334
        %v5785 = vpack.c.bf16 %v5367, %v5335
        %v5786 = vpack.c.bf16 %v5368, %v5336
        %v5787 = vpack.c.bf16 %v5369, %v5337
        %v5788 = vpack.c.bf16 %v5370, %v5338
        %v5789 = vpack.c.bf16 %v5371, %v5339
        %v5790 = vpack.c.bf16 %v5372, %v5340
        %v5791 = vpack.c.bf16 %v5373, %v5341
        %v5792 = vpack.c.bf16 %v5374, %v5342
        %v5793 = vpack.c.bf16 %v5375, %v5343
        %v5794 = vpack.c.bf16 %v5376, %v5344
        %v5795 = vpack.c.bf16 %v5377, %v5345
        %v5796 = vpack.c.bf16 %v5378, %v5346
        %v5797 = vpack.c.bf16 %v5379, %v5347
        %v5798 = vpack.c.bf16 %v5380, %v5348
        %v5799 = vpack.c.bf16 %v5413, %v5381
        %v5800 = vpack.c.bf16 %v5414, %v5382
        %v5801 = vpack.c.bf16 %v5415, %v5383
        %v5802 = vpack.c.bf16 %v5416, %v5384
        %v5803 = vpack.c.bf16 %v5417, %v5385
        %v5804 = vpack.c.bf16 %v5418, %v5386
        %v5805 = vpack.c.bf16 %v5419, %v5387
        %v5806 = vpack.c.bf16 %v5420, %v5388
        %v5807 = vpack.c.bf16 %v5421, %v5389
        %v5808 = vpack.c.bf16 %v5422, %v5390
        %v5809 = vpack.c.bf16 %v5423, %v5391
        %v5810 = vpack.c.bf16 %v5424, %v5392
        %v5811 = vpack.c.bf16 %v5425, %v5393
        %v5812 = vpack.c.bf16 %v5426, %v5394
        %v5813 = vpack.c.bf16 %v5427, %v5395
        %v5814 = vpack.c.bf16 %v5428, %v5396
        %v5815 = vpack.c.bf16 %v5429, %v5397
        %v5816 = vpack.c.bf16 %v5430, %v5398
        %v5817 = vpack.c.bf16 %v5431, %v5399
        %v5818 = vpack.c.bf16 %v5432, %v5400
        %v5819 = vpack.c.bf16 %v5433, %v5401
        %v5820 = vpack.c.bf16 %v5434, %v5402
        %v5821 = vpack.c.bf16 %v5435, %v5403
        %v5822 = vpack.c.bf16 %v5436, %v5404
        %v5823 = vpack.c.bf16 %v5437, %v5405
        %v5824 = vpack.c.bf16 %v5438, %v5406
        %v5825 = vpack.c.bf16 %v5439, %v5407
        %v5826 = vpack.c.bf16 %v5440, %v5408
        %v5827 = vpack.c.bf16 %v5441, %v5409
        %v5828 = vpack.c.bf16 %v5442, %v5410
        %v5829 = vpack.c.bf16 %v5443, %v5411
        %v5830 = vpack.c.bf16 %v5444, %v5412
        %5831 = vrot.lane.b32.xlu0 %v4360, 113
        %v5832 = vpop.permute.xlu0 %5831
        %5833 = vrot.lane.b32.xlu0 %v4361, 113
        %v5834 = vpop.permute.xlu0 %5833
        %vm5835 = vcmask 261120
        %v5837 = vsel %vm5835, %v5832, 0
        %v5840 = vsel %vm5835, %v5834, 0
        %5842 = vmatprep.subr.bf16.mxu0 %v5768
        %5843 = vmatpush1.bf16.msra.mxu0 %v5767
        %5844 = vmatprep.subr.bf16.mxu0 %v5800
        %5845 = vmatpush1.bf16.msra.mxu0 %v5799
        %5846 = vmatprep.subr.bf16.mxu0 0
        %5847 = vmatpush1.bf16.msra.mxu0 0
        %5848 = vmatprep.subr.bf16.mxu0 0
        %5849 = vmatpush1.bf16.msra.mxu0 0
        %5850 = vmatprep.subr.bf16.mxu0 0
        %5851 = vmatpush1.bf16.msra.mxu0 0
        %5852 = vmatprep.subr.bf16.mxu0 0
        %5853 = vmatpush1.bf16.msra.mxu0 0
        %5854 = vmatprep.subr.bf16.mxu0 0
        %5855 = vmatpush1.bf16.msra.mxu0 0
        %5856 = vmatprep.subr.bf16.mxu0 0
        %5857 = vmatpush1.bf16.msra.mxu0 0
        %5858 = vmatprep.subr.bf16.mxu0 0
        %5859 = vmatpush1.bf16.msra.mxu0 0
        %5860 = vmatprep.subr.bf16.mxu0 0
        %5861 = vmatpush1.bf16.msra.mxu0 0
        %5862 = vmatprep.subr.bf16.mxu0 0
        %5863 = vmatpush1.bf16.msra.mxu0 0
        %5864 = vmatprep.subr.bf16.mxu0 0
        %5865 = vmatpush1.bf16.msra.mxu0 0
        %5866 = vmatprep.subr.bf16.mxu0 0
        %5867 = vmatpush1.bf16.msra.mxu0 0
        %5868 = vmatprep.subr.bf16.mxu0 0
        %5869 = vmatpush1.bf16.msra.mxu0 0
        %5870 = vmatprep.subr.bf16.mxu0 0
        %5871 = vmatpush1.bf16.msra.mxu0 0
        %5872 = vmatprep.subr.bf16.mxu0 0
        %5873 = vmatpush1.bf16.msra.mxu0 0
        %5874 = vmatprep.mubr.bf16.mxu0 0
        %5875 = vmatmul.mubr.bf16.gmra.mrb[0].mxu0 %v5837
        %v5876 = vpop.f32.mrb[0].mxu0
        %v5877 = vadd.f32 0.0, %v5876
        %v5878 = vpop.f32.mrb[0].mxu0
        %v5879 = vadd.f32 0.0, %v5878
        %v5880 = vpop.f32.mrb[0].mxu0
        %v5881 = vadd.f32 0.0, %v5880
        %v5882 = vpop.f32.mrb[0].mxu0
        %v5883 = vadd.f32 0.0, %v5882
        %5884 = vmatprep.mubr.bf16.mxu0 0
        %5885 = vmatmul.mubr.bf16.gmra.mrb[0].mxu0 %v5840
        %v5886 = vpop.f32.mrb[0].mxu0
        %v5887 = vadd.f32 0.0, %v5886
        %v5888 = vpop.f32.mrb[0].mxu0
        %v5889 = vadd.f32 0.0, %v5888
        %v5890 = vpop.f32.mrb[0].mxu0
        %v5891 = vadd.f32 0.0, %v5890
        %v5892 = vpop.f32.mrb[0].mxu0
        %v5893 = vadd.f32 0.0, %v5892
        %5894 = vdwg.mxu0
        %5895 = vmatprep.subr.bf16.mxu0 %v5770
        %5896 = vmatpush1.bf16.msra.mxu0 %v5769
        %5897 = vmatprep.subr.bf16.mxu0 %v5802
        %5898 = vmatpush1.bf16.msra.mxu0 %v5801
        %5899 = vmatprep.subr.bf16.mxu0 0
        %5900 = vmatpush1.bf16.msra.mxu0 0
        %5901 = vmatprep.subr.bf16.mxu0 0
        %5902 = vmatpush1.bf16.msra.mxu0 0
        %5903 = vmatprep.subr.bf16.mxu0 0
        %5904 = vmatpush1.bf16.msra.mxu0 0
        %5905 = vmatprep.subr.bf16.mxu0 0
        %5906 = vmatpush1.bf16.msra.mxu0 0
        %5907 = vmatprep.subr.bf16.mxu0 0
        %5908 = vmatpush1.bf16.msra.mxu0 0
        %5909 = vmatprep.subr.bf16.mxu0 0
        %5910 = vmatpush1.bf16.msra.mxu0 0
        %5911 = vmatprep.subr.bf16.mxu0 0
        %5912 = vmatpush1.bf16.msra.mxu0 0
        %5913 = vmatprep.subr.bf16.mxu0 0
        %5914 = vmatpush1.bf16.msra.mxu0 0
        %5915 = vmatprep.subr.bf16.mxu0 0
        %5916 = vmatpush1.bf16.msra.mxu0 0
        %5917 = vmatprep.subr.bf16.mxu0 0
        %5918 = vmatpush1.bf16.msra.mxu0 0
        %5919 = vmatprep.subr.bf16.mxu0 0
        %5920 = vmatpush1.bf16.msra.mxu0 0
        %5921 = vmatprep.subr.bf16.mxu0 0
        %5922 = vmatpush1.bf16.msra.mxu0 0
        %5923 = vmatprep.subr.bf16.mxu0 0
        %5924 = vmatpush1.bf16.msra.mxu0 0
        %5925 = vmatprep.subr.bf16.mxu0 0
        %5926 = vmatpush1.bf16.msra.mxu0 0
        %5927 = vmatprep.mubr.bf16.mxu0 0
        %5928 = vmatmul.mubr.bf16.gmra.mrb[0].mxu0 %v5837
        %v5929 = vpop.f32.mrb[0].mxu0
        %v5930 = vadd.f32 0.0, %v5929
        %v5931 = vpop.f32.mrb[0].mxu0
        %v5932 = vadd.f32 0.0, %v5931
        %v5933 = vpop.f32.mrb[0].mxu0
        %v5934 = vadd.f32 0.0, %v5933
        %v5935 = vpop.f32.mrb[0].mxu0
        %v5936 = vadd.f32 0.0, %v5935
        %5937 = vmatprep.mubr.bf16.mxu0 0
        %5938 = vmatmul.mubr.bf16.gmra.mrb[0].mxu0 %v5840
        %v5939 = vpop.f32.mrb[0].mxu0
        %v5940 = vadd.f32 0.0, %v5939
        %v5941 = vpop.f32.mrb[0].mxu0
        %v5942 = vadd.f32 0.0, %v5941
        %v5943 = vpop.f32.mrb[0].mxu0
        %v5944 = vadd.f32 0.0, %v5943
        %v5945 = vpop.f32.mrb[0].mxu0
        %v5946 = vadd.f32 0.0, %v5945
        %5947 = vdwg.mxu0
        %5948 = vmatprep.subr.bf16.mxu0 %v5772
        %5949 = vmatpush1.bf16.msra.mxu0 %v5771
        %5950 = vmatprep.subr.bf16.mxu0 %v5804
        %5951 = vmatpush1.bf16.msra.mxu0 %v5803
        %5952 = vmatprep.subr.bf16.mxu0 0
        %5953 = vmatpush1.bf16.msra.mxu0 0
        %5954 = vmatprep.subr.bf16.mxu0 0
        %5955 = vmatpush1.bf16.msra.mxu0 0
        %5956 = vmatprep.subr.bf16.mxu0 0
        %5957 = vmatpush1.bf16.msra.mxu0 0
        %5958 = vmatprep.subr.bf16.mxu0 0
        %5959 = vmatpush1.bf16.msra.mxu0 0
        %5960 = vmatprep.subr.bf16.mxu0 0
        %5961 = vmatpush1.bf16.msra.mxu0 0
        %5962 = vmatprep.subr.bf16.mxu0 0
        %5963 = vmatpush1.bf16.msra.mxu0 0
        %5964 = vmatprep.subr.bf16.mxu0 0
        %5965 = vmatpush1.bf16.msra.mxu0 0
        %5966 = vmatprep.subr.bf16.mxu0 0
        %5967 = vmatpush1.bf16.msra.mxu0 0
        %5968 = vmatprep.subr.bf16.mxu0 0
        %5969 = vmatpush1.bf16.msra.mxu0 0
        %5970 = vmatprep.subr.bf16.mxu0 0
        %5971 = vmatpush1.bf16.msra.mxu0 0
        %5972 = vmatprep.subr.bf16.mxu0 0
        %5973 = vmatpush1.bf16.msra.mxu0 0
        %5974 = vmatprep.subr.bf16.mxu0 0
        %5975 = vmatpush1.bf16.msra.mxu0 0
        %5976 = vmatprep.subr.bf16.mxu0 0
        %5977 = vmatpush1.bf16.msra.mxu0 0
        %5978 = vmatprep.subr.bf16.mxu0 0
        %5979 = vmatpush1.bf16.msra.mxu0 0
        %5980 = vmatprep.mubr.bf16.mxu0 0
        %5981 = vmatmul.mubr.bf16.gmra.mrb[0].mxu0 %v5837
        %v5982 = vpop.f32.mrb[0].mxu0
        %v5983 = vadd.f32 0.0, %v5982
        %v5984 = vpop.f32.mrb[0].mxu0
        %v5985 = vadd.f32 0.0, %v5984
        %v5986 = vpop.f32.mrb[0].mxu0
        %v5987 = vadd.f32 0.0, %v5986
        %v5988 = vpop.f32.mrb[0].mxu0
        %v5989 = vadd.f32 0.0, %v5988
        %5990 = vmatprep.mubr.bf16.mxu0 0
        %5991 = vmatmul.mubr.bf16.gmra.mrb[0].mxu0 %v5840
        %v5992 = vpop.f32.mrb[0].mxu0
        %v5993 = vadd.f32 0.0, %v5992
        %v5994 = vpop.f32.mrb[0].mxu0
        %v5995 = vadd.f32 0.0, %v5994
        %v5996 = vpop.f32.mrb[0].mxu0
        %v5997 = vadd.f32 0.0, %v5996
        %v5998 = vpop.f32.mrb[0].mxu0
        %v5999 = vadd.f32 0.0, %v5998
        %6000 = vdwg.mxu0
        %6001 = vmatprep.subr.bf16.mxu0 %v5774
        %6002 = vmatpush1.bf16.msra.mxu0 %v5773
        %6003 = vmatprep.subr.bf16.mxu0 %v5806
        %6004 = vmatpush1.bf16.msra.mxu0 %v5805
        %6005 = vmatprep.subr.bf16.mxu0 0
        %6006 = vmatpush1.bf16.msra.mxu0 0
        %6007 = vmatprep.subr.bf16.mxu0 0
        %6008 = vmatpush1.bf16.msra.mxu0 0
        %6009 = vmatprep.subr.bf16.mxu0 0
        %6010 = vmatpush1.bf16.msra.mxu0 0
        %6011 = vmatprep.subr.bf16.mxu0 0
        %6012 = vmatpush1.bf16.msra.mxu0 0
        %6013 = vmatprep.subr.bf16.mxu0 0
        %6014 = vmatpush1.bf16.msra.mxu0 0
        %6015 = vmatprep.subr.bf16.mxu0 0
        %6016 = vmatpush1.bf16.msra.mxu0 0
        %6017 = vmatprep.subr.bf16.mxu0 0
        %6018 = vmatpush1.bf16.msra.mxu0 0
        %6019 = vmatprep.subr.bf16.mxu0 0
        %6020 = vmatpush1.bf16.msra.mxu0 0
        %6021 = vmatprep.subr.bf16.mxu0 0
        %6022 = vmatpush1.bf16.msra.mxu0 0
        %6023 = vmatprep.subr.bf16.mxu0 0
        %6024 = vmatpush1.bf16.msra.mxu0 0
        %6025 = vmatprep.subr.bf16.mxu0 0
        %6026 = vmatpush1.bf16.msra.mxu0 0
        %6027 = vmatprep.subr.bf16.mxu0 0
        %6028 = vmatpush1.bf16.msra.mxu0 0
        %6029 = vmatprep.subr.bf16.mxu0 0
        %6030 = vmatpush1.bf16.msra.mxu0 0
        %6031 = vmatprep.subr.bf16.mxu0 0
        %6032 = vmatpush1.bf16.msra.mxu0 0
        %6033 = vmatprep.mubr.bf16.mxu0 0
        %6034 = vmatmul.mubr.bf16.gmra.mrb[0].mxu0 %v5837
        %v6035 = vpop.f32.mrb[0].mxu0
        %v6036 = vadd.f32 0.0, %v6035
        %v6037 = vpop.f32.mrb[0].mxu0
        %v6038 = vadd.f32 0.0, %v6037
        %v6039 = vpop.f32.mrb[0].mxu0
        %v6040 = vadd.f32 0.0, %v6039
        %v6041 = vpop.f32.mrb[0].mxu0
        %v6042 = vadd.f32 0.0, %v6041
        %6043 = vmatprep.mubr.bf16.mxu0 0
        %6044 = vmatmul.mubr.bf16.gmra.mrb[0].mxu0 %v5840
        %v6045 = vpop.f32.mrb[0].mxu0
        %v6046 = vadd.f32 0.0, %v6045
        %v6047 = vpop.f32.mrb[0].mxu0
        %v6048 = vadd.f32 0.0, %v6047
        %v6049 = vpop.f32.mrb[0].mxu0
        %v6050 = vadd.f32 0.0, %v6049
        %v6051 = vpop.f32.mrb[0].mxu0
        %v6052 = vadd.f32 0.0, %v6051
        %6053 = vdwg.mxu0
        %6054 = vmatprep.subr.bf16.mxu0 %v5776
        %6055 = vmatpush1.bf16.msra.mxu0 %v5775
        %6056 = vmatprep.subr.bf16.mxu0 %v5808
        %6057 = vmatpush1.bf16.msra.mxu0 %v5807
        %6058 = vmatprep.subr.bf16.mxu0 0
        %6059 = vmatpush1.bf16.msra.mxu0 0
        %6060 = vmatprep.subr.bf16.mxu0 0
        %6061 = vmatpush1.bf16.msra.mxu0 0
        %6062 = vmatprep.subr.bf16.mxu0 0
        %6063 = vmatpush1.bf16.msra.mxu0 0
        %6064 = vmatprep.subr.bf16.mxu0 0
        %6065 = vmatpush1.bf16.msra.mxu0 0
        %6066 = vmatprep.subr.bf16.mxu0 0
        %6067 = vmatpush1.bf16.msra.mxu0 0
        %6068 = vmatprep.subr.bf16.mxu0 0
        %6069 = vmatpush1.bf16.msra.mxu0 0
        %6070 = vmatprep.subr.bf16.mxu0 0
        %6071 = vmatpush1.bf16.msra.mxu0 0
        %6072 = vmatprep.subr.bf16.mxu0 0
        %6073 = vmatpush1.bf16.msra.mxu0 0
        %6074 = vmatprep.subr.bf16.mxu0 0
        %6075 = vmatpush1.bf16.msra.mxu0 0
        %6076 = vmatprep.subr.bf16.mxu0 0
        %6077 = vmatpush1.bf16.msra.mxu0 0
        %6078 = vmatprep.subr.bf16.mxu0 0
        %6079 = vmatpush1.bf16.msra.mxu0 0
        %6080 = vmatprep.subr.bf16.mxu0 0
        %6081 = vmatpush1.bf16.msra.mxu0 0
        %6082 = vmatprep.subr.bf16.mxu0 0
        %6083 = vmatpush1.bf16.msra.mxu0 0
        %6084 = vmatprep.subr.bf16.mxu0 0
        %6085 = vmatpush1.bf16.msra.mxu0 0
        %6086 = vmatprep.mubr.bf16.mxu0 0
        %6087 = vmatmul.mubr.bf16.gmra.mrb[0].mxu0 %v5837
        %v6088 = vpop.f32.mrb[0].mxu0
        %v6089 = vadd.f32 0.0, %v6088
        %v6090 = vpop.f32.mrb[0].mxu0
        %v6091 = vadd.f32 0.0, %v6090
        %v6092 = vpop.f32.mrb[0].mxu0
        %v6093 = vadd.f32 0.0, %v6092
        %v6094 = vpop.f32.mrb[0].mxu0
        %v6095 = vadd.f32 0.0, %v6094
        %6096 = vmatprep.mubr.bf16.mxu0 0
        %6097 = vmatmul.mubr.bf16.gmra.mrb[0].mxu0 %v5840
        %v6098 = vpop.f32.mrb[0].mxu0
        %v6099 = vadd.f32 0.0, %v6098
        %v6100 = vpop.f32.mrb[0].mxu0
        %v6101 = vadd.f32 0.0, %v6100
        %v6102 = vpop.f32.mrb[0].mxu0
        %v6103 = vadd.f32 0.0, %v6102
        %v6104 = vpop.f32.mrb[0].mxu0
        %v6105 = vadd.f32 0.0, %v6104
        %6106 = vdwg.mxu0
        %6107 = vmatprep.subr.bf16.mxu0 %v5778
        %6108 = vmatpush1.bf16.msra.mxu0 %v5777
        %6109 = vmatprep.subr.bf16.mxu0 %v5810
        %6110 = vmatpush1.bf16.msra.mxu0 %v5809
        %6111 = vmatprep.subr.bf16.mxu0 0
        %6112 = vmatpush1.bf16.msra.mxu0 0
        %6113 = vmatprep.subr.bf16.mxu0 0
        %6114 = vmatpush1.bf16.msra.mxu0 0
        %6115 = vmatprep.subr.bf16.mxu0 0
        %6116 = vmatpush1.bf16.msra.mxu0 0
        %6117 = vmatprep.subr.bf16.mxu0 0
        %6118 = vmatpush1.bf16.msra.mxu0 0
        %6119 = vmatprep.subr.bf16.mxu0 0
        %6120 = vmatpush1.bf16.msra.mxu0 0
        %6121 = vmatprep.subr.bf16.mxu0 0
        %6122 = vmatpush1.bf16.msra.mxu0 0
        %6123 = vmatprep.subr.bf16.mxu0 0
        %6124 = vmatpush1.bf16.msra.mxu0 0
        %6125 = vmatprep.subr.bf16.mxu0 0
        %6126 = vmatpush1.bf16.msra.mxu0 0
        %6127 = vmatprep.subr.bf16.mxu0 0
        %6128 = vmatpush1.bf16.msra.mxu0 0
        %6129 = vmatprep.subr.bf16.mxu0 0
        %6130 = vmatpush1.bf16.msra.mxu0 0
        %6131 = vmatprep.subr.bf16.mxu0 0
        %6132 = vmatpush1.bf16.msra.mxu0 0
        %6133 = vmatprep.subr.bf16.mxu0 0
        %6134 = vmatpush1.bf16.msra.mxu0 0
        %6135 = vmatprep.subr.bf16.mxu0 0
        %6136 = vmatpush1.bf16.msra.mxu0 0
        %6137 = vmatprep.subr.bf16.mxu0 0
        %6138 = vmatpush1.bf16.msra.mxu0 0
        %6139 = vmatprep.mubr.bf16.mxu0 0
        %6140 = vmatmul.mubr.bf16.gmra.mrb[0].mxu0 %v5837
        %v6141 = vpop.f32.mrb[0].mxu0
        %v6142 = vadd.f32 0.0, %v6141
        %v6143 = vpop.f32.mrb[0].mxu0
        %v6144 = vadd.f32 0.0, %v6143
        %v6145 = vpop.f32.mrb[0].mxu0
        %v6146 = vadd.f32 0.0, %v6145
        %v6147 = vpop.f32.mrb[0].mxu0
        %v6148 = vadd.f32 0.0, %v6147
        %6149 = vmatprep.mubr.bf16.mxu0 0
        %6150 = vmatmul.mubr.bf16.gmra.mrb[0].mxu0 %v5840
        %v6151 = vpop.f32.mrb[0].mxu0
        %v6152 = vadd.f32 0.0, %v6151
        %v6153 = vpop.f32.mrb[0].mxu0
        %v6154 = vadd.f32 0.0, %v6153
        %v6155 = vpop.f32.mrb[0].mxu0
        %v6156 = vadd.f32 0.0, %v6155
        %v6157 = vpop.f32.mrb[0].mxu0
        %v6158 = vadd.f32 0.0, %v6157
        %6159 = vdwg.mxu0
        %6160 = vmatprep.subr.bf16.mxu0 %v5780
        %6161 = vmatpush1.bf16.msra.mxu0 %v5779
        %6162 = vmatprep.subr.bf16.mxu0 %v5812
        %6163 = vmatpush1.bf16.msra.mxu0 %v5811
        %6164 = vmatprep.subr.bf16.mxu0 0
        %6165 = vmatpush1.bf16.msra.mxu0 0
        %6166 = vmatprep.subr.bf16.mxu0 0
        %6167 = vmatpush1.bf16.msra.mxu0 0
        %6168 = vmatprep.subr.bf16.mxu0 0
        %6169 = vmatpush1.bf16.msra.mxu0 0
        %6170 = vmatprep.subr.bf16.mxu0 0
        %6171 = vmatpush1.bf16.msra.mxu0 0
        %6172 = vmatprep.subr.bf16.mxu0 0
        %6173 = vmatpush1.bf16.msra.mxu0 0
        %6174 = vmatprep.subr.bf16.mxu0 0
        %6175 = vmatpush1.bf16.msra.mxu0 0
        %6176 = vmatprep.subr.bf16.mxu0 0
        %6177 = vmatpush1.bf16.msra.mxu0 0
        %6178 = vmatprep.subr.bf16.mxu0 0
        %6179 = vmatpush1.bf16.msra.mxu0 0
        %6180 = vmatprep.subr.bf16.mxu0 0
        %6181 = vmatpush1.bf16.msra.mxu0 0
        %6182 = vmatprep.subr.bf16.mxu0 0
        %6183 = vmatpush1.bf16.msra.mxu0 0
        %6184 = vmatprep.subr.bf16.mxu0 0
        %6185 = vmatpush1.bf16.msra.mxu0 0
        %6186 = vmatprep.subr.bf16.mxu0 0
        %6187 = vmatpush1.bf16.msra.mxu0 0
        %6188 = vmatprep.subr.bf16.mxu0 0
        %6189 = vmatpush1.bf16.msra.mxu0 0
        %6190 = vmatprep.subr.bf16.mxu0 0
        %6191 = vmatpush1.bf16.msra.mxu0 0
        %6192 = vmatprep.mubr.bf16.mxu0 0
        %6193 = vmatmul.mubr.bf16.gmra.mrb[0].mxu0 %v5837
        %v6194 = vpop.f32.mrb[0].mxu0
        %v6195 = vadd.f32 0.0, %v6194
        %v6196 = vpop.f32.mrb[0].mxu0
        %v6197 = vadd.f32 0.0, %v6196
        %v6198 = vpop.f32.mrb[0].mxu0
        %v6199 = vadd.f32 0.0, %v6198
        %v6200 = vpop.f32.mrb[0].mxu0
        %v6201 = vadd.f32 0.0, %v6200
        %6202 = vmatprep.mubr.bf16.mxu0 0
        %6203 = vmatmul.mubr.bf16.gmra.mrb[0].mxu0 %v5840
        %v6204 = vpop.f32.mrb[0].mxu0
        %v6205 = vadd.f32 0.0, %v6204
        %v6206 = vpop.f32.mrb[0].mxu0
        %v6207 = vadd.f32 0.0, %v6206
        %v6208 = vpop.f32.mrb[0].mxu0
        %v6209 = vadd.f32 0.0, %v6208
        %v6210 = vpop.f32.mrb[0].mxu0
        %v6211 = vadd.f32 0.0, %v6210
        %6212 = vdwg.mxu0
        %6213 = vmatprep.subr.bf16.mxu0 %v5782
        %6214 = vmatpush1.bf16.msra.mxu0 %v5781
        %6215 = vmatprep.subr.bf16.mxu0 %v5814
        %6216 = vmatpush1.bf16.msra.mxu0 %v5813
        %6217 = vmatprep.subr.bf16.mxu0 0
        %6218 = vmatpush1.bf16.msra.mxu0 0
        %6219 = vmatprep.subr.bf16.mxu0 0
        %6220 = vmatpush1.bf16.msra.mxu0 0
        %6221 = vmatprep.subr.bf16.mxu0 0
        %6222 = vmatpush1.bf16.msra.mxu0 0
        %6223 = vmatprep.subr.bf16.mxu0 0
        %6224 = vmatpush1.bf16.msra.mxu0 0
        %6225 = vmatprep.subr.bf16.mxu0 0
        %6226 = vmatpush1.bf16.msra.mxu0 0
        %6227 = vmatprep.subr.bf16.mxu0 0
        %6228 = vmatpush1.bf16.msra.mxu0 0
        %6229 = vmatprep.subr.bf16.mxu0 0
        %6230 = vmatpush1.bf16.msra.mxu0 0
        %6231 = vmatprep.subr.bf16.mxu0 0
        %6232 = vmatpush1.bf16.msra.mxu0 0
        %6233 = vmatprep.subr.bf16.mxu0 0
        %6234 = vmatpush1.bf16.msra.mxu0 0
        %6235 = vmatprep.subr.bf16.mxu0 0
        %6236 = vmatpush1.bf16.msra.mxu0 0
        %6237 = vmatprep.subr.bf16.mxu0 0
        %6238 = vmatpush1.bf16.msra.mxu0 0
        %6239 = vmatprep.subr.bf16.mxu0 0
        %6240 = vmatpush1.bf16.msra.mxu0 0
        %6241 = vmatprep.subr.bf16.mxu0 0
        %6242 = vmatpush1.bf16.msra.mxu0 0
        %6243 = vmatprep.subr.bf16.mxu0 0
        %6244 = vmatpush1.bf16.msra.mxu0 0
        %6245 = vmatprep.mubr.bf16.mxu0 0
        %6246 = vmatmul.mubr.bf16.gmra.mrb[0].mxu0 %v5837
        %v6247 = vpop.f32.mrb[0].mxu0
        %v6248 = vadd.f32 0.0, %v6247
        %v6249 = vpop.f32.mrb[0].mxu0
        %v6250 = vadd.f32 0.0, %v6249
        %v6251 = vpop.f32.mrb[0].mxu0
        %v6252 = vadd.f32 0.0, %v6251
        %v6253 = vpop.f32.mrb[0].mxu0
        %v6254 = vadd.f32 0.0, %v6253
        %6255 = vmatprep.mubr.bf16.mxu0 0
        %6256 = vmatmul.mubr.bf16.gmra.mrb[0].mxu0 %v5840
        %v6257 = vpop.f32.mrb[0].mxu0
        %v6258 = vadd.f32 0.0, %v6257
        %v6259 = vpop.f32.mrb[0].mxu0
        %v6260 = vadd.f32 0.0, %v6259
        %v6261 = vpop.f32.mrb[0].mxu0
        %v6262 = vadd.f32 0.0, %v6261
        %v6263 = vpop.f32.mrb[0].mxu0
        %v6264 = vadd.f32 0.0, %v6263
        %6265 = vdwg.mxu0
        %6266 = vmatprep.subr.bf16.mxu0 %v5784
        %6267 = vmatpush1.bf16.msra.mxu0 %v5783
        %6268 = vmatprep.subr.bf16.mxu0 %v5816
        %6269 = vmatpush1.bf16.msra.mxu0 %v5815
        %6270 = vmatprep.subr.bf16.mxu0 0
        %6271 = vmatpush1.bf16.msra.mxu0 0
        %6272 = vmatprep.subr.bf16.mxu0 0
        %6273 = vmatpush1.bf16.msra.mxu0 0
        %6274 = vmatprep.subr.bf16.mxu0 0
        %6275 = vmatpush1.bf16.msra.mxu0 0
        %6276 = vmatprep.subr.bf16.mxu0 0
        %6277 = vmatpush1.bf16.msra.mxu0 0
        %6278 = vmatprep.subr.bf16.mxu0 0
        %6279 = vmatpush1.bf16.msra.mxu0 0
        %6280 = vmatprep.subr.bf16.mxu0 0
        %6281 = vmatpush1.bf16.msra.mxu0 0
        %6282 = vmatprep.subr.bf16.mxu0 0
        %6283 = vmatpush1.bf16.msra.mxu0 0
        %6284 = vmatprep.subr.bf16.mxu0 0
        %6285 = vmatpush1.bf16.msra.mxu0 0
        %6286 = vmatprep.subr.bf16.mxu0 0
        %6287 = vmatpush1.bf16.msra.mxu0 0
        %6288 = vmatprep.subr.bf16.mxu0 0
        %6289 = vmatpush1.bf16.msra.mxu0 0
        %6290 = vmatprep.subr.bf16.mxu0 0
        %6291 = vmatpush1.bf16.msra.mxu0 0
        %6292 = vmatprep.subr.bf16.mxu0 0
        %6293 = vmatpush1.bf16.msra.mxu0 0
        %6294 = vmatprep.subr.bf16.mxu0 0
        %6295 = vmatpush1.bf16.msra.mxu0 0
        %6296 = vmatprep.subr.bf16.mxu0 0
        %6297 = vmatpush1.bf16.msra.mxu0 0
        %6298 = vmatprep.mubr.bf16.mxu0 0
        %6299 = vmatmul.mubr.bf16.gmra.mrb[0].mxu0 %v5837
        %v6300 = vpop.f32.mrb[0].mxu0
        %v6301 = vadd.f32 0.0, %v6300
        %v6302 = vpop.f32.mrb[0].mxu0
        %v6303 = vadd.f32 0.0, %v6302
        %v6304 = vpop.f32.mrb[0].mxu0
        %v6305 = vadd.f32 0.0, %v6304
        %v6306 = vpop.f32.mrb[0].mxu0
        %v6307 = vadd.f32 0.0, %v6306
        %6308 = vmatprep.mubr.bf16.mxu0 0
        %6309 = vmatmul.mubr.bf16.gmra.mrb[0].mxu0 %v5840
        %v6310 = vpop.f32.mrb[0].mxu0
        %v6311 = vadd.f32 0.0, %v6310
        %v6312 = vpop.f32.mrb[0].mxu0
        %v6313 = vadd.f32 0.0, %v6312
        %v6314 = vpop.f32.mrb[0].mxu0
        %v6315 = vadd.f32 0.0, %v6314
        %v6316 = vpop.f32.mrb[0].mxu0
        %v6317 = vadd.f32 0.0, %v6316
        %6318 = vdwg.mxu0
        %6319 = vmatprep.subr.bf16.mxu0 %v5786
        %6320 = vmatpush1.bf16.msra.mxu0 %v5785
        %6321 = vmatprep.subr.bf16.mxu0 %v5818
        %6322 = vmatpush1.bf16.msra.mxu0 %v5817
        %6323 = vmatprep.subr.bf16.mxu0 0
        %6324 = vmatpush1.bf16.msra.mxu0 0
        %6325 = vmatprep.subr.bf16.mxu0 0
        %6326 = vmatpush1.bf16.msra.mxu0 0
        %6327 = vmatprep.subr.bf16.mxu0 0
        %6328 = vmatpush1.bf16.msra.mxu0 0
        %6329 = vmatprep.subr.bf16.mxu0 0
        %6330 = vmatpush1.bf16.msra.mxu0 0
        %6331 = vmatprep.subr.bf16.mxu0 0
        %6332 = vmatpush1.bf16.msra.mxu0 0
        %6333 = vmatprep.subr.bf16.mxu0 0
        %6334 = vmatpush1.bf16.msra.mxu0 0
        %6335 = vmatprep.subr.bf16.mxu0 0
        %6336 = vmatpush1.bf16.msra.mxu0 0
        %6337 = vmatprep.subr.bf16.mxu0 0
        %6338 = vmatpush1.bf16.msra.mxu0 0
        %6339 = vmatprep.subr.bf16.mxu0 0
        %6340 = vmatpush1.bf16.msra.mxu0 0
        %6341 = vmatprep.subr.bf16.mxu0 0
        %6342 = vmatpush1.bf16.msra.mxu0 0
        %6343 = vmatprep.subr.bf16.mxu0 0
        %6344 = vmatpush1.bf16.msra.mxu0 0
        %6345 = vmatprep.subr.bf16.mxu0 0
        %6346 = vmatpush1.bf16.msra.mxu0 0
        %6347 = vmatprep.subr.bf16.mxu0 0
        %6348 = vmatpush1.bf16.msra.mxu0 0
        %6349 = vmatprep.subr.bf16.mxu0 0
        %6350 = vmatpush1.bf16.msra.mxu0 0
        %6351 = vmatprep.mubr.bf16.mxu0 0
        %6352 = vmatmul.mubr.bf16.gmra.mrb[0].mxu0 %v5837
        %v6353 = vpop.f32.mrb[0].mxu0
        %v6354 = vadd.f32 0.0, %v6353
        %v6355 = vpop.f32.mrb[0].mxu0
        %v6356 = vadd.f32 0.0, %v6355
        %v6357 = vpop.f32.mrb[0].mxu0
        %v6358 = vadd.f32 0.0, %v6357
        %v6359 = vpop.f32.mrb[0].mxu0
        %v6360 = vadd.f32 0.0, %v6359
        %6361 = vmatprep.mubr.bf16.mxu0 0
        %6362 = vmatmul.mubr.bf16.gmra.mrb[0].mxu0 %v5840
        %v6363 = vpop.f32.mrb[0].mxu0
        %v6364 = vadd.f32 0.0, %v6363
        %v6365 = vpop.f32.mrb[0].mxu0
        %v6366 = vadd.f32 0.0, %v6365
        %v6367 = vpop.f32.mrb[0].mxu0
        %v6368 = vadd.f32 0.0, %v6367
        %v6369 = vpop.f32.mrb[0].mxu0
        %v6370 = vadd.f32 0.0, %v6369
        %6371 = vdwg.mxu0
        %6372 = vmatprep.subr.bf16.mxu0 %v5788
        %6373 = vmatpush1.bf16.msra.mxu0 %v5787
        %6374 = vmatprep.subr.bf16.mxu0 %v5820
        %6375 = vmatpush1.bf16.msra.mxu0 %v5819
        %6376 = vmatprep.subr.bf16.mxu0 0
        %6377 = vmatpush1.bf16.msra.mxu0 0
        %6378 = vmatprep.subr.bf16.mxu0 0
        %6379 = vmatpush1.bf16.msra.mxu0 0
        %6380 = vmatprep.subr.bf16.mxu0 0
        %6381 = vmatpush1.bf16.msra.mxu0 0
        %6382 = vmatprep.subr.bf16.mxu0 0
        %6383 = vmatpush1.bf16.msra.mxu0 0
        %6384 = vmatprep.subr.bf16.mxu0 0
        %6385 = vmatpush1.bf16.msra.mxu0 0
        %6386 = vmatprep.subr.bf16.mxu0 0
        %6387 = vmatpush1.bf16.msra.mxu0 0
        %6388 = vmatprep.subr.bf16.mxu0 0
        %6389 = vmatpush1.bf16.msra.mxu0 0
        %6390 = vmatprep.subr.bf16.mxu0 0
        %6391 = vmatpush1.bf16.msra.mxu0 0
        %6392 = vmatprep.subr.bf16.mxu0 0
        %6393 = vmatpush1.bf16.msra.mxu0 0
        %6394 = vmatprep.subr.bf16.mxu0 0
        %6395 = vmatpush1.bf16.msra.mxu0 0
        %6396 = vmatprep.subr.bf16.mxu0 0
        %6397 = vmatpush1.bf16.msra.mxu0 0
        %6398 = vmatprep.subr.bf16.mxu0 0
        %6399 = vmatpush1.bf16.msra.mxu0 0
        %6400 = vmatprep.subr.bf16.mxu0 0
        %6401 = vmatpush1.bf16.msra.mxu0 0
        %6402 = vmatprep.subr.bf16.mxu0 0
        %6403 = vmatpush1.bf16.msra.mxu0 0
        %6404 = vmatprep.mubr.bf16.mxu0 0
        %6405 = vmatmul.mubr.bf16.gmra.mrb[0].mxu0 %v5837
        %v6406 = vpop.f32.mrb[0].mxu0
        %v6407 = vadd.f32 0.0, %v6406
        %v6408 = vpop.f32.mrb[0].mxu0
        %v6409 = vadd.f32 0.0, %v6408
        %v6410 = vpop.f32.mrb[0].mxu0
        %v6411 = vadd.f32 0.0, %v6410
        %v6412 = vpop.f32.mrb[0].mxu0
        %v6413 = vadd.f32 0.0, %v6412
        %6414 = vmatprep.mubr.bf16.mxu0 0
        %6415 = vmatmul.mubr.bf16.gmra.mrb[0].mxu0 %v5840
        %v6416 = vpop.f32.mrb[0].mxu0
        %v6417 = vadd.f32 0.0, %v6416
        %v6418 = vpop.f32.mrb[0].mxu0
        %v6419 = vadd.f32 0.0, %v6418
        %v6420 = vpop.f32.mrb[0].mxu0
        %v6421 = vadd.f32 0.0, %v6420
        %v6422 = vpop.f32.mrb[0].mxu0
        %v6423 = vadd.f32 0.0, %v6422
        %6424 = vdwg.mxu0
        %6425 = vmatprep.subr.bf16.mxu0 %v5790
        %6426 = vmatpush1.bf16.msra.mxu0 %v5789
        %6427 = vmatprep.subr.bf16.mxu0 %v5822
        %6428 = vmatpush1.bf16.msra.mxu0 %v5821
        %6429 = vmatprep.subr.bf16.mxu0 0
        %6430 = vmatpush1.bf16.msra.mxu0 0
        %6431 = vmatprep.subr.bf16.mxu0 0
        %6432 = vmatpush1.bf16.msra.mxu0 0
        %6433 = vmatprep.subr.bf16.mxu0 0
        %6434 = vmatpush1.bf16.msra.mxu0 0
        %6435 = vmatprep.subr.bf16.mxu0 0
        %6436 = vmatpush1.bf16.msra.mxu0 0
        %6437 = vmatprep.subr.bf16.mxu0 0
        %6438 = vmatpush1.bf16.msra.mxu0 0
        %6439 = vmatprep.subr.bf16.mxu0 0
        %6440 = vmatpush1.bf16.msra.mxu0 0
        %6441 = vmatprep.subr.bf16.mxu0 0
        %6442 = vmatpush1.bf16.msra.mxu0 0
        %6443 = vmatprep.subr.bf16.mxu0 0
        %6444 = vmatpush1.bf16.msra.mxu0 0
        %6445 = vmatprep.subr.bf16.mxu0 0
        %6446 = vmatpush1.bf16.msra.mxu0 0
        %6447 = vmatprep.subr.bf16.mxu0 0
        %6448 = vmatpush1.bf16.msra.mxu0 0
        %6449 = vmatprep.subr.bf16.mxu0 0
        %6450 = vmatpush1.bf16.msra.mxu0 0
        %6451 = vmatprep.subr.bf16.mxu0 0
        %6452 = vmatpush1.bf16.msra.mxu0 0
        %6453 = vmatprep.subr.bf16.mxu0 0
        %6454 = vmatpush1.bf16.msra.mxu0 0
        %6455 = vmatprep.subr.bf16.mxu0 0
        %6456 = vmatpush1.bf16.msra.mxu0 0
        %6457 = vmatprep.mubr.bf16.mxu0 0
        %6458 = vmatmul.mubr.bf16.gmra.mrb[0].mxu0 %v5837
        %v6459 = vpop.f32.mrb[0].mxu0
        %v6460 = vadd.f32 0.0, %v6459
        %v6461 = vpop.f32.mrb[0].mxu0
        %v6462 = vadd.f32 0.0, %v6461
        %v6463 = vpop.f32.mrb[0].mxu0
        %v6464 = vadd.f32 0.0, %v6463
        %v6465 = vpop.f32.mrb[0].mxu0
        %v6466 = vadd.f32 0.0, %v6465
        %6467 = vmatprep.mubr.bf16.mxu0 0
        %6468 = vmatmul.mubr.bf16.gmra.mrb[0].mxu0 %v5840
        %v6469 = vpop.f32.mrb[0].mxu0
        %v6470 = vadd.f32 0.0, %v6469
        %v6471 = vpop.f32.mrb[0].mxu0
        %v6472 = vadd.f32 0.0, %v6471
        %v6473 = vpop.f32.mrb[0].mxu0
        %v6474 = vadd.f32 0.0, %v6473
        %v6475 = vpop.f32.mrb[0].mxu0
        %v6476 = vadd.f32 0.0, %v6475
        %6477 = vdwg.mxu0
        %6478 = vmatprep.subr.bf16.mxu0 %v5792
        %6479 = vmatpush1.bf16.msra.mxu0 %v5791
        %6480 = vmatprep.subr.bf16.mxu0 %v5824
        %6481 = vmatpush1.bf16.msra.mxu0 %v5823
        %6482 = vmatprep.subr.bf16.mxu0 0
        %6483 = vmatpush1.bf16.msra.mxu0 0
        %6484 = vmatprep.subr.bf16.mxu0 0
        %6485 = vmatpush1.bf16.msra.mxu0 0
        %6486 = vmatprep.subr.bf16.mxu0 0
        %6487 = vmatpush1.bf16.msra.mxu0 0
        %6488 = vmatprep.subr.bf16.mxu0 0
        %6489 = vmatpush1.bf16.msra.mxu0 0
        %6490 = vmatprep.subr.bf16.mxu0 0
        %6491 = vmatpush1.bf16.msra.mxu0 0
        %6492 = vmatprep.subr.bf16.mxu0 0
        %6493 = vmatpush1.bf16.msra.mxu0 0
        %6494 = vmatprep.subr.bf16.mxu0 0
        %6495 = vmatpush1.bf16.msra.mxu0 0
        %6496 = vmatprep.subr.bf16.mxu0 0
        %6497 = vmatpush1.bf16.msra.mxu0 0
        %6498 = vmatprep.subr.bf16.mxu0 0
        %6499 = vmatpush1.bf16.msra.mxu0 0
        %6500 = vmatprep.subr.bf16.mxu0 0
        %6501 = vmatpush1.bf16.msra.mxu0 0
        %6502 = vmatprep.subr.bf16.mxu0 0
        %6503 = vmatpush1.bf16.msra.mxu0 0
        %6504 = vmatprep.subr.bf16.mxu0 0
        %6505 = vmatpush1.bf16.msra.mxu0 0
        %6506 = vmatprep.subr.bf16.mxu0 0
        %6507 = vmatpush1.bf16.msra.mxu0 0
        %6508 = vmatprep.subr.bf16.mxu0 0
        %6509 = vmatpush1.bf16.msra.mxu0 0
        %6510 = vmatprep.mubr.bf16.mxu0 0
        %6511 = vmatmul.mubr.bf16.gmra.mrb[0].mxu0 %v5837
        %v6512 = vpop.f32.mrb[0].mxu0
        %v6513 = vadd.f32 0.0, %v6512
        %v6514 = vpop.f32.mrb[0].mxu0
        %v6515 = vadd.f32 0.0, %v6514
        %v6516 = vpop.f32.mrb[0].mxu0
        %v6517 = vadd.f32 0.0, %v6516
        %v6518 = vpop.f32.mrb[0].mxu0
        %v6519 = vadd.f32 0.0, %v6518
        %6520 = vmatprep.mubr.bf16.mxu0 0
        %6521 = vmatmul.mubr.bf16.gmra.mrb[0].mxu0 %v5840
        %v6522 = vpop.f32.mrb[0].mxu0
        %v6523 = vadd.f32 0.0, %v6522
        %v6524 = vpop.f32.mrb[0].mxu0
        %v6525 = vadd.f32 0.0, %v6524
        %v6526 = vpop.f32.mrb[0].mxu0
        %v6527 = vadd.f32 0.0, %v6526
        %v6528 = vpop.f32.mrb[0].mxu0
        %v6529 = vadd.f32 0.0, %v6528
        %6530 = vdwg.mxu0
        %6531 = vmatprep.subr.bf16.mxu0 %v5794
        %6532 = vmatpush1.bf16.msra.mxu0 %v5793
        %6533 = vmatprep.subr.bf16.mxu0 %v5826
        %6534 = vmatpush1.bf16.msra.mxu0 %v5825
        %6535 = vmatprep.subr.bf16.mxu0 0
        %6536 = vmatpush1.bf16.msra.mxu0 0
        %6537 = vmatprep.subr.bf16.mxu0 0
        %6538 = vmatpush1.bf16.msra.mxu0 0
        %6539 = vmatprep.subr.bf16.mxu0 0
        %6540 = vmatpush1.bf16.msra.mxu0 0
        %6541 = vmatprep.subr.bf16.mxu0 0
        %6542 = vmatpush1.bf16.msra.mxu0 0
        %6543 = vmatprep.subr.bf16.mxu0 0
        %6544 = vmatpush1.bf16.msra.mxu0 0
        %6545 = vmatprep.subr.bf16.mxu0 0
        %6546 = vmatpush1.bf16.msra.mxu0 0
        %6547 = vmatprep.subr.bf16.mxu0 0
        %6548 = vmatpush1.bf16.msra.mxu0 0
        %6549 = vmatprep.subr.bf16.mxu0 0
        %6550 = vmatpush1.bf16.msra.mxu0 0
        %6551 = vmatprep.subr.bf16.mxu0 0
        %6552 = vmatpush1.bf16.msra.mxu0 0
        %6553 = vmatprep.subr.bf16.mxu0 0
        %6554 = vmatpush1.bf16.msra.mxu0 0
        %6555 = vmatprep.subr.bf16.mxu0 0
        %6556 = vmatpush1.bf16.msra.mxu0 0
        %6557 = vmatprep.subr.bf16.mxu0 0
        %6558 = vmatpush1.bf16.msra.mxu0 0
        %6559 = vmatprep.subr.bf16.mxu0 0
        %6560 = vmatpush1.bf16.msra.mxu0 0
        %6561 = vmatprep.subr.bf16.mxu0 0
        %6562 = vmatpush1.bf16.msra.mxu0 0
        %6563 = vmatprep.mubr.bf16.mxu0 0
        %6564 = vmatmul.mubr.bf16.gmra.mrb[0].mxu0 %v5837
        %v6565 = vpop.f32.mrb[0].mxu0
        %v6566 = vadd.f32 0.0, %v6565
        %v6567 = vpop.f32.mrb[0].mxu0
        %v6568 = vadd.f32 0.0, %v6567
        %v6569 = vpop.f32.mrb[0].mxu0
        %v6570 = vadd.f32 0.0, %v6569
        %v6571 = vpop.f32.mrb[0].mxu0
        %v6572 = vadd.f32 0.0, %v6571
        %6573 = vmatprep.mubr.bf16.mxu0 0
        %6574 = vmatmul.mubr.bf16.gmra.mrb[0].mxu0 %v5840
        %v6575 = vpop.f32.mrb[0].mxu0
        %v6576 = vadd.f32 0.0, %v6575
        %v6577 = vpop.f32.mrb[0].mxu0
        %v6578 = vadd.f32 0.0, %v6577
        %v6579 = vpop.f32.mrb[0].mxu0
        %v6580 = vadd.f32 0.0, %v6579
        %v6581 = vpop.f32.mrb[0].mxu0
        %v6582 = vadd.f32 0.0, %v6581
        %6583 = vdwg.mxu0
        %6584 = vmatprep.subr.bf16.mxu0 %v5796
        %6585 = vmatpush1.bf16.msra.mxu0 %v5795
        %6586 = vmatprep.subr.bf16.mxu0 %v5828
        %6587 = vmatpush1.bf16.msra.mxu0 %v5827
        %6588 = vmatprep.subr.bf16.mxu0 0
        %6589 = vmatpush1.bf16.msra.mxu0 0
        %6590 = vmatprep.subr.bf16.mxu0 0
        %6591 = vmatpush1.bf16.msra.mxu0 0
        %6592 = vmatprep.subr.bf16.mxu0 0
        %6593 = vmatpush1.bf16.msra.mxu0 0
        %6594 = vmatprep.subr.bf16.mxu0 0
        %6595 = vmatpush1.bf16.msra.mxu0 0
        %6596 = vmatprep.subr.bf16.mxu0 0
        %6597 = vmatpush1.bf16.msra.mxu0 0
        %6598 = vmatprep.subr.bf16.mxu0 0
        %6599 = vmatpush1.bf16.msra.mxu0 0
        %6600 = vmatprep.subr.bf16.mxu0 0
        %6601 = vmatpush1.bf16.msra.mxu0 0
        %6602 = vmatprep.subr.bf16.mxu0 0
        %6603 = vmatpush1.bf16.msra.mxu0 0
        %6604 = vmatprep.subr.bf16.mxu0 0
        %6605 = vmatpush1.bf16.msra.mxu0 0
        %6606 = vmatprep.subr.bf16.mxu0 0
        %6607 = vmatpush1.bf16.msra.mxu0 0
        %6608 = vmatprep.subr.bf16.mxu0 0
        %6609 = vmatpush1.bf16.msra.mxu0 0
        %6610 = vmatprep.subr.bf16.mxu0 0
        %6611 = vmatpush1.bf16.msra.mxu0 0
        %6612 = vmatprep.subr.bf16.mxu0 0
        %6613 = vmatpush1.bf16.msra.mxu0 0
        %6614 = vmatprep.subr.bf16.mxu0 0
        %6615 = vmatpush1.bf16.msra.mxu0 0
        %6616 = vmatprep.mubr.bf16.mxu0 0
        %6617 = vmatmul.mubr.bf16.gmra.mrb[0].mxu0 %v5837
        %v6618 = vpop.f32.mrb[0].mxu0
        %v6619 = vadd.f32 0.0, %v6618
        %v6620 = vpop.f32.mrb[0].mxu0
        %v6621 = vadd.f32 0.0, %v6620
        %v6622 = vpop.f32.mrb[0].mxu0
        %v6623 = vadd.f32 0.0, %v6622
        %v6624 = vpop.f32.mrb[0].mxu0
        %v6625 = vadd.f32 0.0, %v6624
        %6626 = vmatprep.mubr.bf16.mxu0 0
        %6627 = vmatmul.mubr.bf16.gmra.mrb[0].mxu0 %v5840
        %v6628 = vpop.f32.mrb[0].mxu0
        %v6629 = vadd.f32 0.0, %v6628
        %v6630 = vpop.f32.mrb[0].mxu0
        %v6631 = vadd.f32 0.0, %v6630
        %v6632 = vpop.f32.mrb[0].mxu0
        %v6633 = vadd.f32 0.0, %v6632
        %v6634 = vpop.f32.mrb[0].mxu0
        %v6635 = vadd.f32 0.0, %v6634
        %6636 = vdwg.mxu0
        %6637 = vmatprep.subr.bf16.mxu0 %v5798
        %6638 = vmatpush1.bf16.msra.mxu0 %v5797
        %6639 = vmatprep.subr.bf16.mxu0 %v5830
        %6640 = vmatpush1.bf16.msra.mxu0 %v5829
        %6641 = vmatprep.subr.bf16.mxu0 0
        %6642 = vmatpush1.bf16.msra.mxu0 0
        %6643 = vmatprep.subr.bf16.mxu0 0
        %6644 = vmatpush1.bf16.msra.mxu0 0
        %6645 = vmatprep.subr.bf16.mxu0 0
        %6646 = vmatpush1.bf16.msra.mxu0 0
        %6647 = vmatprep.subr.bf16.mxu0 0
        %6648 = vmatpush1.bf16.msra.mxu0 0
        %6649 = vmatprep.subr.bf16.mxu0 0
        %6650 = vmatpush1.bf16.msra.mxu0 0
        %6651 = vmatprep.subr.bf16.mxu0 0
        %6652 = vmatpush1.bf16.msra.mxu0 0
        %6653 = vmatprep.subr.bf16.mxu0 0
        %6654 = vmatpush1.bf16.msra.mxu0 0
        %6655 = vmatprep.subr.bf16.mxu0 0
        %6656 = vmatpush1.bf16.msra.mxu0 0
        %6657 = vmatprep.subr.bf16.mxu0 0
        %6658 = vmatpush1.bf16.msra.mxu0 0
        %6659 = vmatprep.subr.bf16.mxu0 0
        %6660 = vmatpush1.bf16.msra.mxu0 0
        %6661 = vmatprep.subr.bf16.mxu0 0
        %6662 = vmatpush1.bf16.msra.mxu0 0
        %6663 = vmatprep.subr.bf16.mxu0 0
        %6664 = vmatpush1.bf16.msra.mxu0 0
        %6665 = vmatprep.subr.bf16.mxu0 0
        %6666 = vmatpush1.bf16.msra.mxu0 0
        %6667 = vmatprep.subr.bf16.mxu0 0
        %6668 = vmatpush1.bf16.msra.mxu0 0
        %6669 = vmatprep.mubr.bf16.mxu0 0
        %6670 = vmatmul.mubr.bf16.gmra.mrb[0].mxu0 %v5837
        %v6671 = vpop.f32.mrb[0].mxu0
        %v6672 = vadd.f32 0.0, %v6671
        %v6673 = vpop.f32.mrb[0].mxu0
        %v6674 = vadd.f32 0.0, %v6673
        %v6675 = vpop.f32.mrb[0].mxu0
        %v6676 = vadd.f32 0.0, %v6675
        %v6677 = vpop.f32.mrb[0].mxu0
        %v6678 = vadd.f32 0.0, %v6677
        %6679 = vmatprep.mubr.bf16.mxu0 0
        %6680 = vmatmul.mubr.bf16.gmra.mrb[0].mxu0 %v5840
        %v6681 = vpop.f32.mrb[0].mxu0
        %v6682 = vadd.f32 0.0, %v6681
        %v6683 = vpop.f32.mrb[0].mxu0
        %v6684 = vadd.f32 0.0, %v6683
        %v6685 = vpop.f32.mrb[0].mxu0
        %v6686 = vadd.f32 0.0, %v6685
        %v6687 = vpop.f32.mrb[0].mxu0
        %v6688 = vadd.f32 0.0, %v6687
        %6689 = vdwg.mxu0
        %6690 = vrot.lane.b32.xlu0 %v4360, 125
        %v6691 = vpop.permute.xlu0 %6690
        %6692 = vrot.lane.b32.xlu0 %v4361, 125
        %v6693 = vpop.permute.xlu0 %6692
        %vm6694 = vcmask 97280
        %v6696 = vsel %vm6694, %v6691, 0
        %v6699 = vsel %vm6694, %v6693, 0
        %v6702 = vsel %vm5670, %v5735, 0
        %v6705 = vsel %vm5670, %v5736, 0
        %v6708 = vsel %vm5670, %v5737, 0
        %v6711 = vsel %vm5670, %v5738, 0
        %v6714 = vsel %vm5670, %v5739, 0
        %v6717 = vsel %vm5670, %v5740, 0
        %v6720 = vsel %vm5670, %v5741, 0
        %v6723 = vsel %vm5670, %v5742, 0
        %v6726 = vsel %vm5670, %v5743, 0
        %v6729 = vsel %vm5670, %v5744, 0
        %v6732 = vsel %vm5670, %v5745, 0
        %v6735 = vsel %vm5670, %v5746, 0
        %v6738 = vsel %vm5670, %v5747, 0
        %v6741 = vsel %vm5670, %v5748, 0
        %v6744 = vsel %vm5670, %v5749, 0
        %v6747 = vsel %vm5670, %v5750, 0
        %v6750 = vsel %vm5670, %v5751, 0
        %v6753 = vsel %vm5670, %v5752, 0
        %v6756 = vsel %vm5670, %v5753, 0
        %v6759 = vsel %vm5670, %v5754, 0
        %v6762 = vsel %vm5670, %v5755, 0
        %v6765 = vsel %vm5670, %v5756, 0
        %v6768 = vsel %vm5670, %v5757, 0
        %v6771 = vsel %vm5670, %v5758, 0
        %v6774 = vsel %vm5670, %v5759, 0
        %v6777 = vsel %vm5670, %v5760, 0
        %v6780 = vsel %vm5670, %v5761, 0
        %v6783 = vsel %vm5670, %v5762, 0
        %v6786 = vsel %vm5670, %v5763, 0
        %v6789 = vsel %vm5670, %v5764, 0
        %v6792 = vsel %vm5670, %v5765, 0
        %v6795 = vsel %vm5670, %v5766, 0
        %6797 = vmatprep.subr.bf16.mxu0 %v6705
        %6798 = vmatpush1.bf16.msra.mxu0 %v6702
        %6799 = vmatprep.subr.bf16.mxu0 0
        %6800 = vmatpush1.bf16.msra.mxu0 0
        %6801 = vmatprep.subr.bf16.mxu0 0
        %6802 = vmatpush1.bf16.msra.mxu0 0
        %6803 = vmatprep.subr.bf16.mxu0 0
        %6804 = vmatpush1.bf16.msra.mxu0 0
        %6805 = vmatprep.subr.bf16.mxu0 0
        %6806 = vmatpush1.bf16.msra.mxu0 0
        %6807 = vmatprep.subr.bf16.mxu0 0
        %6808 = vmatpush1.bf16.msra.mxu0 0
        %6809 = vmatprep.subr.bf16.mxu0 0
        %6810 = vmatpush1.bf16.msra.mxu0 0
        %6811 = vmatprep.subr.bf16.mxu0 0
        %6812 = vmatpush1.bf16.msra.mxu0 0
        %6813 = vmatprep.subr.bf16.mxu0 0
        %6814 = vmatpush1.bf16.msra.mxu0 0
        %6815 = vmatprep.subr.bf16.mxu0 0
        %6816 = vmatpush1.bf16.msra.mxu0 0
        %6817 = vmatprep.subr.bf16.mxu0 0
        %6818 = vmatpush1.bf16.msra.mxu0 0
        %6819 = vmatprep.subr.bf16.mxu0 0
        %6820 = vmatpush1.bf16.msra.mxu0 0
        %6821 = vmatprep.subr.bf16.mxu0 0
        %6822 = vmatpush1.bf16.msra.mxu0 0
        %6823 = vmatprep.subr.bf16.mxu0 0
        %6824 = vmatpush1.bf16.msra.mxu0 0
        %6825 = vmatprep.subr.bf16.mxu0 0
        %6826 = vmatpush1.bf16.msra.mxu0 0
        %6827 = vmatprep.subr.bf16.mxu0 0
        %6828 = vmatpush1.bf16.msra.mxu0 0
        %6829 = vmatprep.mubr.bf16.mxu0 0
        %6830 = vmatmul.mubr.bf16.gmra.mrb[0].mxu0 %v6696
        %v6831 = vpop.f32.mrb[0].mxu0
        %v6832 = vadd.f32 %v5877, %v6831
        %v6833 = vpop.f32.mrb[0].mxu0
        %v6834 = vadd.f32 %v5879, %v6833
        %v6835 = vpop.f32.mrb[0].mxu0
        %v6836 = vadd.f32 %v5881, %v6835
        %v6837 = vpop.f32.mrb[0].mxu0
        %v6838 = vadd.f32 %v5883, %v6837
        %6839 = vmatprep.mubr.bf16.mxu0 0
        %6840 = vmatmul.mubr.bf16.gmra.mrb[0].mxu0 %v6699
        %v6841 = vpop.f32.mrb[0].mxu0
        %v6842 = vadd.f32 %v5887, %v6841
        %v6843 = vpop.f32.mrb[0].mxu0
        %v6844 = vadd.f32 %v5889, %v6843
        %v6845 = vpop.f32.mrb[0].mxu0
        %v6846 = vadd.f32 %v5891, %v6845
        %v6847 = vpop.f32.mrb[0].mxu0
        %v6848 = vadd.f32 %v5893, %v6847
        %6849 = vdwg.mxu0
        %6850 = vmatprep.subr.bf16.mxu0 %v6711
        %6851 = vmatpush1.bf16.msra.mxu0 %v6708
        %6852 = vmatprep.subr.bf16.mxu0 0
        %6853 = vmatpush1.bf16.msra.mxu0 0
        %6854 = vmatprep.subr.bf16.mxu0 0
        %6855 = vmatpush1.bf16.msra.mxu0 0
        %6856 = vmatprep.subr.bf16.mxu0 0
        %6857 = vmatpush1.bf16.msra.mxu0 0
        %6858 = vmatprep.subr.bf16.mxu0 0
        %6859 = vmatpush1.bf16.msra.mxu0 0
        %6860 = vmatprep.subr.bf16.mxu0 0
        %6861 = vmatpush1.bf16.msra.mxu0 0
        %6862 = vmatprep.subr.bf16.mxu0 0
        %6863 = vmatpush1.bf16.msra.mxu0 0
        %6864 = vmatprep.subr.bf16.mxu0 0
        %6865 = vmatpush1.bf16.msra.mxu0 0
        %6866 = vmatprep.subr.bf16.mxu0 0
        %6867 = vmatpush1.bf16.msra.mxu0 0
        %6868 = vmatprep.subr.bf16.mxu0 0
        %6869 = vmatpush1.bf16.msra.mxu0 0
        %6870 = vmatprep.subr.bf16.mxu0 0
        %6871 = vmatpush1.bf16.msra.mxu0 0
        %6872 = vmatprep.subr.bf16.mxu0 0
        %6873 = vmatpush1.bf16.msra.mxu0 0
        %6874 = vmatprep.subr.bf16.mxu0 0
        %6875 = vmatpush1.bf16.msra.mxu0 0
        %6876 = vmatprep.subr.bf16.mxu0 0
        %6877 = vmatpush1.bf16.msra.mxu0 0
        %6878 = vmatprep.subr.bf16.mxu0 0
        %6879 = vmatpush1.bf16.msra.mxu0 0
        %6880 = vmatprep.subr.bf16.mxu0 0
        %6881 = vmatpush1.bf16.msra.mxu0 0
        %6882 = vmatprep.mubr.bf16.mxu0 0
        %6883 = vmatmul.mubr.bf16.gmra.mrb[0].mxu0 %v6696
        %v6884 = vpop.f32.mrb[0].mxu0
        %v6885 = vadd.f32 %v5930, %v6884
        %v6886 = vpop.f32.mrb[0].mxu0
        %v6887 = vadd.f32 %v5932, %v6886
        %v6888 = vpop.f32.mrb[0].mxu0
        %v6889 = vadd.f32 %v5934, %v6888
        %v6890 = vpop.f32.mrb[0].mxu0
        %v6891 = vadd.f32 %v5936, %v6890
        %6892 = vmatprep.mubr.bf16.mxu0 0
        %6893 = vmatmul.mubr.bf16.gmra.mrb[0].mxu0 %v6699
        %v6894 = vpop.f32.mrb[0].mxu0
        %v6895 = vadd.f32 %v5940, %v6894
        %v6896 = vpop.f32.mrb[0].mxu0
        %v6897 = vadd.f32 %v5942, %v6896
        %v6898 = vpop.f32.mrb[0].mxu0
        %v6899 = vadd.f32 %v5944, %v6898
        %v6900 = vpop.f32.mrb[0].mxu0
        %v6901 = vadd.f32 %v5946, %v6900
        %6902 = vdwg.mxu0
        %6903 = vmatprep.subr.bf16.mxu0 %v6717
        %6904 = vmatpush1.bf16.msra.mxu0 %v6714
        %6905 = vmatprep.subr.bf16.mxu0 0
        %6906 = vmatpush1.bf16.msra.mxu0 0
        %6907 = vmatprep.subr.bf16.mxu0 0
        %6908 = vmatpush1.bf16.msra.mxu0 0
        %6909 = vmatprep.subr.bf16.mxu0 0
        %6910 = vmatpush1.bf16.msra.mxu0 0
        %6911 = vmatprep.subr.bf16.mxu0 0
        %6912 = vmatpush1.bf16.msra.mxu0 0
        %6913 = vmatprep.subr.bf16.mxu0 0
        %6914 = vmatpush1.bf16.msra.mxu0 0
        %6915 = vmatprep.subr.bf16.mxu0 0
        %6916 = vmatpush1.bf16.msra.mxu0 0
        %6917 = vmatprep.subr.bf16.mxu0 0
        %6918 = vmatpush1.bf16.msra.mxu0 0
        %6919 = vmatprep.subr.bf16.mxu0 0
        %6920 = vmatpush1.bf16.msra.mxu0 0
        %6921 = vmatprep.subr.bf16.mxu0 0
        %6922 = vmatpush1.bf16.msra.mxu0 0
        %6923 = vmatprep.subr.bf16.mxu0 0
        %6924 = vmatpush1.bf16.msra.mxu0 0
        %6925 = vmatprep.subr.bf16.mxu0 0
        %6926 = vmatpush1.bf16.msra.mxu0 0
        %6927 = vmatprep.subr.bf16.mxu0 0
        %6928 = vmatpush1.bf16.msra.mxu0 0
        %6929 = vmatprep.subr.bf16.mxu0 0
        %6930 = vmatpush1.bf16.msra.mxu0 0
        %6931 = vmatprep.subr.bf16.mxu0 0
        %6932 = vmatpush1.bf16.msra.mxu0 0
        %6933 = vmatprep.subr.bf16.mxu0 0
        %6934 = vmatpush1.bf16.msra.mxu0 0
        %6935 = vmatprep.mubr.bf16.mxu0 0
        %6936 = vmatmul.mubr.bf16.gmra.mrb[0].mxu0 %v6696
        %v6937 = vpop.f32.mrb[0].mxu0
        %v6938 = vadd.f32 %v5983, %v6937
        %v6939 = vpop.f32.mrb[0].mxu0
        %v6940 = vadd.f32 %v5985, %v6939
        %v6941 = vpop.f32.mrb[0].mxu0
        %v6942 = vadd.f32 %v5987, %v6941
        %v6943 = vpop.f32.mrb[0].mxu0
        %v6944 = vadd.f32 %v5989, %v6943
        %6945 = vmatprep.mubr.bf16.mxu0 0
        %6946 = vmatmul.mubr.bf16.gmra.mrb[0].mxu0 %v6699
        %v6947 = vpop.f32.mrb[0].mxu0
        %v6948 = vadd.f32 %v5993, %v6947
        %v6949 = vpop.f32.mrb[0].mxu0
        %v6950 = vadd.f32 %v5995, %v6949
        %v6951 = vpop.f32.mrb[0].mxu0
        %v6952 = vadd.f32 %v5997, %v6951
        %v6953 = vpop.f32.mrb[0].mxu0
        %v6954 = vadd.f32 %v5999, %v6953
        %6955 = vdwg.mxu0
        %6956 = vmatprep.subr.bf16.mxu0 %v6723
        %6957 = vmatpush1.bf16.msra.mxu0 %v6720
        %6958 = vmatprep.subr.bf16.mxu0 0
        %6959 = vmatpush1.bf16.msra.mxu0 0
        %6960 = vmatprep.subr.bf16.mxu0 0
        %6961 = vmatpush1.bf16.msra.mxu0 0
        %6962 = vmatprep.subr.bf16.mxu0 0
        %6963 = vmatpush1.bf16.msra.mxu0 0
        %6964 = vmatprep.subr.bf16.mxu0 0
        %6965 = vmatpush1.bf16.msra.mxu0 0
        %6966 = vmatprep.subr.bf16.mxu0 0
        %6967 = vmatpush1.bf16.msra.mxu0 0
        %6968 = vmatprep.subr.bf16.mxu0 0
        %6969 = vmatpush1.bf16.msra.mxu0 0
        %6970 = vmatprep.subr.bf16.mxu0 0
        %6971 = vmatpush1.bf16.msra.mxu0 0
        %6972 = vmatprep.subr.bf16.mxu0 0
        %6973 = vmatpush1.bf16.msra.mxu0 0
        %6974 = vmatprep.subr.bf16.mxu0 0
        %6975 = vmatpush1.bf16.msra.mxu0 0
        %6976 = vmatprep.subr.bf16.mxu0 0
        %6977 = vmatpush1.bf16.msra.mxu0 0
        %6978 = vmatprep.subr.bf16.mxu0 0
        %6979 = vmatpush1.bf16.msra.mxu0 0
        %6980 = vmatprep.subr.bf16.mxu0 0
        %6981 = vmatpush1.bf16.msra.mxu0 0
        %6982 = vmatprep.subr.bf16.mxu0 0
        %6983 = vmatpush1.bf16.msra.mxu0 0
        %6984 = vmatprep.subr.bf16.mxu0 0
        %6985 = vmatpush1.bf16.msra.mxu0 0
        %6986 = vmatprep.subr.bf16.mxu0 0
        %6987 = vmatpush1.bf16.msra.mxu0 0
        %6988 = vmatprep.mubr.bf16.mxu0 0
        %6989 = vmatmul.mubr.bf16.gmra.mrb[0].mxu0 %v6696
        %v6990 = vpop.f32.mrb[0].mxu0
        %v6991 = vadd.f32 %v6036, %v6990
        %v6992 = vpop.f32.mrb[0].mxu0
        %v6993 = vadd.f32 %v6038, %v6992
        %v6994 = vpop.f32.mrb[0].mxu0
        %v6995 = vadd.f32 %v6040, %v6994
        %v6996 = vpop.f32.mrb[0].mxu0
        %v6997 = vadd.f32 %v6042, %v6996
        %6998 = vmatprep.mubr.bf16.mxu0 0
        %6999 = vmatmul.mubr.bf16.gmra.mrb[0].mxu0 %v6699
        %v7000 = vpop.f32.mrb[0].mxu0
        %v7001 = vadd.f32 %v6046, %v7000
        %v7002 = vpop.f32.mrb[0].mxu0
        %v7003 = vadd.f32 %v6048, %v7002
        %v7004 = vpop.f32.mrb[0].mxu0
        %v7005 = vadd.f32 %v6050, %v7004
        %v7006 = vpop.f32.mrb[0].mxu0
        %v7007 = vadd.f32 %v6052, %v7006
        %7008 = vdwg.mxu0
        %7009 = vmatprep.subr.bf16.mxu0 %v6729
        %7010 = vmatpush1.bf16.msra.mxu0 %v6726
        %7011 = vmatprep.subr.bf16.mxu0 0
        %7012 = vmatpush1.bf16.msra.mxu0 0
        %7013 = vmatprep.subr.bf16.mxu0 0
        %7014 = vmatpush1.bf16.msra.mxu0 0
        %7015 = vmatprep.subr.bf16.mxu0 0
        %7016 = vmatpush1.bf16.msra.mxu0 0
        %7017 = vmatprep.subr.bf16.mxu0 0
        %7018 = vmatpush1.bf16.msra.mxu0 0
        %7019 = vmatprep.subr.bf16.mxu0 0
        %7020 = vmatpush1.bf16.msra.mxu0 0
        %7021 = vmatprep.subr.bf16.mxu0 0
        %7022 = vmatpush1.bf16.msra.mxu0 0
        %7023 = vmatprep.subr.bf16.mxu0 0
        %7024 = vmatpush1.bf16.msra.mxu0 0
        %7025 = vmatprep.subr.bf16.mxu0 0
        %7026 = vmatpush1.bf16.msra.mxu0 0
        %7027 = vmatprep.subr.bf16.mxu0 0
        %7028 = vmatpush1.bf16.msra.mxu0 0
        %7029 = vmatprep.subr.bf16.mxu0 0
        %7030 = vmatpush1.bf16.msra.mxu0 0
        %7031 = vmatprep.subr.bf16.mxu0 0
        %7032 = vmatpush1.bf16.msra.mxu0 0
        %7033 = vmatprep.subr.bf16.mxu0 0
        %7034 = vmatpush1.bf16.msra.mxu0 0
        %7035 = vmatprep.subr.bf16.mxu0 0
        %7036 = vmatpush1.bf16.msra.mxu0 0
        %7037 = vmatprep.subr.bf16.mxu0 0
        %7038 = vmatpush1.bf16.msra.mxu0 0
        %7039 = vmatprep.subr.bf16.mxu0 0
        %7040 = vmatpush1.bf16.msra.mxu0 0
        %7041 = vmatprep.mubr.bf16.mxu0 0
        %7042 = vmatmul.mubr.bf16.gmra.mrb[0].mxu0 %v6696
        %v7043 = vpop.f32.mrb[0].mxu0
        %v7044 = vadd.f32 %v6089, %v7043
        %v7045 = vpop.f32.mrb[0].mxu0
        %v7046 = vadd.f32 %v6091, %v7045
        %v7047 = vpop.f32.mrb[0].mxu0
        %v7048 = vadd.f32 %v6093, %v7047
        %v7049 = vpop.f32.mrb[0].mxu0
        %v7050 = vadd.f32 %v6095, %v7049
        %7051 = vmatprep.mubr.bf16.mxu0 0
        %7052 = vmatmul.mubr.bf16.gmra.mrb[0].mxu0 %v6699
        %v7053 = vpop.f32.mrb[0].mxu0
        %v7054 = vadd.f32 %v6099, %v7053
        %v7055 = vpop.f32.mrb[0].mxu0
        %v7056 = vadd.f32 %v6101, %v7055
        %v7057 = vpop.f32.mrb[0].mxu0
        %v7058 = vadd.f32 %v6103, %v7057
        %v7059 = vpop.f32.mrb[0].mxu0
        %v7060 = vadd.f32 %v6105, %v7059
        %7061 = vdwg.mxu0
        %7062 = vmatprep.subr.bf16.mxu0 %v6735
        %7063 = vmatpush1.bf16.msra.mxu0 %v6732
        %7064 = vmatprep.subr.bf16.mxu0 0
        %7065 = vmatpush1.bf16.msra.mxu0 0
        %7066 = vmatprep.subr.bf16.mxu0 0
        %7067 = vmatpush1.bf16.msra.mxu0 0
        %7068 = vmatprep.subr.bf16.mxu0 0
        %7069 = vmatpush1.bf16.msra.mxu0 0
        %7070 = vmatprep.subr.bf16.mxu0 0
        %7071 = vmatpush1.bf16.msra.mxu0 0
        %7072 = vmatprep.subr.bf16.mxu0 0
        %7073 = vmatpush1.bf16.msra.mxu0 0
        %7074 = vmatprep.subr.bf16.mxu0 0
        %7075 = vmatpush1.bf16.msra.mxu0 0
        %7076 = vmatprep.subr.bf16.mxu0 0
        %7077 = vmatpush1.bf16.msra.mxu0 0
        %7078 = vmatprep.subr.bf16.mxu0 0
        %7079 = vmatpush1.bf16.msra.mxu0 0
        %7080 = vmatprep.subr.bf16.mxu0 0
        %7081 = vmatpush1.bf16.msra.mxu0 0
        %7082 = vmatprep.subr.bf16.mxu0 0
        %7083 = vmatpush1.bf16.msra.mxu0 0
        %7084 = vmatprep.subr.bf16.mxu0 0
        %7085 = vmatpush1.bf16.msra.mxu0 0
        %7086 = vmatprep.subr.bf16.mxu0 0
        %7087 = vmatpush1.bf16.msra.mxu0 0
        %7088 = vmatprep.subr.bf16.mxu0 0
        %7089 = vmatpush1.bf16.msra.mxu0 0
        %7090 = vmatprep.subr.bf16.mxu0 0
        %7091 = vmatpush1.bf16.msra.mxu0 0
        %7092 = vmatprep.subr.bf16.mxu0 0
        %7093 = vmatpush1.bf16.msra.mxu0 0
        %7094 = vmatprep.mubr.bf16.mxu0 0
        %7095 = vmatmul.mubr.bf16.gmra.mrb[0].mxu0 %v6696
        %v7096 = vpop.f32.mrb[0].mxu0
        %v7097 = vadd.f32 %v6142, %v7096
        %v7098 = vpop.f32.mrb[0].mxu0
        %v7099 = vadd.f32 %v6144, %v7098
        %v7100 = vpop.f32.mrb[0].mxu0
        %v7101 = vadd.f32 %v6146, %v7100
        %v7102 = vpop.f32.mrb[0].mxu0
        %v7103 = vadd.f32 %v6148, %v7102
        %7104 = vmatprep.mubr.bf16.mxu0 0
        %7105 = vmatmul.mubr.bf16.gmra.mrb[0].mxu0 %v6699
        %v7106 = vpop.f32.mrb[0].mxu0
        %v7107 = vadd.f32 %v6152, %v7106
        %v7108 = vpop.f32.mrb[0].mxu0
        %v7109 = vadd.f32 %v6154, %v7108
        %v7110 = vpop.f32.mrb[0].mxu0
        %v7111 = vadd.f32 %v6156, %v7110
        %v7112 = vpop.f32.mrb[0].mxu0
        %v7113 = vadd.f32 %v6158, %v7112
        %7114 = vdwg.mxu0
        %7115 = vmatprep.subr.bf16.mxu0 %v6741
        %7116 = vmatpush1.bf16.msra.mxu0 %v6738
        %7117 = vmatprep.subr.bf16.mxu0 0
        %7118 = vmatpush1.bf16.msra.mxu0 0
        %7119 = vmatprep.subr.bf16.mxu0 0
        %7120 = vmatpush1.bf16.msra.mxu0 0
        %7121 = vmatprep.subr.bf16.mxu0 0
        %7122 = vmatpush1.bf16.msra.mxu0 0
        %7123 = vmatprep.subr.bf16.mxu0 0
        %7124 = vmatpush1.bf16.msra.mxu0 0
        %7125 = vmatprep.subr.bf16.mxu0 0
        %7126 = vmatpush1.bf16.msra.mxu0 0
        %7127 = vmatprep.subr.bf16.mxu0 0
        %7128 = vmatpush1.bf16.msra.mxu0 0
        %7129 = vmatprep.subr.bf16.mxu0 0
        %7130 = vmatpush1.bf16.msra.mxu0 0
        %7131 = vmatprep.subr.bf16.mxu0 0
        %7132 = vmatpush1.bf16.msra.mxu0 0
        %7133 = vmatprep.subr.bf16.mxu0 0
        %7134 = vmatpush1.bf16.msra.mxu0 0
        %7135 = vmatprep.subr.bf16.mxu0 0
        %7136 = vmatpush1.bf16.msra.mxu0 0
        %7137 = vmatprep.subr.bf16.mxu0 0
        %7138 = vmatpush1.bf16.msra.mxu0 0
        %7139 = vmatprep.subr.bf16.mxu0 0
        %7140 = vmatpush1.bf16.msra.mxu0 0
        %7141 = vmatprep.subr.bf16.mxu0 0
        %7142 = vmatpush1.bf16.msra.mxu0 0
        %7143 = vmatprep.subr.bf16.mxu0 0
        %7144 = vmatpush1.bf16.msra.mxu0 0
        %7145 = vmatprep.subr.bf16.mxu0 0
        %7146 = vmatpush1.bf16.msra.mxu0 0
        %7147 = vmatprep.mubr.bf16.mxu0 0
        %7148 = vmatmul.mubr.bf16.gmra.mrb[0].mxu0 %v6696
        %v7149 = vpop.f32.mrb[0].mxu0
        %v7150 = vadd.f32 %v6195, %v7149
        %v7151 = vpop.f32.mrb[0].mxu0
        %v7152 = vadd.f32 %v6197, %v7151
        %v7153 = vpop.f32.mrb[0].mxu0
        %v7154 = vadd.f32 %v6199, %v7153
        %v7155 = vpop.f32.mrb[0].mxu0
        %v7156 = vadd.f32 %v6201, %v7155
        %7157 = vmatprep.mubr.bf16.mxu0 0
        %7158 = vmatmul.mubr.bf16.gmra.mrb[0].mxu0 %v6699
        %v7159 = vpop.f32.mrb[0].mxu0
        %v7160 = vadd.f32 %v6205, %v7159
        %v7161 = vpop.f32.mrb[0].mxu0
        %v7162 = vadd.f32 %v6207, %v7161
        %v7163 = vpop.f32.mrb[0].mxu0
        %v7164 = vadd.f32 %v6209, %v7163
        %v7165 = vpop.f32.mrb[0].mxu0
        %v7166 = vadd.f32 %v6211, %v7165
        %7167 = vdwg.mxu0
        %7168 = vmatprep.subr.bf16.mxu0 %v6747
        %7169 = vmatpush1.bf16.msra.mxu0 %v6744
        %7170 = vmatprep.subr.bf16.mxu0 0
        %7171 = vmatpush1.bf16.msra.mxu0 0
        %7172 = vmatprep.subr.bf16.mxu0 0
        %7173 = vmatpush1.bf16.msra.mxu0 0
        %7174 = vmatprep.subr.bf16.mxu0 0
        %7175 = vmatpush1.bf16.msra.mxu0 0
        %7176 = vmatprep.subr.bf16.mxu0 0
        %7177 = vmatpush1.bf16.msra.mxu0 0
        %7178 = vmatprep.subr.bf16.mxu0 0
        %7179 = vmatpush1.bf16.msra.mxu0 0
        %7180 = vmatprep.subr.bf16.mxu0 0
        %7181 = vmatpush1.bf16.msra.mxu0 0
        %7182 = vmatprep.subr.bf16.mxu0 0
        %7183 = vmatpush1.bf16.msra.mxu0 0
        %7184 = vmatprep.subr.bf16.mxu0 0
        %7185 = vmatpush1.bf16.msra.mxu0 0
        %7186 = vmatprep.subr.bf16.mxu0 0
        %7187 = vmatpush1.bf16.msra.mxu0 0
        %7188 = vmatprep.subr.bf16.mxu0 0
        %7189 = vmatpush1.bf16.msra.mxu0 0
        %7190 = vmatprep.subr.bf16.mxu0 0
        %7191 = vmatpush1.bf16.msra.mxu0 0
        %7192 = vmatprep.subr.bf16.mxu0 0
        %7193 = vmatpush1.bf16.msra.mxu0 0
        %7194 = vmatprep.subr.bf16.mxu0 0
        %7195 = vmatpush1.bf16.msra.mxu0 0
        %7196 = vmatprep.subr.bf16.mxu0 0
        %7197 = vmatpush1.bf16.msra.mxu0 0
        %7198 = vmatprep.subr.bf16.mxu0 0
        %7199 = vmatpush1.bf16.msra.mxu0 0
        %7200 = vmatprep.mubr.bf16.mxu0 0
        %7201 = vmatmul.mubr.bf16.gmra.mrb[0].mxu0 %v6696
        %v7202 = vpop.f32.mrb[0].mxu0
        %v7203 = vadd.f32 %v6248, %v7202
        %v7204 = vpop.f32.mrb[0].mxu0
        %v7205 = vadd.f32 %v6250, %v7204
        %v7206 = vpop.f32.mrb[0].mxu0
        %v7207 = vadd.f32 %v6252, %v7206
        %v7208 = vpop.f32.mrb[0].mxu0
        %v7209 = vadd.f32 %v6254, %v7208
        %7210 = vmatprep.mubr.bf16.mxu0 0
        %7211 = vmatmul.mubr.bf16.gmra.mrb[0].mxu0 %v6699
        %v7212 = vpop.f32.mrb[0].mxu0
        %v7213 = vadd.f32 %v6258, %v7212
        %v7214 = vpop.f32.mrb[0].mxu0
        %v7215 = vadd.f32 %v6260, %v7214
        %v7216 = vpop.f32.mrb[0].mxu0
        %v7217 = vadd.f32 %v6262, %v7216
        %v7218 = vpop.f32.mrb[0].mxu0
        %v7219 = vadd.f32 %v6264, %v7218
        %7220 = vdwg.mxu0
        %7221 = vmatprep.subr.bf16.mxu0 %v6753
        %7222 = vmatpush1.bf16.msra.mxu0 %v6750
        %7223 = vmatprep.subr.bf16.mxu0 0
        %7224 = vmatpush1.bf16.msra.mxu0 0
        %7225 = vmatprep.subr.bf16.mxu0 0
        %7226 = vmatpush1.bf16.msra.mxu0 0
        %7227 = vmatprep.subr.bf16.mxu0 0
        %7228 = vmatpush1.bf16.msra.mxu0 0
        %7229 = vmatprep.subr.bf16.mxu0 0
        %7230 = vmatpush1.bf16.msra.mxu0 0
        %7231 = vmatprep.subr.bf16.mxu0 0
        %7232 = vmatpush1.bf16.msra.mxu0 0
        %7233 = vmatprep.subr.bf16.mxu0 0
        %7234 = vmatpush1.bf16.msra.mxu0 0
        %7235 = vmatprep.subr.bf16.mxu0 0
        %7236 = vmatpush1.bf16.msra.mxu0 0
        %7237 = vmatprep.subr.bf16.mxu0 0
        %7238 = vmatpush1.bf16.msra.mxu0 0
        %7239 = vmatprep.subr.bf16.mxu0 0
        %7240 = vmatpush1.bf16.msra.mxu0 0
        %7241 = vmatprep.subr.bf16.mxu0 0
        %7242 = vmatpush1.bf16.msra.mxu0 0
        %7243 = vmatprep.subr.bf16.mxu0 0
        %7244 = vmatpush1.bf16.msra.mxu0 0
        %7245 = vmatprep.subr.bf16.mxu0 0
        %7246 = vmatpush1.bf16.msra.mxu0 0
        %7247 = vmatprep.subr.bf16.mxu0 0
        %7248 = vmatpush1.bf16.msra.mxu0 0
        %7249 = vmatprep.subr.bf16.mxu0 0
        %7250 = vmatpush1.bf16.msra.mxu0 0
        %7251 = vmatprep.subr.bf16.mxu0 0
        %7252 = vmatpush1.bf16.msra.mxu0 0
        %7253 = vmatprep.mubr.bf16.mxu0 0
        %7254 = vmatmul.mubr.bf16.gmra.mrb[0].mxu0 %v6696
        %v7255 = vpop.f32.mrb[0].mxu0
        %v7256 = vadd.f32 %v6301, %v7255
        %v7257 = vpop.f32.mrb[0].mxu0
        %v7258 = vadd.f32 %v6303, %v7257
        %v7259 = vpop.f32.mrb[0].mxu0
        %v7260 = vadd.f32 %v6305, %v7259
        %v7261 = vpop.f32.mrb[0].mxu0
        %v7262 = vadd.f32 %v6307, %v7261
        %7263 = vmatprep.mubr.bf16.mxu0 0
        %7264 = vmatmul.mubr.bf16.gmra.mrb[0].mxu0 %v6699
        %v7265 = vpop.f32.mrb[0].mxu0
        %v7266 = vadd.f32 %v6311, %v7265
        %v7267 = vpop.f32.mrb[0].mxu0
        %v7268 = vadd.f32 %v6313, %v7267
        %v7269 = vpop.f32.mrb[0].mxu0
        %v7270 = vadd.f32 %v6315, %v7269
        %v7271 = vpop.f32.mrb[0].mxu0
        %v7272 = vadd.f32 %v6317, %v7271
        %7273 = vdwg.mxu0
        %7274 = vmatprep.subr.bf16.mxu0 %v6759
        %7275 = vmatpush1.bf16.msra.mxu0 %v6756
        %7276 = vmatprep.subr.bf16.mxu0 0
        %7277 = vmatpush1.bf16.msra.mxu0 0
        %7278 = vmatprep.subr.bf16.mxu0 0
        %7279 = vmatpush1.bf16.msra.mxu0 0
        %7280 = vmatprep.subr.bf16.mxu0 0
        %7281 = vmatpush1.bf16.msra.mxu0 0
        %7282 = vmatprep.subr.bf16.mxu0 0
        %7283 = vmatpush1.bf16.msra.mxu0 0
        %7284 = vmatprep.subr.bf16.mxu0 0
        %7285 = vmatpush1.bf16.msra.mxu0 0
        %7286 = vmatprep.subr.bf16.mxu0 0
        %7287 = vmatpush1.bf16.msra.mxu0 0
        %7288 = vmatprep.subr.bf16.mxu0 0
        %7289 = vmatpush1.bf16.msra.mxu0 0
        %7290 = vmatprep.subr.bf16.mxu0 0
        %7291 = vmatpush1.bf16.msra.mxu0 0
        %7292 = vmatprep.subr.bf16.mxu0 0
        %7293 = vmatpush1.bf16.msra.mxu0 0
        %7294 = vmatprep.subr.bf16.mxu0 0
        %7295 = vmatpush1.bf16.msra.mxu0 0
        %7296 = vmatprep.subr.bf16.mxu0 0
        %7297 = vmatpush1.bf16.msra.mxu0 0
        %7298 = vmatprep.subr.bf16.mxu0 0
        %7299 = vmatpush1.bf16.msra.mxu0 0
        %7300 = vmatprep.subr.bf16.mxu0 0
        %7301 = vmatpush1.bf16.msra.mxu0 0
        %7302 = vmatprep.subr.bf16.mxu0 0
        %7303 = vmatpush1.bf16.msra.mxu0 0
        %7304 = vmatprep.subr.bf16.mxu0 0
        %7305 = vmatpush1.bf16.msra.mxu0 0
        %7306 = vmatprep.mubr.bf16.mxu0 0
        %7307 = vmatmul.mubr.bf16.gmra.mrb[0].mxu0 %v6696
        %v7308 = vpop.f32.mrb[0].mxu0
        %v7309 = vadd.f32 %v6354, %v7308
        %v7310 = vpop.f32.mrb[0].mxu0
        %v7311 = vadd.f32 %v6356, %v7310
        %v7312 = vpop.f32.mrb[0].mxu0
        %v7313 = vadd.f32 %v6358, %v7312
        %v7314 = vpop.f32.mrb[0].mxu0
        %v7315 = vadd.f32 %v6360, %v7314
        %7316 = vmatprep.mubr.bf16.mxu0 0
        %7317 = vmatmul.mubr.bf16.gmra.mrb[0].mxu0 %v6699
        %v7318 = vpop.f32.mrb[0].mxu0
        %v7319 = vadd.f32 %v6364, %v7318
        %v7320 = vpop.f32.mrb[0].mxu0
        %v7321 = vadd.f32 %v6366, %v7320
        %v7322 = vpop.f32.mrb[0].mxu0
        %v7323 = vadd.f32 %v6368, %v7322
        %v7324 = vpop.f32.mrb[0].mxu0
        %v7325 = vadd.f32 %v6370, %v7324
        %7326 = vdwg.mxu0
        %7327 = vmatprep.subr.bf16.mxu0 %v6765
        %7328 = vmatpush1.bf16.msra.mxu0 %v6762
        %7329 = vmatprep.subr.bf16.mxu0 0
        %7330 = vmatpush1.bf16.msra.mxu0 0
        %7331 = vmatprep.subr.bf16.mxu0 0
        %7332 = vmatpush1.bf16.msra.mxu0 0
        %7333 = vmatprep.subr.bf16.mxu0 0
        %7334 = vmatpush1.bf16.msra.mxu0 0
        %7335 = vmatprep.subr.bf16.mxu0 0
        %7336 = vmatpush1.bf16.msra.mxu0 0
        %7337 = vmatprep.subr.bf16.mxu0 0
        %7338 = vmatpush1.bf16.msra.mxu0 0
        %7339 = vmatprep.subr.bf16.mxu0 0
        %7340 = vmatpush1.bf16.msra.mxu0 0
        %7341 = vmatprep.subr.bf16.mxu0 0
        %7342 = vmatpush1.bf16.msra.mxu0 0
        %7343 = vmatprep.subr.bf16.mxu0 0
        %7344 = vmatpush1.bf16.msra.mxu0 0
        %7345 = vmatprep.subr.bf16.mxu0 0
        %7346 = vmatpush1.bf16.msra.mxu0 0
        %7347 = vmatprep.subr.bf16.mxu0 0
        %7348 = vmatpush1.bf16.msra.mxu0 0
        %7349 = vmatprep.subr.bf16.mxu0 0
        %7350 = vmatpush1.bf16.msra.mxu0 0
        %7351 = vmatprep.subr.bf16.mxu0 0
        %7352 = vmatpush1.bf16.msra.mxu0 0
        %7353 = vmatprep.subr.bf16.mxu0 0
        %7354 = vmatpush1.bf16.msra.mxu0 0
        %7355 = vmatprep.subr.bf16.mxu0 0
        %7356 = vmatpush1.bf16.msra.mxu0 0
        %7357 = vmatprep.subr.bf16.mxu0 0
        %7358 = vmatpush1.bf16.msra.mxu0 0
        %7359 = vmatprep.mubr.bf16.mxu0 0
        %7360 = vmatmul.mubr.bf16.gmra.mrb[0].mxu0 %v6696
        %v7361 = vpop.f32.mrb[0].mxu0
        %v7362 = vadd.f32 %v6407, %v7361
        %v7363 = vpop.f32.mrb[0].mxu0
        %v7364 = vadd.f32 %v6409, %v7363
        %v7365 = vpop.f32.mrb[0].mxu0
        %v7366 = vadd.f32 %v6411, %v7365
        %v7367 = vpop.f32.mrb[0].mxu0
        %v7368 = vadd.f32 %v6413, %v7367
        %7369 = vmatprep.mubr.bf16.mxu0 0
        %7370 = vmatmul.mubr.bf16.gmra.mrb[0].mxu0 %v6699
        %v7371 = vpop.f32.mrb[0].mxu0
        %v7372 = vadd.f32 %v6417, %v7371
        %v7373 = vpop.f32.mrb[0].mxu0
        %v7374 = vadd.f32 %v6419, %v7373
        %v7375 = vpop.f32.mrb[0].mxu0
        %v7376 = vadd.f32 %v6421, %v7375
        %v7377 = vpop.f32.mrb[0].mxu0
        %v7378 = vadd.f32 %v6423, %v7377
        %7379 = vdwg.mxu0
        %7380 = vmatprep.subr.bf16.mxu0 %v6771
        %7381 = vmatpush1.bf16.msra.mxu0 %v6768
        %7382 = vmatprep.subr.bf16.mxu0 0
        %7383 = vmatpush1.bf16.msra.mxu0 0
        %7384 = vmatprep.subr.bf16.mxu0 0
        %7385 = vmatpush1.bf16.msra.mxu0 0
        %7386 = vmatprep.subr.bf16.mxu0 0
        %7387 = vmatpush1.bf16.msra.mxu0 0
        %7388 = vmatprep.subr.bf16.mxu0 0
        %7389 = vmatpush1.bf16.msra.mxu0 0
        %7390 = vmatprep.subr.bf16.mxu0 0
        %7391 = vmatpush1.bf16.msra.mxu0 0
        %7392 = vmatprep.subr.bf16.mxu0 0
        %7393 = vmatpush1.bf16.msra.mxu0 0
        %7394 = vmatprep.subr.bf16.mxu0 0
        %7395 = vmatpush1.bf16.msra.mxu0 0
        %7396 = vmatprep.subr.bf16.mxu0 0
        %7397 = vmatpush1.bf16.msra.mxu0 0
        %7398 = vmatprep.subr.bf16.mxu0 0
        %7399 = vmatpush1.bf16.msra.mxu0 0
        %7400 = vmatprep.subr.bf16.mxu0 0
        %7401 = vmatpush1.bf16.msra.mxu0 0
        %7402 = vmatprep.subr.bf16.mxu0 0
        %7403 = vmatpush1.bf16.msra.mxu0 0
        %7404 = vmatprep.subr.bf16.mxu0 0
        %7405 = vmatpush1.bf16.msra.mxu0 0
        %7406 = vmatprep.subr.bf16.mxu0 0
        %7407 = vmatpush1.bf16.msra.mxu0 0
        %7408 = vmatprep.subr.bf16.mxu0 0
        %7409 = vmatpush1.bf16.msra.mxu0 0
        %7410 = vmatprep.subr.bf16.mxu0 0
        %7411 = vmatpush1.bf16.msra.mxu0 0
        %7412 = vmatprep.mubr.bf16.mxu0 0
        %7413 = vmatmul.mubr.bf16.gmra.mrb[0].mxu0 %v6696
        %v7414 = vpop.f32.mrb[0].mxu0
        %v7415 = vadd.f32 %v6460, %v7414
        %v7416 = vpop.f32.mrb[0].mxu0
        %v7417 = vadd.f32 %v6462, %v7416
        %v7418 = vpop.f32.mrb[0].mxu0
        %v7419 = vadd.f32 %v6464, %v7418
        %v7420 = vpop.f32.mrb[0].mxu0
        %v7421 = vadd.f32 %v6466, %v7420
        %7422 = vmatprep.mubr.bf16.mxu0 0
        %7423 = vmatmul.mubr.bf16.gmra.mrb[0].mxu0 %v6699
        %v7424 = vpop.f32.mrb[0].mxu0
        %v7425 = vadd.f32 %v6470, %v7424
        %v7426 = vpop.f32.mrb[0].mxu0
        %v7427 = vadd.f32 %v6472, %v7426
        %v7428 = vpop.f32.mrb[0].mxu0
        %v7429 = vadd.f32 %v6474, %v7428
        %v7430 = vpop.f32.mrb[0].mxu0
        %v7431 = vadd.f32 %v6476, %v7430
        %7432 = vdwg.mxu0
        %7433 = vmatprep.subr.bf16.mxu0 %v6777
        %7434 = vmatpush1.bf16.msra.mxu0 %v6774
        %7435 = vmatprep.subr.bf16.mxu0 0
        %7436 = vmatpush1.bf16.msra.mxu0 0
        %7437 = vmatprep.subr.bf16.mxu0 0
        %7438 = vmatpush1.bf16.msra.mxu0 0
        %7439 = vmatprep.subr.bf16.mxu0 0
        %7440 = vmatpush1.bf16.msra.mxu0 0
        %7441 = vmatprep.subr.bf16.mxu0 0
        %7442 = vmatpush1.bf16.msra.mxu0 0
        %7443 = vmatprep.subr.bf16.mxu0 0
        %7444 = vmatpush1.bf16.msra.mxu0 0
        %7445 = vmatprep.subr.bf16.mxu0 0
        %7446 = vmatpush1.bf16.msra.mxu0 0
        %7447 = vmatprep.subr.bf16.mxu0 0
        %7448 = vmatpush1.bf16.msra.mxu0 0
        %7449 = vmatprep.subr.bf16.mxu0 0
        %7450 = vmatpush1.bf16.msra.mxu0 0
        %7451 = vmatprep.subr.bf16.mxu0 0
        %7452 = vmatpush1.bf16.msra.mxu0 0
        %7453 = vmatprep.subr.bf16.mxu0 0
        %7454 = vmatpush1.bf16.msra.mxu0 0
        %7455 = vmatprep.subr.bf16.mxu0 0
        %7456 = vmatpush1.bf16.msra.mxu0 0
        %7457 = vmatprep.subr.bf16.mxu0 0
        %7458 = vmatpush1.bf16.msra.mxu0 0
        %7459 = vmatprep.subr.bf16.mxu0 0
        %7460 = vmatpush1.bf16.msra.mxu0 0
        %7461 = vmatprep.subr.bf16.mxu0 0
        %7462 = vmatpush1.bf16.msra.mxu0 0
        %7463 = vmatprep.subr.bf16.mxu0 0
        %7464 = vmatpush1.bf16.msra.mxu0 0
        %7465 = vmatprep.mubr.bf16.mxu0 0
        %7466 = vmatmul.mubr.bf16.gmra.mrb[0].mxu0 %v6696
        %v7467 = vpop.f32.mrb[0].mxu0
        %v7468 = vadd.f32 %v6513, %v7467
        %v7469 = vpop.f32.mrb[0].mxu0
        %v7470 = vadd.f32 %v6515, %v7469
        %v7471 = vpop.f32.mrb[0].mxu0
        %v7472 = vadd.f32 %v6517, %v7471
        %v7473 = vpop.f32.mrb[0].mxu0
        %v7474 = vadd.f32 %v6519, %v7473
        %7475 = vmatprep.mubr.bf16.mxu0 0
        %7476 = vmatmul.mubr.bf16.gmra.mrb[0].mxu0 %v6699
        %v7477 = vpop.f32.mrb[0].mxu0
        %v7478 = vadd.f32 %v6523, %v7477
        %v7479 = vpop.f32.mrb[0].mxu0
        %v7480 = vadd.f32 %v6525, %v7479
        %v7481 = vpop.f32.mrb[0].mxu0
        %v7482 = vadd.f32 %v6527, %v7481
        %v7483 = vpop.f32.mrb[0].mxu0
        %v7484 = vadd.f32 %v6529, %v7483
        %7485 = vdwg.mxu0
        %7486 = vmatprep.subr.bf16.mxu0 %v6783
        %7487 = vmatpush1.bf16.msra.mxu0 %v6780
        %7488 = vmatprep.subr.bf16.mxu0 0
        %7489 = vmatpush1.bf16.msra.mxu0 0
        %7490 = vmatprep.subr.bf16.mxu0 0
        %7491 = vmatpush1.bf16.msra.mxu0 0
        %7492 = vmatprep.subr.bf16.mxu0 0
        %7493 = vmatpush1.bf16.msra.mxu0 0
        %7494 = vmatprep.subr.bf16.mxu0 0
        %7495 = vmatpush1.bf16.msra.mxu0 0
        %7496 = vmatprep.subr.bf16.mxu0 0
        %7497 = vmatpush1.bf16.msra.mxu0 0
        %7498 = vmatprep.subr.bf16.mxu0 0
        %7499 = vmatpush1.bf16.msra.mxu0 0
        %7500 = vmatprep.subr.bf16.mxu0 0
        %7501 = vmatpush1.bf16.msra.mxu0 0
        %7502 = vmatprep.subr.bf16.mxu0 0
        %7503 = vmatpush1.bf16.msra.mxu0 0
        %7504 = vmatprep.subr.bf16.mxu0 0
        %7505 = vmatpush1.bf16.msra.mxu0 0
        %7506 = vmatprep.subr.bf16.mxu0 0
        %7507 = vmatpush1.bf16.msra.mxu0 0
        %7508 = vmatprep.subr.bf16.mxu0 0
        %7509 = vmatpush1.bf16.msra.mxu0 0
        %7510 = vmatprep.subr.bf16.mxu0 0
        %7511 = vmatpush1.bf16.msra.mxu0 0
        %7512 = vmatprep.subr.bf16.mxu0 0
        %7513 = vmatpush1.bf16.msra.mxu0 0
        %7514 = vmatprep.subr.bf16.mxu0 0
        %7515 = vmatpush1.bf16.msra.mxu0 0
        %7516 = vmatprep.subr.bf16.mxu0 0
        %7517 = vmatpush1.bf16.msra.mxu0 0
        %7518 = vmatprep.mubr.bf16.mxu0 0
        %7519 = vmatmul.mubr.bf16.gmra.mrb[0].mxu0 %v6696
        %v7520 = vpop.f32.mrb[0].mxu0
        %v7521 = vadd.f32 %v6566, %v7520
        %v7522 = vpop.f32.mrb[0].mxu0
        %v7523 = vadd.f32 %v6568, %v7522
        %v7524 = vpop.f32.mrb[0].mxu0
        %v7525 = vadd.f32 %v6570, %v7524
        %v7526 = vpop.f32.mrb[0].mxu0
        %v7527 = vadd.f32 %v6572, %v7526
        %7528 = vmatprep.mubr.bf16.mxu0 0
        %7529 = vmatmul.mubr.bf16.gmra.mrb[0].mxu0 %v6699
        %v7530 = vpop.f32.mrb[0].mxu0
        %v7531 = vadd.f32 %v6576, %v7530
        %v7532 = vpop.f32.mrb[0].mxu0
        %v7533 = vadd.f32 %v6578, %v7532
        %v7534 = vpop.f32.mrb[0].mxu0
        %v7535 = vadd.f32 %v6580, %v7534
        %v7536 = vpop.f32.mrb[0].mxu0
        %v7537 = vadd.f32 %v6582, %v7536
        %7538 = vdwg.mxu0
        %7539 = vmatprep.subr.bf16.mxu0 %v6789
        %7540 = vmatpush1.bf16.msra.mxu0 %v6786
        %7541 = vmatprep.subr.bf16.mxu0 0
        %7542 = vmatpush1.bf16.msra.mxu0 0
        %7543 = vmatprep.subr.bf16.mxu0 0
        %7544 = vmatpush1.bf16.msra.mxu0 0
        %7545 = vmatprep.subr.bf16.mxu0 0
        %7546 = vmatpush1.bf16.msra.mxu0 0
        %7547 = vmatprep.subr.bf16.mxu0 0
        %7548 = vmatpush1.bf16.msra.mxu0 0
        %7549 = vmatprep.subr.bf16.mxu0 0
        %7550 = vmatpush1.bf16.msra.mxu0 0
        %7551 = vmatprep.subr.bf16.mxu0 0
        %7552 = vmatpush1.bf16.msra.mxu0 0
        %7553 = vmatprep.subr.bf16.mxu0 0
        %7554 = vmatpush1.bf16.msra.mxu0 0
        %7555 = vmatprep.subr.bf16.mxu0 0
        %7556 = vmatpush1.bf16.msra.mxu0 0
        %7557 = vmatprep.subr.bf16.mxu0 0
        %7558 = vmatpush1.bf16.msra.mxu0 0
        %7559 = vmatprep.subr.bf16.mxu0 0
        %7560 = vmatpush1.bf16.msra.mxu0 0
        %7561 = vmatprep.subr.bf16.mxu0 0
        %7562 = vmatpush1.bf16.msra.mxu0 0
        %7563 = vmatprep.subr.bf16.mxu0 0
        %7564 = vmatpush1.bf16.msra.mxu0 0
        %7565 = vmatprep.subr.bf16.mxu0 0
        %7566 = vmatpush1.bf16.msra.mxu0 0
        %7567 = vmatprep.subr.bf16.mxu0 0
        %7568 = vmatpush1.bf16.msra.mxu0 0
        %7569 = vmatprep.subr.bf16.mxu0 0
        %7570 = vmatpush1.bf16.msra.mxu0 0
        %7571 = vmatprep.mubr.bf16.mxu0 0
        %7572 = vmatmul.mubr.bf16.gmra.mrb[0].mxu0 %v6696
        %v7573 = vpop.f32.mrb[0].mxu0
        %v7574 = vadd.f32 %v6619, %v7573
        %v7575 = vpop.f32.mrb[0].mxu0
        %v7576 = vadd.f32 %v6621, %v7575
        %v7577 = vpop.f32.mrb[0].mxu0
        %v7578 = vadd.f32 %v6623, %v7577
        %v7579 = vpop.f32.mrb[0].mxu0
        %v7580 = vadd.f32 %v6625, %v7579
        %7581 = vmatprep.mubr.bf16.mxu0 0
        %7582 = vmatmul.mubr.bf16.gmra.mrb[0].mxu0 %v6699
        %v7583 = vpop.f32.mrb[0].mxu0
        %v7584 = vadd.f32 %v6629, %v7583
        %v7585 = vpop.f32.mrb[0].mxu0
        %v7586 = vadd.f32 %v6631, %v7585
        %v7587 = vpop.f32.mrb[0].mxu0
        %v7588 = vadd.f32 %v6633, %v7587
        %v7589 = vpop.f32.mrb[0].mxu0
        %v7590 = vadd.f32 %v6635, %v7589
        %7591 = vdwg.mxu0
        %7592 = vmatprep.subr.bf16.mxu0 %v6795
        %7593 = vmatpush1.bf16.msra.mxu0 %v6792
        %7594 = vmatprep.subr.bf16.mxu0 0
        %7595 = vmatpush1.bf16.msra.mxu0 0
        %7596 = vmatprep.subr.bf16.mxu0 0
        %7597 = vmatpush1.bf16.msra.mxu0 0
        %7598 = vmatprep.subr.bf16.mxu0 0
        %7599 = vmatpush1.bf16.msra.mxu0 0
        %7600 = vmatprep.subr.bf16.mxu0 0
        %7601 = vmatpush1.bf16.msra.mxu0 0
        %7602 = vmatprep.subr.bf16.mxu0 0
        %7603 = vmatpush1.bf16.msra.mxu0 0
        %7604 = vmatprep.subr.bf16.mxu0 0
        %7605 = vmatpush1.bf16.msra.mxu0 0
        %7606 = vmatprep.subr.bf16.mxu0 0
        %7607 = vmatpush1.bf16.msra.mxu0 0
        %7608 = vmatprep.subr.bf16.mxu0 0
        %7609 = vmatpush1.bf16.msra.mxu0 0
        %7610 = vmatprep.subr.bf16.mxu0 0
        %7611 = vmatpush1.bf16.msra.mxu0 0
        %7612 = vmatprep.subr.bf16.mxu0 0
        %7613 = vmatpush1.bf16.msra.mxu0 0
        %7614 = vmatprep.subr.bf16.mxu0 0
        %7615 = vmatpush1.bf16.msra.mxu0 0
        %7616 = vmatprep.subr.bf16.mxu0 0
        %7617 = vmatpush1.bf16.msra.mxu0 0
        %7618 = vmatprep.subr.bf16.mxu0 0
        %7619 = vmatpush1.bf16.msra.mxu0 0
        %7620 = vmatprep.subr.bf16.mxu0 0
        %7621 = vmatpush1.bf16.msra.mxu0 0
        %7622 = vmatprep.subr.bf16.mxu0 0
        %7623 = vmatpush1.bf16.msra.mxu0 0
        %7624 = vmatprep.mubr.bf16.mxu0 0
        %7625 = vmatmul.mubr.bf16.gmra.mrb[0].mxu0 %v6696
        %v7626 = vpop.f32.mrb[0].mxu0
        %v7627 = vadd.f32 %v6672, %v7626
        %v7628 = vpop.f32.mrb[0].mxu0
        %v7629 = vadd.f32 %v6674, %v7628
        %v7630 = vpop.f32.mrb[0].mxu0
        %v7631 = vadd.f32 %v6676, %v7630
        %v7632 = vpop.f32.mrb[0].mxu0
        %v7633 = vadd.f32 %v6678, %v7632
        %7634 = vmatprep.mubr.bf16.mxu0 0
        %7635 = vmatmul.mubr.bf16.gmra.mrb[0].mxu0 %v6699
        %v7636 = vpop.f32.mrb[0].mxu0
        %v7637 = vadd.f32 %v6682, %v7636
        %v7638 = vpop.f32.mrb[0].mxu0
        %v7639 = vadd.f32 %v6684, %v7638
        %v7640 = vpop.f32.mrb[0].mxu0
        %v7641 = vadd.f32 %v6686, %v7640
        %v7642 = vpop.f32.mrb[0].mxu0
        %v7643 = vadd.f32 %v6688, %v7642
        %7644 = vdwg.mxu0
        %7645 = vset.pattern.permute.xlu0 80
        %7646 = vperm.xlu0 %7645, %v3200
        %v7647 = vpop.permute.xlu0 %7646
        %7649 = vset.pattern.permute.xlu0 80
        %7650 = vperm.xlu0 %7649, %v4298
        %v7651 = vpop.permute.xlu0 %7650
        %7653 = vset.pattern.permute.xlu0 80
        %7654 = vperm.xlu0 %7653, %v4299
        %v7655 = vpop.permute.xlu0 %7654
        %7657 = vset.pattern.permute.xlu0 80
        %7658 = vperm.xlu0 %7657, %v4300
        %v7659 = vpop.permute.xlu0 %7658
        %v7661 = vadd.f32 %v6832, %v7647
        %v7662 = vadd.f32 %v6834, %v7647
        %v7663 = vadd.f32 %v6885, %v7647
        %v7664 = vadd.f32 %v6887, %v7647
        %v7665 = vadd.f32 %v6938, %v7647
        %v7666 = vadd.f32 %v6940, %v7647
        %v7667 = vadd.f32 %v6991, %v7647
        %v7668 = vadd.f32 %v6993, %v7647
        %v7669 = vadd.f32 %v7044, %v7647
        %v7670 = vadd.f32 %v7046, %v7647
        %v7671 = vadd.f32 %v7097, %v7647
        %v7672 = vadd.f32 %v7099, %v7647
        %v7673 = vadd.f32 %v7150, %v7647
        %v7674 = vadd.f32 %v7152, %v7647
        %v7675 = vadd.f32 %v7203, %v7647
        %v7676 = vadd.f32 %v7205, %v7647
        %v7677 = vadd.f32 %v7256, %v7647
        %v7678 = vadd.f32 %v7258, %v7647
        %v7679 = vadd.f32 %v7309, %v7647
        %v7680 = vadd.f32 %v7311, %v7647
        %v7681 = vadd.f32 %v7362, %v7647
        %v7682 = vadd.f32 %v7364, %v7647
        %v7683 = vadd.f32 %v7415, %v7647
        %v7684 = vadd.f32 %v7417, %v7647
        %v7685 = vadd.f32 %v7468, %v7647
        %v7686 = vadd.f32 %v7470, %v7647
        %v7687 = vadd.f32 %v7521, %v7647
        %v7688 = vadd.f32 %v7523, %v7647
        %v7689 = vadd.f32 %v7574, %v7647
        %v7690 = vadd.f32 %v7576, %v7647
        %v7691 = vadd.f32 %v7627, %v7647
        %v7692 = vadd.f32 %v7629, %v7647
        %v7693 = vadd.f32 %v6836, %v7651
        %v7694 = vadd.f32 %v6838, %v7651
        %v7695 = vadd.f32 %v6889, %v7651
        %v7696 = vadd.f32 %v6891, %v7651
        %v7697 = vadd.f32 %v6942, %v7651
        %v7698 = vadd.f32 %v6944, %v7651
        %v7699 = vadd.f32 %v6995, %v7651
        %v7700 = vadd.f32 %v6997, %v7651
        %v7701 = vadd.f32 %v7048, %v7651
        %v7702 = vadd.f32 %v7050, %v7651
        %v7703 = vadd.f32 %v7101, %v7651
        %v7704 = vadd.f32 %v7103, %v7651
        %v7705 = vadd.f32 %v7154, %v7651
        %v7706 = vadd.f32 %v7156, %v7651
        %v7707 = vadd.f32 %v7207, %v7651
        %v7708 = vadd.f32 %v7209, %v7651
        %v7709 = vadd.f32 %v7260, %v7651
        %v7710 = vadd.f32 %v7262, %v7651
        %v7711 = vadd.f32 %v7313, %v7651
        %v7712 = vadd.f32 %v7315, %v7651
        %v7713 = vadd.f32 %v7366, %v7651
        %v7714 = vadd.f32 %v7368, %v7651
        %v7715 = vadd.f32 %v7419, %v7651
        %v7716 = vadd.f32 %v7421, %v7651
        %v7717 = vadd.f32 %v7472, %v7651
        %v7718 = vadd.f32 %v7474, %v7651
        %v7719 = vadd.f32 %v7525, %v7651
        %v7720 = vadd.f32 %v7527, %v7651
        %v7721 = vadd.f32 %v7578, %v7651
        %v7722 = vadd.f32 %v7580, %v7651
        %v7723 = vadd.f32 %v7631, %v7651
        %v7724 = vadd.f32 %v7633, %v7651
        %v7725 = vadd.f32 %v6842, %v7655
        %v7726 = vadd.f32 %v6844, %v7655
        %v7727 = vadd.f32 %v6895, %v7655
        %v7728 = vadd.f32 %v6897, %v7655
        %v7729 = vadd.f32 %v6948, %v7655
        %v7730 = vadd.f32 %v6950, %v7655
        %v7731 = vadd.f32 %v7001, %v7655
        %v7732 = vadd.f32 %v7003, %v7655
        %v7733 = vadd.f32 %v7054, %v7655
        %v7734 = vadd.f32 %v7056, %v7655
        %v7735 = vadd.f32 %v7107, %v7655
        %v7736 = vadd.f32 %v7109, %v7655
        %v7737 = vadd.f32 %v7160, %v7655
        %v7738 = vadd.f32 %v7162, %v7655
        %v7739 = vadd.f32 %v7213, %v7655
        %v7740 = vadd.f32 %v7215, %v7655
        %v7741 = vadd.f32 %v7266, %v7655
        %v7742 = vadd.f32 %v7268, %v7655
        %v7743 = vadd.f32 %v7319, %v7655
        %v7744 = vadd.f32 %v7321, %v7655
        %v7745 = vadd.f32 %v7372, %v7655
        %v7746 = vadd.f32 %v7374, %v7655
        %v7747 = vadd.f32 %v7425, %v7655
        %v7748 = vadd.f32 %v7427, %v7655
        %v7749 = vadd.f32 %v7478, %v7655
        %v7750 = vadd.f32 %v7480, %v7655
        %v7751 = vadd.f32 %v7531, %v7655
        %v7752 = vadd.f32 %v7533, %v7655
        %v7753 = vadd.f32 %v7584, %v7655
        %v7754 = vadd.f32 %v7586, %v7655
        %v7755 = vadd.f32 %v7637, %v7655
        %v7756 = vadd.f32 %v7639, %v7655
        %v7757 = vadd.f32 %v6846, %v7659
        %v7758 = vadd.f32 %v6848, %v7659
        %v7759 = vadd.f32 %v6899, %v7659
        %v7760 = vadd.f32 %v6901, %v7659
        %v7761 = vadd.f32 %v6952, %v7659
        %v7762 = vadd.f32 %v6954, %v7659
        %v7763 = vadd.f32 %v7005, %v7659
        %v7764 = vadd.f32 %v7007, %v7659
        %v7765 = vadd.f32 %v7058, %v7659
        %v7766 = vadd.f32 %v7060, %v7659
        %v7767 = vadd.f32 %v7111, %v7659
        %v7768 = vadd.f32 %v7113, %v7659
        %v7769 = vadd.f32 %v7164, %v7659
        %v7770 = vadd.f32 %v7166, %v7659
        %v7771 = vadd.f32 %v7217, %v7659
        %v7772 = vadd.f32 %v7219, %v7659
        %v7773 = vadd.f32 %v7270, %v7659
        %v7774 = vadd.f32 %v7272, %v7659
        %v7775 = vadd.f32 %v7323, %v7659
        %v7776 = vadd.f32 %v7325, %v7659
        %v7777 = vadd.f32 %v7376, %v7659
        %v7778 = vadd.f32 %v7378, %v7659
        %v7779 = vadd.f32 %v7429, %v7659
        %v7780 = vadd.f32 %v7431, %v7659
        %v7781 = vadd.f32 %v7482, %v7659
        %v7782 = vadd.f32 %v7484, %v7659
        %v7783 = vadd.f32 %v7535, %v7659
        %v7784 = vadd.f32 %v7537, %v7659
        %v7785 = vadd.f32 %v7588, %v7659
        %v7786 = vadd.f32 %v7590, %v7659
        %v7787 = vadd.f32 %v7641, %v7659
        %v7788 = vadd.f32 %v7643, %v7659
        %v7789 = vmax.f32 %v7661, 0.0
        %v7790 = vmax.f32 %v7662, 0.0
        %v7791 = vmax.f32 %v7663, 0.0
        %v7792 = vmax.f32 %v7664, 0.0
        %v7793 = vmax.f32 %v7665, 0.0
        %v7794 = vmax.f32 %v7666, 0.0
        %v7795 = vmax.f32 %v7667, 0.0
        %v7796 = vmax.f32 %v7668, 0.0
        %v7797 = vmax.f32 %v7669, 0.0
        %v7798 = vmax.f32 %v7670, 0.0
        %v7799 = vmax.f32 %v7671, 0.0
        %v7800 = vmax.f32 %v7672, 0.0
        %v7801 = vmax.f32 %v7673, 0.0
        %v7802 = vmax.f32 %v7674, 0.0
        %v7803 = vmax.f32 %v7675, 0.0
        %v7804 = vmax.f32 %v7676, 0.0
        %v7805 = vmax.f32 %v7677, 0.0
        %v7806 = vmax.f32 %v7678, 0.0
        %v7807 = vmax.f32 %v7679, 0.0
        %v7808 = vmax.f32 %v7680, 0.0
        %v7809 = vmax.f32 %v7681, 0.0
        %v7810 = vmax.f32 %v7682, 0.0
        %v7811 = vmax.f32 %v7683, 0.0
        %v7812 = vmax.f32 %v7684, 0.0
        %v7813 = vmax.f32 %v7685, 0.0
        %v7814 = vmax.f32 %v7686, 0.0
        %v7815 = vmax.f32 %v7687, 0.0
        %v7816 = vmax.f32 %v7688, 0.0
        %v7817 = vmax.f32 %v7689, 0.0
        %v7818 = vmax.f32 %v7690, 0.0
        %v7819 = vmax.f32 %v7691, 0.0
        %v7820 = vmax.f32 %v7692, 0.0
        %v7821 = vmax.f32 %v7693, 0.0
        %v7822 = vmax.f32 %v7694, 0.0
        %v7823 = vmax.f32 %v7695, 0.0
        %v7824 = vmax.f32 %v7696, 0.0
        %v7825 = vmax.f32 %v7697, 0.0
        %v7826 = vmax.f32 %v7698, 0.0
        %v7827 = vmax.f32 %v7699, 0.0
        %v7828 = vmax.f32 %v7700, 0.0
        %v7829 = vmax.f32 %v7701, 0.0
        %v7830 = vmax.f32 %v7702, 0.0
        %v7831 = vmax.f32 %v7703, 0.0
        %v7832 = vmax.f32 %v7704, 0.0
        %v7833 = vmax.f32 %v7705, 0.0
        %v7834 = vmax.f32 %v7706, 0.0
        %v7835 = vmax.f32 %v7707, 0.0
        %v7836 = vmax.f32 %v7708, 0.0
        %v7837 = vmax.f32 %v7709, 0.0
        %v7838 = vmax.f32 %v7710, 0.0
        %v7839 = vmax.f32 %v7711, 0.0
        %v7840 = vmax.f32 %v7712, 0.0
        %v7841 = vmax.f32 %v7713, 0.0
        %v7842 = vmax.f32 %v7714, 0.0
        %v7843 = vmax.f32 %v7715, 0.0
        %v7844 = vmax.f32 %v7716, 0.0
        %v7845 = vmax.f32 %v7717, 0.0
        %v7846 = vmax.f32 %v7718, 0.0
        %v7847 = vmax.f32 %v7719, 0.0
        %v7848 = vmax.f32 %v7720, 0.0
        %v7849 = vmax.f32 %v7721, 0.0
        %v7850 = vmax.f32 %v7722, 0.0
        %v7851 = vmax.f32 %v7723, 0.0
        %v7852 = vmax.f32 %v7724, 0.0
        %v7853 = vmax.f32 %v7725, 0.0
        %v7854 = vmax.f32 %v7726, 0.0
        %v7855 = vmax.f32 %v7727, 0.0
        %v7856 = vmax.f32 %v7728, 0.0
        %v7857 = vmax.f32 %v7729, 0.0
        %v7858 = vmax.f32 %v7730, 0.0
        %v7859 = vmax.f32 %v7731, 0.0
        %v7860 = vmax.f32 %v7732, 0.0
        %v7861 = vmax.f32 %v7733, 0.0
        %v7862 = vmax.f32 %v7734, 0.0
        %v7863 = vmax.f32 %v7735, 0.0
        %v7864 = vmax.f32 %v7736, 0.0
        %v7865 = vmax.f32 %v7737, 0.0
        %v7866 = vmax.f32 %v7738, 0.0
        %v7867 = vmax.f32 %v7739, 0.0
        %v7868 = vmax.f32 %v7740, 0.0
        %v7869 = vmax.f32 %v7741, 0.0
        %v7870 = vmax.f32 %v7742, 0.0
        %v7871 = vmax.f32 %v7743, 0.0
        %v7872 = vmax.f32 %v7744, 0.0
        %v7873 = vmax.f32 %v7745, 0.0
        %v7874 = vmax.f32 %v7746, 0.0
        %v7875 = vmax.f32 %v7747, 0.0
        %v7876 = vmax.f32 %v7748, 0.0
        %v7877 = vmax.f32 %v7749, 0.0
        %v7878 = vmax.f32 %v7750, 0.0
        %v7879 = vmax.f32 %v7751, 0.0
        %v7880 = vmax.f32 %v7752, 0.0
        %v7881 = vmax.f32 %v7753, 0.0
        %v7882 = vmax.f32 %v7754, 0.0
        %v7883 = vmax.f32 %v7755, 0.0
        %v7884 = vmax.f32 %v7756, 0.0
        %v7885 = vmax.f32 %v7757, 0.0
        %v7886 = vmax.f32 %v7758, 0.0
        %v7887 = vmax.f32 %v7759, 0.0
        %v7888 = vmax.f32 %v7760, 0.0
        %v7889 = vmax.f32 %v7761, 0.0
        %v7890 = vmax.f32 %v7762, 0.0
        %v7891 = vmax.f32 %v7763, 0.0
        %v7892 = vmax.f32 %v7764, 0.0
        %v7893 = vmax.f32 %v7765, 0.0
        %v7894 = vmax.f32 %v7766, 0.0
        %v7895 = vmax.f32 %v7767, 0.0
        %v7896 = vmax.f32 %v7768, 0.0
        %v7897 = vmax.f32 %v7769, 0.0
        %v7898 = vmax.f32 %v7770, 0.0
        %v7899 = vmax.f32 %v7771, 0.0
        %v7900 = vmax.f32 %v7772, 0.0
        %v7901 = vmax.f32 %v7773, 0.0
        %v7902 = vmax.f32 %v7774, 0.0
        %v7903 = vmax.f32 %v7775, 0.0
        %v7904 = vmax.f32 %v7776, 0.0
        %v7905 = vmax.f32 %v7777, 0.0
        %v7906 = vmax.f32 %v7778, 0.0
        %v7907 = vmax.f32 %v7779, 0.0
        %v7908 = vmax.f32 %v7780, 0.0
        %v7909 = vmax.f32 %v7781, 0.0
        %v7910 = vmax.f32 %v7782, 0.0
        %v7911 = vmax.f32 %v7783, 0.0
        %v7912 = vmax.f32 %v7784, 0.0
        %v7913 = vmax.f32 %v7785, 0.0
        %v7914 = vmax.f32 %v7786, 0.0
        %v7915 = vmax.f32 %v7787, 0.0
        %v7916 = vmax.f32 %v7788, 0.0
        %v7917 = vpack.c.bf16 %v7821, %v7789
        %v7918 = vpack.c.bf16 %v7822, %v7790
        %v7919 = vpack.c.bf16 %v7823, %v7791
        %v7920 = vpack.c.bf16 %v7824, %v7792
        %v7921 = vpack.c.bf16 %v7825, %v7793
        %v7922 = vpack.c.bf16 %v7826, %v7794
        %v7923 = vpack.c.bf16 %v7827, %v7795
        %v7924 = vpack.c.bf16 %v7828, %v7796
        %v7925 = vpack.c.bf16 %v7829, %v7797
        %v7926 = vpack.c.bf16 %v7830, %v7798
        %v7927 = vpack.c.bf16 %v7831, %v7799
        %v7928 = vpack.c.bf16 %v7832, %v7800
        %v7929 = vpack.c.bf16 %v7833, %v7801
        %v7930 = vpack.c.bf16 %v7834, %v7802
        %v7931 = vpack.c.bf16 %v7835, %v7803
        %v7932 = vpack.c.bf16 %v7836, %v7804
        %v7933 = vpack.c.bf16 %v7837, %v7805
        %v7934 = vpack.c.bf16 %v7838, %v7806
        %v7935 = vpack.c.bf16 %v7839, %v7807
        %v7936 = vpack.c.bf16 %v7840, %v7808
        %v7937 = vpack.c.bf16 %v7841, %v7809
        %v7938 = vpack.c.bf16 %v7842, %v7810
        %v7939 = vpack.c.bf16 %v7843, %v7811
        %v7940 = vpack.c.bf16 %v7844, %v7812
        %v7941 = vpack.c.bf16 %v7845, %v7813
        %v7942 = vpack.c.bf16 %v7846, %v7814
        %v7943 = vpack.c.bf16 %v7847, %v7815
        %v7944 = vpack.c.bf16 %v7848, %v7816
        %v7945 = vpack.c.bf16 %v7849, %v7817
        %v7946 = vpack.c.bf16 %v7850, %v7818
        %v7947 = vpack.c.bf16 %v7851, %v7819
        %v7948 = vpack.c.bf16 %v7852, %v7820
        %v7949 = vpack.c.bf16 %v7885, %v7853
        %v7950 = vpack.c.bf16 %v7886, %v7854
        %v7951 = vpack.c.bf16 %v7887, %v7855
        %v7952 = vpack.c.bf16 %v7888, %v7856
        %v7953 = vpack.c.bf16 %v7889, %v7857
        %v7954 = vpack.c.bf16 %v7890, %v7858
        %v7955 = vpack.c.bf16 %v7891, %v7859
        %v7956 = vpack.c.bf16 %v7892, %v7860
        %v7957 = vpack.c.bf16 %v7893, %v7861
        %v7958 = vpack.c.bf16 %v7894, %v7862
        %v7959 = vpack.c.bf16 %v7895, %v7863
        %v7960 = vpack.c.bf16 %v7896, %v7864
        %v7961 = vpack.c.bf16 %v7897, %v7865
        %v7962 = vpack.c.bf16 %v7898, %v7866
        %v7963 = vpack.c.bf16 %v7899, %v7867
        %v7964 = vpack.c.bf16 %v7900, %v7868
        %v7965 = vpack.c.bf16 %v7901, %v7869
        %v7966 = vpack.c.bf16 %v7902, %v7870
        %v7967 = vpack.c.bf16 %v7903, %v7871
        %v7968 = vpack.c.bf16 %v7904, %v7872
        %v7969 = vpack.c.bf16 %v7905, %v7873
        %v7970 = vpack.c.bf16 %v7906, %v7874
        %v7971 = vpack.c.bf16 %v7907, %v7875
        %v7972 = vpack.c.bf16 %v7908, %v7876
        %v7973 = vpack.c.bf16 %v7909, %v7877
        %v7974 = vpack.c.bf16 %v7910, %v7878
        %v7975 = vpack.c.bf16 %v7911, %v7879
        %v7976 = vpack.c.bf16 %v7912, %v7880
        %v7977 = vpack.c.bf16 %v7913, %v7881
        %v7978 = vpack.c.bf16 %v7914, %v7882
        %v7979 = vpack.c.bf16 %v7915, %v7883
        %v7980 = vpack.c.bf16 %v7916, %v7884
        %7981 = vset.pattern.permute.xlu0 81
        %7982 = vperm.xlu0 %7981, %v3200
        %v7983 = vpop.permute.xlu0 %7982
        %v7985 = vpack.c.b16 %v4356, %v4356
        %7986 = vrot.lane.b32.xlu0 %v7985, 81
        %v7987 = vpop.permute.xlu0 %7986
        %v7989 = vsel %vm5835, %v7987, 0
        %7991 = vmatprep.subr.bf16.mxu0 %v7918
        %7992 = vmatpush1.bf16.msra.mxu0 %v7917
        %7993 = vmatprep.subr.bf16.mxu0 %v7950
        %7994 = vmatpush1.bf16.msra.mxu0 %v7949
        %7995 = vmatprep.subr.bf16.mxu0 0
        %7996 = vmatpush1.bf16.msra.mxu0 0
        %7997 = vmatprep.subr.bf16.mxu0 0
        %7998 = vmatpush1.bf16.msra.mxu0 0
        %7999 = vmatprep.subr.bf16.mxu0 0
        %8000 = vmatpush1.bf16.msra.mxu0 0
        %8001 = vmatprep.subr.bf16.mxu0 0
        %8002 = vmatpush1.bf16.msra.mxu0 0
        %8003 = vmatprep.subr.bf16.mxu0 0
        %8004 = vmatpush1.bf16.msra.mxu0 0
        %8005 = vmatprep.subr.bf16.mxu0 0
        %8006 = vmatpush1.bf16.msra.mxu0 0
        %8007 = vmatprep.subr.bf16.mxu0 0
        %8008 = vmatpush1.bf16.msra.mxu0 0
        %8009 = vmatprep.subr.bf16.mxu0 0
        %8010 = vmatpush1.bf16.msra.mxu0 0
        %8011 = vmatprep.subr.bf16.mxu0 0
        %8012 = vmatpush1.bf16.msra.mxu0 0
        %8013 = vmatprep.subr.bf16.mxu0 0
        %8014 = vmatpush1.bf16.msra.mxu0 0
        %8015 = vmatprep.subr.bf16.mxu0 0
        %8016 = vmatpush1.bf16.msra.mxu0 0
        %8017 = vmatprep.subr.bf16.mxu0 0
        %8018 = vmatpush1.bf16.msra.mxu0 0
        %8019 = vmatprep.subr.bf16.mxu0 0
        %8020 = vmatpush1.bf16.msra.mxu0 0
        %8021 = vmatprep.subr.bf16.mxu0 0
        %8022 = vmatpush1.bf16.msra.mxu0 0
        %8023 = vmatprep.mubr.bf16.mxu0 0
        %8024 = vmatmul.mubr.bf16.gmra.mrb[0].mxu0 %v7989
        %v8025 = vpop.f32.mrb[0].mxu0
        %v8026 = vadd.f32 %v7983, %v8025
        %v8027 = vpop.f32.mrb[0].mxu0
        %v8028 = vadd.f32 %v7983, %v8027
        %v8029 = vpop.f32.mrb[0].mxu0
        %v8030 = vpop.f32.mrb[0].mxu0
        %8031 = vdwg.mxu0
        %8032 = vmatprep.subr.bf16.mxu0 %v7920
        %8033 = vmatpush1.bf16.msra.mxu0 %v7919
        %8034 = vmatprep.subr.bf16.mxu0 %v7952
        %8035 = vmatpush1.bf16.msra.mxu0 %v7951
        %8036 = vmatprep.subr.bf16.mxu0 0
        %8037 = vmatpush1.bf16.msra.mxu0 0
        %8038 = vmatprep.subr.bf16.mxu0 0
        %8039 = vmatpush1.bf16.msra.mxu0 0
        %8040 = vmatprep.subr.bf16.mxu0 0
        %8041 = vmatpush1.bf16.msra.mxu0 0
        %8042 = vmatprep.subr.bf16.mxu0 0
        %8043 = vmatpush1.bf16.msra.mxu0 0
        %8044 = vmatprep.subr.bf16.mxu0 0
        %8045 = vmatpush1.bf16.msra.mxu0 0
        %8046 = vmatprep.subr.bf16.mxu0 0
        %8047 = vmatpush1.bf16.msra.mxu0 0
        %8048 = vmatprep.subr.bf16.mxu0 0
        %8049 = vmatpush1.bf16.msra.mxu0 0
        %8050 = vmatprep.subr.bf16.mxu0 0
        %8051 = vmatpush1.bf16.msra.mxu0 0
        %8052 = vmatprep.subr.bf16.mxu0 0
        %8053 = vmatpush1.bf16.msra.mxu0 0
        %8054 = vmatprep.subr.bf16.mxu0 0
        %8055 = vmatpush1.bf16.msra.mxu0 0
        %8056 = vmatprep.subr.bf16.mxu0 0
        %8057 = vmatpush1.bf16.msra.mxu0 0
        %8058 = vmatprep.subr.bf16.mxu0 0
        %8059 = vmatpush1.bf16.msra.mxu0 0
        %8060 = vmatprep.subr.bf16.mxu0 0
        %8061 = vmatpush1.bf16.msra.mxu0 0
        %8062 = vmatprep.subr.bf16.mxu0 0
        %8063 = vmatpush1.bf16.msra.mxu0 0
        %8064 = vmatprep.mubr.bf16.mxu0 0
        %8065 = vmatmul.mubr.bf16.gmra.mrb[0].mxu0 %v7989
        %v8066 = vpop.f32.mrb[0].mxu0
        %v8067 = vadd.f32 %v7983, %v8066
        %v8068 = vpop.f32.mrb[0].mxu0
        %v8069 = vadd.f32 %v7983, %v8068
        %v8070 = vpop.f32.mrb[0].mxu0
        %v8071 = vpop.f32.mrb[0].mxu0
        %8072 = vdwg.mxu0
        %8073 = vmatprep.subr.bf16.mxu0 %v7922
        %8074 = vmatpush1.bf16.msra.mxu0 %v7921
        %8075 = vmatprep.subr.bf16.mxu0 %v7954
        %8076 = vmatpush1.bf16.msra.mxu0 %v7953
        %8077 = vmatprep.subr.bf16.mxu0 0
        %8078 = vmatpush1.bf16.msra.mxu0 0
        %8079 = vmatprep.subr.bf16.mxu0 0
        %8080 = vmatpush1.bf16.msra.mxu0 0
        %8081 = vmatprep.subr.bf16.mxu0 0
        %8082 = vmatpush1.bf16.msra.mxu0 0
        %8083 = vmatprep.subr.bf16.mxu0 0
        %8084 = vmatpush1.bf16.msra.mxu0 0
        %8085 = vmatprep.subr.bf16.mxu0 0
        %8086 = vmatpush1.bf16.msra.mxu0 0
        %8087 = vmatprep.subr.bf16.mxu0 0
        %8088 = vmatpush1.bf16.msra.mxu0 0
        %8089 = vmatprep.subr.bf16.mxu0 0
        %8090 = vmatpush1.bf16.msra.mxu0 0
        %8091 = vmatprep.subr.bf16.mxu0 0
        %8092 = vmatpush1.bf16.msra.mxu0 0
        %8093 = vmatprep.subr.bf16.mxu0 0
        %8094 = vmatpush1.bf16.msra.mxu0 0
        %8095 = vmatprep.subr.bf16.mxu0 0
        %8096 = vmatpush1.bf16.msra.mxu0 0
        %8097 = vmatprep.subr.bf16.mxu0 0
        %8098 = vmatpush1.bf16.msra.mxu0 0
        %8099 = vmatprep.subr.bf16.mxu0 0
        %8100 = vmatpush1.bf16.msra.mxu0 0
        %8101 = vmatprep.subr.bf16.mxu0 0
        %8102 = vmatpush1.bf16.msra.mxu0 0
        %8103 = vmatprep.subr.bf16.mxu0 0
        %8104 = vmatpush1.bf16.msra.mxu0 0
        %8105 = vmatprep.mubr.bf16.mxu0 0
        %8106 = vmatmul.mubr.bf16.gmra.mrb[0].mxu0 %v7989
        %v8107 = vpop.f32.mrb[0].mxu0
        %v8108 = vadd.f32 %v7983, %v8107
        %v8109 = vpop.f32.mrb[0].mxu0
        %v8110 = vadd.f32 %v7983, %v8109
        %v8111 = vpop.f32.mrb[0].mxu0
        %v8112 = vpop.f32.mrb[0].mxu0
        %8113 = vdwg.mxu0
        %8114 = vmatprep.subr.bf16.mxu0 %v7924
        %8115 = vmatpush1.bf16.msra.mxu0 %v7923
        %8116 = vmatprep.subr.bf16.mxu0 %v7956
        %8117 = vmatpush1.bf16.msra.mxu0 %v7955
        %8118 = vmatprep.subr.bf16.mxu0 0
        %8119 = vmatpush1.bf16.msra.mxu0 0
        %8120 = vmatprep.subr.bf16.mxu0 0
        %8121 = vmatpush1.bf16.msra.mxu0 0
        %8122 = vmatprep.subr.bf16.mxu0 0
        %8123 = vmatpush1.bf16.msra.mxu0 0
        %8124 = vmatprep.subr.bf16.mxu0 0
        %8125 = vmatpush1.bf16.msra.mxu0 0
        %8126 = vmatprep.subr.bf16.mxu0 0
        %8127 = vmatpush1.bf16.msra.mxu0 0
        %8128 = vmatprep.subr.bf16.mxu0 0
        %8129 = vmatpush1.bf16.msra.mxu0 0
        %8130 = vmatprep.subr.bf16.mxu0 0
        %8131 = vmatpush1.bf16.msra.mxu0 0
        %8132 = vmatprep.subr.bf16.mxu0 0
        %8133 = vmatpush1.bf16.msra.mxu0 0
        %8134 = vmatprep.subr.bf16.mxu0 0
        %8135 = vmatpush1.bf16.msra.mxu0 0
        %8136 = vmatprep.subr.bf16.mxu0 0
        %8137 = vmatpush1.bf16.msra.mxu0 0
        %8138 = vmatprep.subr.bf16.mxu0 0
        %8139 = vmatpush1.bf16.msra.mxu0 0
        %8140 = vmatprep.subr.bf16.mxu0 0
        %8141 = vmatpush1.bf16.msra.mxu0 0
        %8142 = vmatprep.subr.bf16.mxu0 0
        %8143 = vmatpush1.bf16.msra.mxu0 0
        %8144 = vmatprep.subr.bf16.mxu0 0
        %8145 = vmatpush1.bf16.msra.mxu0 0
        %8146 = vmatprep.mubr.bf16.mxu0 0
        %8147 = vmatmul.mubr.bf16.gmra.mrb[0].mxu0 %v7989
        %v8148 = vpop.f32.mrb[0].mxu0
        %v8149 = vadd.f32 %v7983, %v8148
        %v8150 = vpop.f32.mrb[0].mxu0
        %v8151 = vadd.f32 %v7983, %v8150
        %v8152 = vpop.f32.mrb[0].mxu0
        %v8153 = vpop.f32.mrb[0].mxu0
        %8154 = vdwg.mxu0
        %8155 = vmatprep.subr.bf16.mxu0 %v7926
        %8156 = vmatpush1.bf16.msra.mxu0 %v7925
        %8157 = vmatprep.subr.bf16.mxu0 %v7958
        %8158 = vmatpush1.bf16.msra.mxu0 %v7957
        %8159 = vmatprep.subr.bf16.mxu0 0
        %8160 = vmatpush1.bf16.msra.mxu0 0
        %8161 = vmatprep.subr.bf16.mxu0 0
        %8162 = vmatpush1.bf16.msra.mxu0 0
        %8163 = vmatprep.subr.bf16.mxu0 0
        %8164 = vmatpush1.bf16.msra.mxu0 0
        %8165 = vmatprep.subr.bf16.mxu0 0
        %8166 = vmatpush1.bf16.msra.mxu0 0
        %8167 = vmatprep.subr.bf16.mxu0 0
        %8168 = vmatpush1.bf16.msra.mxu0 0
        %8169 = vmatprep.subr.bf16.mxu0 0
        %8170 = vmatpush1.bf16.msra.mxu0 0
        %8171 = vmatprep.subr.bf16.mxu0 0
        %8172 = vmatpush1.bf16.msra.mxu0 0
        %8173 = vmatprep.subr.bf16.mxu0 0
        %8174 = vmatpush1.bf16.msra.mxu0 0
        %8175 = vmatprep.subr.bf16.mxu0 0
        %8176 = vmatpush1.bf16.msra.mxu0 0
        %8177 = vmatprep.subr.bf16.mxu0 0
        %8178 = vmatpush1.bf16.msra.mxu0 0
        %8179 = vmatprep.subr.bf16.mxu0 0
        %8180 = vmatpush1.bf16.msra.mxu0 0
        %8181 = vmatprep.subr.bf16.mxu0 0
        %8182 = vmatpush1.bf16.msra.mxu0 0
        %8183 = vmatprep.subr.bf16.mxu0 0
        %8184 = vmatpush1.bf16.msra.mxu0 0
        %8185 = vmatprep.subr.bf16.mxu0 0
        %8186 = vmatpush1.bf16.msra.mxu0 0
        %8187 = vmatprep.mubr.bf16.mxu0 0
        %8188 = vmatmul.mubr.bf16.gmra.mrb[0].mxu0 %v7989
        %v8189 = vpop.f32.mrb[0].mxu0
        %v8190 = vadd.f32 %v7983, %v8189
        %v8191 = vpop.f32.mrb[0].mxu0
        %v8192 = vadd.f32 %v7983, %v8191
        %v8193 = vpop.f32.mrb[0].mxu0
        %v8194 = vpop.f32.mrb[0].mxu0
        %8195 = vdwg.mxu0
        %8196 = vmatprep.subr.bf16.mxu0 %v7928
        %8197 = vmatpush1.bf16.msra.mxu0 %v7927
        %8198 = vmatprep.subr.bf16.mxu0 %v7960
        %8199 = vmatpush1.bf16.msra.mxu0 %v7959
        %8200 = vmatprep.subr.bf16.mxu0 0
        %8201 = vmatpush1.bf16.msra.mxu0 0
        %8202 = vmatprep.subr.bf16.mxu0 0
        %8203 = vmatpush1.bf16.msra.mxu0 0
        %8204 = vmatprep.subr.bf16.mxu0 0
        %8205 = vmatpush1.bf16.msra.mxu0 0
        %8206 = vmatprep.subr.bf16.mxu0 0
        %8207 = vmatpush1.bf16.msra.mxu0 0
        %8208 = vmatprep.subr.bf16.mxu0 0
        %8209 = vmatpush1.bf16.msra.mxu0 0
        %8210 = vmatprep.subr.bf16.mxu0 0
        %8211 = vmatpush1.bf16.msra.mxu0 0
        %8212 = vmatprep.subr.bf16.mxu0 0
        %8213 = vmatpush1.bf16.msra.mxu0 0
        %8214 = vmatprep.subr.bf16.mxu0 0
        %8215 = vmatpush1.bf16.msra.mxu0 0
        %8216 = vmatprep.subr.bf16.mxu0 0
        %8217 = vmatpush1.bf16.msra.mxu0 0
        %8218 = vmatprep.subr.bf16.mxu0 0
        %8219 = vmatpush1.bf16.msra.mxu0 0
        %8220 = vmatprep.subr.bf16.mxu0 0
        %8221 = vmatpush1.bf16.msra.mxu0 0
        %8222 = vmatprep.subr.bf16.mxu0 0
        %8223 = vmatpush1.bf16.msra.mxu0 0
        %8224 = vmatprep.subr.bf16.mxu0 0
        %8225 = vmatpush1.bf16.msra.mxu0 0
        %8226 = vmatprep.subr.bf16.mxu0 0
        %8227 = vmatpush1.bf16.msra.mxu0 0
        %8228 = vmatprep.mubr.bf16.mxu0 0
        %8229 = vmatmul.mubr.bf16.gmra.mrb[0].mxu0 %v7989
        %v8230 = vpop.f32.mrb[0].mxu0
        %v8231 = vadd.f32 %v7983, %v8230
        %v8232 = vpop.f32.mrb[0].mxu0
        %v8233 = vadd.f32 %v7983, %v8232
        %v8234 = vpop.f32.mrb[0].mxu0
        %v8235 = vpop.f32.mrb[0].mxu0
        %8236 = vdwg.mxu0
        %8237 = vmatprep.subr.bf16.mxu0 %v7930
        %8238 = vmatpush1.bf16.msra.mxu0 %v7929
        %8239 = vmatprep.subr.bf16.mxu0 %v7962
        %8240 = vmatpush1.bf16.msra.mxu0 %v7961
        %8241 = vmatprep.subr.bf16.mxu0 0
        %8242 = vmatpush1.bf16.msra.mxu0 0
        %8243 = vmatprep.subr.bf16.mxu0 0
        %8244 = vmatpush1.bf16.msra.mxu0 0
        %8245 = vmatprep.subr.bf16.mxu0 0
        %8246 = vmatpush1.bf16.msra.mxu0 0
        %8247 = vmatprep.subr.bf16.mxu0 0
        %8248 = vmatpush1.bf16.msra.mxu0 0
        %8249 = vmatprep.subr.bf16.mxu0 0
        %8250 = vmatpush1.bf16.msra.mxu0 0
        %8251 = vmatprep.subr.bf16.mxu0 0
        %8252 = vmatpush1.bf16.msra.mxu0 0
        %8253 = vmatprep.subr.bf16.mxu0 0
        %8254 = vmatpush1.bf16.msra.mxu0 0
        %8255 = vmatprep.subr.bf16.mxu0 0
        %8256 = vmatpush1.bf16.msra.mxu0 0
        %8257 = vmatprep.subr.bf16.mxu0 0
        %8258 = vmatpush1.bf16.msra.mxu0 0
        %8259 = vmatprep.subr.bf16.mxu0 0
        %8260 = vmatpush1.bf16.msra.mxu0 0
        %8261 = vmatprep.subr.bf16.mxu0 0
        %8262 = vmatpush1.bf16.msra.mxu0 0
        %8263 = vmatprep.subr.bf16.mxu0 0
        %8264 = vmatpush1.bf16.msra.mxu0 0
        %8265 = vmatprep.subr.bf16.mxu0 0
        %8266 = vmatpush1.bf16.msra.mxu0 0
        %8267 = vmatprep.subr.bf16.mxu0 0
        %8268 = vmatpush1.bf16.msra.mxu0 0
        %8269 = vmatprep.mubr.bf16.mxu0 0
        %8270 = vmatmul.mubr.bf16.gmra.mrb[0].mxu0 %v7989
        %v8271 = vpop.f32.mrb[0].mxu0
        %v8272 = vadd.f32 %v7983, %v8271
        %v8273 = vpop.f32.mrb[0].mxu0
        %v8274 = vadd.f32 %v7983, %v8273
        %v8275 = vpop.f32.mrb[0].mxu0
        %v8276 = vpop.f32.mrb[0].mxu0
        %8277 = vdwg.mxu0
        %8278 = vmatprep.subr.bf16.mxu0 %v7932
        %8279 = vmatpush1.bf16.msra.mxu0 %v7931
        %8280 = vmatprep.subr.bf16.mxu0 %v7964
        %8281 = vmatpush1.bf16.msra.mxu0 %v7963
        %8282 = vmatprep.subr.bf16.mxu0 0
        %8283 = vmatpush1.bf16.msra.mxu0 0
        %8284 = vmatprep.subr.bf16.mxu0 0
        %8285 = vmatpush1.bf16.msra.mxu0 0
        %8286 = vmatprep.subr.bf16.mxu0 0
        %8287 = vmatpush1.bf16.msra.mxu0 0
        %8288 = vmatprep.subr.bf16.mxu0 0
        %8289 = vmatpush1.bf16.msra.mxu0 0
        %8290 = vmatprep.subr.bf16.mxu0 0
        %8291 = vmatpush1.bf16.msra.mxu0 0
        %8292 = vmatprep.subr.bf16.mxu0 0
        %8293 = vmatpush1.bf16.msra.mxu0 0
        %8294 = vmatprep.subr.bf16.mxu0 0
        %8295 = vmatpush1.bf16.msra.mxu0 0
        %8296 = vmatprep.subr.bf16.mxu0 0
        %8297 = vmatpush1.bf16.msra.mxu0 0
        %8298 = vmatprep.subr.bf16.mxu0 0
        %8299 = vmatpush1.bf16.msra.mxu0 0
        %8300 = vmatprep.subr.bf16.mxu0 0
        %8301 = vmatpush1.bf16.msra.mxu0 0
        %8302 = vmatprep.subr.bf16.mxu0 0
        %8303 = vmatpush1.bf16.msra.mxu0 0
        %8304 = vmatprep.subr.bf16.mxu0 0
        %8305 = vmatpush1.bf16.msra.mxu0 0
        %8306 = vmatprep.subr.bf16.mxu0 0
        %8307 = vmatpush1.bf16.msra.mxu0 0
        %8308 = vmatprep.subr.bf16.mxu0 0
        %8309 = vmatpush1.bf16.msra.mxu0 0
        %8310 = vmatprep.mubr.bf16.mxu0 0
        %8311 = vmatmul.mubr.bf16.gmra.mrb[0].mxu0 %v7989
        %v8312 = vpop.f32.mrb[0].mxu0
        %v8313 = vadd.f32 %v7983, %v8312
        %v8314 = vpop.f32.mrb[0].mxu0
        %v8315 = vadd.f32 %v7983, %v8314
        %v8316 = vpop.f32.mrb[0].mxu0
        %v8317 = vpop.f32.mrb[0].mxu0
        %8318 = vdwg.mxu0
        %8319 = vmatprep.subr.bf16.mxu0 %v7934
        %8320 = vmatpush1.bf16.msra.mxu0 %v7933
        %8321 = vmatprep.subr.bf16.mxu0 %v7966
        %8322 = vmatpush1.bf16.msra.mxu0 %v7965
        %8323 = vmatprep.subr.bf16.mxu0 0
        %8324 = vmatpush1.bf16.msra.mxu0 0
        %8325 = vmatprep.subr.bf16.mxu0 0
        %8326 = vmatpush1.bf16.msra.mxu0 0
        %8327 = vmatprep.subr.bf16.mxu0 0
        %8328 = vmatpush1.bf16.msra.mxu0 0
        %8329 = vmatprep.subr.bf16.mxu0 0
        %8330 = vmatpush1.bf16.msra.mxu0 0
        %8331 = vmatprep.subr.bf16.mxu0 0
        %8332 = vmatpush1.bf16.msra.mxu0 0
        %8333 = vmatprep.subr.bf16.mxu0 0
        %8334 = vmatpush1.bf16.msra.mxu0 0
        %8335 = vmatprep.subr.bf16.mxu0 0
        %8336 = vmatpush1.bf16.msra.mxu0 0
        %8337 = vmatprep.subr.bf16.mxu0 0
        %8338 = vmatpush1.bf16.msra.mxu0 0
        %8339 = vmatprep.subr.bf16.mxu0 0
        %8340 = vmatpush1.bf16.msra.mxu0 0
        %8341 = vmatprep.subr.bf16.mxu0 0
        %8342 = vmatpush1.bf16.msra.mxu0 0
        %8343 = vmatprep.subr.bf16.mxu0 0
        %8344 = vmatpush1.bf16.msra.mxu0 0
        %8345 = vmatprep.subr.bf16.mxu0 0
        %8346 = vmatpush1.bf16.msra.mxu0 0
        %8347 = vmatprep.subr.bf16.mxu0 0
        %8348 = vmatpush1.bf16.msra.mxu0 0
        %8349 = vmatprep.subr.bf16.mxu0 0
        %8350 = vmatpush1.bf16.msra.mxu0 0
        %8351 = vmatprep.mubr.bf16.mxu0 0
        %8352 = vmatmul.mubr.bf16.gmra.mrb[0].mxu0 %v7989
        %v8353 = vpop.f32.mrb[0].mxu0
        %v8354 = vadd.f32 %v7983, %v8353
        %v8355 = vpop.f32.mrb[0].mxu0
        %v8356 = vadd.f32 %v7983, %v8355
        %v8357 = vpop.f32.mrb[0].mxu0
        %v8358 = vpop.f32.mrb[0].mxu0
        %8359 = vdwg.mxu0
        %8360 = vmatprep.subr.bf16.mxu0 %v7936
        %8361 = vmatpush1.bf16.msra.mxu0 %v7935
        %8362 = vmatprep.subr.bf16.mxu0 %v7968
        %8363 = vmatpush1.bf16.msra.mxu0 %v7967
        %8364 = vmatprep.subr.bf16.mxu0 0
        %8365 = vmatpush1.bf16.msra.mxu0 0
        %8366 = vmatprep.subr.bf16.mxu0 0
        %8367 = vmatpush1.bf16.msra.mxu0 0
        %8368 = vmatprep.subr.bf16.mxu0 0
        %8369 = vmatpush1.bf16.msra.mxu0 0
        %8370 = vmatprep.subr.bf16.mxu0 0
        %8371 = vmatpush1.bf16.msra.mxu0 0
        %8372 = vmatprep.subr.bf16.mxu0 0
        %8373 = vmatpush1.bf16.msra.mxu0 0
        %8374 = vmatprep.subr.bf16.mxu0 0
        %8375 = vmatpush1.bf16.msra.mxu0 0
        %8376 = vmatprep.subr.bf16.mxu0 0
        %8377 = vmatpush1.bf16.msra.mxu0 0
        %8378 = vmatprep.subr.bf16.mxu0 0
        %8379 = vmatpush1.bf16.msra.mxu0 0
        %8380 = vmatprep.subr.bf16.mxu0 0
        %8381 = vmatpush1.bf16.msra.mxu0 0
        %8382 = vmatprep.subr.bf16.mxu0 0
        %8383 = vmatpush1.bf16.msra.mxu0 0
        %8384 = vmatprep.subr.bf16.mxu0 0
        %8385 = vmatpush1.bf16.msra.mxu0 0
        %8386 = vmatprep.subr.bf16.mxu0 0
        %8387 = vmatpush1.bf16.msra.mxu0 0
        %8388 = vmatprep.subr.bf16.mxu0 0
        %8389 = vmatpush1.bf16.msra.mxu0 0
        %8390 = vmatprep.subr.bf16.mxu0 0
        %8391 = vmatpush1.bf16.msra.mxu0 0
        %8392 = vmatprep.mubr.bf16.mxu0 0
        %8393 = vmatmul.mubr.bf16.gmra.mrb[0].mxu0 %v7989
        %v8394 = vpop.f32.mrb[0].mxu0
        %v8395 = vadd.f32 %v7983, %v8394
        %v8396 = vpop.f32.mrb[0].mxu0
        %v8397 = vadd.f32 %v7983, %v8396
        %v8398 = vpop.f32.mrb[0].mxu0
        %v8399 = vpop.f32.mrb[0].mxu0
        %8400 = vdwg.mxu0
        %8401 = vmatprep.subr.bf16.mxu0 %v7938
        %8402 = vmatpush1.bf16.msra.mxu0 %v7937
        %8403 = vmatprep.subr.bf16.mxu0 %v7970
        %8404 = vmatpush1.bf16.msra.mxu0 %v7969
        %8405 = vmatprep.subr.bf16.mxu0 0
        %8406 = vmatpush1.bf16.msra.mxu0 0
        %8407 = vmatprep.subr.bf16.mxu0 0
        %8408 = vmatpush1.bf16.msra.mxu0 0
        %8409 = vmatprep.subr.bf16.mxu0 0
        %8410 = vmatpush1.bf16.msra.mxu0 0
        %8411 = vmatprep.subr.bf16.mxu0 0
        %8412 = vmatpush1.bf16.msra.mxu0 0
        %8413 = vmatprep.subr.bf16.mxu0 0
        %8414 = vmatpush1.bf16.msra.mxu0 0
        %8415 = vmatprep.subr.bf16.mxu0 0
        %8416 = vmatpush1.bf16.msra.mxu0 0
        %8417 = vmatprep.subr.bf16.mxu0 0
        %8418 = vmatpush1.bf16.msra.mxu0 0
        %8419 = vmatprep.subr.bf16.mxu0 0
        %8420 = vmatpush1.bf16.msra.mxu0 0
        %8421 = vmatprep.subr.bf16.mxu0 0
        %8422 = vmatpush1.bf16.msra.mxu0 0
        %8423 = vmatprep.subr.bf16.mxu0 0
        %8424 = vmatpush1.bf16.msra.mxu0 0
        %8425 = vmatprep.subr.bf16.mxu0 0
        %8426 = vmatpush1.bf16.msra.mxu0 0
        %8427 = vmatprep.subr.bf16.mxu0 0
        %8428 = vmatpush1.bf16.msra.mxu0 0
        %8429 = vmatprep.subr.bf16.mxu0 0
        %8430 = vmatpush1.bf16.msra.mxu0 0
        %8431 = vmatprep.subr.bf16.mxu0 0
        %8432 = vmatpush1.bf16.msra.mxu0 0
        %8433 = vmatprep.mubr.bf16.mxu0 0
        %8434 = vmatmul.mubr.bf16.gmra.mrb[0].mxu0 %v7989
        %v8435 = vpop.f32.mrb[0].mxu0
        %v8436 = vadd.f32 %v7983, %v8435
        %v8437 = vpop.f32.mrb[0].mxu0
        %v8438 = vadd.f32 %v7983, %v8437
        %v8439 = vpop.f32.mrb[0].mxu0
        %v8440 = vpop.f32.mrb[0].mxu0
        %8441 = vdwg.mxu0
        %8442 = vmatprep.subr.bf16.mxu0 %v7940
        %8443 = vmatpush1.bf16.msra.mxu0 %v7939
        %8444 = vmatprep.subr.bf16.mxu0 %v7972
        %8445 = vmatpush1.bf16.msra.mxu0 %v7971
        %8446 = vmatprep.subr.bf16.mxu0 0
        %8447 = vmatpush1.bf16.msra.mxu0 0
        %8448 = vmatprep.subr.bf16.mxu0 0
        %8449 = vmatpush1.bf16.msra.mxu0 0
        %8450 = vmatprep.subr.bf16.mxu0 0
        %8451 = vmatpush1.bf16.msra.mxu0 0
        %8452 = vmatprep.subr.bf16.mxu0 0
        %8453 = vmatpush1.bf16.msra.mxu0 0
        %8454 = vmatprep.subr.bf16.mxu0 0
        %8455 = vmatpush1.bf16.msra.mxu0 0
        %8456 = vmatprep.subr.bf16.mxu0 0
        %8457 = vmatpush1.bf16.msra.mxu0 0
        %8458 = vmatprep.subr.bf16.mxu0 0
        %8459 = vmatpush1.bf16.msra.mxu0 0
        %8460 = vmatprep.subr.bf16.mxu0 0
        %8461 = vmatpush1.bf16.msra.mxu0 0
        %8462 = vmatprep.subr.bf16.mxu0 0
        %8463 = vmatpush1.bf16.msra.mxu0 0
        %8464 = vmatprep.subr.bf16.mxu0 0
        %8465 = vmatpush1.bf16.msra.mxu0 0
        %8466 = vmatprep.subr.bf16.mxu0 0
        %8467 = vmatpush1.bf16.msra.mxu0 0
        %8468 = vmatprep.subr.bf16.mxu0 0
        %8469 = vmatpush1.bf16.msra.mxu0 0
        %8470 = vmatprep.subr.bf16.mxu0 0
        %8471 = vmatpush1.bf16.msra.mxu0 0
        %8472 = vmatprep.subr.bf16.mxu0 0
        %8473 = vmatpush1.bf16.msra.mxu0 0
        %8474 = vmatprep.mubr.bf16.mxu0 0
        %8475 = vmatmul.mubr.bf16.gmra.mrb[0].mxu0 %v7989
        %v8476 = vpop.f32.mrb[0].mxu0
        %v8477 = vadd.f32 %v7983, %v8476
        %v8478 = vpop.f32.mrb[0].mxu0
        %v8479 = vadd.f32 %v7983, %v8478
        %v8480 = vpop.f32.mrb[0].mxu0
        %v8481 = vpop.f32.mrb[0].mxu0
        %8482 = vdwg.mxu0
        %8483 = vmatprep.subr.bf16.mxu0 %v7942
        %8484 = vmatpush1.bf16.msra.mxu0 %v7941
        %8485 = vmatprep.subr.bf16.mxu0 %v7974
        %8486 = vmatpush1.bf16.msra.mxu0 %v7973
        %8487 = vmatprep.subr.bf16.mxu0 0
        %8488 = vmatpush1.bf16.msra.mxu0 0
        %8489 = vmatprep.subr.bf16.mxu0 0
        %8490 = vmatpush1.bf16.msra.mxu0 0
        %8491 = vmatprep.subr.bf16.mxu0 0
        %8492 = vmatpush1.bf16.msra.mxu0 0
        %8493 = vmatprep.subr.bf16.mxu0 0
        %8494 = vmatpush1.bf16.msra.mxu0 0
        %8495 = vmatprep.subr.bf16.mxu0 0
        %8496 = vmatpush1.bf16.msra.mxu0 0
        %8497 = vmatprep.subr.bf16.mxu0 0
        %8498 = vmatpush1.bf16.msra.mxu0 0
        %8499 = vmatprep.subr.bf16.mxu0 0
        %8500 = vmatpush1.bf16.msra.mxu0 0
        %8501 = vmatprep.subr.bf16.mxu0 0
        %8502 = vmatpush1.bf16.msra.mxu0 0
        %8503 = vmatprep.subr.bf16.mxu0 0
        %8504 = vmatpush1.bf16.msra.mxu0 0
        %8505 = vmatprep.subr.bf16.mxu0 0
        %8506 = vmatpush1.bf16.msra.mxu0 0
        %8507 = vmatprep.subr.bf16.mxu0 0
        %8508 = vmatpush1.bf16.msra.mxu0 0
        %8509 = vmatprep.subr.bf16.mxu0 0
        %8510 = vmatpush1.bf16.msra.mxu0 0
        %8511 = vmatprep.subr.bf16.mxu0 0
        %8512 = vmatpush1.bf16.msra.mxu0 0
        %8513 = vmatprep.subr.bf16.mxu0 0
        %8514 = vmatpush1.bf16.msra.mxu0 0
        %8515 = vmatprep.mubr.bf16.mxu0 0
        %8516 = vmatmul.mubr.bf16.gmra.mrb[0].mxu0 %v7989
        %v8517 = vpop.f32.mrb[0].mxu0
        %v8518 = vadd.f32 %v7983, %v8517
        %v8519 = vpop.f32.mrb[0].mxu0
        %v8520 = vadd.f32 %v7983, %v8519
        %v8521 = vpop.f32.mrb[0].mxu0
        %v8522 = vpop.f32.mrb[0].mxu0
        %8523 = vdwg.mxu0
        %8524 = vmatprep.subr.bf16.mxu0 %v7944
        %8525 = vmatpush1.bf16.msra.mxu0 %v7943
        %8526 = vmatprep.subr.bf16.mxu0 %v7976
        %8527 = vmatpush1.bf16.msra.mxu0 %v7975
        %8528 = vmatprep.subr.bf16.mxu0 0
        %8529 = vmatpush1.bf16.msra.mxu0 0
        %8530 = vmatprep.subr.bf16.mxu0 0
        %8531 = vmatpush1.bf16.msra.mxu0 0
        %8532 = vmatprep.subr.bf16.mxu0 0
        %8533 = vmatpush1.bf16.msra.mxu0 0
        %8534 = vmatprep.subr.bf16.mxu0 0
        %8535 = vmatpush1.bf16.msra.mxu0 0
        %8536 = vmatprep.subr.bf16.mxu0 0
        %8537 = vmatpush1.bf16.msra.mxu0 0
        %8538 = vmatprep.subr.bf16.mxu0 0
        %8539 = vmatpush1.bf16.msra.mxu0 0
        %8540 = vmatprep.subr.bf16.mxu0 0
        %8541 = vmatpush1.bf16.msra.mxu0 0
        %8542 = vmatprep.subr.bf16.mxu0 0
        %8543 = vmatpush1.bf16.msra.mxu0 0
        %8544 = vmatprep.subr.bf16.mxu0 0
        %8545 = vmatpush1.bf16.msra.mxu0 0
        %8546 = vmatprep.subr.bf16.mxu0 0
        %8547 = vmatpush1.bf16.msra.mxu0 0
        %8548 = vmatprep.subr.bf16.mxu0 0
        %8549 = vmatpush1.bf16.msra.mxu0 0
        %8550 = vmatprep.subr.bf16.mxu0 0
        %8551 = vmatpush1.bf16.msra.mxu0 0
        %8552 = vmatprep.subr.bf16.mxu0 0
        %8553 = vmatpush1.bf16.msra.mxu0 0
        %8554 = vmatprep.subr.bf16.mxu0 0
        %8555 = vmatpush1.bf16.msra.mxu0 0
        %8556 = vmatprep.mubr.bf16.mxu0 0
        %8557 = vmatmul.mubr.bf16.gmra.mrb[0].mxu0 %v7989
        %v8558 = vpop.f32.mrb[0].mxu0
        %v8559 = vadd.f32 %v7983, %v8558
        %v8560 = vpop.f32.mrb[0].mxu0
        %v8561 = vadd.f32 %v7983, %v8560
        %v8562 = vpop.f32.mrb[0].mxu0
        %v8563 = vpop.f32.mrb[0].mxu0
        %8564 = vdwg.mxu0
        %8565 = vmatprep.subr.bf16.mxu0 %v7946
        %8566 = vmatpush1.bf16.msra.mxu0 %v7945
        %8567 = vmatprep.subr.bf16.mxu0 %v7978
        %8568 = vmatpush1.bf16.msra.mxu0 %v7977
        %8569 = vmatprep.subr.bf16.mxu0 0
        %8570 = vmatpush1.bf16.msra.mxu0 0
        %8571 = vmatprep.subr.bf16.mxu0 0
        %8572 = vmatpush1.bf16.msra.mxu0 0
        %8573 = vmatprep.subr.bf16.mxu0 0
        %8574 = vmatpush1.bf16.msra.mxu0 0
        %8575 = vmatprep.subr.bf16.mxu0 0
        %8576 = vmatpush1.bf16.msra.mxu0 0
        %8577 = vmatprep.subr.bf16.mxu0 0
        %8578 = vmatpush1.bf16.msra.mxu0 0
        %8579 = vmatprep.subr.bf16.mxu0 0
        %8580 = vmatpush1.bf16.msra.mxu0 0
        %8581 = vmatprep.subr.bf16.mxu0 0
        %8582 = vmatpush1.bf16.msra.mxu0 0
        %8583 = vmatprep.subr.bf16.mxu0 0
        %8584 = vmatpush1.bf16.msra.mxu0 0
        %8585 = vmatprep.subr.bf16.mxu0 0
        %8586 = vmatpush1.bf16.msra.mxu0 0
        %8587 = vmatprep.subr.bf16.mxu0 0
        %8588 = vmatpush1.bf16.msra.mxu0 0
        %8589 = vmatprep.subr.bf16.mxu0 0
        %8590 = vmatpush1.bf16.msra.mxu0 0
        %8591 = vmatprep.subr.bf16.mxu0 0
        %8592 = vmatpush1.bf16.msra.mxu0 0
        %8593 = vmatprep.subr.bf16.mxu0 0
        %8594 = vmatpush1.bf16.msra.mxu0 0
        %8595 = vmatprep.subr.bf16.mxu0 0
        %8596 = vmatpush1.bf16.msra.mxu0 0
        %8597 = vmatprep.mubr.bf16.mxu0 0
        %8598 = vmatmul.mubr.bf16.gmra.mrb[0].mxu0 %v7989
        %v8599 = vpop.f32.mrb[0].mxu0
        %v8600 = vadd.f32 %v7983, %v8599
        %v8601 = vpop.f32.mrb[0].mxu0
        %v8602 = vadd.f32 %v7983, %v8601
        %v8603 = vpop.f32.mrb[0].mxu0
        %v8604 = vpop.f32.mrb[0].mxu0
        %8605 = vdwg.mxu0
        %8606 = vmatprep.subr.bf16.mxu0 %v7948
        %8607 = vmatpush1.bf16.msra.mxu0 %v7947
        %8608 = vmatprep.subr.bf16.mxu0 %v7980
        %8609 = vmatpush1.bf16.msra.mxu0 %v7979
        %8610 = vmatprep.subr.bf16.mxu0 0
        %8611 = vmatpush1.bf16.msra.mxu0 0
        %8612 = vmatprep.subr.bf16.mxu0 0
        %8613 = vmatpush1.bf16.msra.mxu0 0
        %8614 = vmatprep.subr.bf16.mxu0 0
        %8615 = vmatpush1.bf16.msra.mxu0 0
        %8616 = vmatprep.subr.bf16.mxu0 0
        %8617 = vmatpush1.bf16.msra.mxu0 0
        %8618 = vmatprep.subr.bf16.mxu0 0
        %8619 = vmatpush1.bf16.msra.mxu0 0
        %8620 = vmatprep.subr.bf16.mxu0 0
        %8621 = vmatpush1.bf16.msra.mxu0 0
        %8622 = vmatprep.subr.bf16.mxu0 0
        %8623 = vmatpush1.bf16.msra.mxu0 0
        %8624 = vmatprep.subr.bf16.mxu0 0
        %8625 = vmatpush1.bf16.msra.mxu0 0
        %8626 = vmatprep.subr.bf16.mxu0 0
        %8627 = vmatpush1.bf16.msra.mxu0 0
        %8628 = vmatprep.subr.bf16.mxu0 0
        %8629 = vmatpush1.bf16.msra.mxu0 0
        %8630 = vmatprep.subr.bf16.mxu0 0
        %8631 = vmatpush1.bf16.msra.mxu0 0
        %8632 = vmatprep.subr.bf16.mxu0 0
        %8633 = vmatpush1.bf16.msra.mxu0 0
        %8634 = vmatprep.subr.bf16.mxu0 0
        %8635 = vmatpush1.bf16.msra.mxu0 0
        %8636 = vmatprep.subr.bf16.mxu0 0
        %8637 = vmatpush1.bf16.msra.mxu0 0
        %8638 = vmatprep.mubr.bf16.mxu0 0
        %8639 = vmatmul.mubr.bf16.gmra.mrb[0].mxu0 %v7989
        %v8640 = vpop.f32.mrb[0].mxu0
        %v8641 = vadd.f32 %v7983, %v8640
        %v8642 = vpop.f32.mrb[0].mxu0
        %v8643 = vadd.f32 %v7983, %v8642
        %v8644 = vpop.f32.mrb[0].mxu0
        %v8645 = vpop.f32.mrb[0].mxu0
        %8646 = vdwg.mxu0
        %v8647 = vxor.u32 %v8026, 2147483648
        %v8648 = vxor.u32 %v8028, 2147483648
        %v8649 = vxor.u32 %v8067, 2147483648
        %v8650 = vxor.u32 %v8069, 2147483648
        %v8651 = vxor.u32 %v8108, 2147483648
        %v8652 = vxor.u32 %v8110, 2147483648
        %v8653 = vxor.u32 %v8149, 2147483648
        %v8654 = vxor.u32 %v8151, 2147483648
        %v8655 = vxor.u32 %v8190, 2147483648
        %v8656 = vxor.u32 %v8192, 2147483648
        %v8657 = vxor.u32 %v8231, 2147483648
        %v8658 = vxor.u32 %v8233, 2147483648
        %v8659 = vxor.u32 %v8272, 2147483648
        %v8660 = vxor.u32 %v8274, 2147483648
        %v8661 = vxor.u32 %v8313, 2147483648
        %v8662 = vxor.u32 %v8315, 2147483648
        %v8663 = vxor.u32 %v8354, 2147483648
        %v8664 = vxor.u32 %v8356, 2147483648
        %v8665 = vxor.u32 %v8395, 2147483648
        %v8666 = vxor.u32 %v8397, 2147483648
        %v8667 = vxor.u32 %v8436, 2147483648
        %v8668 = vxor.u32 %v8438, 2147483648
        %v8669 = vxor.u32 %v8477, 2147483648
        %v8670 = vxor.u32 %v8479, 2147483648
        %v8671 = vxor.u32 %v8518, 2147483648
        %v8672 = vxor.u32 %v8520, 2147483648
        %v8673 = vxor.u32 %v8559, 2147483648
        %v8674 = vxor.u32 %v8561, 2147483648
        %v8675 = vxor.u32 %v8600, 2147483648
        %v8676 = vxor.u32 %v8602, 2147483648
        %v8677 = vxor.u32 %v8641, 2147483648
        %v8678 = vxor.u32 %v8643, 2147483648
        %v8679 = vmul.f32 %v8647, 1.442695
        %v8680 = vpow.pop %v8679
        %v8681 = vmul.f32 %v8648, 1.442695
        %v8682 = vpow.pop %v8681
        %v8683 = vmul.f32 %v8649, 1.442695
        %v8684 = vpow.pop %v8683
        %v8685 = vmul.f32 %v8650, 1.442695
        %v8686 = vpow.pop %v8685
        %v8687 = vmul.f32 %v8651, 1.442695
        %v8688 = vpow.pop %v8687
        %v8689 = vmul.f32 %v8652, 1.442695
        %v8690 = vpow.pop %v8689
        %v8691 = vmul.f32 %v8653, 1.442695
        %v8692 = vpow.pop %v8691
        %v8693 = vmul.f32 %v8654, 1.442695
        %v8694 = vpow.pop %v8693
        %v8695 = vmul.f32 %v8655, 1.442695
        %v8696 = vpow.pop %v8695
        %v8697 = vmul.f32 %v8656, 1.442695
        %v8698 = vpow.pop %v8697
        %v8699 = vmul.f32 %v8657, 1.442695
        %v8700 = vpow.pop %v8699
        %v8701 = vmul.f32 %v8658, 1.442695
        %v8702 = vpow.pop %v8701
        %v8703 = vmul.f32 %v8659, 1.442695
        %v8704 = vpow.pop %v8703
        %v8705 = vmul.f32 %v8660, 1.442695
        %v8706 = vpow.pop %v8705
        %v8707 = vmul.f32 %v8661, 1.442695
        %v8708 = vpow.pop %v8707
        %v8709 = vmul.f32 %v8662, 1.442695
        %v8710 = vpow.pop %v8709
        %v8711 = vmul.f32 %v8663, 1.442695
        %v8712 = vpow.pop %v8711
        %v8713 = vmul.f32 %v8664, 1.442695
        %v8714 = vpow.pop %v8713
        %v8715 = vmul.f32 %v8665, 1.442695
        %v8716 = vpow.pop %v8715
        %v8717 = vmul.f32 %v8666, 1.442695
        %v8718 = vpow.pop %v8717
        %v8719 = vmul.f32 %v8667, 1.442695
        %v8720 = vpow.pop %v8719
        %v8721 = vmul.f32 %v8668, 1.442695
        %v8722 = vpow.pop %v8721
        %v8723 = vmul.f32 %v8669, 1.442695
        %v8724 = vpow.pop %v8723
        %v8725 = vmul.f32 %v8670, 1.442695
        %v8726 = vpow.pop %v8725
        %v8727 = vmul.f32 %v8671, 1.442695
        %v8728 = vpow.pop %v8727
        %v8729 = vmul.f32 %v8672, 1.442695
        %v8730 = vpow.pop %v8729
        %v8731 = vmul.f32 %v8673, 1.442695
        %v8732 = vpow.pop %v8731
        %v8733 = vmul.f32 %v8674, 1.442695
        %v8734 = vpow.pop %v8733
        %v8735 = vmul.f32 %v8675, 1.442695
        %v8736 = vpow.pop %v8735
        %v8737 = vmul.f32 %v8676, 1.442695
        %v8738 = vpow.pop %v8737
        %v8739 = vmul.f32 %v8677, 1.442695
        %v8740 = vpow.pop %v8739
        %v8741 = vmul.f32 %v8678, 1.442695
        %v8742 = vpow.pop %v8741
        %v8743 = vadd.f32 %v8680, 1.0
        %v8744 = vadd.f32 %v8682, 1.0
        %v8745 = vadd.f32 %v8684, 1.0
        %v8746 = vadd.f32 %v8686, 1.0
        %v8747 = vadd.f32 %v8688, 1.0
        %v8748 = vadd.f32 %v8690, 1.0
        %v8749 = vadd.f32 %v8692, 1.0
        %v8750 = vadd.f32 %v8694, 1.0
        %v8751 = vadd.f32 %v8696, 1.0
        %v8752 = vadd.f32 %v8698, 1.0
        %v8753 = vadd.f32 %v8700, 1.0
        %v8754 = vadd.f32 %v8702, 1.0
        %v8755 = vadd.f32 %v8704, 1.0
        %v8756 = vadd.f32 %v8706, 1.0
        %v8757 = vadd.f32 %v8708, 1.0
        %v8758 = vadd.f32 %v8710, 1.0
        %v8759 = vadd.f32 %v8712, 1.0
        %v8760 = vadd.f32 %v8714, 1.0
        %v8761 = vadd.f32 %v8716, 1.0
        %v8762 = vadd.f32 %v8718, 1.0
        %v8763 = vadd.f32 %v8720, 1.0
        %v8764 = vadd.f32 %v8722, 1.0
        %v8765 = vadd.f32 %v8724, 1.0
        %v8766 = vadd.f32 %v8726, 1.0
        %v8767 = vadd.f32 %v8728, 1.0
        %v8768 = vadd.f32 %v8730, 1.0
        %v8769 = vadd.f32 %v8732, 1.0
        %v8770 = vadd.f32 %v8734, 1.0
        %v8771 = vadd.f32 %v8736, 1.0
        %v8772 = vadd.f32 %v8738, 1.0
        %v8773 = vadd.f32 %v8740, 1.0
        %v8774 = vadd.f32 %v8742, 1.0
        %v8775 = vrcp.pop %v8743
        %v8776 = vmul.f32 1.0, %v8775
        %v8777 = vrcp.pop %v8744
        %v8778 = vmul.f32 1.0, %v8777
        %v8779 = vrcp.pop %v8745
        %v8780 = vmul.f32 1.0, %v8779
        %v8781 = vrcp.pop %v8746
        %v8782 = vmul.f32 1.0, %v8781
        %v8783 = vrcp.pop %v8747
        %v8784 = vmul.f32 1.0, %v8783
        %v8785 = vrcp.pop %v8748
        %v8786 = vmul.f32 1.0, %v8785
        %v8787 = vrcp.pop %v8749
        %v8788 = vmul.f32 1.0, %v8787
        %v8789 = vrcp.pop %v8750
        %v8790 = vmul.f32 1.0, %v8789
        %v8791 = vrcp.pop %v8751
        %v8792 = vmul.f32 1.0, %v8791
        %v8793 = vrcp.pop %v8752
        %v8794 = vmul.f32 1.0, %v8793
        %v8795 = vrcp.pop %v8753
        %v8796 = vmul.f32 1.0, %v8795
        %v8797 = vrcp.pop %v8754
        %v8798 = vmul.f32 1.0, %v8797
        %v8799 = vrcp.pop %v8755
        %v8800 = vmul.f32 1.0, %v8799
        %v8801 = vrcp.pop %v8756
        %v8802 = vmul.f32 1.0, %v8801
        %v8803 = vrcp.pop %v8757
        %v8804 = vmul.f32 1.0, %v8803
        %v8805 = vrcp.pop %v8758
        %v8806 = vmul.f32 1.0, %v8805
        %v8807 = vrcp.pop %v8759
        %v8808 = vmul.f32 1.0, %v8807
        %v8809 = vrcp.pop %v8760
        %v8810 = vmul.f32 1.0, %v8809
        %v8811 = vrcp.pop %v8761
        %v8812 = vmul.f32 1.0, %v8811
        %v8813 = vrcp.pop %v8762
        %v8814 = vmul.f32 1.0, %v8813
        %v8815 = vrcp.pop %v8763
        %v8816 = vmul.f32 1.0, %v8815
        %v8817 = vrcp.pop %v8764
        %v8818 = vmul.f32 1.0, %v8817
        %v8819 = vrcp.pop %v8765
        %v8820 = vmul.f32 1.0, %v8819
        %v8821 = vrcp.pop %v8766
        %v8822 = vmul.f32 1.0, %v8821
        %v8823 = vrcp.pop %v8767
        %v8824 = vmul.f32 1.0, %v8823
        %v8825 = vrcp.pop %v8768
        %v8826 = vmul.f32 1.0, %v8825
        %v8827 = vrcp.pop %v8769
        %v8828 = vmul.f32 1.0, %v8827
        %v8829 = vrcp.pop %v8770
        %v8830 = vmul.f32 1.0, %v8829
        %v8831 = vrcp.pop %v8771
        %v8832 = vmul.f32 1.0, %v8831
        %v8833 = vrcp.pop %v8772
        %v8834 = vmul.f32 1.0, %v8833
        %v8835 = vrcp.pop %v8773
        %v8836 = vmul.f32 1.0, %v8835
        %v8837 = vrcp.pop %v8774
        %v8838 = vmul.f32 1.0, %v8837
        %v8839 = vmul.f32 %v8776, %v4266
        %v8840 = vmul.f32 %v8778, %v4267
        %v8841 = vmul.f32 %v8780, %v4268
        %v8842 = vmul.f32 %v8782, %v4269
        %v8843 = vmul.f32 %v8784, %v4270
        %v8844 = vmul.f32 %v8786, %v4271
        %v8845 = vmul.f32 %v8788, %v4272
        %v8846 = vmul.f32 %v8790, %v4273
        %v8847 = vmul.f32 %v8792, %v4274
        %v8848 = vmul.f32 %v8794, %v4275
        %v8849 = vmul.f32 %v8796, %v4276
        %v8850 = vmul.f32 %v8798, %v4277
        %v8851 = vmul.f32 %v8800, %v4278
        %v8852 = vmul.f32 %v8802, %v4279
        %v8853 = vmul.f32 %v8804, %v4280
        %v8854 = vmul.f32 %v8806, %v4281
        %v8855 = vmul.f32 %v8808, %v4282
        %v8856 = vmul.f32 %v8810, %v4283
        %v8857 = vmul.f32 %v8812, %v4284
        %v8858 = vmul.f32 %v8814, %v4285
        %v8859 = vmul.f32 %v8816, %v4286
        %v8860 = vmul.f32 %v8818, %v4287
        %v8861 = vmul.f32 %v8820, %v4288
        %v8862 = vmul.f32 %v8822, %v4289
        %v8863 = vmul.f32 %v8824, %v4290
        %v8864 = vmul.f32 %v8826, %v4291
        %v8865 = vmul.f32 %v8828, %v4292
        %v8866 = vmul.f32 %v8830, %v4293
        %v8867 = vmul.f32 %v8832, %v4294
        %v8868 = vmul.f32 %v8834, %v4295
        %v8869 = vmul.f32 %v8836, %v4296
        %v8870 = vmul.f32 %v8838, %v4297
        %v8871 = vsel %vm2752, 1, 0
        %v8872 = vsel %vm2753, 1, 0
        %v8873 = vsel %vm2754, 1, 0
        %v8874 = vsel %vm2755, 1, 0
        %v8875 = vsel %vm2756, 1, 0
        %v8876 = vsel %vm2757, 1, 0
        %v8877 = vsel %vm2758, 1, 0
        %v8878 = vsel %vm2759, 1, 0
        %v8879 = vsel %vm2760, 1, 0
        %v8880 = vsel %vm2761, 1, 0
        %v8881 = vsel %vm2762, 1, 0
        %v8882 = vsel %vm2763, 1, 0
        %v8883 = vsel %vm2764, 1, 0
        %v8884 = vsel %vm2765, 1, 0
        %v8885 = vsel %vm2766, 1, 0
        %v8886 = vsel %vm2767, 1, 0
        %v8887 = vsel %vm2768, 1, 0
        %v8888 = vsel %vm2769, 1, 0
        %v8889 = vsel %vm2770, 1, 0
        %v8890 = vsel %vm2771, 1, 0
        %v8891 = vsel %vm2772, 1, 0
        %v8892 = vsel %vm2773, 1, 0
        %v8893 = vsel %vm2774, 1, 0
        %v8894 = vsel %vm2775, 1, 0
        %v8895 = vsel %vm2776, 1, 0
        %v8896 = vsel %vm2777, 1, 0
        %v8897 = vsel %vm2778, 1, 0
        %v8898 = vsel %vm2779, 1, 0
        %v8899 = vsel %vm2780, 1, 0
        %v8900 = vsel %vm2781, 1, 0
        %v8901 = vsel %vm2782, 1, 0
        %v8902 = vsel %vm2783, 1, 0
        %v8903 = vlaneseq
        %v8904 = vshrl.u32 %v8903, 7
        %v8905 = vsub.s32 0, %v8904
        %v8906 = vrot.slane %v8871, %v8905
        %v8907 = vlaneseq
        %v8908 = vshrl.u32 %v8907, 7
        %v8909 = vsub.s32 0, %v8908
        %v8910 = vrot.slane %v8872, %v8909
        %v8911 = vlaneseq
        %v8912 = vshrl.u32 %v8911, 7
        %v8913 = vsub.s32 0, %v8912
        %v8914 = vrot.slane %v8873, %v8913
        %v8915 = vlaneseq
        %v8916 = vshrl.u32 %v8915, 7
        %v8917 = vsub.s32 0, %v8916
        %v8918 = vrot.slane %v8874, %v8917
        %v8919 = vlaneseq
        %v8920 = vshrl.u32 %v8919, 7
        %v8921 = vsub.s32 0, %v8920
        %v8922 = vrot.slane %v8875, %v8921
        %v8923 = vlaneseq
        %v8924 = vshrl.u32 %v8923, 7
        %v8925 = vsub.s32 0, %v8924
        %v8926 = vrot.slane %v8876, %v8925
        %v8927 = vlaneseq
        %v8928 = vshrl.u32 %v8927, 7
        %v8929 = vsub.s32 0, %v8928
        %v8930 = vrot.slane %v8877, %v8929
        %v8931 = vlaneseq
        %v8932 = vshrl.u32 %v8931, 7
        %v8933 = vsub.s32 0, %v8932
        %v8934 = vrot.slane %v8878, %v8933
        %v8935 = vlaneseq
        %v8936 = vshrl.u32 %v8935, 7
        %v8937 = vsub.s32 0, %v8936
        %v8938 = vrot.slane %v8879, %v8937
        %v8939 = vlaneseq
        %v8940 = vshrl.u32 %v8939, 7
        %v8941 = vsub.s32 0, %v8940
        %v8942 = vrot.slane %v8880, %v8941
        %v8943 = vlaneseq
        %v8944 = vshrl.u32 %v8943, 7
        %v8945 = vsub.s32 0, %v8944
        %v8946 = vrot.slane %v8881, %v8945
        %v8947 = vlaneseq
        %v8948 = vshrl.u32 %v8947, 7
        %v8949 = vsub.s32 0, %v8948
        %v8950 = vrot.slane %v8882, %v8949
        %v8951 = vlaneseq
        %v8952 = vshrl.u32 %v8951, 7
        %v8953 = vsub.s32 0, %v8952
        %v8954 = vrot.slane %v8883, %v8953
        %v8955 = vlaneseq
        %v8956 = vshrl.u32 %v8955, 7
        %v8957 = vsub.s32 0, %v8956
        %v8958 = vrot.slane %v8884, %v8957
        %v8959 = vlaneseq
        %v8960 = vshrl.u32 %v8959, 7
        %v8961 = vsub.s32 0, %v8960
        %v8962 = vrot.slane %v8885, %v8961
        %v8963 = vlaneseq
        %v8964 = vshrl.u32 %v8963, 7
        %v8965 = vsub.s32 0, %v8964
        %v8966 = vrot.slane %v8886, %v8965
        %v8967 = vlaneseq
        %v8968 = vshrl.u32 %v8967, 7
        %v8969 = vsub.s32 0, %v8968
        %v8970 = vrot.slane %v8887, %v8969
        %v8971 = vlaneseq
        %v8972 = vshrl.u32 %v8971, 7
        %v8973 = vsub.s32 0, %v8972
        %v8974 = vrot.slane %v8888, %v8973
        %v8975 = vlaneseq
        %v8976 = vshrl.u32 %v8975, 7
        %v8977 = vsub.s32 0, %v8976
        %v8978 = vrot.slane %v8889, %v8977
        %v8979 = vlaneseq
        %v8980 = vshrl.u32 %v8979, 7
        %v8981 = vsub.s32 0, %v8980
        %v8982 = vrot.slane %v8890, %v8981
        %v8983 = vlaneseq
        %v8984 = vshrl.u32 %v8983, 7
        %v8985 = vsub.s32 0, %v8984
        %v8986 = vrot.slane %v8891, %v8985
        %v8987 = vlaneseq
        %v8988 = vshrl.u32 %v8987, 7
        %v8989 = vsub.s32 0, %v8988
        %v8990 = vrot.slane %v8892, %v8989
        %v8991 = vlaneseq
        %v8992 = vshrl.u32 %v8991, 7
        %v8993 = vsub.s32 0, %v8992
        %v8994 = vrot.slane %v8893, %v8993
        %v8995 = vlaneseq
        %v8996 = vshrl.u32 %v8995, 7
        %v8997 = vsub.s32 0, %v8996
        %v8998 = vrot.slane %v8894, %v8997
        %v8999 = vlaneseq
        %v9000 = vshrl.u32 %v8999, 7
        %v9001 = vsub.s32 0, %v9000
        %v9002 = vrot.slane %v8895, %v9001
        %v9003 = vlaneseq
        %v9004 = vshrl.u32 %v9003, 7
        %v9005 = vsub.s32 0, %v9004
        %v9006 = vrot.slane %v8896, %v9005
        %v9007 = vlaneseq
        %v9008 = vshrl.u32 %v9007, 7
        %v9009 = vsub.s32 0, %v9008
        %v9010 = vrot.slane %v8897, %v9009
        %v9011 = vlaneseq
        %v9012 = vshrl.u32 %v9011, 7
        %v9013 = vsub.s32 0, %v9012
        %v9014 = vrot.slane %v8898, %v9013
        %v9015 = vlaneseq
        %v9016 = vshrl.u32 %v9015, 7
        %v9017 = vsub.s32 0, %v9016
        %v9018 = vrot.slane %v8899, %v9017
        %v9019 = vlaneseq
        %v9020 = vshrl.u32 %v9019, 7
        %v9021 = vsub.s32 0, %v9020
        %v9022 = vrot.slane %v8900, %v9021
        %v9023 = vlaneseq
        %v9024 = vshrl.u32 %v9023, 7
        %v9025 = vsub.s32 0, %v9024
        %v9026 = vrot.slane %v8901, %v9025
        %v9027 = vlaneseq
        %v9028 = vshrl.u32 %v9027, 7
        %v9029 = vsub.s32 0, %v9028
        %v9030 = vrot.slane %v8902, %v9029
        %vm9031 = vcmp.eq.s32.totalorder %v8906, 1
        %vm9032 = vcmp.eq.s32.totalorder %v8910, 1
        %vm9033 = vcmp.eq.s32.totalorder %v8914, 1
        %vm9034 = vcmp.eq.s32.totalorder %v8918, 1
        %vm9035 = vcmp.eq.s32.totalorder %v8922, 1
        %vm9036 = vcmp.eq.s32.totalorder %v8926, 1
        %vm9037 = vcmp.eq.s32.totalorder %v8930, 1
        %vm9038 = vcmp.eq.s32.totalorder %v8934, 1
        %vm9039 = vcmp.eq.s32.totalorder %v8938, 1
        %vm9040 = vcmp.eq.s32.totalorder %v8942, 1
        %vm9041 = vcmp.eq.s32.totalorder %v8946, 1
        %vm9042 = vcmp.eq.s32.totalorder %v8950, 1
        %vm9043 = vcmp.eq.s32.totalorder %v8954, 1
        %vm9044 = vcmp.eq.s32.totalorder %v8958, 1
        %vm9045 = vcmp.eq.s32.totalorder %v8962, 1
        %vm9046 = vcmp.eq.s32.totalorder %v8966, 1
        %vm9047 = vcmp.eq.s32.totalorder %v8970, 1
        %vm9048 = vcmp.eq.s32.totalorder %v8974, 1
        %vm9049 = vcmp.eq.s32.totalorder %v8978, 1
        %vm9050 = vcmp.eq.s32.totalorder %v8982, 1
        %vm9051 = vcmp.eq.s32.totalorder %v8986, 1
        %vm9052 = vcmp.eq.s32.totalorder %v8990, 1
        %vm9053 = vcmp.eq.s32.totalorder %v8994, 1
        %vm9054 = vcmp.eq.s32.totalorder %v8998, 1
        %vm9055 = vcmp.eq.s32.totalorder %v9002, 1
        %vm9056 = vcmp.eq.s32.totalorder %v9006, 1
        %vm9057 = vcmp.eq.s32.totalorder %v9010, 1
        %vm9058 = vcmp.eq.s32.totalorder %v9014, 1
        %vm9059 = vcmp.eq.s32.totalorder %v9018, 1
        %vm9060 = vcmp.eq.s32.totalorder %v9022, 1
        %vm9061 = vcmp.eq.s32.totalorder %v9026, 1
        %vm9062 = vcmp.eq.s32.totalorder %v9030, 1
        %v9063 = vsel %vm9031, %v8839, 0.0
        %v9064 = vsel %vm9032, %v8840, 0.0
        %v9065 = vsel %vm9033, %v8841, 0.0
        %v9066 = vsel %vm9034, %v8842, 0.0
        %v9067 = vsel %vm9035, %v8843, 0.0
        %v9068 = vsel %vm9036, %v8844, 0.0
        %v9069 = vsel %vm9037, %v8845, 0.0
        %v9070 = vsel %vm9038, %v8846, 0.0
        %v9071 = vsel %vm9039, %v8847, 0.0
        %v9072 = vsel %vm9040, %v8848, 0.0
        %v9073 = vsel %vm9041, %v8849, 0.0
        %v9074 = vsel %vm9042, %v8850, 0.0
        %v9075 = vsel %vm9043, %v8851, 0.0
        %v9076 = vsel %vm9044, %v8852, 0.0
        %v9077 = vsel %vm9045, %v8853, 0.0
        %v9078 = vsel %vm9046, %v8854, 0.0
        %v9079 = vsel %vm9047, %v8855, 0.0
        %v9080 = vsel %vm9048, %v8856, 0.0
        %v9081 = vsel %vm9049, %v8857, 0.0
        %v9082 = vsel %vm9050, %v8858, 0.0
        %v9083 = vsel %vm9051, %v8859, 0.0
        %v9084 = vsel %vm9052, %v8860, 0.0
        %v9085 = vsel %vm9053, %v8861, 0.0
        %v9086 = vsel %vm9054, %v8862, 0.0
        %v9087 = vsel %vm9055, %v8863, 0.0
        %v9088 = vsel %vm9056, %v8864, 0.0
        %v9089 = vsel %vm9057, %v8865, 0.0
        %v9090 = vsel %vm9058, %v8866, 0.0
        %v9091 = vsel %vm9059, %v8867, 0.0
        %v9092 = vsel %vm9060, %v8868, 0.0
        %v9093 = vsel %vm9061, %v8869, 0.0
        %v9094 = vsel %vm9062, %v8870, 0.0
        %v9127 = vcombine.low %v9063, %v9064
        %v9128 = vcombine.low %v9065, %v9066
        %v9129 = vcombine.low %v9067, %v9068
        %v9130 = vcombine.low %v9069, %v9070
        %v9131 = vcombine.low %v9071, %v9072
        %v9132 = vcombine.low %v9073, %v9074
        %v9133 = vcombine.low %v9075, %v9076
        %v9134 = vcombine.low %v9077, %v9078
        %v9135 = vcombine.low %v9079, %v9080
        %v9136 = vcombine.low %v9081, %v9082
        %v9137 = vcombine.low %v9083, %v9084
        %v9138 = vcombine.low %v9085, %v9086
        %v9139 = vcombine.low %v9087, %v9088
        %v9140 = vcombine.low %v9089, %v9090
        %v9141 = vcombine.low %v9091, %v9092
        %v9142 = vcombine.low %v9093, %v9094
        %9159 = vst [vmem:[%s221] sm:$0x77] %v9127
        %9160 = vst [vmem:[%s221 + $0x8] sm:$0x77] %v9128
        %9161 = vst [vmem:[%s221 + $0x10] sm:$0x77] %v9129
        %9162 = vst [vmem:[%s221 + $0x18] sm:$0x77] %v9130
        %9163 = vst [vmem:[%s221 + $0x20] sm:$0x77] %v9131
        %9164 = vst [vmem:[%s221 + $0x28] sm:$0x77] %v9132
        %9165 = vst [vmem:[%s221 + $0x30] sm:$0x77] %v9133
        %9166 = vst [vmem:[%s221 + $0x38] sm:$0x77] %v9134
        %9167 = vst [vmem:[%s221 + $0x40] sm:$0x77] %v9135
        %9168 = vst [vmem:[%s221 + $0x48] sm:$0x77] %v9136
        %9169 = vst [vmem:[%s221 + $0x50] sm:$0x77] %v9137
        %9170 = vst [vmem:[%s221 + $0x58] sm:$0x77] %v9138
        %9171 = vst [vmem:[%s221 + $0x60] sm:$0x77] %v9139
        %9172 = vst [vmem:[%s221 + $0x68] sm:$0x77] %v9140
        %9173 = vst [vmem:[%s221 + $0x70] sm:$0x77] %v9141
        %9174 = vst [vmem:[%s221 + $0x78] sm:$0x77] %v9142
        %v9207 = vcombine.low %v2945, %v2947
        %v9208 = vcombine.low %v2949, %v2951
        %v9209 = vcombine.low %v2953, %v2955
        %v9210 = vcombine.low %v2957, %v2959
        %v9212 = vunpack.c.l.s4 1966171168
        %v9213 = vunpack.c.0.s8 %v9212
        %v9214 = vlaneseq
        %v9215 = vshrl.u32 %v9214, 7
        %v9216 = vsub.s32 %v9213, %v9215
        %v9217 = vrot.slane %v9207, %v9216
        %v9219 = vunpack.c.l.s4 1966171168
        %v9220 = vunpack.c.0.s8 %v9219
        %v9221 = vlaneseq
        %v9222 = vshrl.u32 %v9221, 7
        %v9223 = vsub.s32 %v9220, %v9222
        %v9224 = vrot.slane %v9208, %v9223
        %v9226 = vunpack.c.l.s4 1966171168
        %v9227 = vunpack.c.0.s8 %v9226
        %v9228 = vlaneseq
        %v9229 = vshrl.u32 %v9228, 7
        %v9230 = vsub.s32 %v9227, %v9229
        %v9231 = vrot.slane %v9209, %v9230
        %v9233 = vunpack.c.l.s4 1966171168
        %v9234 = vunpack.c.0.s8 %v9233
        %v9235 = vlaneseq
        %v9236 = vshrl.u32 %v9235, 7
        %v9237 = vsub.s32 %v9234, %v9236
        %v9238 = vrot.slane %v9210, %v9237
        %v9239 = vcombine.low %v9217, %v9224
        %v9240 = vcombine.low %v9231, %v9238
        %v9242 = vunpack.c.l.s4 1966171168
        %v9243 = vunpack.c.0.s8 %v9242
        %v9244 = vlaneseq
        %v9245 = vshrl.u32 %v9244, 7
        %v9246 = vsub.s32 %v9243, %v9245
        %v9247 = vrot.slane %v9239, %v9246
        %v9249 = vunpack.c.l.s4 1966171168
        %v9250 = vunpack.c.0.s8 %v9249
        %v9251 = vlaneseq
        %v9252 = vshrl.u32 %v9251, 7
        %v9253 = vsub.s32 %v9250, %v9252
        %v9254 = vrot.slane %v9240, %v9253
        %v9255 = vcombine.low %v9247, %v9254
        %v9256 = vcombine.low %v2961, %v2963
        %v9257 = vcombine.low %v2965, %v2967
        %v9258 = vcombine.low %v2969, %v2971
        %v9259 = vcombine.low %v2973, %v2975
        %v9261 = vunpack.c.l.s4 1966171168
        %v9262 = vunpack.c.0.s8 %v9261
        %v9263 = vlaneseq
        %v9264 = vshrl.u32 %v9263, 7
        %v9265 = vsub.s32 %v9262, %v9264
        %v9266 = vrot.slane %v9256, %v9265
        %v9268 = vunpack.c.l.s4 1966171168
        %v9269 = vunpack.c.0.s8 %v9268
        %v9270 = vlaneseq
        %v9271 = vshrl.u32 %v9270, 7
        %v9272 = vsub.s32 %v9269, %v9271
        %v9273 = vrot.slane %v9257, %v9272
        %v9275 = vunpack.c.l.s4 1966171168
        %v9276 = vunpack.c.0.s8 %v9275
        %v9277 = vlaneseq
        %v9278 = vshrl.u32 %v9277, 7
        %v9279 = vsub.s32 %v9276, %v9278
        %v9280 = vrot.slane %v9258, %v9279
        %v9282 = vunpack.c.l.s4 1966171168
        %v9283 = vunpack.c.0.s8 %v9282
        %v9284 = vlaneseq
        %v9285 = vshrl.u32 %v9284, 7
        %v9286 = vsub.s32 %v9283, %v9285
        %v9287 = vrot.slane %v9259, %v9286
        %v9288 = vcombine.low %v9266, %v9273
        %v9289 = vcombine.low %v9280, %v9287
        %v9291 = vunpack.c.l.s4 1966171168
        %v9292 = vunpack.c.0.s8 %v9291
        %v9293 = vlaneseq
        %v9294 = vshrl.u32 %v9293, 7
        %v9295 = vsub.s32 %v9292, %v9294
        %v9296 = vrot.slane %v9288, %v9295
        %v9298 = vunpack.c.l.s4 1966171168
        %v9299 = vunpack.c.0.s8 %v9298
        %v9300 = vlaneseq
        %v9301 = vshrl.u32 %v9300, 7
        %v9302 = vsub.s32 %v9299, %v9301
        %v9303 = vrot.slane %v9289, %v9302
        %v9304 = vcombine.low %v9296, %v9303
        %v9305 = vcombine.low %v2977, %v2979
        %v9306 = vcombine.low %v2981, %v2983
        %v9307 = vcombine.low %v2985, %v2987
        %v9308 = vcombine.low %v2989, %v2991
        %v9310 = vunpack.c.l.s4 1966171168
        %v9311 = vunpack.c.0.s8 %v9310
        %v9312 = vlaneseq
        %v9313 = vshrl.u32 %v9312, 7
        %v9314 = vsub.s32 %v9311, %v9313
        %v9315 = vrot.slane %v9305, %v9314
        %v9317 = vunpack.c.l.s4 1966171168
        %v9318 = vunpack.c.0.s8 %v9317
        %v9319 = vlaneseq
        %v9320 = vshrl.u32 %v9319, 7
        %v9321 = vsub.s32 %v9318, %v9320
        %v9322 = vrot.slane %v9306, %v9321
        %v9324 = vunpack.c.l.s4 1966171168
        %v9325 = vunpack.c.0.s8 %v9324
        %v9326 = vlaneseq
        %v9327 = vshrl.u32 %v9326, 7
        %v9328 = vsub.s32 %v9325, %v9327
        %v9329 = vrot.slane %v9307, %v9328
        %v9331 = vunpack.c.l.s4 1966171168
        %v9332 = vunpack.c.0.s8 %v9331
        %v9333 = vlaneseq
        %v9334 = vshrl.u32 %v9333, 7
        %v9335 = vsub.s32 %v9332, %v9334
        %v9336 = vrot.slane %v9308, %v9335
        %v9337 = vcombine.low %v9315, %v9322
        %v9338 = vcombine.low %v9329, %v9336
        %v9340 = vunpack.c.l.s4 1966171168
        %v9341 = vunpack.c.0.s8 %v9340
        %v9342 = vlaneseq
        %v9343 = vshrl.u32 %v9342, 7
        %v9344 = vsub.s32 %v9341, %v9343
        %v9345 = vrot.slane %v9337, %v9344
        %v9347 = vunpack.c.l.s4 1966171168
        %v9348 = vunpack.c.0.s8 %v9347
        %v9349 = vlaneseq
        %v9350 = vshrl.u32 %v9349, 7
        %v9351 = vsub.s32 %v9348, %v9350
        %v9352 = vrot.slane %v9338, %v9351
        %v9353 = vcombine.low %v9345, %v9352
        %v9354 = vcombine.low %v2993, %v2995
        %v9355 = vcombine.low %v2997, %v2999
        %v9356 = vcombine.low %v3001, %v3003
        %v9357 = vcombine.low %v3005, %v3007
        %v9359 = vunpack.c.l.s4 1966171168
        %v9360 = vunpack.c.0.s8 %v9359
        %v9361 = vlaneseq
        %v9362 = vshrl.u32 %v9361, 7
        %v9363 = vsub.s32 %v9360, %v9362
        %v9364 = vrot.slane %v9354, %v9363
        %v9366 = vunpack.c.l.s4 1966171168
        %v9367 = vunpack.c.0.s8 %v9366
        %v9368 = vlaneseq
        %v9369 = vshrl.u32 %v9368, 7
        %v9370 = vsub.s32 %v9367, %v9369
        %v9371 = vrot.slane %v9355, %v9370
        %v9373 = vunpack.c.l.s4 1966171168
        %v9374 = vunpack.c.0.s8 %v9373
        %v9375 = vlaneseq
        %v9376 = vshrl.u32 %v9375, 7
        %v9377 = vsub.s32 %v9374, %v9376
        %v9378 = vrot.slane %v9356, %v9377
        %v9380 = vunpack.c.l.s4 1966171168
        %v9381 = vunpack.c.0.s8 %v9380
        %v9382 = vlaneseq
        %v9383 = vshrl.u32 %v9382, 7
        %v9384 = vsub.s32 %v9381, %v9383
        %v9385 = vrot.slane %v9357, %v9384
        %v9386 = vcombine.low %v9364, %v9371
        %v9387 = vcombine.low %v9378, %v9385
        %v9389 = vunpack.c.l.s4 1966171168
        %v9390 = vunpack.c.0.s8 %v9389
        %v9391 = vlaneseq
        %v9392 = vshrl.u32 %v9391, 7
        %v9393 = vsub.s32 %v9390, %v9392
        %v9394 = vrot.slane %v9386, %v9393
        %v9396 = vunpack.c.l.s4 1966171168
        %v9397 = vunpack.c.0.s8 %v9396
        %v9398 = vlaneseq
        %v9399 = vshrl.u32 %v9398, 7
        %v9400 = vsub.s32 %v9397, %v9399
        %v9401 = vrot.slane %v9387, %v9400
        %v9402 = vcombine.low %v9394, %v9401
        %s9407 = scalar_lea.vmem %s221, 3 [#allocation2]
        %9408 = vst [vmem:[%s9407] ss:$4 sm:$0xff] %v9255
        %s9409 = scalar_lea.vmem %s221, 35 [#allocation2]
        %9410 = vst [vmem:[%s9409] ss:$4 sm:$0xff] %v9304
        %s9411 = scalar_lea.vmem %s221, 67 [#allocation2]
        %9412 = vst [vmem:[%s9411] ss:$4 sm:$0xff] %v9353
        %s9413 = scalar_lea.vmem %s221, 99 [#allocation2]
        %9414 = vst [vmem:[%s9413] ss:$4 sm:$0xff] %v9402
        %s9415 = sand.u32 %s125, 1
        %s9416 = scalar_lea.sflag [#allocation3], %s9415
        %s9417 = sand.u32 %s125, 1
        %s9418 = smul.addr %s9417, 128
        %s9419 = scalar_lea.vmem [#allocation2], %s9418
        // Predicated region
        $region37: #{direct_render.1} parent=35 // pred_check
          %p9420 = pneg %p135
        $region38: #{direct_render.1} parent=35 // pred_check_branch
          %9422 = sbr.rel (%p9420) target = $region40
        $region39: #{direct_render.1} parent=35 // pred_region
          %s9423 = smul.u32 32, %s18
          %s9425 = ssub.s32 2048, 2048
          %9426 = vsyncadd %s9416, %s9425
          %s9427 = smul.addr %s9423, 64
          %s9428 = scalar_lea.hbm %s4, %s9427
          %s9430 = sshll.u32 %s9419, 4
          %s9431 = int_to_ptr.vmem [resolvable:$true] %s9430
          %9433 = dma.vmem_to_hbm [thread:$0]  %s9431, 2048, %s9428, %s9416
        $region40: #{direct_render.1} parent=35 // pred_fallthru
          _
      $region36: #{direct_render.1} parent=5 // pred_fallthru
        _
      %p9434 = scmp.le.s32.totalorder 2, %s13
      // Predicated region
      $region41: #{direct_render.1} parent=5 // pred_check
        %p9435 = pneg %p9434
      $region42: #{direct_render.1} parent=5 // pred_check_branch
        %9437 = sbr.rel (%p9435) target = $region44
      $region43: #{direct_render.1} parent=5 // pred_region
        %s9438 = ssub.s32 %s13, 2
        // Predicated region
        $region45: #{direct_render.1} parent=43 // pred_check
          %p9439 = pneg %p141
        $region46: #{direct_render.1} parent=43 // pred_check_branch
          %9441 = sbr.rel (%p9439) target = $region48
        $region47: #{direct_render.1} parent=43 // pred_region
          %s9442 = sand.u32 %s126, 1
          %s9443 = scalar_lea.sflag [#allocation3], %s9442
          %s9444 = sand.u32 %s126, 1
          %s9445 = smul.addr %s9444, 128
          %s9446 = scalar_lea.vmem [#allocation2], %s9445
          %9447 = dma.done %s9443, 2048
        $region48: #{direct_render.1} parent=43 // pred_fallthru
          _
      $region44: #{direct_render.1} parent=5 // pred_fallthru
        _
    $region6: #{direct_render.1} parent=1 // loop_footer
      %s17 = sadd.s32 1, %s13
    $region7: #{direct_render.1} parent=1 // loop_footer_branch
      %12 = sbr.rel target = $region3
    $region8: #{direct_render.1} parent=1 // loop_exit
      _
    %9448 = vsyncpa [#allocation3], 1
    %s9449 = scalar_lea.sflag [#allocation3], 1
    %9450 = vsyncpa %s9449, 1

</llo_original>
